<compile_context>
chip_gen: v5e
topology: v5e:2x2
jax: 0.10.0
libtpu: 0.0.40
codegen_flags: <defaults>
</compile_context>

<pallas_src>
import functools

import jax
import jax.numpy as jnp
from jax.experimental import pallas as pl
from jax.experimental.pallas import tpu as pltpu

# Fixed SFCN hyper-parameters (from the PyTorch module).
_K = 7
_C_MID = 18
_INPUT_C = (3, 18, 18)
_PADDINGS = (3, 3, 6)
_DILATIONS = (1, 1, 2)


def _lower_weights(w, width, pad, dil):
    """Lower HWIO conv weights to per-kh Toeplitz GEMM operands (unpadded width).

    Returns M of shape (K, width*Cin, width*Cout) with
      M[kh, w_in*Cin + cin, w_out*Cout + cout] = w[kh, kw, cin, cout]
        where kw = (w_in - w_out + pad) / dil if that is an integer in [0, K)
        (0 otherwise),
    so that for each kh (a_pad is the H-padded, width-UNpadded activation slab):
      out[h, w_out*Cout + cout] += sum_{w_in,cin} a_pad[h + kh*dil, w_in*Cin+cin] * M[kh].
    Width-padding taps have no matching (w_in, w_out) pair and simply vanish.
    """
    K, _, cin, cout = w.shape
    diff = (jnp.arange(width)[:, None] - jnp.arange(width)[None, :]) + pad   # (w_in, w_out)
    valid = (diff >= 0) & (diff < K * dil) & (diff % dil == 0)
    kw = jnp.where(valid, diff // dil, 0)                                    # (w_in, w_out)
    g = w[:, kw, :, :]                                                       # (K, w_in, w_out, Cin, Cout)
    g = jnp.where(valid[None, :, :, None, None], g, 0.0)
    g = jnp.transpose(g, (0, 1, 3, 2, 4))                                    # (K, w_in, Cin, w_out, Cout)
    return g.reshape(K, width * cin, width * cout)


def prepare_inference_params(params, *, width):
    """One-time weight lowering / bias tiling (done once, outside the hot path)."""
    lowered, biases = [], []
    for (w, b), p, d in zip(params, _PADDINGS, _DILATIONS):
        lowered.append(_lower_weights(w, width, p, d).astype(jnp.bfloat16))
        biases.append(jnp.tile(b, width).reshape(1, width * b.shape[0])
                      .astype(jnp.float32))
    return tuple(lowered), tuple(biases)


def _sfcn_kernel(x_ref, m1_ref, m2_ref, m3_ref, b1_ref, b2_ref, b3_ref,
                 o_ref, pad2_ref, pad3_ref, *, B, H, W, K, C_mid, pads, dils):
    """Fused 3-layer conv+ReLU for a block of B samples; fully VMEM-resident.

    x_ref:         (B, Hp1, W*Cin0)   bf16 H-padded input slab
    m{1,2,3}_ref:  (K, W*Cin, W*Cout) bf16 lowered (Toeplitz) weights
    b{1,2,3}_ref:  (1, W*Cout)        f32 tiled bias
    o_ref:         (B, H, W*Cout)     f32 lane-dense output slab
    pad{2,3}_ref:  (B, Hp, W*C_mid)   bf16 scratch: H-padded intermediates
    """
    BH = B * H

    def conv_layer(a_ref, m_ref, b_ref, dil):
        kdim = a_ref.shape[-1]
        wc_out = b_ref.shape[-1]
        # Bias-initialized f32 accumulator (hoisted broadcast, done once).
        acc = jnp.broadcast_to(b_ref[...], (BH, wc_out))
        for kh in range(K):  # static unroll: K deep GEMMs with M = B*H rows
            rows = a_ref[:, kh * dil:kh * dil + H, :].reshape(BH, kdim)
            acc = acc + jnp.dot(rows, m_ref[kh],
                                preferred_element_type=jnp.float32)
        return jnp.maximum(acc, 0.0)  # fused ReLU

    def stage_padded(act, dst_ref, pad):
        # bf16 H-padded slab for the next layer.  Only the border rows are
        # zeroed (every step, so this stays correct when the batch grid axis is
        # split across TensorCores); the interior is fully overwritten -> no
        # full-slab zero store, single f32->bf16 cast at the write.
        nl = dst_ref.shape[-1]
        zrow = jnp.zeros((B, pad, nl), dst_ref.dtype)
        dst_ref[:, :pad, :] = zrow
        dst_ref[:, pad + H:, :] = zrow
        dst_ref[:, pad:pad + H, :] = act.reshape(B, H, nl).astype(dst_ref.dtype)

    a1 = conv_layer(x_ref, m1_ref, b1_ref, dils[0])
    stage_padded(a1, pad2_ref, pads[1])
    a2 = conv_layer(pad2_ref, m2_ref, b2_ref, dils[1])
    stage_padded(a2, pad3_ref, pads[2])
    a3 = conv_layer(pad3_ref, m3_ref, b3_ref, dils[2])
    o_ref[...] = a3.reshape(B, H, W * C_mid).astype(o_ref.dtype)


def _auto_batch_block(n, h):
    """Largest B dividing N with B*H <= target MXU rows, preferring a grid
    length that is a multiple of the number of TensorCores (v7x: 2)."""
    try:
        kind = jax.devices()[0].device_kind.lower()
    except Exception:
        kind = ""
    target_m = 128 if "v5" in kind else 256
    num_cores = 2 if "v7" in kind else 1
    divisors = [d for d in range(1, n + 1) if n % d == 0]
    best = 1
    for d in divisors:
        if d * h <= target_m and (n // d) % num_cores == 0:
            best = max(best, d)
    if best == 1:
        for d in divisors:
            if d * h <= target_m:
                best = max(best, d)
    return best


@jax.jit
def sfcn_forward(x_nchw, lowered, biases):
    """SFCN.forward: 3 x (Conv2d(.., 18, 7, padding=p, dilation=d) + ReLU)."""
    N, C0, H, W = x_nchw.shape
    K, Cm = _K, _C_MID
    p0, p1, p2 = _PADDINGS
    Hp1, Hp2, Hp3 = H + 2 * p0, H + 2 * p1, H + 2 * p2

    B = _auto_batch_block(N, H)          # static (shapes + device kind)
    assert N % B == 0

    # NCHW -> NHWC, pad H only (width padding is folded into the Toeplitz
    # weights), flatten (W, Cin) onto the lane axis, cast to bf16 once.
    x = jnp.transpose(x_nchw, (0, 2, 3, 1))
    xpad = jnp.pad(x, ((0, 0), (p0, p0), (0, 0), (0, 0)))
    x_slab = xpad.reshape(N, Hp1, W * C0).astype(jnp.bfloat16)

    kern = functools.partial(_sfcn_kernel, B=B, H=H, W=W, K=K, C_mid=Cm,
                             pads=_PADDINGS, dils=_DILATIONS)

    # NOTE: the ~2.4 MB of bf16 lowered weights are grid-invariant but still
    # double-buffered by BlockSpec; if W / channels grow, tile the W*Cout
    # output columns with an extra grid axis before hitting v7x's 64 MiB VMEM.
    out_flat = pl.pallas_call(
        kern,
        out_shape=jax.ShapeDtypeStruct((N, H, W * Cm), jnp.float32),
        grid=(N // B,),
        in_specs=[
            pl.BlockSpec((B, Hp1, W * C0), lambda n: (n, 0, 0)),
            pl.BlockSpec((K, W * C0, W * Cm), lambda n: (0, 0, 0)),
            pl.BlockSpec((K, W * Cm, W * Cm), lambda n: (0, 0, 0)),
            pl.BlockSpec((K, W * Cm, W * Cm), lambda n: (0, 0, 0)),
            pl.BlockSpec((1, W * Cm), lambda n: (0, 0)),
            pl.BlockSpec((1, W * Cm), lambda n: (0, 0)),
            pl.BlockSpec((1, W * Cm), lambda n: (0, 0)),
        ],
        out_specs=pl.BlockSpec((B, H, W * Cm), lambda n: (n, 0, 0)),
        scratch_shapes=[
            pltpu.VMEM((B, Hp2, W * Cm), jnp.bfloat16),  # H-padded layer-2 input
            pltpu.VMEM((B, Hp3, W * Cm), jnp.bfloat16),  # H-padded layer-3 input
        ],
        compiler_params=pltpu.CompilerParams(
            dimension_semantics=("parallel",)),
    )(x_slab, *lowered, *biases)

    out = out_flat.reshape(N, H, W, Cm)
    return jnp.transpose(out, (0, 3, 1, 2))             # NHWC -> NCHW


def init_params(key):
    """Deterministic synthetic init mirroring nn.Conv2d shapes (HWIO layout)."""
    params = []
    for i in range(3):
        key, k1, k2 = jax.random.split(key, 3)
        fan_in = _INPUT_C[i] * _K * _K
        bound = 1.0 / (fan_in ** 0.5)
        w = jax.random.uniform(k1, (_K, _K, _INPUT_C[i], _C_MID),
                               jnp.float32, -bound, bound)
        b = jax.random.uniform(k2, (_C_MID,), jnp.float32, -bound, bound)
        params.append((w, b))
    return params


def _reference_forward(x_nchw, params):
    """Pure-JAX (XLA) reference for correctness checking."""
    x = jnp.transpose(x_nchw, (0, 2, 3, 1))
    for (w, b), p, d in zip(params, _PADDINGS, _DILATIONS):
        x = jax.lax.conv_general_dilated(
            x, w, window_strides=(1, 1), padding=[(p, p), (p, p)],
            rhs_dilation=(d, d),
            dimension_numbers=("NHWC", "HWIO", "NHWC"),
            precision=jax.lax.Precision.HIGHEST)
        x = jnp.maximum(x + b, 0.0)
    return jnp.transpose(x, (0, 3, 1, 2))


if __name__ == "__main__":
    key = jax.random.PRNGKey(0)
    kx, kp = jax.random.split(key)

    # Small shapes consistent with the module: N=2, Cin=3, H=W=16.
    x = jax.random.normal(kx, (2, 3, 16, 16), jnp.float32)
    params = init_params(kp)
    lowered, biases = prepare_inference_params(params, width=x.shape[-1])

    out = sfcn_forward(x, lowered, biases)
    jax.block_until_ready(out)

    assert out.shape == (2, 18, 16, 16), out.shape
    assert out.dtype == jnp.float32
    assert bool(jnp.all(out >= 0.0))  # ReLU output is non-negative

    # Numerical check against the f32 XLA reference (bf16 MXU tolerance).
    ref = _reference_forward(x, params)
    max_err = float(jnp.max(jnp.abs(out - ref)))
    assert max_err < 5e-2, f"max abs err vs reference = {max_err}"

    print("KERNEL_OK")
</pallas_src>

<mosaic_0001>
module attributes {stable_mosaic.version = 11 : i64} {
  func.func @_sfcn_kernel(%arg0: i32, %arg1: memref<2x22x48xbf16, #tpu.memory_space<vmem>>, %arg2: memref<7x48x288xbf16, #tpu.memory_space<vmem>>, %arg3: memref<7x288x288xbf16, #tpu.memory_space<vmem>>, %arg4: memref<7x288x288xbf16, #tpu.memory_space<vmem>>, %arg5: memref<1x288xf32, #tpu.memory_space<vmem>>, %arg6: memref<1x288xf32, #tpu.memory_space<vmem>>, %arg7: memref<1x288xf32, #tpu.memory_space<vmem>>, %arg8: memref<2x16x288xf32, #tpu.memory_space<vmem>>, %arg9: memref<2x22x288xbf16, #tpu.memory_space<vmem>>, %arg10: memref<2x28x288xbf16, #tpu.memory_space<vmem>>) attributes {dimension_semantics = [#tpu.dimension_semantics<parallel>], iteration_bounds = array<i64: 1>, scalar_prefetch = 0 : i64, scratch_operands = 2 : i64, tpu.core_type = #tpu.core_type<tc>, window_params = [{transform_indices = @transform_0, window_bounds = array<i64: 2, 22, 48>}, {pipeline_mode = #tpu.pipeline_mode<synchronous>, transform_indices = @transform_1, window_bounds = array<i64: 7, 48, 288>}, {pipeline_mode = #tpu.pipeline_mode<synchronous>, transform_indices = @transform_2, window_bounds = array<i64: 7, 288, 288>}, {pipeline_mode = #tpu.pipeline_mode<synchronous>, transform_indices = @transform_3, window_bounds = array<i64: 7, 288, 288>}, {pipeline_mode = #tpu.pipeline_mode<synchronous>, transform_indices = @transform_4, window_bounds = array<i64: 1, 288>}, {pipeline_mode = #tpu.pipeline_mode<synchronous>, transform_indices = @transform_5, window_bounds = array<i64: 1, 288>}, {pipeline_mode = #tpu.pipeline_mode<synchronous>, transform_indices = @transform_6, window_bounds = array<i64: 1, 288>}, {transform_indices = @transform_7, window_bounds = array<i64: 2, 16, 288>}]} {
    %c0 = arith.constant 0 : index
    %c0_0 = arith.constant 0 : index
    %0 = vector.load %arg5[%c0, %c0_0] : memref<1x288xf32, #tpu.memory_space<vmem>>, vector<1x288xf32>
    %1 = vector.shape_cast %0 : vector<1x288xf32> to vector<1x288xf32>
    %2 = vector.broadcast %1 : vector<1x288xf32> to vector<32x288xf32>
    %c0_1 = arith.constant 0 : index
    %c0_2 = arith.constant 0 : index
    %c0_3 = arith.constant 0 : index
    %3 = vector.load %arg1[%c0_1, %c0_2, %c0_3] : memref<2x22x48xbf16, #tpu.memory_space<vmem>>, vector<2x16x48xbf16>
    %4 = vector.shape_cast %3 : vector<2x16x48xbf16> to vector<32x48xbf16>
    %c0_4 = arith.constant 0 : index
    %c0_5 = arith.constant 0 : index
    %c0_6 = arith.constant 0 : index
    %5 = vector.load %arg2[%c0_4, %c0_5, %c0_6] : memref<7x48x288xbf16, #tpu.memory_space<vmem>>, vector<1x48x288xbf16>
    %6 = vector.shape_cast %5 : vector<1x48x288xbf16> to vector<48x288xbf16>
    %cst = arith.constant dense<0.000000e+00> : vector<32x288xf32>
    %7 = tpu.matmul %4, %6, %cst {dimension_numbers = #tpu.dot_dimension_numbers<[1], [0], [0], [1], [0, 0, 1, 1], [], []>} : vector<32x48xbf16>, vector<48x288xbf16>, vector<32x288xf32> -> vector<32x288xf32>
    %8 = arith.addf %2, %7 : vector<32x288xf32>
    %c0_7 = arith.constant 0 : index
    %c1 = arith.constant 1 : index
    %c0_8 = arith.constant 0 : index
    %9 = vector.load %arg1[%c0_7, %c1, %c0_8] : memref<2x22x48xbf16, #tpu.memory_space<vmem>>, vector<2x16x48xbf16>
    %10 = vector.shape_cast %9 : vector<2x16x48xbf16> to vector<32x48xbf16>
    %c1_9 = arith.constant 1 : index
    %c0_10 = arith.constant 0 : index
    %c0_11 = arith.constant 0 : index
    %11 = vector.load %arg2[%c1_9, %c0_10, %c0_11] : memref<7x48x288xbf16, #tpu.memory_space<vmem>>, vector<1x48x288xbf16>
    %12 = vector.shape_cast %11 : vector<1x48x288xbf16> to vector<48x288xbf16>
    %cst_12 = arith.constant dense<0.000000e+00> : vector<32x288xf32>
    %13 = tpu.matmul %10, %12, %cst_12 {dimension_numbers = #tpu.dot_dimension_numbers<[1], [0], [0], [1], [0, 0, 1, 1], [], []>} : vector<32x48xbf16>, vector<48x288xbf16>, vector<32x288xf32> -> vector<32x288xf32>
    %14 = arith.addf %8, %13 : vector<32x288xf32>
    %c0_13 = arith.constant 0 : index
    %c2 = arith.constant 2 : index
    %c0_14 = arith.constant 0 : index
    %15 = vector.load %arg1[%c0_13, %c2, %c0_14] : memref<2x22x48xbf16, #tpu.memory_space<vmem>>, vector<2x16x48xbf16>
    %16 = vector.shape_cast %15 : vector<2x16x48xbf16> to vector<32x48xbf16>
    %c2_15 = arith.constant 2 : index
    %c0_16 = arith.constant 0 : index
    %c0_17 = arith.constant 0 : index
    %17 = vector.load %arg2[%c2_15, %c0_16, %c0_17] : memref<7x48x288xbf16, #tpu.memory_space<vmem>>, vector<1x48x288xbf16>
    %18 = vector.shape_cast %17 : vector<1x48x288xbf16> to vector<48x288xbf16>
    %cst_18 = arith.constant dense<0.000000e+00> : vector<32x288xf32>
    %19 = tpu.matmul %16, %18, %cst_18 {dimension_numbers = #tpu.dot_dimension_numbers<[1], [0], [0], [1], [0, 0, 1, 1], [], []>} : vector<32x48xbf16>, vector<48x288xbf16>, vector<32x288xf32> -> vector<32x288xf32>
    %20 = arith.addf %14, %19 : vector<32x288xf32>
    %c0_19 = arith.constant 0 : index
    %c3 = arith.constant 3 : index
    %c0_20 = arith.constant 0 : index
    %21 = vector.load %arg1[%c0_19, %c3, %c0_20] : memref<2x22x48xbf16, #tpu.memory_space<vmem>>, vector<2x16x48xbf16>
    %22 = vector.shape_cast %21 : vector<2x16x48xbf16> to vector<32x48xbf16>
    %c3_21 = arith.constant 3 : index
    %c0_22 = arith.constant 0 : index
    %c0_23 = arith.constant 0 : index
    %23 = vector.load %arg2[%c3_21, %c0_22, %c0_23] : memref<7x48x288xbf16, #tpu.memory_space<vmem>>, vector<1x48x288xbf16>
    %24 = vector.shape_cast %23 : vector<1x48x288xbf16> to vector<48x288xbf16>
    %cst_24 = arith.constant dense<0.000000e+00> : vector<32x288xf32>
    %25 = tpu.matmul %22, %24, %cst_24 {dimension_numbers = #tpu.dot_dimension_numbers<[1], [0], [0], [1], [0, 0, 1, 1], [], []>} : vector<32x48xbf16>, vector<48x288xbf16>, vector<32x288xf32> -> vector<32x288xf32>
    %26 = arith.addf %20, %25 : vector<32x288xf32>
    %c0_25 = arith.constant 0 : index
    %c4 = arith.constant 4 : index
    %c0_26 = arith.constant 0 : index
    %27 = vector.load %arg1[%c0_25, %c4, %c0_26] : memref<2x22x48xbf16, #tpu.memory_space<vmem>>, vector<2x16x48xbf16>
    %28 = vector.shape_cast %27 : vector<2x16x48xbf16> to vector<32x48xbf16>
    %c4_27 = arith.constant 4 : index
    %c0_28 = arith.constant 0 : index
    %c0_29 = arith.constant 0 : index
    %29 = vector.load %arg2[%c4_27, %c0_28, %c0_29] : memref<7x48x288xbf16, #tpu.memory_space<vmem>>, vector<1x48x288xbf16>
    %30 = vector.shape_cast %29 : vector<1x48x288xbf16> to vector<48x288xbf16>
    %cst_30 = arith.constant dense<0.000000e+00> : vector<32x288xf32>
    %31 = tpu.matmul %28, %30, %cst_30 {dimension_numbers = #tpu.dot_dimension_numbers<[1], [0], [0], [1], [0, 0, 1, 1], [], []>} : vector<32x48xbf16>, vector<48x288xbf16>, vector<32x288xf32> -> vector<32x288xf32>
    %32 = arith.addf %26, %31 : vector<32x288xf32>
    %c0_31 = arith.constant 0 : index
    %c5 = arith.constant 5 : index
    %c0_32 = arith.constant 0 : index
    %33 = vector.load %arg1[%c0_31, %c5, %c0_32] : memref<2x22x48xbf16, #tpu.memory_space<vmem>>, vector<2x16x48xbf16>
    %34 = vector.shape_cast %33 : vector<2x16x48xbf16> to vector<32x48xbf16>
    %c5_33 = arith.constant 5 : index
    %c0_34 = arith.constant 0 : index
    %c0_35 = arith.constant 0 : index
    %35 = vector.load %arg2[%c5_33, %c0_34, %c0_35] : memref<7x48x288xbf16, #tpu.memory_space<vmem>>, vector<1x48x288xbf16>
    %36 = vector.shape_cast %35 : vector<1x48x288xbf16> to vector<48x288xbf16>
    %cst_36 = arith.constant dense<0.000000e+00> : vector<32x288xf32>
    %37 = tpu.matmul %34, %36, %cst_36 {dimension_numbers = #tpu.dot_dimension_numbers<[1], [0], [0], [1], [0, 0, 1, 1], [], []>} : vector<32x48xbf16>, vector<48x288xbf16>, vector<32x288xf32> -> vector<32x288xf32>
    %38 = arith.addf %32, %37 : vector<32x288xf32>
    %c0_37 = arith.constant 0 : index
    %c6 = arith.constant 6 : index
    %c0_38 = arith.constant 0 : index
    %39 = vector.load %arg1[%c0_37, %c6, %c0_38] : memref<2x22x48xbf16, #tpu.memory_space<vmem>>, vector<2x16x48xbf16>
    %40 = vector.shape_cast %39 : vector<2x16x48xbf16> to vector<32x48xbf16>
    %c6_39 = arith.constant 6 : index
    %c0_40 = arith.constant 0 : index
    %c0_41 = arith.constant 0 : index
    %41 = vector.load %arg2[%c6_39, %c0_40, %c0_41] : memref<7x48x288xbf16, #tpu.memory_space<vmem>>, vector<1x48x288xbf16>
    %42 = vector.shape_cast %41 : vector<1x48x288xbf16> to vector<48x288xbf16>
    %cst_42 = arith.constant dense<0.000000e+00> : vector<32x288xf32>
    %43 = tpu.matmul %40, %42, %cst_42 {dimension_numbers = #tpu.dot_dimension_numbers<[1], [0], [0], [1], [0, 0, 1, 1], [], []>} : vector<32x48xbf16>, vector<48x288xbf16>, vector<32x288xf32> -> vector<32x288xf32>
    %44 = arith.addf %38, %43 : vector<32x288xf32>
    %cst_43 = arith.constant 0.000000e+00 : f32
    %45 = vector.broadcast %cst_43 : f32 to vector<32x288xf32>
    %46 = arith.maximumf %44, %45 : vector<32x288xf32>
    %cst_44 = arith.constant 0.000000e+00 : bf16
    %47 = vector.broadcast %cst_44 : bf16 to vector<2x3x288xbf16>
    %c0_45 = arith.constant 0 : index
    %c0_46 = arith.constant 0 : index
    %c0_47 = arith.constant 0 : index
    %48 = vector.load %arg9[%c0_45, %c0_46, %c0_47] : memref<2x22x288xbf16, #tpu.memory_space<vmem>>, vector<2x3x288xbf16>
    tpu.vector_store %arg9[%c0_45, %c0_46, %c0_47], %47 {strides = array<i32>} : memref<2x22x288xbf16, #tpu.memory_space<vmem>>, vector<2x3x288xbf16>,
    %c0_48 = arith.constant 0 : index
    %c19 = arith.constant 19 : index
    %c0_49 = arith.constant 0 : index
    %49 = vector.load %arg9[%c0_48, %c19, %c0_49] : memref<2x22x288xbf16, #tpu.memory_space<vmem>>, vector<2x3x288xbf16>
    tpu.vector_store %arg9[%c0_48, %c19, %c0_49], %47 {strides = array<i32>} : memref<2x22x288xbf16, #tpu.memory_space<vmem>>, vector<2x3x288xbf16>,
    %50 = vector.shape_cast %46 : vector<32x288xf32> to vector<2x16x288xf32>
    %51 = arith.truncf %50 : vector<2x16x288xf32> to vector<2x16x288xbf16>
    %c0_50 = arith.constant 0 : index
    %c3_51 = arith.constant 3 : index
    %c0_52 = arith.constant 0 : index
    %52 = vector.load %arg9[%c0_50, %c3_51, %c0_52] : memref<2x22x288xbf16, #tpu.memory_space<vmem>>, vector<2x16x288xbf16>
    tpu.vector_store %arg9[%c0_50, %c3_51, %c0_52], %51 {strides = array<i32>} : memref<2x22x288xbf16, #tpu.memory_space<vmem>>, vector<2x16x288xbf16>,
    %c0_53 = arith.constant 0 : index
    %c0_54 = arith.constant 0 : index
    %53 = vector.load %arg6[%c0_53, %c0_54] : memref<1x288xf32, #tpu.memory_space<vmem>>, vector<1x288xf32>
    %54 = vector.shape_cast %53 : vector<1x288xf32> to vector<1x288xf32>
    %55 = vector.broadcast %54 : vector<1x288xf32> to vector<32x288xf32>
    %c0_55 = arith.constant 0 : index
    %c0_56 = arith.constant 0 : index
    %c0_57 = arith.constant 0 : index
    %56 = vector.load %arg9[%c0_55, %c0_56, %c0_57] : memref<2x22x288xbf16, #tpu.memory_space<vmem>>, vector<2x16x288xbf16>
    %57 = vector.shape_cast %56 : vector<2x16x288xbf16> to vector<32x288xbf16>
    %c0_58 = arith.constant 0 : index
    %c0_59 = arith.constant 0 : index
    %c0_60 = arith.constant 0 : index
    %58 = vector.load %arg3[%c0_58, %c0_59, %c0_60] : memref<7x288x288xbf16, #tpu.memory_space<vmem>>, vector<1x288x288xbf16>
    %59 = vector.shape_cast %58 : vector<1x288x288xbf16> to vector<288x288xbf16>
    %cst_61 = arith.constant dense<0.000000e+00> : vector<32x288xf32>
    %60 = tpu.matmul %57, %59, %cst_61 {dimension_numbers = #tpu.dot_dimension_numbers<[1], [0], [0], [1], [0, 0, 1, 1], [], []>} : vector<32x288xbf16>, vector<288x288xbf16>, vector<32x288xf32> -> vector<32x288xf32>
    %61 = arith.addf %55, %60 : vector<32x288xf32>
    %c0_62 = arith.constant 0 : index
    %c1_63 = arith.constant 1 : index
    %c0_64 = arith.constant 0 : index
    %62 = vector.load %arg9[%c0_62, %c1_63, %c0_64] : memref<2x22x288xbf16, #tpu.memory_space<vmem>>, vector<2x16x288xbf16>
    %63 = vector.shape_cast %62 : vector<2x16x288xbf16> to vector<32x288xbf16>
    %c1_65 = arith.constant 1 : index
    %c0_66 = arith.constant 0 : index
    %c0_67 = arith.constant 0 : index
    %64 = vector.load %arg3[%c1_65, %c0_66, %c0_67] : memref<7x288x288xbf16, #tpu.memory_space<vmem>>, vector<1x288x288xbf16>
    %65 = vector.shape_cast %64 : vector<1x288x288xbf16> to vector<288x288xbf16>
    %cst_68 = arith.constant dense<0.000000e+00> : vector<32x288xf32>
    %66 = tpu.matmul %63, %65, %cst_68 {dimension_numbers = #tpu.dot_dimension_numbers<[1], [0], [0], [1], [0, 0, 1, 1], [], []>} : vector<32x288xbf16>, vector<288x288xbf16>, vector<32x288xf32> -> vector<32x288xf32>
    %67 = arith.addf %61, %66 : vector<32x288xf32>
    %c0_69 = arith.constant 0 : index
    %c2_70 = arith.constant 2 : index
    %c0_71 = arith.constant 0 : index
    %68 = vector.load %arg9[%c0_69, %c2_70, %c0_71] : memref<2x22x288xbf16, #tpu.memory_space<vmem>>, vector<2x16x288xbf16>
    %69 = vector.shape_cast %68 : vector<2x16x288xbf16> to vector<32x288xbf16>
    %c2_72 = arith.constant 2 : index
    %c0_73 = arith.constant 0 : index
    %c0_74 = arith.constant 0 : index
    %70 = vector.load %arg3[%c2_72, %c0_73, %c0_74] : memref<7x288x288xbf16, #tpu.memory_space<vmem>>, vector<1x288x288xbf16>
    %71 = vector.shape_cast %70 : vector<1x288x288xbf16> to vector<288x288xbf16>
    %cst_75 = arith.constant dense<0.000000e+00> : vector<32x288xf32>
    %72 = tpu.matmul %69, %71, %cst_75 {dimension_numbers = #tpu.dot_dimension_numbers<[1], [0], [0], [1], [0, 0, 1, 1], [], []>} : vector<32x288xbf16>, vector<288x288xbf16>, vector<32x288xf32> -> vector<32x288xf32>
    %73 = arith.addf %67, %72 : vector<32x288xf32>
    %c0_76 = arith.constant 0 : index
    %c3_77 = arith.constant 3 : index
    %c0_78 = arith.constant 0 : index
    %74 = vector.load %arg9[%c0_76, %c3_77, %c0_78] : memref<2x22x288xbf16, #tpu.memory_space<vmem>>, vector<2x16x288xbf16>
    %75 = vector.shape_cast %74 : vector<2x16x288xbf16> to vector<32x288xbf16>
    %c3_79 = arith.constant 3 : index
    %c0_80 = arith.constant 0 : index
    %c0_81 = arith.constant 0 : index
    %76 = vector.load %arg3[%c3_79, %c0_80, %c0_81] : memref<7x288x288xbf16, #tpu.memory_space<vmem>>, vector<1x288x288xbf16>
    %77 = vector.shape_cast %76 : vector<1x288x288xbf16> to vector<288x288xbf16>
    %cst_82 = arith.constant dense<0.000000e+00> : vector<32x288xf32>
    %78 = tpu.matmul %75, %77, %cst_82 {dimension_numbers = #tpu.dot_dimension_numbers<[1], [0], [0], [1], [0, 0, 1, 1], [], []>} : vector<32x288xbf16>, vector<288x288xbf16>, vector<32x288xf32> -> vector<32x288xf32>
    %79 = arith.addf %73, %78 : vector<32x288xf32>
    %c0_83 = arith.constant 0 : index
    %c4_84 = arith.constant 4 : index
    %c0_85 = arith.constant 0 : index
    %80 = vector.load %arg9[%c0_83, %c4_84, %c0_85] : memref<2x22x288xbf16, #tpu.memory_space<vmem>>, vector<2x16x288xbf16>
    %81 = vector.shape_cast %80 : vector<2x16x288xbf16> to vector<32x288xbf16>
    %c4_86 = arith.constant 4 : index
    %c0_87 = arith.constant 0 : index
    %c0_88 = arith.constant 0 : index
    %82 = vector.load %arg3[%c4_86, %c0_87, %c0_88] : memref<7x288x288xbf16, #tpu.memory_space<vmem>>, vector<1x288x288xbf16>
    %83 = vector.shape_cast %82 : vector<1x288x288xbf16> to vector<288x288xbf16>
    %cst_89 = arith.constant dense<0.000000e+00> : vector<32x288xf32>
    %84 = tpu.matmul %81, %83, %cst_89 {dimension_numbers = #tpu.dot_dimension_numbers<[1], [0], [0], [1], [0, 0, 1, 1], [], []>} : vector<32x288xbf16>, vector<288x288xbf16>, vector<32x288xf32> -> vector<32x288xf32>
    %85 = arith.addf %79, %84 : vector<32x288xf32>
    %c0_90 = arith.constant 0 : index
    %c5_91 = arith.constant 5 : index
    %c0_92 = arith.constant 0 : index
    %86 = vector.load %arg9[%c0_90, %c5_91, %c0_92] : memref<2x22x288xbf16, #tpu.memory_space<vmem>>, vector<2x16x288xbf16>
    %87 = vector.shape_cast %86 : vector<2x16x288xbf16> to vector<32x288xbf16>
    %c5_93 = arith.constant 5 : index
    %c0_94 = arith.constant 0 : index
    %c0_95 = arith.constant 0 : index
    %88 = vector.load %arg3[%c5_93, %c0_94, %c0_95] : memref<7x288x288xbf16, #tpu.memory_space<vmem>>, vector<1x288x288xbf16>
    %89 = vector.shape_cast %88 : vector<1x288x288xbf16> to vector<288x288xbf16>
    %cst_96 = arith.constant dense<0.000000e+00> : vector<32x288xf32>
    %90 = tpu.matmul %87, %89, %cst_96 {dimension_numbers = #tpu.dot_dimension_numbers<[1], [0], [0], [1], [0, 0, 1, 1], [], []>} : vector<32x288xbf16>, vector<288x288xbf16>, vector<32x288xf32> -> vector<32x288xf32>
    %91 = arith.addf %85, %90 : vector<32x288xf32>
    %c0_97 = arith.constant 0 : index
    %c6_98 = arith.constant 6 : index
    %c0_99 = arith.constant 0 : index
    %92 = vector.load %arg9[%c0_97, %c6_98, %c0_99] : memref<2x22x288xbf16, #tpu.memory_space<vmem>>, vector<2x16x288xbf16>
    %93 = vector.shape_cast %92 : vector<2x16x288xbf16> to vector<32x288xbf16>
    %c6_100 = arith.constant 6 : index
    %c0_101 = arith.constant 0 : index
    %c0_102 = arith.constant 0 : index
    %94 = vector.load %arg3[%c6_100, %c0_101, %c0_102] : memref<7x288x288xbf16, #tpu.memory_space<vmem>>, vector<1x288x288xbf16>
    %95 = vector.shape_cast %94 : vector<1x288x288xbf16> to vector<288x288xbf16>
    %cst_103 = arith.constant dense<0.000000e+00> : vector<32x288xf32>
    %96 = tpu.matmul %93, %95, %cst_103 {dimension_numbers = #tpu.dot_dimension_numbers<[1], [0], [0], [1], [0, 0, 1, 1], [], []>} : vector<32x288xbf16>, vector<288x288xbf16>, vector<32x288xf32> -> vector<32x288xf32>
    %97 = arith.addf %91, %96 : vector<32x288xf32>
    %cst_104 = arith.constant 0.000000e+00 : f32
    %98 = vector.broadcast %cst_104 : f32 to vector<32x288xf32>
    %99 = arith.maximumf %97, %98 : vector<32x288xf32>
    %cst_105 = arith.constant 0.000000e+00 : bf16
    %100 = vector.broadcast %cst_105 : bf16 to vector<2x6x288xbf16>
    %c0_106 = arith.constant 0 : index
    %c0_107 = arith.constant 0 : index
    %c0_108 = arith.constant 0 : index
    %101 = vector.load %arg10[%c0_106, %c0_107, %c0_108] : memref<2x28x288xbf16, #tpu.memory_space<vmem>>, vector<2x6x288xbf16>
    tpu.vector_store %arg10[%c0_106, %c0_107, %c0_108], %100 {strides = array<i32>} : memref<2x28x288xbf16, #tpu.memory_space<vmem>>, vector<2x6x288xbf16>,
    %c0_109 = arith.constant 0 : index
    %c22 = arith.constant 22 : index
    %c0_110 = arith.constant 0 : index
    %102 = vector.load %arg10[%c0_109, %c22, %c0_110] : memref<2x28x288xbf16, #tpu.memory_space<vmem>>, vector<2x6x288xbf16>
    tpu.vector_store %arg10[%c0_109, %c22, %c0_110], %100 {strides = array<i32>} : memref<2x28x288xbf16, #tpu.memory_space<vmem>>, vector<2x6x288xbf16>,
    %103 = vector.shape_cast %99 : vector<32x288xf32> to vector<2x16x288xf32>
    %104 = arith.truncf %103 : vector<2x16x288xf32> to vector<2x16x288xbf16>
    %c0_111 = arith.constant 0 : index
    %c6_112 = arith.constant 6 : index
    %c0_113 = arith.constant 0 : index
    %105 = vector.load %arg10[%c0_111, %c6_112, %c0_113] : memref<2x28x288xbf16, #tpu.memory_space<vmem>>, vector<2x16x288xbf16>
    tpu.vector_store %arg10[%c0_111, %c6_112, %c0_113], %104 {strides = array<i32>} : memref<2x28x288xbf16, #tpu.memory_space<vmem>>, vector<2x16x288xbf16>,
    %c0_114 = arith.constant 0 : index
    %c0_115 = arith.constant 0 : index
    %106 = vector.load %arg7[%c0_114, %c0_115] : memref<1x288xf32, #tpu.memory_space<vmem>>, vector<1x288xf32>
    %107 = vector.shape_cast %106 : vector<1x288xf32> to vector<1x288xf32>
    %108 = vector.broadcast %107 : vector<1x288xf32> to vector<32x288xf32>
    %c0_116 = arith.constant 0 : index
    %c0_117 = arith.constant 0 : index
    %c0_118 = arith.constant 0 : index
    %109 = vector.load %arg10[%c0_116, %c0_117, %c0_118] : memref<2x28x288xbf16, #tpu.memory_space<vmem>>, vector<2x16x288xbf16>
    %110 = vector.shape_cast %109 : vector<2x16x288xbf16> to vector<32x288xbf16>
    %c0_119 = arith.constant 0 : index
    %c0_120 = arith.constant 0 : index
    %c0_121 = arith.constant 0 : index
    %111 = vector.load %arg4[%c0_119, %c0_120, %c0_121] : memref<7x288x288xbf16, #tpu.memory_space<vmem>>, vector<1x288x288xbf16>
    %112 = vector.shape_cast %111 : vector<1x288x288xbf16> to vector<288x288xbf16>
    %cst_122 = arith.constant dense<0.000000e+00> : vector<32x288xf32>
    %113 = tpu.matmul %110, %112, %cst_122 {dimension_numbers = #tpu.dot_dimension_numbers<[1], [0], [0], [1], [0, 0, 1, 1], [], []>} : vector<32x288xbf16>, vector<288x288xbf16>, vector<32x288xf32> -> vector<32x288xf32>
    %114 = arith.addf %108, %113 : vector<32x288xf32>
    %c0_123 = arith.constant 0 : index
    %c2_124 = arith.constant 2 : index
    %c0_125 = arith.constant 0 : index
    %115 = vector.load %arg10[%c0_123, %c2_124, %c0_125] : memref<2x28x288xbf16, #tpu.memory_space<vmem>>, vector<2x16x288xbf16>
    %116 = vector.shape_cast %115 : vector<2x16x288xbf16> to vector<32x288xbf16>
    %c1_126 = arith.constant 1 : index
    %c0_127 = arith.constant 0 : index
    %c0_128 = arith.constant 0 : index
    %117 = vector.load %arg4[%c1_126, %c0_127, %c0_128] : memref<7x288x288xbf16, #tpu.memory_space<vmem>>, vector<1x288x288xbf16>
    %118 = vector.shape_cast %117 : vector<1x288x288xbf16> to vector<288x288xbf16>
    %cst_129 = arith.constant dense<0.000000e+00> : vector<32x288xf32>
    %119 = tpu.matmul %116, %118, %cst_129 {dimension_numbers = #tpu.dot_dimension_numbers<[1], [0], [0], [1], [0, 0, 1, 1], [], []>} : vector<32x288xbf16>, vector<288x288xbf16>, vector<32x288xf32> -> vector<32x288xf32>
    %120 = arith.addf %114, %119 : vector<32x288xf32>
    %c0_130 = arith.constant 0 : index
    %c4_131 = arith.constant 4 : index
    %c0_132 = arith.constant 0 : index
    %121 = vector.load %arg10[%c0_130, %c4_131, %c0_132] : memref<2x28x288xbf16, #tpu.memory_space<vmem>>, vector<2x16x288xbf16>
    %122 = vector.shape_cast %121 : vector<2x16x288xbf16> to vector<32x288xbf16>
    %c2_133 = arith.constant 2 : index
    %c0_134 = arith.constant 0 : index
    %c0_135 = arith.constant 0 : index
    %123 = vector.load %arg4[%c2_133, %c0_134, %c0_135] : memref<7x288x288xbf16, #tpu.memory_space<vmem>>, vector<1x288x288xbf16>
    %124 = vector.shape_cast %123 : vector<1x288x288xbf16> to vector<288x288xbf16>
    %cst_136 = arith.constant dense<0.000000e+00> : vector<32x288xf32>
    %125 = tpu.matmul %122, %124, %cst_136 {dimension_numbers = #tpu.dot_dimension_numbers<[1], [0], [0], [1], [0, 0, 1, 1], [], []>} : vector<32x288xbf16>, vector<288x288xbf16>, vector<32x288xf32> -> vector<32x288xf32>
    %126 = arith.addf %120, %125 : vector<32x288xf32>
    %c0_137 = arith.constant 0 : index
    %c6_138 = arith.constant 6 : index
    %c0_139 = arith.constant 0 : index
    %127 = vector.load %arg10[%c0_137, %c6_138, %c0_139] : memref<2x28x288xbf16, #tpu.memory_space<vmem>>, vector<2x16x288xbf16>
    %128 = vector.shape_cast %127 : vector<2x16x288xbf16> to vector<32x288xbf16>
    %c3_140 = arith.constant 3 : index
    %c0_141 = arith.constant 0 : index
    %c0_142 = arith.constant 0 : index
    %129 = vector.load %arg4[%c3_140, %c0_141, %c0_142] : memref<7x288x288xbf16, #tpu.memory_space<vmem>>, vector<1x288x288xbf16>
    %130 = vector.shape_cast %129 : vector<1x288x288xbf16> to vector<288x288xbf16>
    %cst_143 = arith.constant dense<0.000000e+00> : vector<32x288xf32>
    %131 = tpu.matmul %128, %130, %cst_143 {dimension_numbers = #tpu.dot_dimension_numbers<[1], [0], [0], [1], [0, 0, 1, 1], [], []>} : vector<32x288xbf16>, vector<288x288xbf16>, vector<32x288xf32> -> vector<32x288xf32>
    %132 = arith.addf %126, %131 : vector<32x288xf32>
    %c0_144 = arith.constant 0 : index
    %c8 = arith.constant 8 : index
    %c0_145 = arith.constant 0 : index
    %133 = vector.load %arg10[%c0_144, %c8, %c0_145] : memref<2x28x288xbf16, #tpu.memory_space<vmem>>, vector<2x16x288xbf16>
    %134 = vector.shape_cast %133 : vector<2x16x288xbf16> to vector<32x288xbf16>
    %c4_146 = arith.constant 4 : index
    %c0_147 = arith.constant 0 : index
    %c0_148 = arith.constant 0 : index
    %135 = vector.load %arg4[%c4_146, %c0_147, %c0_148] : memref<7x288x288xbf16, #tpu.memory_space<vmem>>, vector<1x288x288xbf16>
    %136 = vector.shape_cast %135 : vector<1x288x288xbf16> to vector<288x288xbf16>
    %cst_149 = arith.constant dense<0.000000e+00> : vector<32x288xf32>
    %137 = tpu.matmul %134, %136, %cst_149 {dimension_numbers = #tpu.dot_dimension_numbers<[1], [0], [0], [1], [0, 0, 1, 1], [], []>} : vector<32x288xbf16>, vector<288x288xbf16>, vector<32x288xf32> -> vector<32x288xf32>
    %138 = arith.addf %132, %137 : vector<32x288xf32>
    %c0_150 = arith.constant 0 : index
    %c10 = arith.constant 10 : index
    %c0_151 = arith.constant 0 : index
    %139 = vector.load %arg10[%c0_150, %c10, %c0_151] : memref<2x28x288xbf16, #tpu.memory_space<vmem>>, vector<2x16x288xbf16>
    %140 = vector.shape_cast %139 : vector<2x16x288xbf16> to vector<32x288xbf16>
    %c5_152 = arith.constant 5 : index
    %c0_153 = arith.constant 0 : index
    %c0_154 = arith.constant 0 : index
    %141 = vector.load %arg4[%c5_152, %c0_153, %c0_154] : memref<7x288x288xbf16, #tpu.memory_space<vmem>>, vector<1x288x288xbf16>
    %142 = vector.shape_cast %141 : vector<1x288x288xbf16> to vector<288x288xbf16>
    %cst_155 = arith.constant dense<0.000000e+00> : vector<32x288xf32>
    %143 = tpu.matmul %140, %142, %cst_155 {dimension_numbers = #tpu.dot_dimension_numbers<[1], [0], [0], [1], [0, 0, 1, 1], [], []>} : vector<32x288xbf16>, vector<288x288xbf16>, vector<32x288xf32> -> vector<32x288xf32>
    %144 = arith.addf %138, %143 : vector<32x288xf32>
    %c0_156 = arith.constant 0 : index
    %c12 = arith.constant 12 : index
    %c0_157 = arith.constant 0 : index
    %145 = vector.load %arg10[%c0_156, %c12, %c0_157] : memref<2x28x288xbf16, #tpu.memory_space<vmem>>, vector<2x16x288xbf16>
    %146 = vector.shape_cast %145 : vector<2x16x288xbf16> to vector<32x288xbf16>
    %c6_158 = arith.constant 6 : index
    %c0_159 = arith.constant 0 : index
    %c0_160 = arith.constant 0 : index
    %147 = vector.load %arg4[%c6_158, %c0_159, %c0_160] : memref<7x288x288xbf16, #tpu.memory_space<vmem>>, vector<1x288x288xbf16>
    %148 = vector.shape_cast %147 : vector<1x288x288xbf16> to vector<288x288xbf16>
    %cst_161 = arith.constant dense<0.000000e+00> : vector<32x288xf32>
    %149 = tpu.matmul %146, %148, %cst_161 {dimension_numbers = #tpu.dot_dimension_numbers<[1], [0], [0], [1], [0, 0, 1, 1], [], []>} : vector<32x288xbf16>, vector<288x288xbf16>, vector<32x288xf32> -> vector<32x288xf32>
    %150 = arith.addf %144, %149 : vector<32x288xf32>
    %cst_162 = arith.constant 0.000000e+00 : f32
    %151 = vector.broadcast %cst_162 : f32 to vector<32x288xf32>
    %152 = arith.maximumf %150, %151 : vector<32x288xf32>
    %153 = vector.shape_cast %152 : vector<32x288xf32> to vector<2x16x288xf32>
    %c0_163 = arith.constant 0 : index
    %c0_164 = arith.constant 0 : index
    %c0_165 = arith.constant 0 : index
    %154 = vector.load %arg8[%c0_163, %c0_164, %c0_165] : memref<2x16x288xf32, #tpu.memory_space<vmem>>, vector<2x16x288xf32>
    tpu.vector_store %arg8[%c0_163, %c0_164, %c0_165], %153 {strides = array<i32>} : memref<2x16x288xf32, #tpu.memory_space<vmem>>, vector<2x16x288xf32>,
    return
  }
  func.func @transform_0(%arg0: i32) -> (i32, i32, i32) {
    %c0_i32 = arith.constant 0 : i32
    %c0_i32_0 = arith.constant 0 : i32
    %c0_i32_1 = arith.constant 0 : i32
    return %arg0, %c0_i32, %c0_i32_0 : i32, i32, i32
  }
  func.func @transform_1(%arg0: i32) -> (i32, i32, i32) {
    %c0_i32 = arith.constant 0 : i32
    %c0_i32_0 = arith.constant 0 : i32
    %c0_i32_1 = arith.constant 0 : i32
    %c0_i32_2 = arith.constant 0 : i32
    return %c0_i32, %c0_i32_0, %c0_i32_1 : i32, i32, i32
  }
  func.func @transform_2(%arg0: i32) -> (i32, i32, i32) {
    %c0_i32 = arith.constant 0 : i32
    %c0_i32_0 = arith.constant 0 : i32
    %c0_i32_1 = arith.constant 0 : i32
    %c0_i32_2 = arith.constant 0 : i32
    return %c0_i32, %c0_i32_0, %c0_i32_1 : i32, i32, i32
  }
  func.func @transform_3(%arg0: i32) -> (i32, i32, i32) {
    %c0_i32 = arith.constant 0 : i32
    %c0_i32_0 = arith.constant 0 : i32
    %c0_i32_1 = arith.constant 0 : i32
    %c0_i32_2 = arith.constant 0 : i32
    return %c0_i32, %c0_i32_0, %c0_i32_1 : i32, i32, i32
  }
  func.func @transform_4(%arg0: i32) -> (i32, i32) {
    %c0_i32 = arith.constant 0 : i32
    %c0_i32_0 = arith.constant 0 : i32
    %c0_i32_1 = arith.constant 0 : i32
    return %c0_i32, %c0_i32_0 : i32, i32
  }
  func.func @transform_5(%arg0: i32) -> (i32, i32) {
    %c0_i32 = arith.constant 0 : i32
    %c0_i32_0 = arith.constant 0 : i32
    %c0_i32_1 = arith.constant 0 : i32
    return %c0_i32, %c0_i32_0 : i32, i32
  }
  func.func @transform_6(%arg0: i32) -> (i32, i32) {
    %c0_i32 = arith.constant 0 : i32
    %c0_i32_0 = arith.constant 0 : i32
    %c0_i32_1 = arith.constant 0 : i32
    return %c0_i32, %c0_i32_0 : i32, i32
  }
  func.func @transform_7(%arg0: i32) -> (i32, i32, i32) {
    %c0_i32 = arith.constant 0 : i32
    %c0_i32_0 = arith.constant 0 : i32
    %c0_i32_1 = arith.constant 0 : i32
    return %arg0, %c0_i32, %c0_i32_0 : i32, i32, i32
  }
}

</mosaic_0001>

<llo_original>
// kernel: sfcn_forward.1
$region0: #{sfcn_forward.1}
  #allocation0 [shape = 'u32[]', space=smem, size = 0x4, offset = 0x4, fixed_abs, tag = 'smem constant byte address 0x4 - core index']
  #allocation1 [shape = 'u32[72,128]{1,0:T(1,128)}', space=vmem, size = 0x9000, scoped, tag = 'internal scratch']
  #allocation2 [shape = 'bf16[2,22,288]{2,1,0:T(8,128)(2,1)}', space=vmem, size = 0x9000, scoped, tag = 'scratch operand']
  #allocation3 [shape = 'bf16[2,28,288]{2,1,0:T(8,128)(2,1)}', space=vmem, size = 0xc000, scoped, tag = 'scratch operand']
  %s0 = inlined_call_operand.vmem [shape: bf16[2,22,48], index: 0, kind: input, shape index: {}]
  %s1 = inlined_call_operand.hbm [shape: bf16[7,48,288], index: 1, kind: input, shape index: {}]
  %s2 = inlined_call_operand.hbm [shape: bf16[7,288,288], index: 2, kind: input, shape index: {}]
  %s3 = inlined_call_operand.hbm [shape: bf16[7,288,288], index: 3, kind: input, shape index: {}]
  %s4 = inlined_call_operand.hbm [shape: f32[1,288], index: 4, kind: input, shape index: {}]
  %s5 = inlined_call_operand.hbm [shape: f32[1,288], index: 5, kind: input, shape index: {}]
  %s6 = inlined_call_operand.hbm [shape: f32[1,288], index: 6, kind: input, shape index: {}]
  %s7 = inlined_call_operand.vmem [shape: f32[2,16,288], index: 7, kind: output, shape index: {}]
  %s8 = sld [smem:[#allocation0]]
  $region62: #{sfcn_forward.1} parent=0
    _
  %s10 = ssub.s32 1, %s8
  %s11 = scalar_select 0, %s10, %s8
  $region1: #{sfcn_forward.1} parent=0
    #allocation4 [shape = 'u8[258048]{0}', space=vmem, size = 0x3f000, scoped, tag = 'input window, operand 1, single buffered']
    #allocation5 [shape = 's32[1]{0}', space=sflag, size = 0x4, scoped, tag = 'scoped memory for sfcn_forward.1']
    #allocation6 [shape = 'u8[1548288]{0}', space=vmem, size = 0x17a000, scoped, tag = 'input window, operand 2, single buffered']
    #allocation7 [shape = 's32[1]{0}', space=sflag, size = 0x4, scoped, tag = 'scoped memory for sfcn_forward.1']
    #allocation8 [shape = 'u8[1548288]{0}', space=vmem, size = 0x17a000, scoped, tag = 'input window, operand 3, single buffered']
    #allocation9 [shape = 'u8[1536]{0}', space=vmem, size = 0x800, scoped, tag = 'input window, operand 4, single buffered']
    #allocation10 [shape = 's32[1]{0}', space=sflag, size = 0x4, scoped, tag = 'scoped memory for sfcn_forward.1']
    #allocation11 [shape = 'u8[1536]{0}', space=vmem, size = 0x800, scoped, tag = 'input window, operand 5, single buffered']
    #allocation12 [shape = 'u8[1536]{0}', space=vmem, size = 0x800, scoped, tag = 'input window, operand 6, single buffered']
    #allocation13 [shape = 's32[1]{0}', space=sflag, size = 0x4, scoped, tag = 'scoped memory for sfcn_forward.1']
    %12 = vsyncpa [#allocation5], 0
    %13 = vsyncpa [#allocation7], 0
    %14 = vsyncpa [#allocation10], 0
    %15 = vsyncpa [#allocation13], 0
    // Predicated region
    $region2: #{sfcn_forward.1} parent=1 // pred_check
      _
    $region3: #{sfcn_forward.1} parent=1 // pred_check_branch
      %17 = sbr.rel (0) target = $region5
    $region4: #{sfcn_forward.1} parent=1 // pred_region
      _
    $region5: #{sfcn_forward.1} parent=1 // pred_fallthru
      _
    // Predicated region
    $region6: #{sfcn_forward.1} parent=1 // pred_check
      _
    $region7: #{sfcn_forward.1} parent=1 // pred_check_branch
      %19 = sbr.rel (0) target = $region9
    $region8: #{sfcn_forward.1} parent=1 // pred_region
      %21 = vsyncadd [#allocation5], 0
      %s22 = sshll.u32 %s1, 4
      %s23 = int_to_ptr.hbm [resolvable:$true] %s22
      %s24 = sshll.u32 [#allocation4], 4
      %s25 = int_to_ptr.vmem [resolvable:$true] %s24
      %30 = dma.hbm_to_vmem [thread:$0]  %s23, 8064, %s25, [#allocation5], 192, 192, 12
    $region9: #{sfcn_forward.1} parent=1 // pred_fallthru
      _
    // Predicated region
    $region10: #{sfcn_forward.1} parent=1 // pred_check
      _
    $region11: #{sfcn_forward.1} parent=1 // pred_check_branch
      %32 = sbr.rel (0) target = $region13
    $region12: #{sfcn_forward.1} parent=1 // pred_region
      %34 = vsyncadd [#allocation7], 0
      %s35 = sshll.u32 %s2, 4
      %s36 = int_to_ptr.hbm [resolvable:$true] %s35
      %s37 = sshll.u32 [#allocation6], 4
      %s38 = int_to_ptr.vmem [resolvable:$true] %s37
      %43 = dma.hbm_to_vmem [thread:$0]  %s36, 48384, %s38, [#allocation7], 192, 192, 12
    $region13: #{sfcn_forward.1} parent=1 // pred_fallthru
      _
    // Predicated region
    $region14: #{sfcn_forward.1} parent=1 // pred_check
      _
    $region15: #{sfcn_forward.1} parent=1 // pred_check_branch
      %45 = sbr.rel (0) target = $region17
    $region16: #{sfcn_forward.1} parent=1 // pred_region
      %47 = vsyncadd [#allocation7], 0
      %s48 = sshll.u32 %s3, 4
      %s49 = int_to_ptr.hbm [resolvable:$true] %s48
      %s50 = sshll.u32 [#allocation8], 4
      %s51 = int_to_ptr.vmem [resolvable:$true] %s50
      %56 = dma.hbm_to_vmem [thread:$0]  %s49, 48384, %s51, [#allocation7], 192, 192, 12
    $region17: #{sfcn_forward.1} parent=1 // pred_fallthru
      _
    // Predicated region
    $region18: #{sfcn_forward.1} parent=1 // pred_check
      _
    $region19: #{sfcn_forward.1} parent=1 // pred_check_branch
      %58 = sbr.rel (0) target = $region21
    $region20: #{sfcn_forward.1} parent=1 // pred_region
      %60 = vsyncadd [#allocation10], 0
      %s62 = sshll.u32 %s4, 4
      %s63 = int_to_ptr.hbm [resolvable:$true] %s62
      %s64 = sshll.u32 [#allocation9], 4
      %s65 = int_to_ptr.vmem [resolvable:$true] %s64
      %67 = dma.hbm_to_vmem [thread:$0]  %s63, 48, %s65, [#allocation10]
    $region21: #{sfcn_forward.1} parent=1 // pred_fallthru
      _
    // Predicated region
    $region22: #{sfcn_forward.1} parent=1 // pred_check
      _
    $region23: #{sfcn_forward.1} parent=1 // pred_check_branch
      %69 = sbr.rel (0) target = $region25
    $region24: #{sfcn_forward.1} parent=1 // pred_region
      %71 = vsyncadd [#allocation10], 0
      %s73 = sshll.u32 %s5, 4
      %s74 = int_to_ptr.hbm [resolvable:$true] %s73
      %s75 = sshll.u32 [#allocation11], 4
      %s76 = int_to_ptr.vmem [resolvable:$true] %s75
      %78 = dma.hbm_to_vmem [thread:$0]  %s74, 48, %s76, [#allocation10]
    $region25: #{sfcn_forward.1} parent=1 // pred_fallthru
      _
    // Predicated region
    $region26: #{sfcn_forward.1} parent=1 // pred_check
      _
    $region27: #{sfcn_forward.1} parent=1 // pred_check_branch
      %80 = sbr.rel (0) target = $region29
    $region28: #{sfcn_forward.1} parent=1 // pred_region
      %82 = vsyncadd [#allocation13], 0
      %s84 = sshll.u32 %s6, 4
      %s85 = int_to_ptr.hbm [resolvable:$true] %s84
      %s86 = sshll.u32 [#allocation12], 4
      %s87 = int_to_ptr.vmem [resolvable:$true] %s86
      %89 = dma.hbm_to_vmem [thread:$0]  %s85, 48, %s87, [#allocation13]
    $region29: #{sfcn_forward.1} parent=1 // pred_fallthru
      _
    // Predicated region
    $region30: #{sfcn_forward.1} parent=1 // pred_check
      _
    $region31: #{sfcn_forward.1} parent=1 // pred_check_branch
      %91 = sbr.rel (0) target = $region33
    $region32: #{sfcn_forward.1} parent=1 // pred_region
      %93 = dma.done [#allocation5], 8064
    $region33: #{sfcn_forward.1} parent=1 // pred_fallthru
      _
    // Predicated region
    $region34: #{sfcn_forward.1} parent=1 // pred_check
      _
    $region35: #{sfcn_forward.1} parent=1 // pred_check_branch
      %95 = sbr.rel (0) target = $region37
    $region36: #{sfcn_forward.1} parent=1 // pred_region
      %97 = dma.done [#allocation7], 48384
    $region37: #{sfcn_forward.1} parent=1 // pred_fallthru
      _
    // Predicated region
    $region38: #{sfcn_forward.1} parent=1 // pred_check
      _
    $region39: #{sfcn_forward.1} parent=1 // pred_check_branch
      %99 = sbr.rel (0) target = $region41
    $region40: #{sfcn_forward.1} parent=1 // pred_region
      %101 = dma.done [#allocation7], 48384
    $region41: #{sfcn_forward.1} parent=1 // pred_fallthru
      _
    // Predicated region
    $region42: #{sfcn_forward.1} parent=1 // pred_check
      _
    $region43: #{sfcn_forward.1} parent=1 // pred_check_branch
      %103 = sbr.rel (0) target = $region45
    $region44: #{sfcn_forward.1} parent=1 // pred_region
      %105 = dma.done [#allocation10], 48
    $region45: #{sfcn_forward.1} parent=1 // pred_fallthru
      _
    // Predicated region
    $region46: #{sfcn_forward.1} parent=1 // pred_check
      _
    $region47: #{sfcn_forward.1} parent=1 // pred_check_branch
      %107 = sbr.rel (0) target = $region49
    $region48: #{sfcn_forward.1} parent=1 // pred_region
      %109 = dma.done [#allocation10], 48
    $region49: #{sfcn_forward.1} parent=1 // pred_fallthru
      _
    // Predicated region
    $region50: #{sfcn_forward.1} parent=1 // pred_check
      _
    $region51: #{sfcn_forward.1} parent=1 // pred_check_branch
      %111 = sbr.rel (0) target = $region53
    $region52: #{sfcn_forward.1} parent=1 // pred_region
      %113 = dma.done [#allocation13], 48
    $region53: #{sfcn_forward.1} parent=1 // pred_fallthru
      _
    %v115 = vld [vmem:[#allocation9] sm:$0x7]
    %v117 = vperm.slane %v115, 0
    %v118 = vperm.slane %v115, 1
    %v119 = vperm.slane %v115, 2
    %v123 = vld [vmem:[%s0] sm:$0xf]
    %v124 = vld [vmem:[%s0 + $0x4] sm:$0xf]
    %v125 = vld [vmem:[%s0 + $0xc] sm:$0xf]
    %v126 = vld [vmem:[%s0 + $0x10] sm:$0xf]
    %v127 = vld [vmem:[#allocation4] sm:$0xff]
    %v128 = vld [vmem:[#allocation4 + $0x8] sm:$0xf]
    %v129 = vld [vmem:[#allocation4 + $0xc] sm:$0xff]
    %v130 = vld [vmem:[#allocation4 + $0x14] sm:$0xf]
    %v131 = vld [vmem:[#allocation4 + $0x18] sm:$0xff]
    %v132 = vld [vmem:[#allocation4 + $0x20] sm:$0xf]
    %v133 = vld [vmem:[#allocation4 + $0x24] sm:$0xff]
    %v134 = vld [vmem:[#allocation4 + $0x2c] sm:$0xf]
    %v135 = vld [vmem:[#allocation4 + $0x30] sm:$0xff]
    %v136 = vld [vmem:[#allocation4 + $0x38] sm:$0xf]
    %v137 = vld [vmem:[#allocation4 + $0x3c] sm:$0xff]
    %v138 = vld [vmem:[#allocation4 + $0x44] sm:$0xf]
    %v143 = vunpack.c.l.b16 %v123
    %v144 = vunpack.c.l.b16 %v124
    %v145 = vunpack.c.l.b16 %v125
    %v146 = vunpack.c.l.b16 %v126
    %v147 = vpack.c.b16 %v144, %v143
    %v148 = vpack.c.b16 %v146, %v145
    %v161 = vunpack.c.l.b16 %v127
    %v162 = vunpack.c.h.b16 %v127
    %v163 = vunpack.c.l.b16 %v128
    %v164 = vunpack.c.l.b16 %v129
    %v165 = vunpack.c.h.b16 %v129
    %v166 = vunpack.c.l.b16 %v130
    %v167 = vunpack.c.l.b16 %v131
    %v168 = vunpack.c.h.b16 %v131
    %v169 = vunpack.c.l.b16 %v132
    %v170 = vunpack.c.l.b16 %v133
    %v171 = vunpack.c.h.b16 %v133
    %v172 = vunpack.c.l.b16 %v134
    %v173 = vunpack.c.l.b16 %v135
    %v174 = vunpack.c.h.b16 %v135
    %v175 = vunpack.c.l.b16 %v136
    %v176 = vunpack.c.l.b16 %v137
    %v177 = vunpack.c.h.b16 %v137
    %v178 = vunpack.c.l.b16 %v138
    %v179 = vpack.c.b16 %v164, %v161
    %v180 = vpack.c.b16 %v165, %v162
    %v181 = vpack.c.b16 %v166, %v163
    %v182 = vpack.c.b16 %v170, %v167
    %v183 = vpack.c.b16 %v171, %v168
    %v184 = vpack.c.b16 %v172, %v169
    %v185 = vpack.c.b16 %v176, %v173
    %v186 = vpack.c.b16 %v177, %v174
    %v187 = vpack.c.b16 %v178, %v175
    %vm197 = vcmask 392192
    %v199 = vsel %vm197, %v147, 0
    %v202 = vsel %vm197, %v148, 0
    %204 = vmatpush.bf16.msra.mxu0 0
    %205 = vmatpush.bf16.msra.mxu0 0
    %206 = vmatpush.bf16.msra.mxu0 0
    %207 = vmatpush.bf16.msra.mxu0 0
    %208 = vmatpush.bf16.msra.mxu0 0
    %209 = vmatpush.bf16.msra.mxu0 %v185
    %210 = vmatpush.bf16.msra.mxu0 %v182
    %211 = vmatpush.bf16.msra.mxu0 %v179
    %212 = vmatmul.bf16.gmra.mxu0 %v199
    %v213 = vpop.f32.mrf.mxu0
    %v214 = vadd.f32 0.0, %v213
    %v215 = vpop.f32.mrf.mxu0
    %v216 = vadd.f32 0.0, %v215
    %217 = vmatmul.bf16.gmra.mxu0 %v202
    %v218 = vpop.f32.mrf.mxu0
    %v219 = vadd.f32 0.0, %v218
    %v220 = vpop.f32.mrf.mxu0
    %v221 = vadd.f32 0.0, %v220
    %222 = vdwg.mxu0
    %223 = vmatpush.bf16.msra.mxu0 0
    %224 = vmatpush.bf16.msra.mxu0 0
    %225 = vmatpush.bf16.msra.mxu0 0
    %226 = vmatpush.bf16.msra.mxu0 0
    %227 = vmatpush.bf16.msra.mxu0 0
    %228 = vmatpush.bf16.msra.mxu0 %v186
    %229 = vmatpush.bf16.msra.mxu0 %v183
    %230 = vmatpush.bf16.msra.mxu0 %v180
    %231 = vmatmul.bf16.gmra.mxu0 %v199
    %v232 = vpop.f32.mrf.mxu0
    %v233 = vadd.f32 0.0, %v232
    %v234 = vpop.f32.mrf.mxu0
    %v235 = vadd.f32 0.0, %v234
    %236 = vmatmul.bf16.gmra.mxu0 %v202
    %v237 = vpop.f32.mrf.mxu0
    %v238 = vadd.f32 0.0, %v237
    %v239 = vpop.f32.mrf.mxu0
    %v240 = vadd.f32 0.0, %v239
    %241 = vdwg.mxu0
    %242 = vmatpush.bf16.msra.mxu0 0
    %243 = vmatpush.bf16.msra.mxu0 0
    %244 = vmatpush.bf16.msra.mxu0 0
    %245 = vmatpush.bf16.msra.mxu0 0
    %246 = vmatpush.bf16.msra.mxu0 0
    %247 = vmatpush.bf16.msra.mxu0 %v187
    %248 = vmatpush.bf16.msra.mxu0 %v184
    %249 = vmatpush.bf16.msra.mxu0 %v181
    %250 = vmatmul.bf16.gmra.mxu0 %v199
    %v251 = vpop.f32.mrf.mxu0
    %v252 = vadd.f32 0.0, %v251
    %v253 = vpop.f32.mrf.mxu0
    %v254 = vadd.f32 0.0, %v253
    %255 = vmatmul.bf16.gmra.mxu0 %v202
    %v256 = vpop.f32.mrf.mxu0
    %v257 = vadd.f32 0.0, %v256
    %v258 = vpop.f32.mrf.mxu0
    %v259 = vadd.f32 0.0, %v258
    %260 = vdwg.mxu0
    %v261 = vadd.f32 %v117, %v214
    %v262 = vadd.f32 %v118, %v233
    %v263 = vadd.f32 %v119, %v252
    %v264 = vadd.f32 %v117, %v216
    %v265 = vadd.f32 %v118, %v235
    %v266 = vadd.f32 %v119, %v254
    %v267 = vadd.f32 %v117, %v219
    %v268 = vadd.f32 %v118, %v238
    %v269 = vadd.f32 %v119, %v257
    %v270 = vadd.f32 %v117, %v221
    %v271 = vadd.f32 %v118, %v240
    %v272 = vadd.f32 %v119, %v259
    %v273 = vld [vmem:[%s0] sm:$0xf]
    %v274 = vld [vmem:[%s0 + $0x4] sm:$0xf]
    %v275 = vld [vmem:[%s0 + $0x8] sm:$0x1]
    %v276 = vld [vmem:[%s0 + $0xc] sm:$0xf]
    %v277 = vld [vmem:[%s0 + $0x10] sm:$0xf]
    %v278 = vld [vmem:[%s0 + $0x14] sm:$0x1]
    %vm279 = vsmask.f32 3328
    %vm280 = vsmask.f32 7440
    %vm281 = vmor %vm279, %vm280
    %v283 = vshrl.u32 %v273, 16
    %v285 = vrot.slane %v283, 4
    %v286 = vshll.u32 %v273, 16
    %v288 = vrot.slane %v286, 5
    %v289 = vor.u32 %v285, %v288
    %v290 = vrot.slane %v289, 4
    %v292 = vshll.u32 %v274, 16
    %v294 = vrot.slane %v292, 5
    %v295 = vsel %vm281, %v290, %v294
    %v296 = vshrl.u32 %v274, 16
    %v298 = vrot.slane %v296, 4
    %v299 = vor.u32 %v298, %v294
    %v300 = vrot.slane %v299, 4
    %v302 = vshll.u32 %v275, 16
    %v304 = vrot.slane %v302, 5
    %v305 = vsel %vm281, %v300, %v304
    %v307 = vshrl.u32 %v276, 16
    %v309 = vrot.slane %v307, 4
    %v310 = vshll.u32 %v276, 16
    %v312 = vrot.slane %v310, 5
    %v313 = vor.u32 %v309, %v312
    %v314 = vrot.slane %v313, 4
    %v316 = vshll.u32 %v277, 16
    %v318 = vrot.slane %v316, 5
    %v319 = vsel %vm281, %v314, %v318
    %v320 = vshrl.u32 %v277, 16
    %v322 = vrot.slane %v320, 4
    %v323 = vor.u32 %v322, %v318
    %v324 = vrot.slane %v323, 4
    %v326 = vshll.u32 %v278, 16
    %v328 = vrot.slane %v326, 5
    %v329 = vsel %vm281, %v324, %v328
    %s330 = scalar_lea.vmem [#allocation4], 72
    %v331 = vld [vmem:[%s330] sm:$0xff]
    %v332 = vld [vmem:[%s330 + $0x8] sm:$0xf]
    %v333 = vld [vmem:[%s330 + $0xc] sm:$0xff]
    %v334 = vld [vmem:[%s330 + $0x14] sm:$0xf]
    %v335 = vld [vmem:[%s330 + $0x18] sm:$0xff]
    %v336 = vld [vmem:[%s330 + $0x20] sm:$0xf]
    %v337 = vld [vmem:[%s330 + $0x24] sm:$0xff]
    %v338 = vld [vmem:[%s330 + $0x2c] sm:$0xf]
    %v339 = vld [vmem:[%s330 + $0x30] sm:$0xff]
    %v340 = vld [vmem:[%s330 + $0x38] sm:$0xf]
    %v341 = vld [vmem:[%s330 + $0x3c] sm:$0xff]
    %v342 = vld [vmem:[%s330 + $0x44] sm:$0xf]
    %v343 = vunpack.c.l.b16 %v295
    %v344 = vunpack.c.l.b16 %v305
    %v345 = vunpack.c.l.b16 %v319
    %v346 = vunpack.c.l.b16 %v329
    %v347 = vpack.c.b16 %v344, %v343
    %v348 = vpack.c.b16 %v346, %v345
    %v361 = vunpack.c.l.b16 %v331
    %v362 = vunpack.c.h.b16 %v331
    %v363 = vunpack.c.l.b16 %v332
    %v364 = vunpack.c.l.b16 %v333
    %v365 = vunpack.c.h.b16 %v333
    %v366 = vunpack.c.l.b16 %v334
    %v367 = vunpack.c.l.b16 %v335
    %v368 = vunpack.c.h.b16 %v335
    %v369 = vunpack.c.l.b16 %v336
    %v370 = vunpack.c.l.b16 %v337
    %v371 = vunpack.c.h.b16 %v337
    %v372 = vunpack.c.l.b16 %v338
    %v373 = vunpack.c.l.b16 %v339
    %v374 = vunpack.c.h.b16 %v339
    %v375 = vunpack.c.l.b16 %v340
    %v376 = vunpack.c.l.b16 %v341
    %v377 = vunpack.c.h.b16 %v341
    %v378 = vunpack.c.l.b16 %v342
    %v379 = vpack.c.b16 %v364, %v361
    %v380 = vpack.c.b16 %v365, %v362
    %v381 = vpack.c.b16 %v366, %v363
    %v382 = vpack.c.b16 %v370, %v367
    %v383 = vpack.c.b16 %v371, %v368
    %v384 = vpack.c.b16 %v372, %v369
    %v385 = vpack.c.b16 %v376, %v373
    %v386 = vpack.c.b16 %v377, %v374
    %v387 = vpack.c.b16 %v378, %v375
    %v398 = vsel %vm197, %v347, 0
    %v401 = vsel %vm197, %v348, 0
    %403 = vmatpush.bf16.msra.mxu0 0
    %404 = vmatpush.bf16.msra.mxu0 0
    %405 = vmatpush.bf16.msra.mxu0 0
    %406 = vmatpush.bf16.msra.mxu0 0
    %407 = vmatpush.bf16.msra.mxu0 0
    %408 = vmatpush.bf16.msra.mxu0 %v385
    %409 = vmatpush.bf16.msra.mxu0 %v382
    %410 = vmatpush.bf16.msra.mxu0 %v379
    %411 = vmatmul.bf16.gmra.mxu0 %v398
    %v412 = vpop.f32.mrf.mxu0
    %v413 = vadd.f32 0.0, %v412
    %v414 = vpop.f32.mrf.mxu0
    %v415 = vadd.f32 0.0, %v414
    %416 = vmatmul.bf16.gmra.mxu0 %v401
    %v417 = vpop.f32.mrf.mxu0
    %v418 = vadd.f32 0.0, %v417
    %v419 = vpop.f32.mrf.mxu0
    %v420 = vadd.f32 0.0, %v419
    %421 = vdwg.mxu0
    %422 = vmatpush.bf16.msra.mxu0 0
    %423 = vmatpush.bf16.msra.mxu0 0
    %424 = vmatpush.bf16.msra.mxu0 0
    %425 = vmatpush.bf16.msra.mxu0 0
    %426 = vmatpush.bf16.msra.mxu0 0
    %427 = vmatpush.bf16.msra.mxu0 %v386
    %428 = vmatpush.bf16.msra.mxu0 %v383
    %429 = vmatpush.bf16.msra.mxu0 %v380
    %430 = vmatmul.bf16.gmra.mxu0 %v398
    %v431 = vpop.f32.mrf.mxu0
    %v432 = vadd.f32 0.0, %v431
    %v433 = vpop.f32.mrf.mxu0
    %v434 = vadd.f32 0.0, %v433
    %435 = vmatmul.bf16.gmra.mxu0 %v401
    %v436 = vpop.f32.mrf.mxu0
    %v437 = vadd.f32 0.0, %v436
    %v438 = vpop.f32.mrf.mxu0
    %v439 = vadd.f32 0.0, %v438
    %440 = vdwg.mxu0
    %441 = vmatpush.bf16.msra.mxu0 0
    %442 = vmatpush.bf16.msra.mxu0 0
    %443 = vmatpush.bf16.msra.mxu0 0
    %444 = vmatpush.bf16.msra.mxu0 0
    %445 = vmatpush.bf16.msra.mxu0 0
    %446 = vmatpush.bf16.msra.mxu0 %v387
    %447 = vmatpush.bf16.msra.mxu0 %v384
    %448 = vmatpush.bf16.msra.mxu0 %v381
    %449 = vmatmul.bf16.gmra.mxu0 %v398
    %v450 = vpop.f32.mrf.mxu0
    %v451 = vadd.f32 0.0, %v450
    %v452 = vpop.f32.mrf.mxu0
    %v453 = vadd.f32 0.0, %v452
    %454 = vmatmul.bf16.gmra.mxu0 %v401
    %v455 = vpop.f32.mrf.mxu0
    %v456 = vadd.f32 0.0, %v455
    %v457 = vpop.f32.mrf.mxu0
    %v458 = vadd.f32 0.0, %v457
    %459 = vdwg.mxu0
    %v460 = vadd.f32 %v261, %v413
    %v461 = vadd.f32 %v262, %v432
    %v462 = vadd.f32 %v263, %v451
    %v463 = vadd.f32 %v264, %v415
    %v464 = vadd.f32 %v265, %v434
    %v465 = vadd.f32 %v266, %v453
    %v466 = vadd.f32 %v267, %v418
    %v467 = vadd.f32 %v268, %v437
    %v468 = vadd.f32 %v269, %v456
    %v469 = vadd.f32 %v270, %v420
    %v470 = vadd.f32 %v271, %v439
    %v471 = vadd.f32 %v272, %v458
    %v472 = vld [vmem:[%s0] sm:$0xe]
    %v473 = vld [vmem:[%s0 + $0xc] sm:$0xe]
    %vm480 = vcmask 1042432
    %vm481 = vcmask 1046532
    %vm482 = vmor %vm480, %vm481
    %v483 = vrot.slane %v472, 5
    %v484 = vrot.slane %v483, 4
    %v485 = vrot.slane %v274, 5
    %v486 = vsel %vm482, %v484, %v485
    %v487 = vrot.slane %v485, 4
    %v488 = vrot.slane %v275, 5
    %v489 = vsel %vm482, %v487, %v488
    %v490 = vrot.slane %v473, 5
    %v491 = vrot.slane %v490, 4
    %v492 = vrot.slane %v277, 5
    %v493 = vsel %vm482, %v491, %v492
    %v494 = vrot.slane %v492, 4
    %v495 = vrot.slane %v278, 5
    %v496 = vsel %vm482, %v494, %v495
    %s497 = scalar_lea.vmem [#allocation4], 144
    %v498 = vld [vmem:[%s497] sm:$0xff]
    %v499 = vld [vmem:[%s497 + $0x8] sm:$0xf]
    %v500 = vld [vmem:[%s497 + $0xc] sm:$0xff]
    %v501 = vld [vmem:[%s497 + $0x14] sm:$0xf]
    %v502 = vld [vmem:[%s497 + $0x18] sm:$0xff]
    %v503 = vld [vmem:[%s497 + $0x20] sm:$0xf]
    %v504 = vld [vmem:[%s497 + $0x24] sm:$0xff]
    %v505 = vld [vmem:[%s497 + $0x2c] sm:$0xf]
    %v506 = vld [vmem:[%s497 + $0x30] sm:$0xff]
    %v507 = vld [vmem:[%s497 + $0x38] sm:$0xf]
    %v508 = vld [vmem:[%s497 + $0x3c] sm:$0xff]
    %v509 = vld [vmem:[%s497 + $0x44] sm:$0xf]
    %v510 = vunpack.c.l.b16 %v486
    %v511 = vunpack.c.l.b16 %v489
    %v512 = vunpack.c.l.b16 %v493
    %v513 = vunpack.c.l.b16 %v496
    %v514 = vpack.c.b16 %v511, %v510
    %v515 = vpack.c.b16 %v513, %v512
    %v528 = vunpack.c.l.b16 %v498
    %v529 = vunpack.c.h.b16 %v498
    %v530 = vunpack.c.l.b16 %v499
    %v531 = vunpack.c.l.b16 %v500
    %v532 = vunpack.c.h.b16 %v500
    %v533 = vunpack.c.l.b16 %v501
    %v534 = vunpack.c.l.b16 %v502
    %v535 = vunpack.c.h.b16 %v502
    %v536 = vunpack.c.l.b16 %v503
    %v537 = vunpack.c.l.b16 %v504
    %v538 = vunpack.c.h.b16 %v504
    %v539 = vunpack.c.l.b16 %v505
    %v540 = vunpack.c.l.b16 %v506
    %v541 = vunpack.c.h.b16 %v506
    %v542 = vunpack.c.l.b16 %v507
    %v543 = vunpack.c.l.b16 %v508
    %v544 = vunpack.c.h.b16 %v508
    %v545 = vunpack.c.l.b16 %v509
    %v546 = vpack.c.b16 %v531, %v528
    %v547 = vpack.c.b16 %v532, %v529
    %v548 = vpack.c.b16 %v533, %v530
    %v549 = vpack.c.b16 %v537, %v534
    %v550 = vpack.c.b16 %v538, %v535
    %v551 = vpack.c.b16 %v539, %v536
    %v552 = vpack.c.b16 %v543, %v540
    %v553 = vpack.c.b16 %v544, %v541
    %v554 = vpack.c.b16 %v545, %v542
    %v565 = vsel %vm197, %v514, 0
    %v568 = vsel %vm197, %v515, 0
    %570 = vmatpush.bf16.msra.mxu0 0
    %571 = vmatpush.bf16.msra.mxu0 0
    %572 = vmatpush.bf16.msra.mxu0 0
    %573 = vmatpush.bf16.msra.mxu0 0
    %574 = vmatpush.bf16.msra.mxu0 0
    %575 = vmatpush.bf16.msra.mxu0 %v552
    %576 = vmatpush.bf16.msra.mxu0 %v549
    %577 = vmatpush.bf16.msra.mxu0 %v546
    %578 = vmatmul.bf16.gmra.mxu0 %v565
    %v579 = vpop.f32.mrf.mxu0
    %v580 = vadd.f32 0.0, %v579
    %v581 = vpop.f32.mrf.mxu0
    %v582 = vadd.f32 0.0, %v581
    %583 = vmatmul.bf16.gmra.mxu0 %v568
    %v584 = vpop.f32.mrf.mxu0
    %v585 = vadd.f32 0.0, %v584
    %v586 = vpop.f32.mrf.mxu0
    %v587 = vadd.f32 0.0, %v586
    %588 = vdwg.mxu0
    %589 = vmatpush.bf16.msra.mxu0 0
    %590 = vmatpush.bf16.msra.mxu0 0
    %591 = vmatpush.bf16.msra.mxu0 0
    %592 = vmatpush.bf16.msra.mxu0 0
    %593 = vmatpush.bf16.msra.mxu0 0
    %594 = vmatpush.bf16.msra.mxu0 %v553
    %595 = vmatpush.bf16.msra.mxu0 %v550
    %596 = vmatpush.bf16.msra.mxu0 %v547
    %597 = vmatmul.bf16.gmra.mxu0 %v565
    %v598 = vpop.f32.mrf.mxu0
    %v599 = vadd.f32 0.0, %v598
    %v600 = vpop.f32.mrf.mxu0
    %v601 = vadd.f32 0.0, %v600
    %602 = vmatmul.bf16.gmra.mxu0 %v568
    %v603 = vpop.f32.mrf.mxu0
    %v604 = vadd.f32 0.0, %v603
    %v605 = vpop.f32.mrf.mxu0
    %v606 = vadd.f32 0.0, %v605
    %607 = vdwg.mxu0
    %608 = vmatpush.bf16.msra.mxu0 0
    %609 = vmatpush.bf16.msra.mxu0 0
    %610 = vmatpush.bf16.msra.mxu0 0
    %611 = vmatpush.bf16.msra.mxu0 0
    %612 = vmatpush.bf16.msra.mxu0 0
    %613 = vmatpush.bf16.msra.mxu0 %v554
    %614 = vmatpush.bf16.msra.mxu0 %v551
    %615 = vmatpush.bf16.msra.mxu0 %v548
    %616 = vmatmul.bf16.gmra.mxu0 %v565
    %v617 = vpop.f32.mrf.mxu0
    %v618 = vadd.f32 0.0, %v617
    %v619 = vpop.f32.mrf.mxu0
    %v620 = vadd.f32 0.0, %v619
    %621 = vmatmul.bf16.gmra.mxu0 %v568
    %v622 = vpop.f32.mrf.mxu0
    %v623 = vadd.f32 0.0, %v622
    %v624 = vpop.f32.mrf.mxu0
    %v625 = vadd.f32 0.0, %v624
    %626 = vdwg.mxu0
    %v627 = vadd.f32 %v460, %v580
    %v628 = vadd.f32 %v461, %v599
    %v629 = vadd.f32 %v462, %v618
    %v630 = vadd.f32 %v463, %v582
    %v631 = vadd.f32 %v464, %v601
    %v632 = vadd.f32 %v465, %v620
    %v633 = vadd.f32 %v466, %v585
    %v634 = vadd.f32 %v467, %v604
    %v635 = vadd.f32 %v468, %v623
    %v636 = vadd.f32 %v469, %v587
    %v637 = vadd.f32 %v470, %v606
    %v638 = vadd.f32 %v471, %v625
    %v639 = vld [vmem:[%s0 + $0x8] sm:$0x3]
    %v640 = vld [vmem:[%s0 + $0x14] sm:$0x3]
    %vm641 = vsmask.f32 2304
    %vm642 = vsmask.f32 6416
    %vm643 = vmor %vm641, %vm642
    %v645 = vshrl.u32 %v472, 16
    %v647 = vrot.slane %v645, 5
    %v648 = vshll.u32 %v472, 16
    %v650 = vrot.slane %v648, 6
    %v651 = vor.u32 %v647, %v650
    %v652 = vrot.slane %v651, 4
    %v653 = vrot.slane %v296, 5
    %v654 = vrot.slane %v292, 6
    %v655 = vor.u32 %v653, %v654
    %v656 = vsel %vm643, %v652, %v655
    %v657 = vrot.slane %v655, 4
    %v659 = vshrl.u32 %v639, 16
    %v661 = vrot.slane %v659, 5
    %v662 = vshll.u32 %v639, 16
    %v664 = vrot.slane %v662, 6
    %v665 = vor.u32 %v661, %v664
    %v666 = vsel %vm643, %v657, %v665
    %v668 = vshrl.u32 %v473, 16
    %v670 = vrot.slane %v668, 5
    %v671 = vshll.u32 %v473, 16
    %v673 = vrot.slane %v671, 6
    %v674 = vor.u32 %v670, %v673
    %v675 = vrot.slane %v674, 4
    %v676 = vrot.slane %v320, 5
    %v677 = vrot.slane %v316, 6
    %v678 = vor.u32 %v676, %v677
    %v679 = vsel %vm643, %v675, %v678
    %v680 = vrot.slane %v678, 4
    %v682 = vshrl.u32 %v640, 16
    %v684 = vrot.slane %v682, 5
    %v685 = vshll.u32 %v640, 16
    %v687 = vrot.slane %v685, 6
    %v688 = vor.u32 %v684, %v687
    %v689 = vsel %vm643, %v680, %v688
    %s690 = scalar_lea.vmem [#allocation4], 216
    %v691 = vld [vmem:[%s690] sm:$0xff]
    %v692 = vld [vmem:[%s690 + $0x8] sm:$0xf]
    %v693 = vld [vmem:[%s690 + $0xc] sm:$0xff]
    %v694 = vld [vmem:[%s690 + $0x14] sm:$0xf]
    %v695 = vld [vmem:[%s690 + $0x18] sm:$0xff]
    %v696 = vld [vmem:[%s690 + $0x20] sm:$0xf]
    %v697 = vld [vmem:[%s690 + $0x24] sm:$0xff]
    %v698 = vld [vmem:[%s690 + $0x2c] sm:$0xf]
    %v699 = vld [vmem:[%s690 + $0x30] sm:$0xff]
    %v700 = vld [vmem:[%s690 + $0x38] sm:$0xf]
    %v701 = vld [vmem:[%s690 + $0x3c] sm:$0xff]
    %v702 = vld [vmem:[%s690 + $0x44] sm:$0xf]
    %v703 = vunpack.c.l.b16 %v656
    %v704 = vunpack.c.l.b16 %v666
    %v705 = vunpack.c.l.b16 %v679
    %v706 = vunpack.c.l.b16 %v689
    %v707 = vpack.c.b16 %v704, %v703
    %v708 = vpack.c.b16 %v706, %v705
    %v721 = vunpack.c.l.b16 %v691
    %v722 = vunpack.c.h.b16 %v691
    %v723 = vunpack.c.l.b16 %v692
    %v724 = vunpack.c.l.b16 %v693
    %v725 = vunpack.c.h.b16 %v693
    %v726 = vunpack.c.l.b16 %v694
    %v727 = vunpack.c.l.b16 %v695
    %v728 = vunpack.c.h.b16 %v695
    %v729 = vunpack.c.l.b16 %v696
    %v730 = vunpack.c.l.b16 %v697
    %v731 = vunpack.c.h.b16 %v697
    %v732 = vunpack.c.l.b16 %v698
    %v733 = vunpack.c.l.b16 %v699
    %v734 = vunpack.c.h.b16 %v699
    %v735 = vunpack.c.l.b16 %v700
    %v736 = vunpack.c.l.b16 %v701
    %v737 = vunpack.c.h.b16 %v701
    %v738 = vunpack.c.l.b16 %v702
    %v739 = vpack.c.b16 %v724, %v721
    %v740 = vpack.c.b16 %v725, %v722
    %v741 = vpack.c.b16 %v726, %v723
    %v742 = vpack.c.b16 %v730, %v727
    %v743 = vpack.c.b16 %v731, %v728
    %v744 = vpack.c.b16 %v732, %v729
    %v745 = vpack.c.b16 %v736, %v733
    %v746 = vpack.c.b16 %v737, %v734
    %v747 = vpack.c.b16 %v738, %v735
    %v758 = vsel %vm197, %v707, 0
    %v761 = vsel %vm197, %v708, 0
    %763 = vmatpush.bf16.msra.mxu0 0
    %764 = vmatpush.bf16.msra.mxu0 0
    %765 = vmatpush.bf16.msra.mxu0 0
    %766 = vmatpush.bf16.msra.mxu0 0
    %767 = vmatpush.bf16.msra.mxu0 0
    %768 = vmatpush.bf16.msra.mxu0 %v745
    %769 = vmatpush.bf16.msra.mxu0 %v742
    %770 = vmatpush.bf16.msra.mxu0 %v739
    %771 = vmatmul.bf16.gmra.mxu0 %v758
    %v772 = vpop.f32.mrf.mxu0
    %v773 = vadd.f32 0.0, %v772
    %v774 = vpop.f32.mrf.mxu0
    %v775 = vadd.f32 0.0, %v774
    %776 = vmatmul.bf16.gmra.mxu0 %v761
    %v777 = vpop.f32.mrf.mxu0
    %v778 = vadd.f32 0.0, %v777
    %v779 = vpop.f32.mrf.mxu0
    %v780 = vadd.f32 0.0, %v779
    %781 = vdwg.mxu0
    %782 = vmatpush.bf16.msra.mxu0 0
    %783 = vmatpush.bf16.msra.mxu0 0
    %784 = vmatpush.bf16.msra.mxu0 0
    %785 = vmatpush.bf16.msra.mxu0 0
    %786 = vmatpush.bf16.msra.mxu0 0
    %787 = vmatpush.bf16.msra.mxu0 %v746
    %788 = vmatpush.bf16.msra.mxu0 %v743
    %789 = vmatpush.bf16.msra.mxu0 %v740
    %790 = vmatmul.bf16.gmra.mxu0 %v758
    %v791 = vpop.f32.mrf.mxu0
    %v792 = vadd.f32 0.0, %v791
    %v793 = vpop.f32.mrf.mxu0
    %v794 = vadd.f32 0.0, %v793
    %795 = vmatmul.bf16.gmra.mxu0 %v761
    %v796 = vpop.f32.mrf.mxu0
    %v797 = vadd.f32 0.0, %v796
    %v798 = vpop.f32.mrf.mxu0
    %v799 = vadd.f32 0.0, %v798
    %800 = vdwg.mxu0
    %801 = vmatpush.bf16.msra.mxu0 0
    %802 = vmatpush.bf16.msra.mxu0 0
    %803 = vmatpush.bf16.msra.mxu0 0
    %804 = vmatpush.bf16.msra.mxu0 0
    %805 = vmatpush.bf16.msra.mxu0 0
    %806 = vmatpush.bf16.msra.mxu0 %v747
    %807 = vmatpush.bf16.msra.mxu0 %v744
    %808 = vmatpush.bf16.msra.mxu0 %v741
    %809 = vmatmul.bf16.gmra.mxu0 %v758
    %v810 = vpop.f32.mrf.mxu0
    %v811 = vadd.f32 0.0, %v810
    %v812 = vpop.f32.mrf.mxu0
    %v813 = vadd.f32 0.0, %v812
    %814 = vmatmul.bf16.gmra.mxu0 %v761
    %v815 = vpop.f32.mrf.mxu0
    %v816 = vadd.f32 0.0, %v815
    %v817 = vpop.f32.mrf.mxu0
    %v818 = vadd.f32 0.0, %v817
    %819 = vdwg.mxu0
    %v820 = vadd.f32 %v627, %v773
    %v821 = vadd.f32 %v628, %v792
    %v822 = vadd.f32 %v629, %v811
    %v823 = vadd.f32 %v630, %v775
    %v824 = vadd.f32 %v631, %v794
    %v825 = vadd.f32 %v632, %v813
    %v826 = vadd.f32 %v633, %v778
    %v827 = vadd.f32 %v634, %v797
    %v828 = vadd.f32 %v635, %v816
    %v829 = vadd.f32 %v636, %v780
    %v830 = vadd.f32 %v637, %v799
    %v831 = vadd.f32 %v638, %v818
    %v832 = vld [vmem:[%s0] sm:$0xc]
    %v833 = vld [vmem:[%s0 + $0xc] sm:$0xc]
    %vm838 = vcmask 1041408
    %vm839 = vcmask 1045508
    %vm840 = vmor %vm838, %vm839
    %v841 = vrot.slane %v832, 6
    %v842 = vrot.slane %v841, 4
    %v843 = vrot.slane %v274, 6
    %v844 = vsel %vm840, %v842, %v843
    %v845 = vrot.slane %v843, 4
    %v846 = vrot.slane %v639, 6
    %v847 = vsel %vm840, %v845, %v846
    %v848 = vrot.slane %v833, 6
    %v849 = vrot.slane %v848, 4
    %v850 = vrot.slane %v277, 6
    %v851 = vsel %vm840, %v849, %v850
    %v852 = vrot.slane %v850, 4
    %v853 = vrot.slane %v640, 6
    %v854 = vsel %vm840, %v852, %v853
    %s855 = scalar_lea.vmem [#allocation4], 288
    %v856 = vld [vmem:[%s855] sm:$0xff]
    %v857 = vld [vmem:[%s855 + $0x8] sm:$0xf]
    %v858 = vld [vmem:[%s855 + $0xc] sm:$0xff]
    %v859 = vld [vmem:[%s855 + $0x14] sm:$0xf]
    %v860 = vld [vmem:[%s855 + $0x18] sm:$0xff]
    %v861 = vld [vmem:[%s855 + $0x20] sm:$0xf]
    %v862 = vld [vmem:[%s855 + $0x24] sm:$0xff]
    %v863 = vld [vmem:[%s855 + $0x2c] sm:$0xf]
    %v864 = vld [vmem:[%s855 + $0x30] sm:$0xff]
    %v865 = vld [vmem:[%s855 + $0x38] sm:$0xf]
    %v866 = vld [vmem:[%s855 + $0x3c] sm:$0xff]
    %v867 = vld [vmem:[%s855 + $0x44] sm:$0xf]
    %v868 = vunpack.c.l.b16 %v844
    %v869 = vunpack.c.l.b16 %v847
    %v870 = vunpack.c.l.b16 %v851
    %v871 = vunpack.c.l.b16 %v854
    %v872 = vpack.c.b16 %v869, %v868
    %v873 = vpack.c.b16 %v871, %v870
    %v886 = vunpack.c.l.b16 %v856
    %v887 = vunpack.c.h.b16 %v856
    %v888 = vunpack.c.l.b16 %v857
    %v889 = vunpack.c.l.b16 %v858
    %v890 = vunpack.c.h.b16 %v858
    %v891 = vunpack.c.l.b16 %v859
    %v892 = vunpack.c.l.b16 %v860
    %v893 = vunpack.c.h.b16 %v860
    %v894 = vunpack.c.l.b16 %v861
    %v895 = vunpack.c.l.b16 %v862
    %v896 = vunpack.c.h.b16 %v862
    %v897 = vunpack.c.l.b16 %v863
    %v898 = vunpack.c.l.b16 %v864
    %v899 = vunpack.c.h.b16 %v864
    %v900 = vunpack.c.l.b16 %v865
    %v901 = vunpack.c.l.b16 %v866
    %v902 = vunpack.c.h.b16 %v866
    %v903 = vunpack.c.l.b16 %v867
    %v904 = vpack.c.b16 %v889, %v886
    %v905 = vpack.c.b16 %v890, %v887
    %v906 = vpack.c.b16 %v891, %v888
    %v907 = vpack.c.b16 %v895, %v892
    %v908 = vpack.c.b16 %v896, %v893
    %v909 = vpack.c.b16 %v897, %v894
    %v910 = vpack.c.b16 %v901, %v898
    %v911 = vpack.c.b16 %v902, %v899
    %v912 = vpack.c.b16 %v903, %v900
    %v923 = vsel %vm197, %v872, 0
    %v926 = vsel %vm197, %v873, 0
    %928 = vmatpush.bf16.msra.mxu0 0
    %929 = vmatpush.bf16.msra.mxu0 0
    %930 = vmatpush.bf16.msra.mxu0 0
    %931 = vmatpush.bf16.msra.mxu0 0
    %932 = vmatpush.bf16.msra.mxu0 0
    %933 = vmatpush.bf16.msra.mxu0 %v910
    %934 = vmatpush.bf16.msra.mxu0 %v907
    %935 = vmatpush.bf16.msra.mxu0 %v904
    %936 = vmatmul.bf16.gmra.mxu0 %v923
    %v937 = vpop.f32.mrf.mxu0
    %v938 = vadd.f32 0.0, %v937
    %v939 = vpop.f32.mrf.mxu0
    %v940 = vadd.f32 0.0, %v939
    %941 = vmatmul.bf16.gmra.mxu0 %v926
    %v942 = vpop.f32.mrf.mxu0
    %v943 = vadd.f32 0.0, %v942
    %v944 = vpop.f32.mrf.mxu0
    %v945 = vadd.f32 0.0, %v944
    %946 = vdwg.mxu0
    %947 = vmatpush.bf16.msra.mxu0 0
    %948 = vmatpush.bf16.msra.mxu0 0
    %949 = vmatpush.bf16.msra.mxu0 0
    %950 = vmatpush.bf16.msra.mxu0 0
    %951 = vmatpush.bf16.msra.mxu0 0
    %952 = vmatpush.bf16.msra.mxu0 %v911
    %953 = vmatpush.bf16.msra.mxu0 %v908
    %954 = vmatpush.bf16.msra.mxu0 %v905
    %955 = vmatmul.bf16.gmra.mxu0 %v923
    %v956 = vpop.f32.mrf.mxu0
    %v957 = vadd.f32 0.0, %v956
    %v958 = vpop.f32.mrf.mxu0
    %v959 = vadd.f32 0.0, %v958
    %960 = vmatmul.bf16.gmra.mxu0 %v926
    %v961 = vpop.f32.mrf.mxu0
    %v962 = vadd.f32 0.0, %v961
    %v963 = vpop.f32.mrf.mxu0
    %v964 = vadd.f32 0.0, %v963
    %965 = vdwg.mxu0
    %966 = vmatpush.bf16.msra.mxu0 0
    %967 = vmatpush.bf16.msra.mxu0 0
    %968 = vmatpush.bf16.msra.mxu0 0
    %969 = vmatpush.bf16.msra.mxu0 0
    %970 = vmatpush.bf16.msra.mxu0 0
    %971 = vmatpush.bf16.msra.mxu0 %v912
    %972 = vmatpush.bf16.msra.mxu0 %v909
    %973 = vmatpush.bf16.msra.mxu0 %v906
    %974 = vmatmul.bf16.gmra.mxu0 %v923
    %v975 = vpop.f32.mrf.mxu0
    %v976 = vadd.f32 0.0, %v975
    %v977 = vpop.f32.mrf.mxu0
    %v978 = vadd.f32 0.0, %v977
    %979 = vmatmul.bf16.gmra.mxu0 %v926
    %v980 = vpop.f32.mrf.mxu0
    %v981 = vadd.f32 0.0, %v980
    %v982 = vpop.f32.mrf.mxu0
    %v983 = vadd.f32 0.0, %v982
    %984 = vdwg.mxu0
    %v985 = vadd.f32 %v820, %v938
    %v986 = vadd.f32 %v821, %v957
    %v987 = vadd.f32 %v822, %v976
    %v988 = vadd.f32 %v823, %v940
    %v989 = vadd.f32 %v824, %v959
    %v990 = vadd.f32 %v825, %v978
    %v991 = vadd.f32 %v826, %v943
    %v992 = vadd.f32 %v827, %v962
    %v993 = vadd.f32 %v828, %v981
    %v994 = vadd.f32 %v829, %v945
    %v995 = vadd.f32 %v830, %v964
    %v996 = vadd.f32 %v831, %v983
    %v997 = vld [vmem:[%s0 + $0x8] sm:$0x7]
    %v998 = vld [vmem:[%s0 + $0x14] sm:$0x7]
    %vm999 = vsmask.f32 1280
    %vm1000 = vsmask.f32 5392
    %vm1001 = vmor %vm999, %vm1000
    %v1003 = vshrl.u32 %v832, 16
    %v1005 = vrot.slane %v1003, 6
    %v1006 = vshll.u32 %v832, 16
    %v1008 = vrot.slane %v1006, 7
    %v1009 = vor.u32 %v1005, %v1008
    %v1010 = vrot.slane %v1009, 4
    %v1011 = vrot.slane %v296, 6
    %v1012 = vrot.slane %v292, 7
    %v1013 = vor.u32 %v1011, %v1012
    %v1014 = vsel %vm1001, %v1010, %v1013
    %v1015 = vrot.slane %v1013, 4
    %v1017 = vshrl.u32 %v997, 16
    %v1019 = vrot.slane %v1017, 6
    %v1020 = vshll.u32 %v997, 16
    %v1022 = vrot.slane %v1020, 7
    %v1023 = vor.u32 %v1019, %v1022
    %v1024 = vsel %vm1001, %v1015, %v1023
    %v1026 = vshrl.u32 %v833, 16
    %v1028 = vrot.slane %v1026, 6
    %v1029 = vshll.u32 %v833, 16
    %v1031 = vrot.slane %v1029, 7
    %v1032 = vor.u32 %v1028, %v1031
    %v1033 = vrot.slane %v1032, 4
    %v1034 = vrot.slane %v320, 6
    %v1035 = vrot.slane %v316, 7
    %v1036 = vor.u32 %v1034, %v1035
    %v1037 = vsel %vm1001, %v1033, %v1036
    %v1038 = vrot.slane %v1036, 4
    %v1040 = vshrl.u32 %v998, 16
    %v1042 = vrot.slane %v1040, 6
    %v1043 = vshll.u32 %v998, 16
    %v1045 = vrot.slane %v1043, 7
    %v1046 = vor.u32 %v1042, %v1045
    %v1047 = vsel %vm1001, %v1038, %v1046
    %s1048 = scalar_lea.vmem [#allocation4], 360
    %v1049 = vld [vmem:[%s1048] sm:$0xff]
    %v1050 = vld [vmem:[%s1048 + $0x8] sm:$0xf]
    %v1051 = vld [vmem:[%s1048 + $0xc] sm:$0xff]
    %v1052 = vld [vmem:[%s1048 + $0x14] sm:$0xf]
    %v1053 = vld [vmem:[%s1048 + $0x18] sm:$0xff]
    %v1054 = vld [vmem:[%s1048 + $0x20] sm:$0xf]
    %v1055 = vld [vmem:[%s1048 + $0x24] sm:$0xff]
    %v1056 = vld [vmem:[%s1048 + $0x2c] sm:$0xf]
    %v1057 = vld [vmem:[%s1048 + $0x30] sm:$0xff]
    %v1058 = vld [vmem:[%s1048 + $0x38] sm:$0xf]
    %v1059 = vld [vmem:[%s1048 + $0x3c] sm:$0xff]
    %v1060 = vld [vmem:[%s1048 + $0x44] sm:$0xf]
    %v1061 = vunpack.c.l.b16 %v1014
    %v1062 = vunpack.c.l.b16 %v1024
    %v1063 = vunpack.c.l.b16 %v1037
    %v1064 = vunpack.c.l.b16 %v1047
    %v1065 = vpack.c.b16 %v1062, %v1061
    %v1066 = vpack.c.b16 %v1064, %v1063
    %v1079 = vunpack.c.l.b16 %v1049
    %v1080 = vunpack.c.h.b16 %v1049
    %v1081 = vunpack.c.l.b16 %v1050
    %v1082 = vunpack.c.l.b16 %v1051
    %v1083 = vunpack.c.h.b16 %v1051
    %v1084 = vunpack.c.l.b16 %v1052
    %v1085 = vunpack.c.l.b16 %v1053
    %v1086 = vunpack.c.h.b16 %v1053
    %v1087 = vunpack.c.l.b16 %v1054
    %v1088 = vunpack.c.l.b16 %v1055
    %v1089 = vunpack.c.h.b16 %v1055
    %v1090 = vunpack.c.l.b16 %v1056
    %v1091 = vunpack.c.l.b16 %v1057
    %v1092 = vunpack.c.h.b16 %v1057
    %v1093 = vunpack.c.l.b16 %v1058
    %v1094 = vunpack.c.l.b16 %v1059
    %v1095 = vunpack.c.h.b16 %v1059
    %v1096 = vunpack.c.l.b16 %v1060
    %v1097 = vpack.c.b16 %v1082, %v1079
    %v1098 = vpack.c.b16 %v1083, %v1080
    %v1099 = vpack.c.b16 %v1084, %v1081
    %v1100 = vpack.c.b16 %v1088, %v1085
    %v1101 = vpack.c.b16 %v1089, %v1086
    %v1102 = vpack.c.b16 %v1090, %v1087
    %v1103 = vpack.c.b16 %v1094, %v1091
    %v1104 = vpack.c.b16 %v1095, %v1092
    %v1105 = vpack.c.b16 %v1096, %v1093
    %v1116 = vsel %vm197, %v1065, 0
    %v1119 = vsel %vm197, %v1066, 0
    %1121 = vmatpush.bf16.msra.mxu0 0
    %1122 = vmatpush.bf16.msra.mxu0 0
    %1123 = vmatpush.bf16.msra.mxu0 0
    %1124 = vmatpush.bf16.msra.mxu0 0
    %1125 = vmatpush.bf16.msra.mxu0 0
    %1126 = vmatpush.bf16.msra.mxu0 %v1103
    %1127 = vmatpush.bf16.msra.mxu0 %v1100
    %1128 = vmatpush.bf16.msra.mxu0 %v1097
    %1129 = vmatmul.bf16.gmra.mxu0 %v1116
    %v1130 = vpop.f32.mrf.mxu0
    %v1131 = vadd.f32 0.0, %v1130
    %v1132 = vpop.f32.mrf.mxu0
    %v1133 = vadd.f32 0.0, %v1132
    %1134 = vmatmul.bf16.gmra.mxu0 %v1119
    %v1135 = vpop.f32.mrf.mxu0
    %v1136 = vadd.f32 0.0, %v1135
    %v1137 = vpop.f32.mrf.mxu0
    %v1138 = vadd.f32 0.0, %v1137
    %1139 = vdwg.mxu0
    %1140 = vmatpush.bf16.msra.mxu0 0
    %1141 = vmatpush.bf16.msra.mxu0 0
    %1142 = vmatpush.bf16.msra.mxu0 0
    %1143 = vmatpush.bf16.msra.mxu0 0
    %1144 = vmatpush.bf16.msra.mxu0 0
    %1145 = vmatpush.bf16.msra.mxu0 %v1104
    %1146 = vmatpush.bf16.msra.mxu0 %v1101
    %1147 = vmatpush.bf16.msra.mxu0 %v1098
    %1148 = vmatmul.bf16.gmra.mxu0 %v1116
    %v1149 = vpop.f32.mrf.mxu0
    %v1150 = vadd.f32 0.0, %v1149
    %v1151 = vpop.f32.mrf.mxu0
    %v1152 = vadd.f32 0.0, %v1151
    %1153 = vmatmul.bf16.gmra.mxu0 %v1119
    %v1154 = vpop.f32.mrf.mxu0
    %v1155 = vadd.f32 0.0, %v1154
    %v1156 = vpop.f32.mrf.mxu0
    %v1157 = vadd.f32 0.0, %v1156
    %1158 = vdwg.mxu0
    %1159 = vmatpush.bf16.msra.mxu0 0
    %1160 = vmatpush.bf16.msra.mxu0 0
    %1161 = vmatpush.bf16.msra.mxu0 0
    %1162 = vmatpush.bf16.msra.mxu0 0
    %1163 = vmatpush.bf16.msra.mxu0 0
    %1164 = vmatpush.bf16.msra.mxu0 %v1105
    %1165 = vmatpush.bf16.msra.mxu0 %v1102
    %1166 = vmatpush.bf16.msra.mxu0 %v1099
    %1167 = vmatmul.bf16.gmra.mxu0 %v1116
    %v1168 = vpop.f32.mrf.mxu0
    %v1169 = vadd.f32 0.0, %v1168
    %v1170 = vpop.f32.mrf.mxu0
    %v1171 = vadd.f32 0.0, %v1170
    %1172 = vmatmul.bf16.gmra.mxu0 %v1119
    %v1173 = vpop.f32.mrf.mxu0
    %v1174 = vadd.f32 0.0, %v1173
    %v1175 = vpop.f32.mrf.mxu0
    %v1176 = vadd.f32 0.0, %v1175
    %1177 = vdwg.mxu0
    %v1178 = vadd.f32 %v985, %v1131
    %v1179 = vadd.f32 %v986, %v1150
    %v1180 = vadd.f32 %v987, %v1169
    %v1181 = vadd.f32 %v988, %v1133
    %v1182 = vadd.f32 %v989, %v1152
    %v1183 = vadd.f32 %v990, %v1171
    %v1184 = vadd.f32 %v991, %v1136
    %v1185 = vadd.f32 %v992, %v1155
    %v1186 = vadd.f32 %v993, %v1174
    %v1187 = vadd.f32 %v994, %v1138
    %v1188 = vadd.f32 %v995, %v1157
    %v1189 = vadd.f32 %v996, %v1176
    %v1190 = vld [vmem:[%s0] sm:$0x8]
    %v1191 = vld [vmem:[%s0 + $0xc] sm:$0x8]
    %vm1196 = vcmask 1040384
    %vm1197 = vcmask 1044484
    %vm1198 = vmor %vm1196, %vm1197
    %v1199 = vrot.slane %v1190, 7
    %v1200 = vrot.slane %v1199, 4
    %v1201 = vrot.slane %v274, 7
    %v1202 = vsel %vm1198, %v1200, %v1201
    %v1203 = vrot.slane %v1201, 4
    %v1204 = vrot.slane %v997, 7
    %v1205 = vsel %vm1198, %v1203, %v1204
    %v1206 = vrot.slane %v1191, 7
    %v1207 = vrot.slane %v1206, 4
    %v1208 = vrot.slane %v277, 7
    %v1209 = vsel %vm1198, %v1207, %v1208
    %v1210 = vrot.slane %v1208, 4
    %v1211 = vrot.slane %v998, 7
    %v1212 = vsel %vm1198, %v1210, %v1211
    %s1213 = scalar_lea.vmem [#allocation4], 432
    %v1214 = vld [vmem:[%s1213] sm:$0xff]
    %v1215 = vld [vmem:[%s1213 + $0x8] sm:$0xf]
    %v1216 = vld [vmem:[%s1213 + $0xc] sm:$0xff]
    %v1217 = vld [vmem:[%s1213 + $0x14] sm:$0xf]
    %v1218 = vld [vmem:[%s1213 + $0x18] sm:$0xff]
    %v1219 = vld [vmem:[%s1213 + $0x20] sm:$0xf]
    %v1220 = vld [vmem:[%s1213 + $0x24] sm:$0xff]
    %v1221 = vld [vmem:[%s1213 + $0x2c] sm:$0xf]
    %v1222 = vld [vmem:[%s1213 + $0x30] sm:$0xff]
    %v1223 = vld [vmem:[%s1213 + $0x38] sm:$0xf]
    %v1224 = vld [vmem:[%s1213 + $0x3c] sm:$0xff]
    %v1225 = vld [vmem:[%s1213 + $0x44] sm:$0xf]
    %v1226 = vunpack.c.l.b16 %v1202
    %v1227 = vunpack.c.l.b16 %v1205
    %v1228 = vunpack.c.l.b16 %v1209
    %v1229 = vunpack.c.l.b16 %v1212
    %v1230 = vpack.c.b16 %v1227, %v1226
    %v1231 = vpack.c.b16 %v1229, %v1228
    %v1244 = vunpack.c.l.b16 %v1214
    %v1245 = vunpack.c.h.b16 %v1214
    %v1246 = vunpack.c.l.b16 %v1215
    %v1247 = vunpack.c.l.b16 %v1216
    %v1248 = vunpack.c.h.b16 %v1216
    %v1249 = vunpack.c.l.b16 %v1217
    %v1250 = vunpack.c.l.b16 %v1218
    %v1251 = vunpack.c.h.b16 %v1218
    %v1252 = vunpack.c.l.b16 %v1219
    %v1253 = vunpack.c.l.b16 %v1220
    %v1254 = vunpack.c.h.b16 %v1220
    %v1255 = vunpack.c.l.b16 %v1221
    %v1256 = vunpack.c.l.b16 %v1222
    %v1257 = vunpack.c.h.b16 %v1222
    %v1258 = vunpack.c.l.b16 %v1223
    %v1259 = vunpack.c.l.b16 %v1224
    %v1260 = vunpack.c.h.b16 %v1224
    %v1261 = vunpack.c.l.b16 %v1225
    %v1262 = vpack.c.b16 %v1247, %v1244
    %v1263 = vpack.c.b16 %v1248, %v1245
    %v1264 = vpack.c.b16 %v1249, %v1246
    %v1265 = vpack.c.b16 %v1253, %v1250
    %v1266 = vpack.c.b16 %v1254, %v1251
    %v1267 = vpack.c.b16 %v1255, %v1252
    %v1268 = vpack.c.b16 %v1259, %v1256
    %v1269 = vpack.c.b16 %v1260, %v1257
    %v1270 = vpack.c.b16 %v1261, %v1258
    %v1281 = vsel %vm197, %v1230, 0
    %v1284 = vsel %vm197, %v1231, 0
    %1286 = vmatpush.bf16.msra.mxu0 0
    %1287 = vmatpush.bf16.msra.mxu0 0
    %1288 = vmatpush.bf16.msra.mxu0 0
    %1289 = vmatpush.bf16.msra.mxu0 0
    %1290 = vmatpush.bf16.msra.mxu0 0
    %1291 = vmatpush.bf16.msra.mxu0 %v1268
    %1292 = vmatpush.bf16.msra.mxu0 %v1265
    %1293 = vmatpush.bf16.msra.mxu0 %v1262
    %1294 = vmatmul.bf16.gmra.mxu0 %v1281
    %v1295 = vpop.f32.mrf.mxu0
    %v1296 = vadd.f32 0.0, %v1295
    %v1297 = vpop.f32.mrf.mxu0
    %v1298 = vadd.f32 0.0, %v1297
    %1299 = vmatmul.bf16.gmra.mxu0 %v1284
    %v1300 = vpop.f32.mrf.mxu0
    %v1301 = vadd.f32 0.0, %v1300
    %v1302 = vpop.f32.mrf.mxu0
    %v1303 = vadd.f32 0.0, %v1302
    %1304 = vdwg.mxu0
    %1305 = vmatpush.bf16.msra.mxu0 0
    %1306 = vmatpush.bf16.msra.mxu0 0
    %1307 = vmatpush.bf16.msra.mxu0 0
    %1308 = vmatpush.bf16.msra.mxu0 0
    %1309 = vmatpush.bf16.msra.mxu0 0
    %1310 = vmatpush.bf16.msra.mxu0 %v1269
    %1311 = vmatpush.bf16.msra.mxu0 %v1266
    %1312 = vmatpush.bf16.msra.mxu0 %v1263
    %1313 = vmatmul.bf16.gmra.mxu0 %v1281
    %v1314 = vpop.f32.mrf.mxu0
    %v1315 = vadd.f32 0.0, %v1314
    %v1316 = vpop.f32.mrf.mxu0
    %v1317 = vadd.f32 0.0, %v1316
    %1318 = vmatmul.bf16.gmra.mxu0 %v1284
    %v1319 = vpop.f32.mrf.mxu0
    %v1320 = vadd.f32 0.0, %v1319
    %v1321 = vpop.f32.mrf.mxu0
    %v1322 = vadd.f32 0.0, %v1321
    %1323 = vdwg.mxu0
    %1324 = vmatpush.bf16.msra.mxu0 0
    %1325 = vmatpush.bf16.msra.mxu0 0
    %1326 = vmatpush.bf16.msra.mxu0 0
    %1327 = vmatpush.bf16.msra.mxu0 0
    %1328 = vmatpush.bf16.msra.mxu0 0
    %1329 = vmatpush.bf16.msra.mxu0 %v1270
    %1330 = vmatpush.bf16.msra.mxu0 %v1267
    %1331 = vmatpush.bf16.msra.mxu0 %v1264
    %1332 = vmatmul.bf16.gmra.mxu0 %v1281
    %v1333 = vpop.f32.mrf.mxu0
    %v1334 = vadd.f32 0.0, %v1333
    %v1335 = vpop.f32.mrf.mxu0
    %v1336 = vadd.f32 0.0, %v1335
    %1337 = vmatmul.bf16.gmra.mxu0 %v1284
    %v1338 = vpop.f32.mrf.mxu0
    %v1339 = vadd.f32 0.0, %v1338
    %v1340 = vpop.f32.mrf.mxu0
    %v1341 = vadd.f32 0.0, %v1340
    %1342 = vdwg.mxu0
    %v1343 = vadd.f32 %v1178, %v1296
    %v1344 = vadd.f32 %v1179, %v1315
    %v1345 = vadd.f32 %v1180, %v1334
    %v1346 = vadd.f32 %v1181, %v1298
    %v1347 = vadd.f32 %v1182, %v1317
    %v1348 = vadd.f32 %v1183, %v1336
    %v1349 = vadd.f32 %v1184, %v1301
    %v1350 = vadd.f32 %v1185, %v1320
    %v1351 = vadd.f32 %v1186, %v1339
    %v1352 = vadd.f32 %v1187, %v1303
    %v1353 = vadd.f32 %v1188, %v1322
    %v1354 = vadd.f32 %v1189, %v1341
    %v1355 = vmax.f32 %v1343, 0.0
    %v1356 = vmax.f32 %v1344, 0.0
    %v1357 = vmax.f32 %v1345, 0.0
    %v1358 = vmax.f32 %v1346, 0.0
    %v1359 = vmax.f32 %v1347, 0.0
    %v1360 = vmax.f32 %v1348, 0.0
    %v1361 = vmax.f32 %v1349, 0.0
    %v1362 = vmax.f32 %v1350, 0.0
    %v1363 = vmax.f32 %v1351, 0.0
    %v1364 = vmax.f32 %v1352, 0.0
    %v1365 = vmax.f32 %v1353, 0.0
    %v1366 = vmax.f32 %v1354, 0.0
    %vm1367 = vmand %vm838, %vm999
    %vm1368 = vsmask.f32 5376
    %vm1369 = vmand %vm839, %vm1368
    %vm1370 = vmor %vm1369, %vm1367
    %v1371 = vld [vmem:[#allocation2] sm:$0x33]
    %v1372 = vsel %vm1370, 0, %v1371
    %1373 = vst [vmem:[#allocation2] sm:$0x33] %v1372
    %vm1374 = vcmask 254976
    %vm1375 = vmand %vm1374, %vm999
    %v1376 = vld [vmem:[#allocation2 + $0x8] sm:$0x3]
    %v1377 = vsel %vm1375, 0, %v1376
    %1378 = vst [vmem:[#allocation2 + $0x8] sm:$0x3] %v1377
    %v1379 = vld [vmem:[#allocation2 + $0x24] sm:$0x33]
    %v1380 = vsel %vm1370, 0, %v1379
    %1381 = vst [vmem:[#allocation2 + $0x24] sm:$0x33] %v1380
    %v1382 = vld [vmem:[#allocation2 + $0x2c] sm:$0x3]
    %v1383 = vsel %vm1375, 0, %v1382
    %1384 = vst [vmem:[#allocation2 + $0x2c] sm:$0x3] %v1383
    %vm1385 = vcmask 1042433
    %vm1386 = vsmask.f32 7942
    %vm1387 = vmand %vm1385, %vm1386
    %vm1388 = vcmask 1046533
    %vm1389 = vsmask.f32 7958
    %vm1390 = vmand %vm1388, %vm1389
    %vm1391 = vmor %vm1390, %vm1387
    %v1392 = vld [vmem:[#allocation2 + $0x18] sm:$0x66]
    %v1393 = vsel %vm1391, 0, %v1392
    %1394 = vst [vmem:[#allocation2 + $0x18] sm:$0x66] %v1393
    %vm1395 = vcmask 256001
    %vm1396 = vmand %vm1395, %vm1386
    %v1397 = vld [vmem:[#allocation2 + $0x20] sm:$0x6]
    %v1398 = vsel %vm1396, 0, %v1397
    %1399 = vst [vmem:[#allocation2 + $0x20] sm:$0x6] %v1398
    %v1400 = vld [vmem:[#allocation2 + $0x3c] sm:$0x66]
    %v1401 = vsel %vm1391, 0, %v1400
    %1402 = vst [vmem:[#allocation2 + $0x3c] sm:$0x66] %v1401
    %v1403 = vld [vmem:[#allocation2 + $0x44] sm:$0x6]
    %v1404 = vsel %vm1396, 0, %v1403
    %1405 = vst [vmem:[#allocation2 + $0x44] sm:$0x6] %v1404
    %v1406 = vpack.c.bf16 %v1356, %v1355
    %v1407 = vpack.c.bf16 %v1357, %v1357
    %v1408 = vpack.c.bf16 %v1359, %v1358
    %v1409 = vpack.c.bf16 %v1360, %v1360
    %v1410 = vpack.c.bf16 %v1362, %v1361
    %v1411 = vpack.c.bf16 %v1363, %v1363
    %v1412 = vpack.c.bf16 %v1365, %v1364
    %v1413 = vpack.c.bf16 %v1366, %v1366
    %v1415 = vshrl.u32 %v1406, 16
    %v1417 = vrot.slane %v1415, 6
    %v1418 = vshll.u32 %v1406, 16
    %v1420 = vrot.slane %v1418, 7
    %v1421 = vor.u32 %v1417, %v1420
    %v1423 = vshrl.u32 %v1407, 16
    %v1425 = vrot.slane %v1423, 6
    %v1426 = vshll.u32 %v1407, 16
    %v1428 = vrot.slane %v1426, 7
    %v1429 = vor.u32 %v1425, %v1428
    %v1430 = vrot.slane %v1421, 4
    %v1432 = vshrl.u32 %v1408, 16
    %v1434 = vrot.slane %v1432, 6
    %v1435 = vshll.u32 %v1408, 16
    %v1437 = vrot.slane %v1435, 7
    %v1438 = vor.u32 %v1434, %v1437
    %v1439 = vsel %vm1001, %v1430, %v1438
    %v1440 = vrot.slane %v1429, 4
    %v1442 = vshrl.u32 %v1409, 16
    %v1444 = vrot.slane %v1442, 6
    %v1445 = vshll.u32 %v1409, 16
    %v1447 = vrot.slane %v1445, 7
    %v1448 = vor.u32 %v1444, %v1447
    %v1449 = vsel %vm1001, %v1440, %v1448
    %v1450 = vrot.slane %v1438, 4
    %v1451 = vrot.slane %v1448, 4
    %v1453 = vshrl.u32 %v1410, 16
    %v1455 = vrot.slane %v1453, 6
    %v1456 = vshll.u32 %v1410, 16
    %v1458 = vrot.slane %v1456, 7
    %v1459 = vor.u32 %v1455, %v1458
    %v1461 = vshrl.u32 %v1411, 16
    %v1463 = vrot.slane %v1461, 6
    %v1464 = vshll.u32 %v1411, 16
    %v1466 = vrot.slane %v1464, 7
    %v1467 = vor.u32 %v1463, %v1466
    %v1468 = vrot.slane %v1459, 4
    %v1470 = vshrl.u32 %v1412, 16
    %v1472 = vrot.slane %v1470, 6
    %v1473 = vshll.u32 %v1412, 16
    %v1475 = vrot.slane %v1473, 7
    %v1476 = vor.u32 %v1472, %v1475
    %v1477 = vsel %vm1001, %v1468, %v1476
    %v1478 = vrot.slane %v1467, 4
    %v1480 = vshrl.u32 %v1413, 16
    %v1482 = vrot.slane %v1480, 6
    %v1483 = vshll.u32 %v1413, 16
    %v1485 = vrot.slane %v1483, 7
    %v1486 = vor.u32 %v1482, %v1485
    %v1487 = vsel %vm1001, %v1478, %v1486
    %v1488 = vrot.slane %v1476, 4
    %v1489 = vrot.slane %v1486, 4
    %vm1502 = vcmask 1043457
    %vm1503 = vmand %vm1502, %vm1386
    %vm1504 = vcmask 1047557
    %vm1505 = vmand %vm1504, %vm1389
    %vm1506 = vmor %vm1505, %vm1503
    %v1507 = vld [vmem:[#allocation2] sm:$0xee]
    %v1508 = vsel %vm1506, %v1421, %v1507
    %1509 = vst [vmem:[#allocation2] sm:$0xee] %v1508
    %vm1510 = vcmask 257025
    %vm1511 = vmand %vm1510, %vm1386
    %v1512 = vld [vmem:[#allocation2 + $0x8] sm:$0xe]
    %v1513 = vsel %vm1511, %v1429, %v1512
    %1514 = vst [vmem:[#allocation2 + $0x8] sm:$0xe] %v1513
    %1515 = vst [vmem:[#allocation2 + $0xc] sm:$0xff] %v1439
    %vm1516 = vcmask 257024
    %1517 = vst.msk [vmem:[#allocation2 + $0x14] sm:$0xf] %vm1516, %v1449
    %v1518 = vld [vmem:[#allocation2 + $0x18] sm:$0x33]
    %v1519 = vsel %vm1370, %v1450, %v1518
    %1520 = vst [vmem:[#allocation2 + $0x18] sm:$0x33] %v1519
    %v1521 = vld [vmem:[#allocation2 + $0x20] sm:$0x3]
    %v1522 = vsel %vm1375, %v1451, %v1521
    %1523 = vst [vmem:[#allocation2 + $0x20] sm:$0x3] %v1522
    %v1524 = vld [vmem:[#allocation2 + $0x24] sm:$0xee]
    %v1525 = vsel %vm1506, %v1459, %v1524
    %1526 = vst [vmem:[#allocation2 + $0x24] sm:$0xee] %v1525
    %v1527 = vld [vmem:[#allocation2 + $0x2c] sm:$0xe]
    %v1528 = vsel %vm1511, %v1467, %v1527
    %1529 = vst [vmem:[#allocation2 + $0x2c] sm:$0xe] %v1528
    %1530 = vst [vmem:[#allocation2 + $0x30] sm:$0xff] %v1477
    %1531 = vst.msk [vmem:[#allocation2 + $0x38] sm:$0xf] %vm1516, %v1487
    %v1532 = vld [vmem:[#allocation2 + $0x3c] sm:$0x33]
    %v1533 = vsel %vm1370, %v1488, %v1532
    %1534 = vst [vmem:[#allocation2 + $0x3c] sm:$0x33] %v1533
    %v1535 = vld [vmem:[#allocation2 + $0x44] sm:$0x3]
    %v1536 = vsel %vm1375, %v1489, %v1535
    %1537 = vst [vmem:[#allocation2 + $0x44] sm:$0x3] %v1536
    %v1538 = vld [vmem:[#allocation11] sm:$0x7]
    %v1540 = vperm.slane %v1538, 0
    %v1541 = vperm.slane %v1538, 1
    %v1542 = vperm.slane %v1538, 2
    %v1546 = vld [vmem:[#allocation2] sm:$0xff]
    %v1547 = vld [vmem:[#allocation2 + $0x8] sm:$0xf]
    %v1548 = vld [vmem:[#allocation2 + $0xc] sm:$0xff]
    %v1549 = vld [vmem:[#allocation2 + $0x14] sm:$0xf]
    %v1550 = vld [vmem:[#allocation2 + $0x24] sm:$0xff]
    %v1551 = vld [vmem:[#allocation2 + $0x2c] sm:$0xf]
    %v1552 = vld [vmem:[#allocation2 + $0x30] sm:$0xff]
    %v1553 = vld [vmem:[#allocation2 + $0x38] sm:$0xf]
    %v1554 = vld [vmem:[#allocation6] sm:$0xff]
    %v1555 = vld [vmem:[#allocation6 + $0x8] sm:$0xf]
    %v1556 = vld [vmem:[#allocation6 + $0xc] sm:$0xff]
    %v1557 = vld [vmem:[#allocation6 + $0x14] sm:$0xf]
    %v1558 = vld [vmem:[#allocation6 + $0x18] sm:$0xff]
    %v1559 = vld [vmem:[#allocation6 + $0x20] sm:$0xf]
    %v1560 = vld [vmem:[#allocation6 + $0x24] sm:$0xff]
    %v1561 = vld [vmem:[#allocation6 + $0x2c] sm:$0xf]
    %v1562 = vld [vmem:[#allocation6 + $0x30] sm:$0xff]
    %v1563 = vld [vmem:[#allocation6 + $0x38] sm:$0xf]
    %v1564 = vld [vmem:[#allocation6 + $0x3c] sm:$0xff]
    %v1565 = vld [vmem:[#allocation6 + $0x44] sm:$0xf]
    %v1566 = vld [vmem:[#allocation6 + $0x48] sm:$0xff]
    %v1567 = vld [vmem:[#allocation6 + $0x50] sm:$0xf]
    %v1568 = vld [vmem:[#allocation6 + $0x54] sm:$0xff]
    %v1569 = vld [vmem:[#allocation6 + $0x5c] sm:$0xf]
    %v1570 = vld [vmem:[#allocation6 + $0x60] sm:$0xff]
    %v1571 = vld [vmem:[#allocation6 + $0x68] sm:$0xf]
    %v1572 = vld [vmem:[#allocation6 + $0x6c] sm:$0xff]
    %v1573 = vld [vmem:[#allocation6 + $0x74] sm:$0xf]
    %v1574 = vld [vmem:[#allocation6 + $0x78] sm:$0xff]
    %v1575 = vld [vmem:[#allocation6 + $0x80] sm:$0xf]
    %v1576 = vld [vmem:[#allocation6 + $0x84] sm:$0xff]
    %v1577 = vld [vmem:[#allocation6 + $0x8c] sm:$0xf]
    %v1578 = vld [vmem:[#allocation6 + $0x90] sm:$0xff]
    %v1579 = vld [vmem:[#allocation6 + $0x98] sm:$0xf]
    %v1580 = vld [vmem:[#allocation6 + $0x9c] sm:$0xff]
    %v1581 = vld [vmem:[#allocation6 + $0xa4] sm:$0xf]
    %v1582 = vld [vmem:[#allocation6 + $0xa8] sm:$0xff]
    %v1583 = vld [vmem:[#allocation6 + $0xb0] sm:$0xf]
    %v1584 = vld [vmem:[#allocation6 + $0xb4] sm:$0xff]
    %v1585 = vld [vmem:[#allocation6 + $0xbc] sm:$0xf]
    %v1586 = vld [vmem:[#allocation6 + $0xc0] sm:$0xff]
    %v1587 = vld [vmem:[#allocation6 + $0xc8] sm:$0xf]
    %v1588 = vld [vmem:[#allocation6 + $0xcc] sm:$0xff]
    %v1589 = vld [vmem:[#allocation6 + $0xd4] sm:$0xf]
    %v1590 = vld [vmem:[#allocation6 + $0xd8] sm:$0xff]
    %v1591 = vld [vmem:[#allocation6 + $0xe0] sm:$0xf]
    %v1592 = vld [vmem:[#allocation6 + $0xe4] sm:$0xff]
    %v1593 = vld [vmem:[#allocation6 + $0xec] sm:$0xf]
    %v1594 = vld [vmem:[#allocation6 + $0xf0] sm:$0xff]
    %v1595 = vld [vmem:[#allocation6 + $0xf8] sm:$0xf]
    %v1596 = vld [vmem:[#allocation6 + $0xfc] sm:$0xff]
    %v1597 = vld [vmem:[#allocation6 + $0x104] sm:$0xf]
    %v1598 = vld [vmem:[#allocation6 + $0x108] sm:$0xff]
    %v1599 = vld [vmem:[#allocation6 + $0x110] sm:$0xf]
    %v1600 = vld [vmem:[#allocation6 + $0x114] sm:$0xff]
    %v1601 = vld [vmem:[#allocation6 + $0x11c] sm:$0xf]
    %v1602 = vld [vmem:[#allocation6 + $0x120] sm:$0xff]
    %v1603 = vld [vmem:[#allocation6 + $0x128] sm:$0xf]
    %v1604 = vld [vmem:[#allocation6 + $0x12c] sm:$0xff]
    %v1605 = vld [vmem:[#allocation6 + $0x134] sm:$0xf]
    %v1606 = vld [vmem:[#allocation6 + $0x138] sm:$0xff]
    %v1607 = vld [vmem:[#allocation6 + $0x140] sm:$0xf]
    %v1608 = vld [vmem:[#allocation6 + $0x144] sm:$0xff]
    %v1609 = vld [vmem:[#allocation6 + $0x14c] sm:$0xf]
    %v1610 = vld [vmem:[#allocation6 + $0x150] sm:$0xff]
    %v1611 = vld [vmem:[#allocation6 + $0x158] sm:$0xf]
    %v1612 = vld [vmem:[#allocation6 + $0x15c] sm:$0xff]
    %v1613 = vld [vmem:[#allocation6 + $0x164] sm:$0xf]
    %v1614 = vld [vmem:[#allocation6 + $0x168] sm:$0xff]
    %v1615 = vld [vmem:[#allocation6 + $0x170] sm:$0xf]
    %v1616 = vld [vmem:[#allocation6 + $0x174] sm:$0xff]
    %v1617 = vld [vmem:[#allocation6 + $0x17c] sm:$0xf]
    %v1618 = vld [vmem:[#allocation6 + $0x180] sm:$0xff]
    %v1619 = vld [vmem:[#allocation6 + $0x188] sm:$0xf]
    %v1620 = vld [vmem:[#allocation6 + $0x18c] sm:$0xff]
    %v1621 = vld [vmem:[#allocation6 + $0x194] sm:$0xf]
    %v1622 = vld [vmem:[#allocation6 + $0x198] sm:$0xff]
    %v1623 = vld [vmem:[#allocation6 + $0x1a0] sm:$0xf]
    %v1624 = vld [vmem:[#allocation6 + $0x1a4] sm:$0xff]
    %v1625 = vld [vmem:[#allocation6 + $0x1ac] sm:$0xf]
    %v1634 = vunpack.c.l.b16 %v1546
    %v1635 = vunpack.c.h.b16 %v1546
    %v1636 = vunpack.c.l.b16 %v1547
    %v1637 = vunpack.c.l.b16 %v1548
    %v1638 = vunpack.c.h.b16 %v1548
    %v1639 = vunpack.c.l.b16 %v1549
    %v1640 = vunpack.c.l.b16 %v1550
    %v1641 = vunpack.c.h.b16 %v1550
    %v1642 = vunpack.c.l.b16 %v1551
    %v1643 = vunpack.c.l.b16 %v1552
    %v1644 = vunpack.c.h.b16 %v1552
    %v1645 = vunpack.c.l.b16 %v1553
    %v1646 = vpack.c.b16 %v1637, %v1634
    %v1647 = vpack.c.b16 %v1638, %v1635
    %v1648 = vpack.c.b16 %v1639, %v1636
    %v1649 = vpack.c.b16 %v1643, %v1640
    %v1650 = vpack.c.b16 %v1644, %v1641
    %v1651 = vpack.c.b16 %v1645, %v1642
    %v1728 = vunpack.c.l.b16 %v1554
    %v1729 = vunpack.c.h.b16 %v1554
    %v1730 = vunpack.c.l.b16 %v1555
    %v1731 = vunpack.c.l.b16 %v1556
    %v1732 = vunpack.c.h.b16 %v1556
    %v1733 = vunpack.c.l.b16 %v1557
    %v1734 = vunpack.c.l.b16 %v1558
    %v1735 = vunpack.c.h.b16 %v1558
    %v1736 = vunpack.c.l.b16 %v1559
    %v1737 = vunpack.c.l.b16 %v1560
    %v1738 = vunpack.c.h.b16 %v1560
    %v1739 = vunpack.c.l.b16 %v1561
    %v1740 = vunpack.c.l.b16 %v1562
    %v1741 = vunpack.c.h.b16 %v1562
    %v1742 = vunpack.c.l.b16 %v1563
    %v1743 = vunpack.c.l.b16 %v1564
    %v1744 = vunpack.c.h.b16 %v1564
    %v1745 = vunpack.c.l.b16 %v1565
    %v1746 = vunpack.c.l.b16 %v1566
    %v1747 = vunpack.c.h.b16 %v1566
    %v1748 = vunpack.c.l.b16 %v1567
    %v1749 = vunpack.c.l.b16 %v1568
    %v1750 = vunpack.c.h.b16 %v1568
    %v1751 = vunpack.c.l.b16 %v1569
    %v1752 = vunpack.c.l.b16 %v1570
    %v1753 = vunpack.c.h.b16 %v1570
    %v1754 = vunpack.c.l.b16 %v1571
    %v1755 = vunpack.c.l.b16 %v1572
    %v1756 = vunpack.c.h.b16 %v1572
    %v1757 = vunpack.c.l.b16 %v1573
    %v1758 = vunpack.c.l.b16 %v1574
    %v1759 = vunpack.c.h.b16 %v1574
    %v1760 = vunpack.c.l.b16 %v1575
    %v1761 = vunpack.c.l.b16 %v1576
    %v1762 = vunpack.c.h.b16 %v1576
    %v1763 = vunpack.c.l.b16 %v1577
    %v1764 = vunpack.c.l.b16 %v1578
    %v1765 = vunpack.c.h.b16 %v1578
    %v1766 = vunpack.c.l.b16 %v1579
    %v1767 = vunpack.c.l.b16 %v1580
    %v1768 = vunpack.c.h.b16 %v1580
    %v1769 = vunpack.c.l.b16 %v1581
    %v1770 = vunpack.c.l.b16 %v1582
    %v1771 = vunpack.c.h.b16 %v1582
    %v1772 = vunpack.c.l.b16 %v1583
    %v1773 = vunpack.c.l.b16 %v1584
    %v1774 = vunpack.c.h.b16 %v1584
    %v1775 = vunpack.c.l.b16 %v1585
    %v1776 = vunpack.c.l.b16 %v1586
    %v1777 = vunpack.c.h.b16 %v1586
    %v1778 = vunpack.c.l.b16 %v1587
    %v1779 = vunpack.c.l.b16 %v1588
    %v1780 = vunpack.c.h.b16 %v1588
    %v1781 = vunpack.c.l.b16 %v1589
    %v1782 = vunpack.c.l.b16 %v1590
    %v1783 = vunpack.c.h.b16 %v1590
    %v1784 = vunpack.c.l.b16 %v1591
    %v1785 = vunpack.c.l.b16 %v1592
    %v1786 = vunpack.c.h.b16 %v1592
    %v1787 = vunpack.c.l.b16 %v1593
    %v1788 = vunpack.c.l.b16 %v1594
    %v1789 = vunpack.c.h.b16 %v1594
    %v1790 = vunpack.c.l.b16 %v1595
    %v1791 = vunpack.c.l.b16 %v1596
    %v1792 = vunpack.c.h.b16 %v1596
    %v1793 = vunpack.c.l.b16 %v1597
    %v1794 = vunpack.c.l.b16 %v1598
    %v1795 = vunpack.c.h.b16 %v1598
    %v1796 = vunpack.c.l.b16 %v1599
    %v1797 = vunpack.c.l.b16 %v1600
    %v1798 = vunpack.c.h.b16 %v1600
    %v1799 = vunpack.c.l.b16 %v1601
    %v1800 = vunpack.c.l.b16 %v1602
    %v1801 = vunpack.c.h.b16 %v1602
    %v1802 = vunpack.c.l.b16 %v1603
    %v1803 = vunpack.c.l.b16 %v1604
    %v1804 = vunpack.c.h.b16 %v1604
    %v1805 = vunpack.c.l.b16 %v1605
    %v1806 = vunpack.c.l.b16 %v1606
    %v1807 = vunpack.c.h.b16 %v1606
    %v1808 = vunpack.c.l.b16 %v1607
    %v1809 = vunpack.c.l.b16 %v1608
    %v1810 = vunpack.c.h.b16 %v1608
    %v1811 = vunpack.c.l.b16 %v1609
    %v1812 = vunpack.c.l.b16 %v1610
    %v1813 = vunpack.c.h.b16 %v1610
    %v1814 = vunpack.c.l.b16 %v1611
    %v1815 = vunpack.c.l.b16 %v1612
    %v1816 = vunpack.c.h.b16 %v1612
    %v1817 = vunpack.c.l.b16 %v1613
    %v1818 = vunpack.c.l.b16 %v1614
    %v1819 = vunpack.c.h.b16 %v1614
    %v1820 = vunpack.c.l.b16 %v1615
    %v1821 = vunpack.c.l.b16 %v1616
    %v1822 = vunpack.c.h.b16 %v1616
    %v1823 = vunpack.c.l.b16 %v1617
    %v1824 = vunpack.c.l.b16 %v1618
    %v1825 = vunpack.c.h.b16 %v1618
    %v1826 = vunpack.c.l.b16 %v1619
    %v1827 = vunpack.c.l.b16 %v1620
    %v1828 = vunpack.c.h.b16 %v1620
    %v1829 = vunpack.c.l.b16 %v1621
    %v1830 = vunpack.c.l.b16 %v1622
    %v1831 = vunpack.c.h.b16 %v1622
    %v1832 = vunpack.c.l.b16 %v1623
    %v1833 = vunpack.c.l.b16 %v1624
    %v1834 = vunpack.c.h.b16 %v1624
    %v1835 = vunpack.c.l.b16 %v1625
    %v1836 = vpack.c.b16 %v1731, %v1728
    %v1837 = vpack.c.b16 %v1732, %v1729
    %v1838 = vpack.c.b16 %v1733, %v1730
    %v1839 = vpack.c.b16 %v1737, %v1734
    %v1840 = vpack.c.b16 %v1738, %v1735
    %v1841 = vpack.c.b16 %v1739, %v1736
    %v1842 = vpack.c.b16 %v1743, %v1740
    %v1843 = vpack.c.b16 %v1744, %v1741
    %v1844 = vpack.c.b16 %v1745, %v1742
    %v1845 = vpack.c.b16 %v1749, %v1746
    %v1846 = vpack.c.b16 %v1750, %v1747
    %v1847 = vpack.c.b16 %v1751, %v1748
    %v1848 = vpack.c.b16 %v1755, %v1752
    %v1849 = vpack.c.b16 %v1756, %v1753
    %v1850 = vpack.c.b16 %v1757, %v1754
    %v1851 = vpack.c.b16 %v1761, %v1758
    %v1852 = vpack.c.b16 %v1762, %v1759
    %v1853 = vpack.c.b16 %v1763, %v1760
    %v1854 = vpack.c.b16 %v1767, %v1764
    %v1855 = vpack.c.b16 %v1768, %v1765
    %v1856 = vpack.c.b16 %v1769, %v1766
    %v1857 = vpack.c.b16 %v1773, %v1770
    %v1858 = vpack.c.b16 %v1774, %v1771
    %v1859 = vpack.c.b16 %v1775, %v1772
    %v1860 = vpack.c.b16 %v1779, %v1776
    %v1861 = vpack.c.b16 %v1780, %v1777
    %v1862 = vpack.c.b16 %v1781, %v1778
    %v1863 = vpack.c.b16 %v1785, %v1782
    %v1864 = vpack.c.b16 %v1786, %v1783
    %v1865 = vpack.c.b16 %v1787, %v1784
    %v1866 = vpack.c.b16 %v1791, %v1788
    %v1867 = vpack.c.b16 %v1792, %v1789
    %v1868 = vpack.c.b16 %v1793, %v1790
    %v1869 = vpack.c.b16 %v1797, %v1794
    %v1870 = vpack.c.b16 %v1798, %v1795
    %v1871 = vpack.c.b16 %v1799, %v1796
    %v1872 = vpack.c.b16 %v1803, %v1800
    %v1873 = vpack.c.b16 %v1804, %v1801
    %v1874 = vpack.c.b16 %v1805, %v1802
    %v1875 = vpack.c.b16 %v1809, %v1806
    %v1876 = vpack.c.b16 %v1810, %v1807
    %v1877 = vpack.c.b16 %v1811, %v1808
    %v1878 = vpack.c.b16 %v1815, %v1812
    %v1879 = vpack.c.b16 %v1816, %v1813
    %v1880 = vpack.c.b16 %v1817, %v1814
    %v1881 = vpack.c.b16 %v1821, %v1818
    %v1882 = vpack.c.b16 %v1822, %v1819
    %v1883 = vpack.c.b16 %v1823, %v1820
    %v1884 = vpack.c.b16 %v1827, %v1824
    %v1885 = vpack.c.b16 %v1828, %v1825
    %v1886 = vpack.c.b16 %v1829, %v1826
    %v1887 = vpack.c.b16 %v1833, %v1830
    %v1888 = vpack.c.b16 %v1834, %v1831
    %v1889 = vpack.c.b16 %v1835, %v1832
    %vm1944 = vcmask 261120
    %v1946 = vsel %vm1944, %v1648, 0
    %v1949 = vsel %vm1944, %v1651, 0
    %1951 = vmatpush.bf16.msra.mxu0 %v1857
    %1952 = vmatpush.bf16.msra.mxu0 %v1854
    %1953 = vmatpush.bf16.msra.mxu0 %v1851
    %1954 = vmatpush.bf16.msra.mxu0 %v1848
    %1955 = vmatpush.bf16.msra.mxu0 %v1845
    %1956 = vmatpush.bf16.msra.mxu0 %v1842
    %1957 = vmatpush.bf16.msra.mxu0 %v1839
    %1958 = vmatpush.bf16.msra.mxu0 %v1836
    %1959 = vmatmul.bf16.gmra.mxu0 %v1646
    %v1960 = vpop.f32.mrf.mxu0
    %v1961 = vadd.f32 0.0, %v1960
    %v1962 = vpop.f32.mrf.mxu0
    %v1963 = vadd.f32 0.0, %v1962
    %1964 = vmatmul.bf16.gmra.mxu0 %v1649
    %v1965 = vpop.f32.mrf.mxu0
    %v1966 = vadd.f32 0.0, %v1965
    %v1967 = vpop.f32.mrf.mxu0
    %v1968 = vadd.f32 0.0, %v1967
    %1969 = vdwg.mxu0
    %1970 = vmatpush.bf16.msra.mxu0 %v1881
    %1971 = vmatpush.bf16.msra.mxu0 %v1878
    %1972 = vmatpush.bf16.msra.mxu0 %v1875
    %1973 = vmatpush.bf16.msra.mxu0 %v1872
    %1974 = vmatpush.bf16.msra.mxu0 %v1869
    %1975 = vmatpush.bf16.msra.mxu0 %v1866
    %1976 = vmatpush.bf16.msra.mxu0 %v1863
    %1977 = vmatpush.bf16.msra.mxu0 %v1860
    %1978 = vmatmul.bf16.gmra.mxu0 %v1647
    %v1979 = vpop.f32.mrf.mxu0
    %v1980 = vadd.f32 %v1961, %v1979
    %v1981 = vpop.f32.mrf.mxu0
    %v1982 = vadd.f32 %v1963, %v1981
    %1983 = vmatmul.bf16.gmra.mxu0 %v1650
    %v1984 = vpop.f32.mrf.mxu0
    %v1985 = vadd.f32 %v1966, %v1984
    %v1986 = vpop.f32.mrf.mxu0
    %v1987 = vadd.f32 %v1968, %v1986
    %1988 = vdwg.mxu0
    %1989 = vmatpush.bf16.msra.mxu0 0
    %1990 = vmatpush.bf16.msra.mxu0 0
    %1991 = vmatpush.bf16.msra.mxu0 0
    %1992 = vmatpush.bf16.msra.mxu0 0
    %1993 = vmatpush.bf16.msra.mxu0 0
    %1994 = vmatpush.bf16.msra.mxu0 0
    %1995 = vmatpush.bf16.msra.mxu0 %v1887
    %1996 = vmatpush.bf16.msra.mxu0 %v1884
    %1997 = vmatmul.bf16.gmra.mxu0 %v1946
    %v1998 = vpop.f32.mrf.mxu0
    %v1999 = vadd.f32 %v1980, %v1998
    %v2000 = vpop.f32.mrf.mxu0
    %v2001 = vadd.f32 %v1982, %v2000
    %2002 = vmatmul.bf16.gmra.mxu0 %v1949
    %v2003 = vpop.f32.mrf.mxu0
    %v2004 = vadd.f32 %v1985, %v2003
    %v2005 = vpop.f32.mrf.mxu0
    %v2006 = vadd.f32 %v1987, %v2005
    %2007 = vdwg.mxu0
    %2008 = vmatpush.bf16.msra.mxu0 %v1858
    %2009 = vmatpush.bf16.msra.mxu0 %v1855
    %2010 = vmatpush.bf16.msra.mxu0 %v1852
    %2011 = vmatpush.bf16.msra.mxu0 %v1849
    %2012 = vmatpush.bf16.msra.mxu0 %v1846
    %2013 = vmatpush.bf16.msra.mxu0 %v1843
    %2014 = vmatpush.bf16.msra.mxu0 %v1840
    %2015 = vmatpush.bf16.msra.mxu0 %v1837
    %2016 = vmatmul.bf16.gmra.mxu0 %v1646
    %v2017 = vpop.f32.mrf.mxu0
    %v2018 = vadd.f32 0.0, %v2017
    %v2019 = vpop.f32.mrf.mxu0
    %v2020 = vadd.f32 0.0, %v2019
    %2021 = vmatmul.bf16.gmra.mxu0 %v1649
    %v2022 = vpop.f32.mrf.mxu0
    %v2023 = vadd.f32 0.0, %v2022
    %v2024 = vpop.f32.mrf.mxu0
    %v2025 = vadd.f32 0.0, %v2024
    %2026 = vdwg.mxu0
    %2027 = vmatpush.bf16.msra.mxu0 %v1882
    %2028 = vmatpush.bf16.msra.mxu0 %v1879
    %2029 = vmatpush.bf16.msra.mxu0 %v1876
    %2030 = vmatpush.bf16.msra.mxu0 %v1873
    %2031 = vmatpush.bf16.msra.mxu0 %v1870
    %2032 = vmatpush.bf16.msra.mxu0 %v1867
    %2033 = vmatpush.bf16.msra.mxu0 %v1864
    %2034 = vmatpush.bf16.msra.mxu0 %v1861
    %2035 = vmatmul.bf16.gmra.mxu0 %v1647
    %v2036 = vpop.f32.mrf.mxu0
    %v2037 = vadd.f32 %v2018, %v2036
    %v2038 = vpop.f32.mrf.mxu0
    %v2039 = vadd.f32 %v2020, %v2038
    %2040 = vmatmul.bf16.gmra.mxu0 %v1650
    %v2041 = vpop.f32.mrf.mxu0
    %v2042 = vadd.f32 %v2023, %v2041
    %v2043 = vpop.f32.mrf.mxu0
    %v2044 = vadd.f32 %v2025, %v2043
    %2045 = vdwg.mxu0
    %2046 = vmatpush.bf16.msra.mxu0 0
    %2047 = vmatpush.bf16.msra.mxu0 0
    %2048 = vmatpush.bf16.msra.mxu0 0
    %2049 = vmatpush.bf16.msra.mxu0 0
    %2050 = vmatpush.bf16.msra.mxu0 0
    %2051 = vmatpush.bf16.msra.mxu0 0
    %2052 = vmatpush.bf16.msra.mxu0 %v1888
    %2053 = vmatpush.bf16.msra.mxu0 %v1885
    %2054 = vmatmul.bf16.gmra.mxu0 %v1946
    %v2055 = vpop.f32.mrf.mxu0
    %v2056 = vadd.f32 %v2037, %v2055
    %v2057 = vpop.f32.mrf.mxu0
    %v2058 = vadd.f32 %v2039, %v2057
    %2059 = vmatmul.bf16.gmra.mxu0 %v1949
    %v2060 = vpop.f32.mrf.mxu0
    %v2061 = vadd.f32 %v2042, %v2060
    %v2062 = vpop.f32.mrf.mxu0
    %v2063 = vadd.f32 %v2044, %v2062
    %2064 = vdwg.mxu0
    %2065 = vmatpush.bf16.msra.mxu0 %v1859
    %2066 = vmatpush.bf16.msra.mxu0 %v1856
    %2067 = vmatpush.bf16.msra.mxu0 %v1853
    %2068 = vmatpush.bf16.msra.mxu0 %v1850
    %2069 = vmatpush.bf16.msra.mxu0 %v1847
    %2070 = vmatpush.bf16.msra.mxu0 %v1844
    %2071 = vmatpush.bf16.msra.mxu0 %v1841
    %2072 = vmatpush.bf16.msra.mxu0 %v1838
    %2073 = vmatmul.bf16.gmra.mxu0 %v1646
    %v2074 = vpop.f32.mrf.mxu0
    %v2075 = vadd.f32 0.0, %v2074
    %v2076 = vpop.f32.mrf.mxu0
    %v2077 = vadd.f32 0.0, %v2076
    %2078 = vmatmul.bf16.gmra.mxu0 %v1649
    %v2079 = vpop.f32.mrf.mxu0
    %v2080 = vadd.f32 0.0, %v2079
    %v2081 = vpop.f32.mrf.mxu0
    %v2082 = vadd.f32 0.0, %v2081
    %2083 = vdwg.mxu0
    %2084 = vmatpush.bf16.msra.mxu0 %v1883
    %2085 = vmatpush.bf16.msra.mxu0 %v1880
    %2086 = vmatpush.bf16.msra.mxu0 %v1877
    %2087 = vmatpush.bf16.msra.mxu0 %v1874
    %2088 = vmatpush.bf16.msra.mxu0 %v1871
    %2089 = vmatpush.bf16.msra.mxu0 %v1868
    %2090 = vmatpush.bf16.msra.mxu0 %v1865
    %2091 = vmatpush.bf16.msra.mxu0 %v1862
    %2092 = vmatmul.bf16.gmra.mxu0 %v1647
    %v2093 = vpop.f32.mrf.mxu0
    %v2094 = vadd.f32 %v2075, %v2093
    %v2095 = vpop.f32.mrf.mxu0
    %v2096 = vadd.f32 %v2077, %v2095
    %2097 = vmatmul.bf16.gmra.mxu0 %v1650
    %v2098 = vpop.f32.mrf.mxu0
    %v2099 = vadd.f32 %v2080, %v2098
    %v2100 = vpop.f32.mrf.mxu0
    %v2101 = vadd.f32 %v2082, %v2100
    %2102 = vdwg.mxu0
    %2103 = vmatpush.bf16.msra.mxu0 0
    %2104 = vmatpush.bf16.msra.mxu0 0
    %2105 = vmatpush.bf16.msra.mxu0 0
    %2106 = vmatpush.bf16.msra.mxu0 0
    %2107 = vmatpush.bf16.msra.mxu0 0
    %2108 = vmatpush.bf16.msra.mxu0 0
    %2109 = vmatpush.bf16.msra.mxu0 %v1889
    %2110 = vmatpush.bf16.msra.mxu0 %v1886
    %2111 = vmatmul.bf16.gmra.mxu0 %v1946
    %v2112 = vpop.f32.mrf.mxu0
    %v2113 = vadd.f32 %v2094, %v2112
    %v2114 = vpop.f32.mrf.mxu0
    %v2115 = vadd.f32 %v2096, %v2114
    %2116 = vmatmul.bf16.gmra.mxu0 %v1949
    %v2117 = vpop.f32.mrf.mxu0
    %v2118 = vadd.f32 %v2099, %v2117
    %v2119 = vpop.f32.mrf.mxu0
    %v2120 = vadd.f32 %v2101, %v2119
    %2121 = vdwg.mxu0
    %v2122 = vadd.f32 %v1540, %v1999
    %v2123 = vadd.f32 %v1541, %v2056
    %v2124 = vadd.f32 %v1542, %v2113
    %v2125 = vadd.f32 %v1540, %v2001
    %v2126 = vadd.f32 %v1541, %v2058
    %v2127 = vadd.f32 %v1542, %v2115
    %v2128 = vadd.f32 %v1540, %v2004
    %v2129 = vadd.f32 %v1541, %v2061
    %v2130 = vadd.f32 %v1542, %v2118
    %v2131 = vadd.f32 %v1540, %v2006
    %v2132 = vadd.f32 %v1541, %v2063
    %v2133 = vadd.f32 %v1542, %v2120
    %v2134 = vld [vmem:[#allocation2] sm:$0xff]
    %v2135 = vld [vmem:[#allocation2 + $0x8] sm:$0xf]
    %v2136 = vld [vmem:[#allocation2 + $0xc] sm:$0xff]
    %v2137 = vld [vmem:[#allocation2 + $0x14] sm:$0xf]
    %v2138 = vld [vmem:[#allocation2 + $0x18] sm:$0x11]
    %v2139 = vld [vmem:[#allocation2 + $0x20] sm:$0x1]
    %v2140 = vld [vmem:[#allocation2 + $0x24] sm:$0xff]
    %v2141 = vld [vmem:[#allocation2 + $0x2c] sm:$0xf]
    %v2142 = vld [vmem:[#allocation2 + $0x30] sm:$0xff]
    %v2143 = vld [vmem:[#allocation2 + $0x38] sm:$0xf]
    %v2144 = vld [vmem:[#allocation2 + $0x3c] sm:$0x11]
    %v2145 = vld [vmem:[#allocation2 + $0x44] sm:$0x1]
    %v2147 = vshrl.u32 %v2134, 16
    %v2149 = vrot.slane %v2147, 4
    %v2150 = vshll.u32 %v2134, 16
    %v2152 = vrot.slane %v2150, 5
    %v2153 = vor.u32 %v2149, %v2152
    %v2154 = vrot.slane %v2153, 4
    %v2156 = vshll.u32 %v2136, 16
    %v2158 = vrot.slane %v2156, 5
    %v2159 = vsel %vm281, %v2154, %v2158
    %v2161 = vshrl.u32 %v2135, 16
    %v2163 = vrot.slane %v2161, 4
    %v2164 = vshll.u32 %v2135, 16
    %v2166 = vrot.slane %v2164, 5
    %v2167 = vor.u32 %v2163, %v2166
    %v2168 = vrot.slane %v2167, 4
    %v2170 = vshll.u32 %v2137, 16
    %v2172 = vrot.slane %v2170, 5
    %v2173 = vsel %vm281, %v2168, %v2172
    %v2174 = vshrl.u32 %v2136, 16
    %v2176 = vrot.slane %v2174, 4
    %v2177 = vor.u32 %v2176, %v2158
    %v2178 = vrot.slane %v2177, 4
    %v2180 = vshll.u32 %v2138, 16
    %v2182 = vrot.slane %v2180, 5
    %v2183 = vsel %vm281, %v2178, %v2182
    %v2184 = vshrl.u32 %v2137, 16
    %v2186 = vrot.slane %v2184, 4
    %v2187 = vor.u32 %v2186, %v2172
    %v2188 = vrot.slane %v2187, 4
    %v2190 = vshll.u32 %v2139, 16
    %v2192 = vrot.slane %v2190, 5
    %v2193 = vsel %vm281, %v2188, %v2192
    %v2195 = vshrl.u32 %v2140, 16
    %v2197 = vrot.slane %v2195, 4
    %v2198 = vshll.u32 %v2140, 16
    %v2200 = vrot.slane %v2198, 5
    %v2201 = vor.u32 %v2197, %v2200
    %v2202 = vrot.slane %v2201, 4
    %v2204 = vshll.u32 %v2142, 16
    %v2206 = vrot.slane %v2204, 5
    %v2207 = vsel %vm281, %v2202, %v2206
    %v2209 = vshrl.u32 %v2141, 16
    %v2211 = vrot.slane %v2209, 4
    %v2212 = vshll.u32 %v2141, 16
    %v2214 = vrot.slane %v2212, 5
    %v2215 = vor.u32 %v2211, %v2214
    %v2216 = vrot.slane %v2215, 4
    %v2218 = vshll.u32 %v2143, 16
    %v2220 = vrot.slane %v2218, 5
    %v2221 = vsel %vm281, %v2216, %v2220
    %v2222 = vshrl.u32 %v2142, 16
    %v2224 = vrot.slane %v2222, 4
    %v2225 = vor.u32 %v2224, %v2206
    %v2226 = vrot.slane %v2225, 4
    %v2228 = vshll.u32 %v2144, 16
    %v2230 = vrot.slane %v2228, 5
    %v2231 = vsel %vm281, %v2226, %v2230
    %v2232 = vshrl.u32 %v2143, 16
    %v2234 = vrot.slane %v2232, 4
    %v2235 = vor.u32 %v2234, %v2220
    %v2236 = vrot.slane %v2235, 4
    %v2238 = vshll.u32 %v2145, 16
    %v2240 = vrot.slane %v2238, 5
    %v2241 = vsel %vm281, %v2236, %v2240
    %s2242 = scalar_lea.vmem [#allocation6], 432
    %v2243 = vld [vmem:[%s2242] sm:$0xff]
    %v2244 = vld [vmem:[%s2242 + $0x8] sm:$0xf]
    %v2245 = vld [vmem:[%s2242 + $0xc] sm:$0xff]
    %v2246 = vld [vmem:[%s2242 + $0x14] sm:$0xf]
    %v2247 = vld [vmem:[%s2242 + $0x18] sm:$0xff]
    %v2248 = vld [vmem:[%s2242 + $0x20] sm:$0xf]
    %v2249 = vld [vmem:[%s2242 + $0x24] sm:$0xff]
    %v2250 = vld [vmem:[%s2242 + $0x2c] sm:$0xf]
    %v2251 = vld [vmem:[%s2242 + $0x30] sm:$0xff]
    %v2252 = vld [vmem:[%s2242 + $0x38] sm:$0xf]
    %v2253 = vld [vmem:[%s2242 + $0x3c] sm:$0xff]
    %v2254 = vld [vmem:[%s2242 + $0x44] sm:$0xf]
    %v2255 = vld [vmem:[%s2242 + $0x48] sm:$0xff]
    %v2256 = vld [vmem:[%s2242 + $0x50] sm:$0xf]
    %v2257 = vld [vmem:[%s2242 + $0x54] sm:$0xff]
    %v2258 = vld [vmem:[%s2242 + $0x5c] sm:$0xf]
    %v2259 = vld [vmem:[%s2242 + $0x60] sm:$0xff]
    %v2260 = vld [vmem:[%s2242 + $0x68] sm:$0xf]
    %v2261 = vld [vmem:[%s2242 + $0x6c] sm:$0xff]
    %v2262 = vld [vmem:[%s2242 + $0x74] sm:$0xf]
    %v2263 = vld [vmem:[%s2242 + $0x78] sm:$0xff]
    %v2264 = vld [vmem:[%s2242 + $0x80] sm:$0xf]
    %v2265 = vld [vmem:[%s2242 + $0x84] sm:$0xff]
    %v2266 = vld [vmem:[%s2242 + $0x8c] sm:$0xf]
    %v2267 = vld [vmem:[%s2242 + $0x90] sm:$0xff]
    %v2268 = vld [vmem:[%s2242 + $0x98] sm:$0xf]
    %v2269 = vld [vmem:[%s2242 + $0x9c] sm:$0xff]
    %v2270 = vld [vmem:[%s2242 + $0xa4] sm:$0xf]
    %v2271 = vld [vmem:[%s2242 + $0xa8] sm:$0xff]
    %v2272 = vld [vmem:[%s2242 + $0xb0] sm:$0xf]
    %v2273 = vld [vmem:[%s2242 + $0xb4] sm:$0xff]
    %v2274 = vld [vmem:[%s2242 + $0xbc] sm:$0xf]
    %v2275 = vld [vmem:[%s2242 + $0xc0] sm:$0xff]
    %v2276 = vld [vmem:[%s2242 + $0xc8] sm:$0xf]
    %v2277 = vld [vmem:[%s2242 + $0xcc] sm:$0xff]
    %v2278 = vld [vmem:[%s2242 + $0xd4] sm:$0xf]
    %v2279 = vld [vmem:[%s2242 + $0xd8] sm:$0xff]
    %v2280 = vld [vmem:[%s2242 + $0xe0] sm:$0xf]
    %v2281 = vld [vmem:[%s2242 + $0xe4] sm:$0xff]
    %v2282 = vld [vmem:[%s2242 + $0xec] sm:$0xf]
    %v2283 = vld [vmem:[%s2242 + $0xf0] sm:$0xff]
    %v2284 = vld [vmem:[%s2242 + $0xf8] sm:$0xf]
    %v2285 = vld [vmem:[%s2242 + $0xfc] sm:$0xff]
    %v2286 = vld [vmem:[%s2242 + $0x104] sm:$0xf]
    %v2287 = vld [vmem:[%s2242 + $0x108] sm:$0xff]
    %v2288 = vld [vmem:[%s2242 + $0x110] sm:$0xf]
    %v2289 = vld [vmem:[%s2242 + $0x114] sm:$0xff]
    %v2290 = vld [vmem:[%s2242 + $0x11c] sm:$0xf]
    %v2291 = vld [vmem:[%s2242 + $0x120] sm:$0xff]
    %v2292 = vld [vmem:[%s2242 + $0x128] sm:$0xf]
    %v2293 = vld [vmem:[%s2242 + $0x12c] sm:$0xff]
    %v2294 = vld [vmem:[%s2242 + $0x134] sm:$0xf]
    %v2295 = vld [vmem:[%s2242 + $0x138] sm:$0xff]
    %v2296 = vld [vmem:[%s2242 + $0x140] sm:$0xf]
    %v2297 = vld [vmem:[%s2242 + $0x144] sm:$0xff]
    %v2298 = vld [vmem:[%s2242 + $0x14c] sm:$0xf]
    %v2299 = vld [vmem:[%s2242 + $0x150] sm:$0xff]
    %v2300 = vld [vmem:[%s2242 + $0x158] sm:$0xf]
    %v2301 = vld [vmem:[%s2242 + $0x15c] sm:$0xff]
    %v2302 = vld [vmem:[%s2242 + $0x164] sm:$0xf]
    %v2303 = vld [vmem:[%s2242 + $0x168] sm:$0xff]
    %v2304 = vld [vmem:[%s2242 + $0x170] sm:$0xf]
    %v2305 = vld [vmem:[%s2242 + $0x174] sm:$0xff]
    %v2306 = vld [vmem:[%s2242 + $0x17c] sm:$0xf]
    %v2307 = vld [vmem:[%s2242 + $0x180] sm:$0xff]
    %v2308 = vld [vmem:[%s2242 + $0x188] sm:$0xf]
    %v2309 = vld [vmem:[%s2242 + $0x18c] sm:$0xff]
    %v2310 = vld [vmem:[%s2242 + $0x194] sm:$0xf]
    %v2311 = vld [vmem:[%s2242 + $0x198] sm:$0xff]
    %v2312 = vld [vmem:[%s2242 + $0x1a0] sm:$0xf]
    %v2313 = vld [vmem:[%s2242 + $0x1a4] sm:$0xff]
    %v2314 = vld [vmem:[%s2242 + $0x1ac] sm:$0xf]
    %v2315 = vunpack.c.l.b16 %v2159
    %v2316 = vunpack.c.h.b16 %v2159
    %v2317 = vunpack.c.l.b16 %v2173
    %v2318 = vunpack.c.l.b16 %v2183
    %v2319 = vunpack.c.h.b16 %v2183
    %v2320 = vunpack.c.l.b16 %v2193
    %v2321 = vunpack.c.l.b16 %v2207
    %v2322 = vunpack.c.h.b16 %v2207
    %v2323 = vunpack.c.l.b16 %v2221
    %v2324 = vunpack.c.l.b16 %v2231
    %v2325 = vunpack.c.h.b16 %v2231
    %v2326 = vunpack.c.l.b16 %v2241
    %v2327 = vpack.c.b16 %v2318, %v2315
    %v2328 = vpack.c.b16 %v2319, %v2316
    %v2329 = vpack.c.b16 %v2320, %v2317
    %v2330 = vpack.c.b16 %v2324, %v2321
    %v2331 = vpack.c.b16 %v2325, %v2322
    %v2332 = vpack.c.b16 %v2326, %v2323
    %v2409 = vunpack.c.l.b16 %v2243
    %v2410 = vunpack.c.h.b16 %v2243
    %v2411 = vunpack.c.l.b16 %v2244
    %v2412 = vunpack.c.l.b16 %v2245
    %v2413 = vunpack.c.h.b16 %v2245
    %v2414 = vunpack.c.l.b16 %v2246
    %v2415 = vunpack.c.l.b16 %v2247
    %v2416 = vunpack.c.h.b16 %v2247
    %v2417 = vunpack.c.l.b16 %v2248
    %v2418 = vunpack.c.l.b16 %v2249
    %v2419 = vunpack.c.h.b16 %v2249
    %v2420 = vunpack.c.l.b16 %v2250
    %v2421 = vunpack.c.l.b16 %v2251
    %v2422 = vunpack.c.h.b16 %v2251
    %v2423 = vunpack.c.l.b16 %v2252
    %v2424 = vunpack.c.l.b16 %v2253
    %v2425 = vunpack.c.h.b16 %v2253
    %v2426 = vunpack.c.l.b16 %v2254
    %v2427 = vunpack.c.l.b16 %v2255
    %v2428 = vunpack.c.h.b16 %v2255
    %v2429 = vunpack.c.l.b16 %v2256
    %v2430 = vunpack.c.l.b16 %v2257
    %v2431 = vunpack.c.h.b16 %v2257
    %v2432 = vunpack.c.l.b16 %v2258
    %v2433 = vunpack.c.l.b16 %v2259
    %v2434 = vunpack.c.h.b16 %v2259
    %v2435 = vunpack.c.l.b16 %v2260
    %v2436 = vunpack.c.l.b16 %v2261
    %v2437 = vunpack.c.h.b16 %v2261
    %v2438 = vunpack.c.l.b16 %v2262
    %v2439 = vunpack.c.l.b16 %v2263
    %v2440 = vunpack.c.h.b16 %v2263
    %v2441 = vunpack.c.l.b16 %v2264
    %v2442 = vunpack.c.l.b16 %v2265
    %v2443 = vunpack.c.h.b16 %v2265
    %v2444 = vunpack.c.l.b16 %v2266
    %v2445 = vunpack.c.l.b16 %v2267
    %v2446 = vunpack.c.h.b16 %v2267
    %v2447 = vunpack.c.l.b16 %v2268
    %v2448 = vunpack.c.l.b16 %v2269
    %v2449 = vunpack.c.h.b16 %v2269
    %v2450 = vunpack.c.l.b16 %v2270
    %v2451 = vunpack.c.l.b16 %v2271
    %v2452 = vunpack.c.h.b16 %v2271
    %v2453 = vunpack.c.l.b16 %v2272
    %v2454 = vunpack.c.l.b16 %v2273
    %v2455 = vunpack.c.h.b16 %v2273
    %v2456 = vunpack.c.l.b16 %v2274
    %v2457 = vunpack.c.l.b16 %v2275
    %v2458 = vunpack.c.h.b16 %v2275
    %v2459 = vunpack.c.l.b16 %v2276
    %v2460 = vunpack.c.l.b16 %v2277
    %v2461 = vunpack.c.h.b16 %v2277
    %v2462 = vunpack.c.l.b16 %v2278
    %v2463 = vunpack.c.l.b16 %v2279
    %v2464 = vunpack.c.h.b16 %v2279
    %v2465 = vunpack.c.l.b16 %v2280
    %v2466 = vunpack.c.l.b16 %v2281
    %v2467 = vunpack.c.h.b16 %v2281
    %v2468 = vunpack.c.l.b16 %v2282
    %v2469 = vunpack.c.l.b16 %v2283
    %v2470 = vunpack.c.h.b16 %v2283
    %v2471 = vunpack.c.l.b16 %v2284
    %v2472 = vunpack.c.l.b16 %v2285
    %v2473 = vunpack.c.h.b16 %v2285
    %v2474 = vunpack.c.l.b16 %v2286
    %v2475 = vunpack.c.l.b16 %v2287
    %v2476 = vunpack.c.h.b16 %v2287
    %v2477 = vunpack.c.l.b16 %v2288
    %v2478 = vunpack.c.l.b16 %v2289
    %v2479 = vunpack.c.h.b16 %v2289
    %v2480 = vunpack.c.l.b16 %v2290
    %v2481 = vunpack.c.l.b16 %v2291
    %v2482 = vunpack.c.h.b16 %v2291
    %v2483 = vunpack.c.l.b16 %v2292
    %v2484 = vunpack.c.l.b16 %v2293
    %v2485 = vunpack.c.h.b16 %v2293
    %v2486 = vunpack.c.l.b16 %v2294
    %v2487 = vunpack.c.l.b16 %v2295
    %v2488 = vunpack.c.h.b16 %v2295
    %v2489 = vunpack.c.l.b16 %v2296
    %v2490 = vunpack.c.l.b16 %v2297
    %v2491 = vunpack.c.h.b16 %v2297
    %v2492 = vunpack.c.l.b16 %v2298
    %v2493 = vunpack.c.l.b16 %v2299
    %v2494 = vunpack.c.h.b16 %v2299
    %v2495 = vunpack.c.l.b16 %v2300
    %v2496 = vunpack.c.l.b16 %v2301
    %v2497 = vunpack.c.h.b16 %v2301
    %v2498 = vunpack.c.l.b16 %v2302
    %v2499 = vunpack.c.l.b16 %v2303
    %v2500 = vunpack.c.h.b16 %v2303
    %v2501 = vunpack.c.l.b16 %v2304
    %v2502 = vunpack.c.l.b16 %v2305
    %v2503 = vunpack.c.h.b16 %v2305
    %v2504 = vunpack.c.l.b16 %v2306
    %v2505 = vunpack.c.l.b16 %v2307
    %v2506 = vunpack.c.h.b16 %v2307
    %v2507 = vunpack.c.l.b16 %v2308
    %v2508 = vunpack.c.l.b16 %v2309
    %v2509 = vunpack.c.h.b16 %v2309
    %v2510 = vunpack.c.l.b16 %v2310
    %v2511 = vunpack.c.l.b16 %v2311
    %v2512 = vunpack.c.h.b16 %v2311
    %v2513 = vunpack.c.l.b16 %v2312
    %v2514 = vunpack.c.l.b16 %v2313
    %v2515 = vunpack.c.h.b16 %v2313
    %v2516 = vunpack.c.l.b16 %v2314
    %v2517 = vpack.c.b16 %v2412, %v2409
    %v2518 = vpack.c.b16 %v2413, %v2410
    %v2519 = vpack.c.b16 %v2414, %v2411
    %v2520 = vpack.c.b16 %v2418, %v2415
    %v2521 = vpack.c.b16 %v2419, %v2416
    %v2522 = vpack.c.b16 %v2420, %v2417
    %v2523 = vpack.c.b16 %v2424, %v2421
    %v2524 = vpack.c.b16 %v2425, %v2422
    %v2525 = vpack.c.b16 %v2426, %v2423
    %v2526 = vpack.c.b16 %v2430, %v2427
    %v2527 = vpack.c.b16 %v2431, %v2428
    %v2528 = vpack.c.b16 %v2432, %v2429
    %v2529 = vpack.c.b16 %v2436, %v2433
    %v2530 = vpack.c.b16 %v2437, %v2434
    %v2531 = vpack.c.b16 %v2438, %v2435
    %v2532 = vpack.c.b16 %v2442, %v2439
    %v2533 = vpack.c.b16 %v2443, %v2440
    %v2534 = vpack.c.b16 %v2444, %v2441
    %v2535 = vpack.c.b16 %v2448, %v2445
    %v2536 = vpack.c.b16 %v2449, %v2446
    %v2537 = vpack.c.b16 %v2450, %v2447
    %v2538 = vpack.c.b16 %v2454, %v2451
    %v2539 = vpack.c.b16 %v2455, %v2452
    %v2540 = vpack.c.b16 %v2456, %v2453
    %v2541 = vpack.c.b16 %v2460, %v2457
    %v2542 = vpack.c.b16 %v2461, %v2458
    %v2543 = vpack.c.b16 %v2462, %v2459
    %v2544 = vpack.c.b16 %v2466, %v2463
    %v2545 = vpack.c.b16 %v2467, %v2464
    %v2546 = vpack.c.b16 %v2468, %v2465
    %v2547 = vpack.c.b16 %v2472, %v2469
    %v2548 = vpack.c.b16 %v2473, %v2470
    %v2549 = vpack.c.b16 %v2474, %v2471
    %v2550 = vpack.c.b16 %v2478, %v2475
    %v2551 = vpack.c.b16 %v2479, %v2476
    %v2552 = vpack.c.b16 %v2480, %v2477
    %v2553 = vpack.c.b16 %v2484, %v2481
    %v2554 = vpack.c.b16 %v2485, %v2482
    %v2555 = vpack.c.b16 %v2486, %v2483
    %v2556 = vpack.c.b16 %v2490, %v2487
    %v2557 = vpack.c.b16 %v2491, %v2488
    %v2558 = vpack.c.b16 %v2492, %v2489
    %v2559 = vpack.c.b16 %v2496, %v2493
    %v2560 = vpack.c.b16 %v2497, %v2494
    %v2561 = vpack.c.b16 %v2498, %v2495
    %v2562 = vpack.c.b16 %v2502, %v2499
    %v2563 = vpack.c.b16 %v2503, %v2500
    %v2564 = vpack.c.b16 %v2504, %v2501
    %v2565 = vpack.c.b16 %v2508, %v2505
    %v2566 = vpack.c.b16 %v2509, %v2506
    %v2567 = vpack.c.b16 %v2510, %v2507
    %v2568 = vpack.c.b16 %v2514, %v2511
    %v2569 = vpack.c.b16 %v2515, %v2512
    %v2570 = vpack.c.b16 %v2516, %v2513
    %v2626 = vsel %vm1944, %v2329, 0
    %v2629 = vsel %vm1944, %v2332, 0
    %2631 = vmatpush.bf16.msra.mxu0 %v2538
    %2632 = vmatpush.bf16.msra.mxu0 %v2535
    %2633 = vmatpush.bf16.msra.mxu0 %v2532
    %2634 = vmatpush.bf16.msra.mxu0 %v2529
    %2635 = vmatpush.bf16.msra.mxu0 %v2526
    %2636 = vmatpush.bf16.msra.mxu0 %v2523
    %2637 = vmatpush.bf16.msra.mxu0 %v2520
    %2638 = vmatpush.bf16.msra.mxu0 %v2517
    %2639 = vmatmul.bf16.gmra.mxu0 %v2327
    %v2640 = vpop.f32.mrf.mxu0
    %v2641 = vadd.f32 0.0, %v2640
    %v2642 = vpop.f32.mrf.mxu0
    %v2643 = vadd.f32 0.0, %v2642
    %2644 = vmatmul.bf16.gmra.mxu0 %v2330
    %v2645 = vpop.f32.mrf.mxu0
    %v2646 = vadd.f32 0.0, %v2645
    %v2647 = vpop.f32.mrf.mxu0
    %v2648 = vadd.f32 0.0, %v2647
    %2649 = vdwg.mxu0
    %2650 = vmatpush.bf16.msra.mxu0 %v2562
    %2651 = vmatpush.bf16.msra.mxu0 %v2559
    %2652 = vmatpush.bf16.msra.mxu0 %v2556
    %2653 = vmatpush.bf16.msra.mxu0 %v2553
    %2654 = vmatpush.bf16.msra.mxu0 %v2550
    %2655 = vmatpush.bf16.msra.mxu0 %v2547
    %2656 = vmatpush.bf16.msra.mxu0 %v2544
    %2657 = vmatpush.bf16.msra.mxu0 %v2541
    %2658 = vmatmul.bf16.gmra.mxu0 %v2328
    %v2659 = vpop.f32.mrf.mxu0
    %v2660 = vadd.f32 %v2641, %v2659
    %v2661 = vpop.f32.mrf.mxu0
    %v2662 = vadd.f32 %v2643, %v2661
    %2663 = vmatmul.bf16.gmra.mxu0 %v2331
    %v2664 = vpop.f32.mrf.mxu0
    %v2665 = vadd.f32 %v2646, %v2664
    %v2666 = vpop.f32.mrf.mxu0
    %v2667 = vadd.f32 %v2648, %v2666
    %2668 = vdwg.mxu0
    %2669 = vmatpush.bf16.msra.mxu0 0
    %2670 = vmatpush.bf16.msra.mxu0 0
    %2671 = vmatpush.bf16.msra.mxu0 0
    %2672 = vmatpush.bf16.msra.mxu0 0
    %2673 = vmatpush.bf16.msra.mxu0 0
    %2674 = vmatpush.bf16.msra.mxu0 0
    %2675 = vmatpush.bf16.msra.mxu0 %v2568
    %2676 = vmatpush.bf16.msra.mxu0 %v2565
    %2677 = vmatmul.bf16.gmra.mxu0 %v2626
    %v2678 = vpop.f32.mrf.mxu0
    %v2679 = vadd.f32 %v2660, %v2678
    %v2680 = vpop.f32.mrf.mxu0
    %v2681 = vadd.f32 %v2662, %v2680
    %2682 = vmatmul.bf16.gmra.mxu0 %v2629
    %v2683 = vpop.f32.mrf.mxu0
    %v2684 = vadd.f32 %v2665, %v2683
    %v2685 = vpop.f32.mrf.mxu0
    %v2686 = vadd.f32 %v2667, %v2685
    %2687 = vdwg.mxu0
    %2688 = vmatpush.bf16.msra.mxu0 %v2539
    %2689 = vmatpush.bf16.msra.mxu0 %v2536
    %2690 = vmatpush.bf16.msra.mxu0 %v2533
    %2691 = vmatpush.bf16.msra.mxu0 %v2530
    %2692 = vmatpush.bf16.msra.mxu0 %v2527
    %2693 = vmatpush.bf16.msra.mxu0 %v2524
    %2694 = vmatpush.bf16.msra.mxu0 %v2521
    %2695 = vmatpush.bf16.msra.mxu0 %v2518
    %2696 = vmatmul.bf16.gmra.mxu0 %v2327
    %v2697 = vpop.f32.mrf.mxu0
    %v2698 = vadd.f32 0.0, %v2697
    %v2699 = vpop.f32.mrf.mxu0
    %v2700 = vadd.f32 0.0, %v2699
    %2701 = vmatmul.bf16.gmra.mxu0 %v2330
    %v2702 = vpop.f32.mrf.mxu0
    %v2703 = vadd.f32 0.0, %v2702
    %v2704 = vpop.f32.mrf.mxu0
    %v2705 = vadd.f32 0.0, %v2704
    %2706 = vdwg.mxu0
    %2707 = vmatpush.bf16.msra.mxu0 %v2563
    %2708 = vmatpush.bf16.msra.mxu0 %v2560
    %2709 = vmatpush.bf16.msra.mxu0 %v2557
    %2710 = vmatpush.bf16.msra.mxu0 %v2554
    %2711 = vmatpush.bf16.msra.mxu0 %v2551
    %2712 = vmatpush.bf16.msra.mxu0 %v2548
    %2713 = vmatpush.bf16.msra.mxu0 %v2545
    %2714 = vmatpush.bf16.msra.mxu0 %v2542
    %2715 = vmatmul.bf16.gmra.mxu0 %v2328
    %v2716 = vpop.f32.mrf.mxu0
    %v2717 = vadd.f32 %v2698, %v2716
    %v2718 = vpop.f32.mrf.mxu0
    %v2719 = vadd.f32 %v2700, %v2718
    %2720 = vmatmul.bf16.gmra.mxu0 %v2331
    %v2721 = vpop.f32.mrf.mxu0
    %v2722 = vadd.f32 %v2703, %v2721
    %v2723 = vpop.f32.mrf.mxu0
    %v2724 = vadd.f32 %v2705, %v2723
    %2725 = vdwg.mxu0
    %2726 = vmatpush.bf16.msra.mxu0 0
    %2727 = vmatpush.bf16.msra.mxu0 0
    %2728 = vmatpush.bf16.msra.mxu0 0
    %2729 = vmatpush.bf16.msra.mxu0 0
    %2730 = vmatpush.bf16.msra.mxu0 0
    %2731 = vmatpush.bf16.msra.mxu0 0
    %2732 = vmatpush.bf16.msra.mxu0 %v2569
    %2733 = vmatpush.bf16.msra.mxu0 %v2566
    %2734 = vmatmul.bf16.gmra.mxu0 %v2626
    %v2735 = vpop.f32.mrf.mxu0
    %v2736 = vadd.f32 %v2717, %v2735
    %v2737 = vpop.f32.mrf.mxu0
    %v2738 = vadd.f32 %v2719, %v2737
    %2739 = vmatmul.bf16.gmra.mxu0 %v2629
    %v2740 = vpop.f32.mrf.mxu0
    %v2741 = vadd.f32 %v2722, %v2740
    %v2742 = vpop.f32.mrf.mxu0
    %v2743 = vadd.f32 %v2724, %v2742
    %2744 = vdwg.mxu0
    %2745 = vmatpush.bf16.msra.mxu0 %v2540
    %2746 = vmatpush.bf16.msra.mxu0 %v2537
    %2747 = vmatpush.bf16.msra.mxu0 %v2534
    %2748 = vmatpush.bf16.msra.mxu0 %v2531
    %2749 = vmatpush.bf16.msra.mxu0 %v2528
    %2750 = vmatpush.bf16.msra.mxu0 %v2525
    %2751 = vmatpush.bf16.msra.mxu0 %v2522
    %2752 = vmatpush.bf16.msra.mxu0 %v2519
    %2753 = vmatmul.bf16.gmra.mxu0 %v2327
    %v2754 = vpop.f32.mrf.mxu0
    %v2755 = vadd.f32 0.0, %v2754
    %v2756 = vpop.f32.mrf.mxu0
    %v2757 = vadd.f32 0.0, %v2756
    %2758 = vmatmul.bf16.gmra.mxu0 %v2330
    %v2759 = vpop.f32.mrf.mxu0
    %v2760 = vadd.f32 0.0, %v2759
    %v2761 = vpop.f32.mrf.mxu0
    %v2762 = vadd.f32 0.0, %v2761
    %2763 = vdwg.mxu0
    %2764 = vmatpush.bf16.msra.mxu0 %v2564
    %2765 = vmatpush.bf16.msra.mxu0 %v2561
    %2766 = vmatpush.bf16.msra.mxu0 %v2558
    %2767 = vmatpush.bf16.msra.mxu0 %v2555
    %2768 = vmatpush.bf16.msra.mxu0 %v2552
    %2769 = vmatpush.bf16.msra.mxu0 %v2549
    %2770 = vmatpush.bf16.msra.mxu0 %v2546
    %2771 = vmatpush.bf16.msra.mxu0 %v2543
    %2772 = vmatmul.bf16.gmra.mxu0 %v2328
    %v2773 = vpop.f32.mrf.mxu0
    %v2774 = vadd.f32 %v2755, %v2773
    %v2775 = vpop.f32.mrf.mxu0
    %v2776 = vadd.f32 %v2757, %v2775
    %2777 = vmatmul.bf16.gmra.mxu0 %v2331
    %v2778 = vpop.f32.mrf.mxu0
    %v2779 = vadd.f32 %v2760, %v2778
    %v2780 = vpop.f32.mrf.mxu0
    %v2781 = vadd.f32 %v2762, %v2780
    %2782 = vdwg.mxu0
    %2783 = vmatpush.bf16.msra.mxu0 0
    %2784 = vmatpush.bf16.msra.mxu0 0
    %2785 = vmatpush.bf16.msra.mxu0 0
    %2786 = vmatpush.bf16.msra.mxu0 0
    %2787 = vmatpush.bf16.msra.mxu0 0
    %2788 = vmatpush.bf16.msra.mxu0 0
    %2789 = vmatpush.bf16.msra.mxu0 %v2570
    %2790 = vmatpush.bf16.msra.mxu0 %v2567
    %2791 = vmatmul.bf16.gmra.mxu0 %v2626
    %v2792 = vpop.f32.mrf.mxu0
    %v2793 = vadd.f32 %v2774, %v2792
    %v2794 = vpop.f32.mrf.mxu0
    %v2795 = vadd.f32 %v2776, %v2794
    %2796 = vmatmul.bf16.gmra.mxu0 %v2629
    %v2797 = vpop.f32.mrf.mxu0
    %v2798 = vadd.f32 %v2779, %v2797
    %v2799 = vpop.f32.mrf.mxu0
    %v2800 = vadd.f32 %v2781, %v2799
    %2801 = vdwg.mxu0
    %v2802 = vadd.f32 %v2122, %v2679
    %v2803 = vadd.f32 %v2123, %v2736
    %v2804 = vadd.f32 %v2124, %v2793
    %v2805 = vadd.f32 %v2125, %v2681
    %v2806 = vadd.f32 %v2126, %v2738
    %v2807 = vadd.f32 %v2127, %v2795
    %v2808 = vadd.f32 %v2128, %v2684
    %v2809 = vadd.f32 %v2129, %v2741
    %v2810 = vadd.f32 %v2130, %v2798
    %v2811 = vadd.f32 %v2131, %v2686
    %v2812 = vadd.f32 %v2132, %v2743
    %v2813 = vadd.f32 %v2133, %v2800
    %v2814 = vld [vmem:[#allocation2] sm:$0xee]
    %v2815 = vld [vmem:[#allocation2 + $0x8] sm:$0xe]
    %v2816 = vld [vmem:[#allocation2 + $0x24] sm:$0xee]
    %v2817 = vld [vmem:[#allocation2 + $0x2c] sm:$0xe]
    %v2830 = vrot.slane %v2814, 5
    %v2831 = vrot.slane %v2830, 4
    %v2832 = vrot.slane %v2136, 5
    %v2833 = vsel %vm482, %v2831, %v2832
    %v2834 = vrot.slane %v2815, 5
    %v2835 = vrot.slane %v2834, 4
    %v2836 = vrot.slane %v2137, 5
    %v2837 = vsel %vm482, %v2835, %v2836
    %v2838 = vrot.slane %v2832, 4
    %v2839 = vrot.slane %v2138, 5
    %v2840 = vsel %vm482, %v2838, %v2839
    %v2841 = vrot.slane %v2836, 4
    %v2842 = vrot.slane %v2139, 5
    %v2843 = vsel %vm482, %v2841, %v2842
    %v2844 = vrot.slane %v2816, 5
    %v2845 = vrot.slane %v2844, 4
    %v2846 = vrot.slane %v2142, 5
    %v2847 = vsel %vm482, %v2845, %v2846
    %v2848 = vrot.slane %v2817, 5
    %v2849 = vrot.slane %v2848, 4
    %v2850 = vrot.slane %v2143, 5
    %v2851 = vsel %vm482, %v2849, %v2850
    %v2852 = vrot.slane %v2846, 4
    %v2853 = vrot.slane %v2144, 5
    %v2854 = vsel %vm482, %v2852, %v2853
    %v2855 = vrot.slane %v2850, 4
    %v2856 = vrot.slane %v2145, 5
    %v2857 = vsel %vm482, %v2855, %v2856
    %s2858 = scalar_lea.vmem [#allocation6], 864
    %v2859 = vld [vmem:[%s2858] sm:$0xff]
    %v2860 = vld [vmem:[%s2858 + $0x8] sm:$0xf]
    %v2861 = vld [vmem:[%s2858 + $0xc] sm:$0xff]
    %v2862 = vld [vmem:[%s2858 + $0x14] sm:$0xf]
    %v2863 = vld [vmem:[%s2858 + $0x18] sm:$0xff]
    %v2864 = vld [vmem:[%s2858 + $0x20] sm:$0xf]
    %v2865 = vld [vmem:[%s2858 + $0x24] sm:$0xff]
    %v2866 = vld [vmem:[%s2858 + $0x2c] sm:$0xf]
    %v2867 = vld [vmem:[%s2858 + $0x30] sm:$0xff]
    %v2868 = vld [vmem:[%s2858 + $0x38] sm:$0xf]
    %v2869 = vld [vmem:[%s2858 + $0x3c] sm:$0xff]
    %v2870 = vld [vmem:[%s2858 + $0x44] sm:$0xf]
    %v2871 = vld [vmem:[%s2858 + $0x48] sm:$0xff]
    %v2872 = vld [vmem:[%s2858 + $0x50] sm:$0xf]
    %v2873 = vld [vmem:[%s2858 + $0x54] sm:$0xff]
    %v2874 = vld [vmem:[%s2858 + $0x5c] sm:$0xf]
    %v2875 = vld [vmem:[%s2858 + $0x60] sm:$0xff]
    %v2876 = vld [vmem:[%s2858 + $0x68] sm:$0xf]
    %v2877 = vld [vmem:[%s2858 + $0x6c] sm:$0xff]
    %v2878 = vld [vmem:[%s2858 + $0x74] sm:$0xf]
    %v2879 = vld [vmem:[%s2858 + $0x78] sm:$0xff]
    %v2880 = vld [vmem:[%s2858 + $0x80] sm:$0xf]
    %v2881 = vld [vmem:[%s2858 + $0x84] sm:$0xff]
    %v2882 = vld [vmem:[%s2858 + $0x8c] sm:$0xf]
    %v2883 = vld [vmem:[%s2858 + $0x90] sm:$0xff]
    %v2884 = vld [vmem:[%s2858 + $0x98] sm:$0xf]
    %v2885 = vld [vmem:[%s2858 + $0x9c] sm:$0xff]
    %v2886 = vld [vmem:[%s2858 + $0xa4] sm:$0xf]
    %v2887 = vld [vmem:[%s2858 + $0xa8] sm:$0xff]
    %v2888 = vld [vmem:[%s2858 + $0xb0] sm:$0xf]
    %v2889 = vld [vmem:[%s2858 + $0xb4] sm:$0xff]
    %v2890 = vld [vmem:[%s2858 + $0xbc] sm:$0xf]
    %v2891 = vld [vmem:[%s2858 + $0xc0] sm:$0xff]
    %v2892 = vld [vmem:[%s2858 + $0xc8] sm:$0xf]
    %v2893 = vld [vmem:[%s2858 + $0xcc] sm:$0xff]
    %v2894 = vld [vmem:[%s2858 + $0xd4] sm:$0xf]
    %v2895 = vld [vmem:[%s2858 + $0xd8] sm:$0xff]
    %v2896 = vld [vmem:[%s2858 + $0xe0] sm:$0xf]
    %v2897 = vld [vmem:[%s2858 + $0xe4] sm:$0xff]
    %v2898 = vld [vmem:[%s2858 + $0xec] sm:$0xf]
    %v2899 = vld [vmem:[%s2858 + $0xf0] sm:$0xff]
    %v2900 = vld [vmem:[%s2858 + $0xf8] sm:$0xf]
    %v2901 = vld [vmem:[%s2858 + $0xfc] sm:$0xff]
    %v2902 = vld [vmem:[%s2858 + $0x104] sm:$0xf]
    %v2903 = vld [vmem:[%s2858 + $0x108] sm:$0xff]
    %v2904 = vld [vmem:[%s2858 + $0x110] sm:$0xf]
    %v2905 = vld [vmem:[%s2858 + $0x114] sm:$0xff]
    %v2906 = vld [vmem:[%s2858 + $0x11c] sm:$0xf]
    %v2907 = vld [vmem:[%s2858 + $0x120] sm:$0xff]
    %v2908 = vld [vmem:[%s2858 + $0x128] sm:$0xf]
    %v2909 = vld [vmem:[%s2858 + $0x12c] sm:$0xff]
    %v2910 = vld [vmem:[%s2858 + $0x134] sm:$0xf]
    %v2911 = vld [vmem:[%s2858 + $0x138] sm:$0xff]
    %v2912 = vld [vmem:[%s2858 + $0x140] sm:$0xf]
    %v2913 = vld [vmem:[%s2858 + $0x144] sm:$0xff]
    %v2914 = vld [vmem:[%s2858 + $0x14c] sm:$0xf]
    %v2915 = vld [vmem:[%s2858 + $0x150] sm:$0xff]
    %v2916 = vld [vmem:[%s2858 + $0x158] sm:$0xf]
    %v2917 = vld [vmem:[%s2858 + $0x15c] sm:$0xff]
    %v2918 = vld [vmem:[%s2858 + $0x164] sm:$0xf]
    %v2919 = vld [vmem:[%s2858 + $0x168] sm:$0xff]
    %v2920 = vld [vmem:[%s2858 + $0x170] sm:$0xf]
    %v2921 = vld [vmem:[%s2858 + $0x174] sm:$0xff]
    %v2922 = vld [vmem:[%s2858 + $0x17c] sm:$0xf]
    %v2923 = vld [vmem:[%s2858 + $0x180] sm:$0xff]
    %v2924 = vld [vmem:[%s2858 + $0x188] sm:$0xf]
    %v2925 = vld [vmem:[%s2858 + $0x18c] sm:$0xff]
    %v2926 = vld [vmem:[%s2858 + $0x194] sm:$0xf]
    %v2927 = vld [vmem:[%s2858 + $0x198] sm:$0xff]
    %v2928 = vld [vmem:[%s2858 + $0x1a0] sm:$0xf]
    %v2929 = vld [vmem:[%s2858 + $0x1a4] sm:$0xff]
    %v2930 = vld [vmem:[%s2858 + $0x1ac] sm:$0xf]
    %v2931 = vunpack.c.l.b16 %v2833
    %v2932 = vunpack.c.h.b16 %v2833
    %v2933 = vunpack.c.l.b16 %v2837
    %v2934 = vunpack.c.l.b16 %v2840
    %v2935 = vunpack.c.h.b16 %v2840
    %v2936 = vunpack.c.l.b16 %v2843
    %v2937 = vunpack.c.l.b16 %v2847
    %v2938 = vunpack.c.h.b16 %v2847
    %v2939 = vunpack.c.l.b16 %v2851
    %v2940 = vunpack.c.l.b16 %v2854
    %v2941 = vunpack.c.h.b16 %v2854
    %v2942 = vunpack.c.l.b16 %v2857
    %v2943 = vpack.c.b16 %v2934, %v2931
    %v2944 = vpack.c.b16 %v2935, %v2932
    %v2945 = vpack.c.b16 %v2936, %v2933
    %v2946 = vpack.c.b16 %v2940, %v2937
    %v2947 = vpack.c.b16 %v2941, %v2938
    %v2948 = vpack.c.b16 %v2942, %v2939
    %v3025 = vunpack.c.l.b16 %v2859
    %v3026 = vunpack.c.h.b16 %v2859
    %v3027 = vunpack.c.l.b16 %v2860
    %v3028 = vunpack.c.l.b16 %v2861
    %v3029 = vunpack.c.h.b16 %v2861
    %v3030 = vunpack.c.l.b16 %v2862
    %v3031 = vunpack.c.l.b16 %v2863
    %v3032 = vunpack.c.h.b16 %v2863
    %v3033 = vunpack.c.l.b16 %v2864
    %v3034 = vunpack.c.l.b16 %v2865
    %v3035 = vunpack.c.h.b16 %v2865
    %v3036 = vunpack.c.l.b16 %v2866
    %v3037 = vunpack.c.l.b16 %v2867
    %v3038 = vunpack.c.h.b16 %v2867
    %v3039 = vunpack.c.l.b16 %v2868
    %v3040 = vunpack.c.l.b16 %v2869
    %v3041 = vunpack.c.h.b16 %v2869
    %v3042 = vunpack.c.l.b16 %v2870
    %v3043 = vunpack.c.l.b16 %v2871
    %v3044 = vunpack.c.h.b16 %v2871
    %v3045 = vunpack.c.l.b16 %v2872
    %v3046 = vunpack.c.l.b16 %v2873
    %v3047 = vunpack.c.h.b16 %v2873
    %v3048 = vunpack.c.l.b16 %v2874
    %v3049 = vunpack.c.l.b16 %v2875
    %v3050 = vunpack.c.h.b16 %v2875
    %v3051 = vunpack.c.l.b16 %v2876
    %v3052 = vunpack.c.l.b16 %v2877
    %v3053 = vunpack.c.h.b16 %v2877
    %v3054 = vunpack.c.l.b16 %v2878
    %v3055 = vunpack.c.l.b16 %v2879
    %v3056 = vunpack.c.h.b16 %v2879
    %v3057 = vunpack.c.l.b16 %v2880
    %v3058 = vunpack.c.l.b16 %v2881
    %v3059 = vunpack.c.h.b16 %v2881
    %v3060 = vunpack.c.l.b16 %v2882
    %v3061 = vunpack.c.l.b16 %v2883
    %v3062 = vunpack.c.h.b16 %v2883
    %v3063 = vunpack.c.l.b16 %v2884
    %v3064 = vunpack.c.l.b16 %v2885
    %v3065 = vunpack.c.h.b16 %v2885
    %v3066 = vunpack.c.l.b16 %v2886
    %v3067 = vunpack.c.l.b16 %v2887
    %v3068 = vunpack.c.h.b16 %v2887
    %v3069 = vunpack.c.l.b16 %v2888
    %v3070 = vunpack.c.l.b16 %v2889
    %v3071 = vunpack.c.h.b16 %v2889
    %v3072 = vunpack.c.l.b16 %v2890
    %v3073 = vunpack.c.l.b16 %v2891
    %v3074 = vunpack.c.h.b16 %v2891
    %v3075 = vunpack.c.l.b16 %v2892
    %v3076 = vunpack.c.l.b16 %v2893
    %v3077 = vunpack.c.h.b16 %v2893
    %v3078 = vunpack.c.l.b16 %v2894
    %v3079 = vunpack.c.l.b16 %v2895
    %v3080 = vunpack.c.h.b16 %v2895
    %v3081 = vunpack.c.l.b16 %v2896
    %v3082 = vunpack.c.l.b16 %v2897
    %v3083 = vunpack.c.h.b16 %v2897
    %v3084 = vunpack.c.l.b16 %v2898
    %v3085 = vunpack.c.l.b16 %v2899
    %v3086 = vunpack.c.h.b16 %v2899
    %v3087 = vunpack.c.l.b16 %v2900
    %v3088 = vunpack.c.l.b16 %v2901
    %v3089 = vunpack.c.h.b16 %v2901
    %v3090 = vunpack.c.l.b16 %v2902
    %v3091 = vunpack.c.l.b16 %v2903
    %v3092 = vunpack.c.h.b16 %v2903
    %v3093 = vunpack.c.l.b16 %v2904
    %v3094 = vunpack.c.l.b16 %v2905
    %v3095 = vunpack.c.h.b16 %v2905
    %v3096 = vunpack.c.l.b16 %v2906
    %v3097 = vunpack.c.l.b16 %v2907
    %v3098 = vunpack.c.h.b16 %v2907
    %v3099 = vunpack.c.l.b16 %v2908
    %v3100 = vunpack.c.l.b16 %v2909
    %v3101 = vunpack.c.h.b16 %v2909
    %v3102 = vunpack.c.l.b16 %v2910
    %v3103 = vunpack.c.l.b16 %v2911
    %v3104 = vunpack.c.h.b16 %v2911
    %v3105 = vunpack.c.l.b16 %v2912
    %v3106 = vunpack.c.l.b16 %v2913
    %v3107 = vunpack.c.h.b16 %v2913
    %v3108 = vunpack.c.l.b16 %v2914
    %v3109 = vunpack.c.l.b16 %v2915
    %v3110 = vunpack.c.h.b16 %v2915
    %v3111 = vunpack.c.l.b16 %v2916
    %v3112 = vunpack.c.l.b16 %v2917
    %v3113 = vunpack.c.h.b16 %v2917
    %v3114 = vunpack.c.l.b16 %v2918
    %v3115 = vunpack.c.l.b16 %v2919
    %v3116 = vunpack.c.h.b16 %v2919
    %v3117 = vunpack.c.l.b16 %v2920
    %v3118 = vunpack.c.l.b16 %v2921
    %v3119 = vunpack.c.h.b16 %v2921
    %v3120 = vunpack.c.l.b16 %v2922
    %v3121 = vunpack.c.l.b16 %v2923
    %v3122 = vunpack.c.h.b16 %v2923
    %v3123 = vunpack.c.l.b16 %v2924
    %v3124 = vunpack.c.l.b16 %v2925
    %v3125 = vunpack.c.h.b16 %v2925
    %v3126 = vunpack.c.l.b16 %v2926
    %v3127 = vunpack.c.l.b16 %v2927
    %v3128 = vunpack.c.h.b16 %v2927
    %v3129 = vunpack.c.l.b16 %v2928
    %v3130 = vunpack.c.l.b16 %v2929
    %v3131 = vunpack.c.h.b16 %v2929
    %v3132 = vunpack.c.l.b16 %v2930
    %v3133 = vpack.c.b16 %v3028, %v3025
    %v3134 = vpack.c.b16 %v3029, %v3026
    %v3135 = vpack.c.b16 %v3030, %v3027
    %v3136 = vpack.c.b16 %v3034, %v3031
    %v3137 = vpack.c.b16 %v3035, %v3032
    %v3138 = vpack.c.b16 %v3036, %v3033
    %v3139 = vpack.c.b16 %v3040, %v3037
    %v3140 = vpack.c.b16 %v3041, %v3038
    %v3141 = vpack.c.b16 %v3042, %v3039
    %v3142 = vpack.c.b16 %v3046, %v3043
    %v3143 = vpack.c.b16 %v3047, %v3044
    %v3144 = vpack.c.b16 %v3048, %v3045
    %v3145 = vpack.c.b16 %v3052, %v3049
    %v3146 = vpack.c.b16 %v3053, %v3050
    %v3147 = vpack.c.b16 %v3054, %v3051
    %v3148 = vpack.c.b16 %v3058, %v3055
    %v3149 = vpack.c.b16 %v3059, %v3056
    %v3150 = vpack.c.b16 %v3060, %v3057
    %v3151 = vpack.c.b16 %v3064, %v3061
    %v3152 = vpack.c.b16 %v3065, %v3062
    %v3153 = vpack.c.b16 %v3066, %v3063
    %v3154 = vpack.c.b16 %v3070, %v3067
    %v3155 = vpack.c.b16 %v3071, %v3068
    %v3156 = vpack.c.b16 %v3072, %v3069
    %v3157 = vpack.c.b16 %v3076, %v3073
    %v3158 = vpack.c.b16 %v3077, %v3074
    %v3159 = vpack.c.b16 %v3078, %v3075
    %v3160 = vpack.c.b16 %v3082, %v3079
    %v3161 = vpack.c.b16 %v3083, %v3080
    %v3162 = vpack.c.b16 %v3084, %v3081
    %v3163 = vpack.c.b16 %v3088, %v3085
    %v3164 = vpack.c.b16 %v3089, %v3086
    %v3165 = vpack.c.b16 %v3090, %v3087
    %v3166 = vpack.c.b16 %v3094, %v3091
    %v3167 = vpack.c.b16 %v3095, %v3092
    %v3168 = vpack.c.b16 %v3096, %v3093
    %v3169 = vpack.c.b16 %v3100, %v3097
    %v3170 = vpack.c.b16 %v3101, %v3098
    %v3171 = vpack.c.b16 %v3102, %v3099
    %v3172 = vpack.c.b16 %v3106, %v3103
    %v3173 = vpack.c.b16 %v3107, %v3104
    %v3174 = vpack.c.b16 %v3108, %v3105
    %v3175 = vpack.c.b16 %v3112, %v3109
    %v3176 = vpack.c.b16 %v3113, %v3110
    %v3177 = vpack.c.b16 %v3114, %v3111
    %v3178 = vpack.c.b16 %v3118, %v3115
    %v3179 = vpack.c.b16 %v3119, %v3116
    %v3180 = vpack.c.b16 %v3120, %v3117
    %v3181 = vpack.c.b16 %v3124, %v3121
    %v3182 = vpack.c.b16 %v3125, %v3122
    %v3183 = vpack.c.b16 %v3126, %v3123
    %v3184 = vpack.c.b16 %v3130, %v3127
    %v3185 = vpack.c.b16 %v3131, %v3128
    %v3186 = vpack.c.b16 %v3132, %v3129
    %v3242 = vsel %vm1944, %v2945, 0
    %v3245 = vsel %vm1944, %v2948, 0
    %3247 = vmatpush.bf16.msra.mxu0 %v3154
    %3248 = vmatpush.bf16.msra.mxu0 %v3151
    %3249 = vmatpush.bf16.msra.mxu0 %v3148
    %3250 = vmatpush.bf16.msra.mxu0 %v3145
    %3251 = vmatpush.bf16.msra.mxu0 %v3142
    %3252 = vmatpush.bf16.msra.mxu0 %v3139
    %3253 = vmatpush.bf16.msra.mxu0 %v3136
    %3254 = vmatpush.bf16.msra.mxu0 %v3133
    %3255 = vmatmul.bf16.gmra.mxu0 %v2943
    %v3256 = vpop.f32.mrf.mxu0
    %v3257 = vadd.f32 0.0, %v3256
    %v3258 = vpop.f32.mrf.mxu0
    %v3259 = vadd.f32 0.0, %v3258
    %3260 = vmatmul.bf16.gmra.mxu0 %v2946
    %v3261 = vpop.f32.mrf.mxu0
    %v3262 = vadd.f32 0.0, %v3261
    %v3263 = vpop.f32.mrf.mxu0
    %v3264 = vadd.f32 0.0, %v3263
    %3265 = vdwg.mxu0
    %3266 = vmatpush.bf16.msra.mxu0 %v3178
    %3267 = vmatpush.bf16.msra.mxu0 %v3175
    %3268 = vmatpush.bf16.msra.mxu0 %v3172
    %3269 = vmatpush.bf16.msra.mxu0 %v3169
    %3270 = vmatpush.bf16.msra.mxu0 %v3166
    %3271 = vmatpush.bf16.msra.mxu0 %v3163
    %3272 = vmatpush.bf16.msra.mxu0 %v3160
    %3273 = vmatpush.bf16.msra.mxu0 %v3157
    %3274 = vmatmul.bf16.gmra.mxu0 %v2944
    %v3275 = vpop.f32.mrf.mxu0
    %v3276 = vadd.f32 %v3257, %v3275
    %v3277 = vpop.f32.mrf.mxu0
    %v3278 = vadd.f32 %v3259, %v3277
    %3279 = vmatmul.bf16.gmra.mxu0 %v2947
    %v3280 = vpop.f32.mrf.mxu0
    %v3281 = vadd.f32 %v3262, %v3280
    %v3282 = vpop.f32.mrf.mxu0
    %v3283 = vadd.f32 %v3264, %v3282
    %3284 = vdwg.mxu0
    %3285 = vmatpush.bf16.msra.mxu0 0
    %3286 = vmatpush.bf16.msra.mxu0 0
    %3287 = vmatpush.bf16.msra.mxu0 0
    %3288 = vmatpush.bf16.msra.mxu0 0
    %3289 = vmatpush.bf16.msra.mxu0 0
    %3290 = vmatpush.bf16.msra.mxu0 0
    %3291 = vmatpush.bf16.msra.mxu0 %v3184
    %3292 = vmatpush.bf16.msra.mxu0 %v3181
    %3293 = vmatmul.bf16.gmra.mxu0 %v3242
    %v3294 = vpop.f32.mrf.mxu0
    %v3295 = vadd.f32 %v3276, %v3294
    %v3296 = vpop.f32.mrf.mxu0
    %v3297 = vadd.f32 %v3278, %v3296
    %3298 = vmatmul.bf16.gmra.mxu0 %v3245
    %v3299 = vpop.f32.mrf.mxu0
    %v3300 = vadd.f32 %v3281, %v3299
    %v3301 = vpop.f32.mrf.mxu0
    %v3302 = vadd.f32 %v3283, %v3301
    %3303 = vdwg.mxu0
    %3304 = vmatpush.bf16.msra.mxu0 %v3155
    %3305 = vmatpush.bf16.msra.mxu0 %v3152
    %3306 = vmatpush.bf16.msra.mxu0 %v3149
    %3307 = vmatpush.bf16.msra.mxu0 %v3146
    %3308 = vmatpush.bf16.msra.mxu0 %v3143
    %3309 = vmatpush.bf16.msra.mxu0 %v3140
    %3310 = vmatpush.bf16.msra.mxu0 %v3137
    %3311 = vmatpush.bf16.msra.mxu0 %v3134
    %3312 = vmatmul.bf16.gmra.mxu0 %v2943
    %v3313 = vpop.f32.mrf.mxu0
    %v3314 = vadd.f32 0.0, %v3313
    %v3315 = vpop.f32.mrf.mxu0
    %v3316 = vadd.f32 0.0, %v3315
    %3317 = vmatmul.bf16.gmra.mxu0 %v2946
    %v3318 = vpop.f32.mrf.mxu0
    %v3319 = vadd.f32 0.0, %v3318
    %v3320 = vpop.f32.mrf.mxu0
    %v3321 = vadd.f32 0.0, %v3320
    %3322 = vdwg.mxu0
    %3323 = vmatpush.bf16.msra.mxu0 %v3179
    %3324 = vmatpush.bf16.msra.mxu0 %v3176
    %3325 = vmatpush.bf16.msra.mxu0 %v3173
    %3326 = vmatpush.bf16.msra.mxu0 %v3170
    %3327 = vmatpush.bf16.msra.mxu0 %v3167
    %3328 = vmatpush.bf16.msra.mxu0 %v3164
    %3329 = vmatpush.bf16.msra.mxu0 %v3161
    %3330 = vmatpush.bf16.msra.mxu0 %v3158
    %3331 = vmatmul.bf16.gmra.mxu0 %v2944
    %v3332 = vpop.f32.mrf.mxu0
    %v3333 = vadd.f32 %v3314, %v3332
    %v3334 = vpop.f32.mrf.mxu0
    %v3335 = vadd.f32 %v3316, %v3334
    %3336 = vmatmul.bf16.gmra.mxu0 %v2947
    %v3337 = vpop.f32.mrf.mxu0
    %v3338 = vadd.f32 %v3319, %v3337
    %v3339 = vpop.f32.mrf.mxu0
    %v3340 = vadd.f32 %v3321, %v3339
    %3341 = vdwg.mxu0
    %3342 = vmatpush.bf16.msra.mxu0 0
    %3343 = vmatpush.bf16.msra.mxu0 0
    %3344 = vmatpush.bf16.msra.mxu0 0
    %3345 = vmatpush.bf16.msra.mxu0 0
    %3346 = vmatpush.bf16.msra.mxu0 0
    %3347 = vmatpush.bf16.msra.mxu0 0
    %3348 = vmatpush.bf16.msra.mxu0 %v3185
    %3349 = vmatpush.bf16.msra.mxu0 %v3182
    %3350 = vmatmul.bf16.gmra.mxu0 %v3242
    %v3351 = vpop.f32.mrf.mxu0
    %v3352 = vadd.f32 %v3333, %v3351
    %v3353 = vpop.f32.mrf.mxu0
    %v3354 = vadd.f32 %v3335, %v3353
    %3355 = vmatmul.bf16.gmra.mxu0 %v3245
    %v3356 = vpop.f32.mrf.mxu0
    %v3357 = vadd.f32 %v3338, %v3356
    %v3358 = vpop.f32.mrf.mxu0
    %v3359 = vadd.f32 %v3340, %v3358
    %3360 = vdwg.mxu0
    %3361 = vmatpush.bf16.msra.mxu0 %v3156
    %3362 = vmatpush.bf16.msra.mxu0 %v3153
    %3363 = vmatpush.bf16.msra.mxu0 %v3150
    %3364 = vmatpush.bf16.msra.mxu0 %v3147
    %3365 = vmatpush.bf16.msra.mxu0 %v3144
    %3366 = vmatpush.bf16.msra.mxu0 %v3141
    %3367 = vmatpush.bf16.msra.mxu0 %v3138
    %3368 = vmatpush.bf16.msra.mxu0 %v3135
    %3369 = vmatmul.bf16.gmra.mxu0 %v2943
    %v3370 = vpop.f32.mrf.mxu0
    %v3371 = vadd.f32 0.0, %v3370
    %v3372 = vpop.f32.mrf.mxu0
    %v3373 = vadd.f32 0.0, %v3372
    %3374 = vmatmul.bf16.gmra.mxu0 %v2946
    %v3375 = vpop.f32.mrf.mxu0
    %v3376 = vadd.f32 0.0, %v3375
    %v3377 = vpop.f32.mrf.mxu0
    %v3378 = vadd.f32 0.0, %v3377
    %3379 = vdwg.mxu0
    %3380 = vmatpush.bf16.msra.mxu0 %v3180
    %3381 = vmatpush.bf16.msra.mxu0 %v3177
    %3382 = vmatpush.bf16.msra.mxu0 %v3174
    %3383 = vmatpush.bf16.msra.mxu0 %v3171
    %3384 = vmatpush.bf16.msra.mxu0 %v3168
    %3385 = vmatpush.bf16.msra.mxu0 %v3165
    %3386 = vmatpush.bf16.msra.mxu0 %v3162
    %3387 = vmatpush.bf16.msra.mxu0 %v3159
    %3388 = vmatmul.bf16.gmra.mxu0 %v2944
    %v3389 = vpop.f32.mrf.mxu0
    %v3390 = vadd.f32 %v3371, %v3389
    %v3391 = vpop.f32.mrf.mxu0
    %v3392 = vadd.f32 %v3373, %v3391
    %3393 = vmatmul.bf16.gmra.mxu0 %v2947
    %v3394 = vpop.f32.mrf.mxu0
    %v3395 = vadd.f32 %v3376, %v3394
    %v3396 = vpop.f32.mrf.mxu0
    %v3397 = vadd.f32 %v3378, %v3396
    %3398 = vdwg.mxu0
    %3399 = vmatpush.bf16.msra.mxu0 0
    %3400 = vmatpush.bf16.msra.mxu0 0
    %3401 = vmatpush.bf16.msra.mxu0 0
    %3402 = vmatpush.bf16.msra.mxu0 0
    %3403 = vmatpush.bf16.msra.mxu0 0
    %3404 = vmatpush.bf16.msra.mxu0 0
    %3405 = vmatpush.bf16.msra.mxu0 %v3186
    %3406 = vmatpush.bf16.msra.mxu0 %v3183
    %3407 = vmatmul.bf16.gmra.mxu0 %v3242
    %v3408 = vpop.f32.mrf.mxu0
    %v3409 = vadd.f32 %v3390, %v3408
    %v3410 = vpop.f32.mrf.mxu0
    %v3411 = vadd.f32 %v3392, %v3410
    %3412 = vmatmul.bf16.gmra.mxu0 %v3245
    %v3413 = vpop.f32.mrf.mxu0
    %v3414 = vadd.f32 %v3395, %v3413
    %v3415 = vpop.f32.mrf.mxu0
    %v3416 = vadd.f32 %v3397, %v3415
    %3417 = vdwg.mxu0
    %v3418 = vadd.f32 %v2802, %v3295
    %v3419 = vadd.f32 %v2803, %v3352
    %v3420 = vadd.f32 %v2804, %v3409
    %v3421 = vadd.f32 %v2805, %v3297
    %v3422 = vadd.f32 %v2806, %v3354
    %v3423 = vadd.f32 %v2807, %v3411
    %v3424 = vadd.f32 %v2808, %v3300
    %v3425 = vadd.f32 %v2809, %v3357
    %v3426 = vadd.f32 %v2810, %v3414
    %v3427 = vadd.f32 %v2811, %v3302
    %v3428 = vadd.f32 %v2812, %v3359
    %v3429 = vadd.f32 %v2813, %v3416
    %v3430 = vld [vmem:[#allocation2 + $0x18] sm:$0x33]
    %v3431 = vld [vmem:[#allocation2 + $0x20] sm:$0x3]
    %v3432 = vld [vmem:[#allocation2 + $0x3c] sm:$0x33]
    %v3433 = vld [vmem:[#allocation2 + $0x44] sm:$0x3]
    %v3435 = vshrl.u32 %v2814, 16
    %v3437 = vrot.slane %v3435, 5
    %v3438 = vshll.u32 %v2814, 16
    %v3440 = vrot.slane %v3438, 6
    %v3441 = vor.u32 %v3437, %v3440
    %v3442 = vrot.slane %v3441, 4
    %v3443 = vrot.slane %v2174, 5
    %v3444 = vrot.slane %v2156, 6
    %v3445 = vor.u32 %v3443, %v3444
    %v3446 = vsel %vm643, %v3442, %v3445
    %v3448 = vshrl.u32 %v2815, 16
    %v3450 = vrot.slane %v3448, 5
    %v3451 = vshll.u32 %v2815, 16
    %v3453 = vrot.slane %v3451, 6
    %v3454 = vor.u32 %v3450, %v3453
    %v3455 = vrot.slane %v3454, 4
    %v3456 = vrot.slane %v2184, 5
    %v3457 = vrot.slane %v2170, 6
    %v3458 = vor.u32 %v3456, %v3457
    %v3459 = vsel %vm643, %v3455, %v3458
    %v3460 = vrot.slane %v3445, 4
    %v3462 = vshrl.u32 %v3430, 16
    %v3464 = vrot.slane %v3462, 5
    %v3465 = vshll.u32 %v3430, 16
    %v3467 = vrot.slane %v3465, 6
    %v3468 = vor.u32 %v3464, %v3467
    %v3469 = vsel %vm643, %v3460, %v3468
    %v3470 = vrot.slane %v3458, 4
    %v3472 = vshrl.u32 %v3431, 16
    %v3474 = vrot.slane %v3472, 5
    %v3475 = vshll.u32 %v3431, 16
    %v3477 = vrot.slane %v3475, 6
    %v3478 = vor.u32 %v3474, %v3477
    %v3479 = vsel %vm643, %v3470, %v3478
    %v3481 = vshrl.u32 %v2816, 16
    %v3483 = vrot.slane %v3481, 5
    %v3484 = vshll.u32 %v2816, 16
    %v3486 = vrot.slane %v3484, 6
    %v3487 = vor.u32 %v3483, %v3486
    %v3488 = vrot.slane %v3487, 4
    %v3489 = vrot.slane %v2222, 5
    %v3490 = vrot.slane %v2204, 6
    %v3491 = vor.u32 %v3489, %v3490
    %v3492 = vsel %vm643, %v3488, %v3491
    %v3494 = vshrl.u32 %v2817, 16
    %v3496 = vrot.slane %v3494, 5
    %v3497 = vshll.u32 %v2817, 16
    %v3499 = vrot.slane %v3497, 6
    %v3500 = vor.u32 %v3496, %v3499
    %v3501 = vrot.slane %v3500, 4
    %v3502 = vrot.slane %v2232, 5
    %v3503 = vrot.slane %v2218, 6
    %v3504 = vor.u32 %v3502, %v3503
    %v3505 = vsel %vm643, %v3501, %v3504
    %v3506 = vrot.slane %v3491, 4
    %v3508 = vshrl.u32 %v3432, 16
    %v3510 = vrot.slane %v3508, 5
    %v3511 = vshll.u32 %v3432, 16
    %v3513 = vrot.slane %v3511, 6
    %v3514 = vor.u32 %v3510, %v3513
    %v3515 = vsel %vm643, %v3506, %v3514
    %v3516 = vrot.slane %v3504, 4
    %v3518 = vshrl.u32 %v3433, 16
    %v3520 = vrot.slane %v3518, 5
    %v3521 = vshll.u32 %v3433, 16
    %v3523 = vrot.slane %v3521, 6
    %v3524 = vor.u32 %v3520, %v3523
    %v3525 = vsel %vm643, %v3516, %v3524
    %s3526 = scalar_lea.vmem [#allocation6], 1296
    %v3527 = vld [vmem:[%s3526] sm:$0xff]
    %v3528 = vld [vmem:[%s3526 + $0x8] sm:$0xf]
    %v3529 = vld [vmem:[%s3526 + $0xc] sm:$0xff]
    %v3530 = vld [vmem:[%s3526 + $0x14] sm:$0xf]
    %v3531 = vld [vmem:[%s3526 + $0x18] sm:$0xff]
    %v3532 = vld [vmem:[%s3526 + $0x20] sm:$0xf]
    %v3533 = vld [vmem:[%s3526 + $0x24] sm:$0xff]
    %v3534 = vld [vmem:[%s3526 + $0x2c] sm:$0xf]
    %v3535 = vld [vmem:[%s3526 + $0x30] sm:$0xff]
    %v3536 = vld [vmem:[%s3526 + $0x38] sm:$0xf]
    %v3537 = vld [vmem:[%s3526 + $0x3c] sm:$0xff]
    %v3538 = vld [vmem:[%s3526 + $0x44] sm:$0xf]
    %v3539 = vld [vmem:[%s3526 + $0x48] sm:$0xff]
    %v3540 = vld [vmem:[%s3526 + $0x50] sm:$0xf]
    %v3541 = vld [vmem:[%s3526 + $0x54] sm:$0xff]
    %v3542 = vld [vmem:[%s3526 + $0x5c] sm:$0xf]
    %v3543 = vld [vmem:[%s3526 + $0x60] sm:$0xff]
    %v3544 = vld [vmem:[%s3526 + $0x68] sm:$0xf]
    %v3545 = vld [vmem:[%s3526 + $0x6c] sm:$0xff]
    %v3546 = vld [vmem:[%s3526 + $0x74] sm:$0xf]
    %v3547 = vld [vmem:[%s3526 + $0x78] sm:$0xff]
    %v3548 = vld [vmem:[%s3526 + $0x80] sm:$0xf]
    %v3549 = vld [vmem:[%s3526 + $0x84] sm:$0xff]
    %v3550 = vld [vmem:[%s3526 + $0x8c] sm:$0xf]
    %v3551 = vld [vmem:[%s3526 + $0x90] sm:$0xff]
    %v3552 = vld [vmem:[%s3526 + $0x98] sm:$0xf]
    %v3553 = vld [vmem:[%s3526 + $0x9c] sm:$0xff]
    %v3554 = vld [vmem:[%s3526 + $0xa4] sm:$0xf]
    %v3555 = vld [vmem:[%s3526 + $0xa8] sm:$0xff]
    %v3556 = vld [vmem:[%s3526 + $0xb0] sm:$0xf]
    %v3557 = vld [vmem:[%s3526 + $0xb4] sm:$0xff]
    %v3558 = vld [vmem:[%s3526 + $0xbc] sm:$0xf]
    %v3559 = vld [vmem:[%s3526 + $0xc0] sm:$0xff]
    %v3560 = vld [vmem:[%s3526 + $0xc8] sm:$0xf]
    %v3561 = vld [vmem:[%s3526 + $0xcc] sm:$0xff]
    %v3562 = vld [vmem:[%s3526 + $0xd4] sm:$0xf]
    %v3563 = vld [vmem:[%s3526 + $0xd8] sm:$0xff]
    %v3564 = vld [vmem:[%s3526 + $0xe0] sm:$0xf]
    %v3565 = vld [vmem:[%s3526 + $0xe4] sm:$0xff]
    %v3566 = vld [vmem:[%s3526 + $0xec] sm:$0xf]
    %v3567 = vld [vmem:[%s3526 + $0xf0] sm:$0xff]
    %v3568 = vld [vmem:[%s3526 + $0xf8] sm:$0xf]
    %v3569 = vld [vmem:[%s3526 + $0xfc] sm:$0xff]
    %v3570 = vld [vmem:[%s3526 + $0x104] sm:$0xf]
    %v3571 = vld [vmem:[%s3526 + $0x108] sm:$0xff]
    %v3572 = vld [vmem:[%s3526 + $0x110] sm:$0xf]
    %v3573 = vld [vmem:[%s3526 + $0x114] sm:$0xff]
    %v3574 = vld [vmem:[%s3526 + $0x11c] sm:$0xf]
    %v3575 = vld [vmem:[%s3526 + $0x120] sm:$0xff]
    %v3576 = vld [vmem:[%s3526 + $0x128] sm:$0xf]
    %v3577 = vld [vmem:[%s3526 + $0x12c] sm:$0xff]
    %v3578 = vld [vmem:[%s3526 + $0x134] sm:$0xf]
    %v3579 = vld [vmem:[%s3526 + $0x138] sm:$0xff]
    %v3580 = vld [vmem:[%s3526 + $0x140] sm:$0xf]
    %v3581 = vld [vmem:[%s3526 + $0x144] sm:$0xff]
    %v3582 = vld [vmem:[%s3526 + $0x14c] sm:$0xf]
    %v3583 = vld [vmem:[%s3526 + $0x150] sm:$0xff]
    %v3584 = vld [vmem:[%s3526 + $0x158] sm:$0xf]
    %v3585 = vld [vmem:[%s3526 + $0x15c] sm:$0xff]
    %v3586 = vld [vmem:[%s3526 + $0x164] sm:$0xf]
    %v3587 = vld [vmem:[%s3526 + $0x168] sm:$0xff]
    %v3588 = vld [vmem:[%s3526 + $0x170] sm:$0xf]
    %v3589 = vld [vmem:[%s3526 + $0x174] sm:$0xff]
    %v3590 = vld [vmem:[%s3526 + $0x17c] sm:$0xf]
    %v3591 = vld [vmem:[%s3526 + $0x180] sm:$0xff]
    %v3592 = vld [vmem:[%s3526 + $0x188] sm:$0xf]
    %v3593 = vld [vmem:[%s3526 + $0x18c] sm:$0xff]
    %v3594 = vld [vmem:[%s3526 + $0x194] sm:$0xf]
    %v3595 = vld [vmem:[%s3526 + $0x198] sm:$0xff]
    %v3596 = vld [vmem:[%s3526 + $0x1a0] sm:$0xf]
    %v3597 = vld [vmem:[%s3526 + $0x1a4] sm:$0xff]
    %v3598 = vld [vmem:[%s3526 + $0x1ac] sm:$0xf]
    %v3599 = vunpack.c.l.b16 %v3446
    %v3600 = vunpack.c.h.b16 %v3446
    %v3601 = vunpack.c.l.b16 %v3459
    %v3602 = vunpack.c.l.b16 %v3469
    %v3603 = vunpack.c.h.b16 %v3469
    %v3604 = vunpack.c.l.b16 %v3479
    %v3605 = vunpack.c.l.b16 %v3492
    %v3606 = vunpack.c.h.b16 %v3492
    %v3607 = vunpack.c.l.b16 %v3505
    %v3608 = vunpack.c.l.b16 %v3515
    %v3609 = vunpack.c.h.b16 %v3515
    %v3610 = vunpack.c.l.b16 %v3525
    %v3611 = vpack.c.b16 %v3602, %v3599
    %v3612 = vpack.c.b16 %v3603, %v3600
    %v3613 = vpack.c.b16 %v3604, %v3601
    %v3614 = vpack.c.b16 %v3608, %v3605
    %v3615 = vpack.c.b16 %v3609, %v3606
    %v3616 = vpack.c.b16 %v3610, %v3607
    %v3693 = vunpack.c.l.b16 %v3527
    %v3694 = vunpack.c.h.b16 %v3527
    %v3695 = vunpack.c.l.b16 %v3528
    %v3696 = vunpack.c.l.b16 %v3529
    %v3697 = vunpack.c.h.b16 %v3529
    %v3698 = vunpack.c.l.b16 %v3530
    %v3699 = vunpack.c.l.b16 %v3531
    %v3700 = vunpack.c.h.b16 %v3531
    %v3701 = vunpack.c.l.b16 %v3532
    %v3702 = vunpack.c.l.b16 %v3533
    %v3703 = vunpack.c.h.b16 %v3533
    %v3704 = vunpack.c.l.b16 %v3534
    %v3705 = vunpack.c.l.b16 %v3535
    %v3706 = vunpack.c.h.b16 %v3535
    %v3707 = vunpack.c.l.b16 %v3536
    %v3708 = vunpack.c.l.b16 %v3537
    %v3709 = vunpack.c.h.b16 %v3537
    %v3710 = vunpack.c.l.b16 %v3538
    %v3711 = vunpack.c.l.b16 %v3539
    %v3712 = vunpack.c.h.b16 %v3539
    %v3713 = vunpack.c.l.b16 %v3540
    %v3714 = vunpack.c.l.b16 %v3541
    %v3715 = vunpack.c.h.b16 %v3541
    %v3716 = vunpack.c.l.b16 %v3542
    %v3717 = vunpack.c.l.b16 %v3543
    %v3718 = vunpack.c.h.b16 %v3543
    %v3719 = vunpack.c.l.b16 %v3544
    %v3720 = vunpack.c.l.b16 %v3545
    %v3721 = vunpack.c.h.b16 %v3545
    %v3722 = vunpack.c.l.b16 %v3546
    %v3723 = vunpack.c.l.b16 %v3547
    %v3724 = vunpack.c.h.b16 %v3547
    %v3725 = vunpack.c.l.b16 %v3548
    %v3726 = vunpack.c.l.b16 %v3549
    %v3727 = vunpack.c.h.b16 %v3549
    %v3728 = vunpack.c.l.b16 %v3550
    %v3729 = vunpack.c.l.b16 %v3551
    %v3730 = vunpack.c.h.b16 %v3551
    %v3731 = vunpack.c.l.b16 %v3552
    %v3732 = vunpack.c.l.b16 %v3553
    %v3733 = vunpack.c.h.b16 %v3553
    %v3734 = vunpack.c.l.b16 %v3554
    %v3735 = vunpack.c.l.b16 %v3555
    %v3736 = vunpack.c.h.b16 %v3555
    %v3737 = vunpack.c.l.b16 %v3556
    %v3738 = vunpack.c.l.b16 %v3557
    %v3739 = vunpack.c.h.b16 %v3557
    %v3740 = vunpack.c.l.b16 %v3558
    %v3741 = vunpack.c.l.b16 %v3559
    %v3742 = vunpack.c.h.b16 %v3559
    %v3743 = vunpack.c.l.b16 %v3560
    %v3744 = vunpack.c.l.b16 %v3561
    %v3745 = vunpack.c.h.b16 %v3561
    %v3746 = vunpack.c.l.b16 %v3562
    %v3747 = vunpack.c.l.b16 %v3563
    %v3748 = vunpack.c.h.b16 %v3563
    %v3749 = vunpack.c.l.b16 %v3564
    %v3750 = vunpack.c.l.b16 %v3565
    %v3751 = vunpack.c.h.b16 %v3565
    %v3752 = vunpack.c.l.b16 %v3566
    %v3753 = vunpack.c.l.b16 %v3567
    %v3754 = vunpack.c.h.b16 %v3567
    %v3755 = vunpack.c.l.b16 %v3568
    %v3756 = vunpack.c.l.b16 %v3569
    %v3757 = vunpack.c.h.b16 %v3569
    %v3758 = vunpack.c.l.b16 %v3570
    %v3759 = vunpack.c.l.b16 %v3571
    %v3760 = vunpack.c.h.b16 %v3571
    %v3761 = vunpack.c.l.b16 %v3572
    %v3762 = vunpack.c.l.b16 %v3573
    %v3763 = vunpack.c.h.b16 %v3573
    %v3764 = vunpack.c.l.b16 %v3574
    %v3765 = vunpack.c.l.b16 %v3575
    %v3766 = vunpack.c.h.b16 %v3575
    %v3767 = vunpack.c.l.b16 %v3576
    %v3768 = vunpack.c.l.b16 %v3577
    %v3769 = vunpack.c.h.b16 %v3577
    %v3770 = vunpack.c.l.b16 %v3578
    %v3771 = vunpack.c.l.b16 %v3579
    %v3772 = vunpack.c.h.b16 %v3579
    %v3773 = vunpack.c.l.b16 %v3580
    %v3774 = vunpack.c.l.b16 %v3581
    %v3775 = vunpack.c.h.b16 %v3581
    %v3776 = vunpack.c.l.b16 %v3582
    %v3777 = vunpack.c.l.b16 %v3583
    %v3778 = vunpack.c.h.b16 %v3583
    %v3779 = vunpack.c.l.b16 %v3584
    %v3780 = vunpack.c.l.b16 %v3585
    %v3781 = vunpack.c.h.b16 %v3585
    %v3782 = vunpack.c.l.b16 %v3586
    %v3783 = vunpack.c.l.b16 %v3587
    %v3784 = vunpack.c.h.b16 %v3587
    %v3785 = vunpack.c.l.b16 %v3588
    %v3786 = vunpack.c.l.b16 %v3589
    %v3787 = vunpack.c.h.b16 %v3589
    %v3788 = vunpack.c.l.b16 %v3590
    %v3789 = vunpack.c.l.b16 %v3591
    %v3790 = vunpack.c.h.b16 %v3591
    %v3791 = vunpack.c.l.b16 %v3592
    %v3792 = vunpack.c.l.b16 %v3593
    %v3793 = vunpack.c.h.b16 %v3593
    %v3794 = vunpack.c.l.b16 %v3594
    %v3795 = vunpack.c.l.b16 %v3595
    %v3796 = vunpack.c.h.b16 %v3595
    %v3797 = vunpack.c.l.b16 %v3596
    %v3798 = vunpack.c.l.b16 %v3597
    %v3799 = vunpack.c.h.b16 %v3597
    %v3800 = vunpack.c.l.b16 %v3598
    %v3801 = vpack.c.b16 %v3696, %v3693
    %v3802 = vpack.c.b16 %v3697, %v3694
    %v3803 = vpack.c.b16 %v3698, %v3695
    %v3804 = vpack.c.b16 %v3702, %v3699
    %v3805 = vpack.c.b16 %v3703, %v3700
    %v3806 = vpack.c.b16 %v3704, %v3701
    %v3807 = vpack.c.b16 %v3708, %v3705
    %v3808 = vpack.c.b16 %v3709, %v3706
    %v3809 = vpack.c.b16 %v3710, %v3707
    %v3810 = vpack.c.b16 %v3714, %v3711
    %v3811 = vpack.c.b16 %v3715, %v3712
    %v3812 = vpack.c.b16 %v3716, %v3713
    %v3813 = vpack.c.b16 %v3720, %v3717
    %v3814 = vpack.c.b16 %v3721, %v3718
    %v3815 = vpack.c.b16 %v3722, %v3719
    %v3816 = vpack.c.b16 %v3726, %v3723
    %v3817 = vpack.c.b16 %v3727, %v3724
    %v3818 = vpack.c.b16 %v3728, %v3725
    %v3819 = vpack.c.b16 %v3732, %v3729
    %v3820 = vpack.c.b16 %v3733, %v3730
    %v3821 = vpack.c.b16 %v3734, %v3731
    %v3822 = vpack.c.b16 %v3738, %v3735
    %v3823 = vpack.c.b16 %v3739, %v3736
    %v3824 = vpack.c.b16 %v3740, %v3737
    %v3825 = vpack.c.b16 %v3744, %v3741
    %v3826 = vpack.c.b16 %v3745, %v3742
    %v3827 = vpack.c.b16 %v3746, %v3743
    %v3828 = vpack.c.b16 %v3750, %v3747
    %v3829 = vpack.c.b16 %v3751, %v3748
    %v3830 = vpack.c.b16 %v3752, %v3749
    %v3831 = vpack.c.b16 %v3756, %v3753
    %v3832 = vpack.c.b16 %v3757, %v3754
    %v3833 = vpack.c.b16 %v3758, %v3755
    %v3834 = vpack.c.b16 %v3762, %v3759
    %v3835 = vpack.c.b16 %v3763, %v3760
    %v3836 = vpack.c.b16 %v3764, %v3761
    %v3837 = vpack.c.b16 %v3768, %v3765
    %v3838 = vpack.c.b16 %v3769, %v3766
    %v3839 = vpack.c.b16 %v3770, %v3767
    %v3840 = vpack.c.b16 %v3774, %v3771
    %v3841 = vpack.c.b16 %v3775, %v3772
    %v3842 = vpack.c.b16 %v3776, %v3773
    %v3843 = vpack.c.b16 %v3780, %v3777
    %v3844 = vpack.c.b16 %v3781, %v3778
    %v3845 = vpack.c.b16 %v3782, %v3779
    %v3846 = vpack.c.b16 %v3786, %v3783
    %v3847 = vpack.c.b16 %v3787, %v3784
    %v3848 = vpack.c.b16 %v3788, %v3785
    %v3849 = vpack.c.b16 %v3792, %v3789
    %v3850 = vpack.c.b16 %v3793, %v3790
    %v3851 = vpack.c.b16 %v3794, %v3791
    %v3852 = vpack.c.b16 %v3798, %v3795
    %v3853 = vpack.c.b16 %v3799, %v3796
    %v3854 = vpack.c.b16 %v3800, %v3797
    %v3910 = vsel %vm1944, %v3613, 0
    %v3913 = vsel %vm1944, %v3616, 0
    %3915 = vmatpush.bf16.msra.mxu0 %v3822
    %3916 = vmatpush.bf16.msra.mxu0 %v3819
    %3917 = vmatpush.bf16.msra.mxu0 %v3816
    %3918 = vmatpush.bf16.msra.mxu0 %v3813
    %3919 = vmatpush.bf16.msra.mxu0 %v3810
    %3920 = vmatpush.bf16.msra.mxu0 %v3807
    %3921 = vmatpush.bf16.msra.mxu0 %v3804
    %3922 = vmatpush.bf16.msra.mxu0 %v3801
    %3923 = vmatmul.bf16.gmra.mxu0 %v3611
    %v3924 = vpop.f32.mrf.mxu0
    %v3925 = vadd.f32 0.0, %v3924
    %v3926 = vpop.f32.mrf.mxu0
    %v3927 = vadd.f32 0.0, %v3926
    %3928 = vmatmul.bf16.gmra.mxu0 %v3614
    %v3929 = vpop.f32.mrf.mxu0
    %v3930 = vadd.f32 0.0, %v3929
    %v3931 = vpop.f32.mrf.mxu0
    %v3932 = vadd.f32 0.0, %v3931
    %3933 = vdwg.mxu0
    %3934 = vmatpush.bf16.msra.mxu0 %v3846
    %3935 = vmatpush.bf16.msra.mxu0 %v3843
    %3936 = vmatpush.bf16.msra.mxu0 %v3840
    %3937 = vmatpush.bf16.msra.mxu0 %v3837
    %3938 = vmatpush.bf16.msra.mxu0 %v3834
    %3939 = vmatpush.bf16.msra.mxu0 %v3831
    %3940 = vmatpush.bf16.msra.mxu0 %v3828
    %3941 = vmatpush.bf16.msra.mxu0 %v3825
    %3942 = vmatmul.bf16.gmra.mxu0 %v3612
    %v3943 = vpop.f32.mrf.mxu0
    %v3944 = vadd.f32 %v3925, %v3943
    %v3945 = vpop.f32.mrf.mxu0
    %v3946 = vadd.f32 %v3927, %v3945
    %3947 = vmatmul.bf16.gmra.mxu0 %v3615
    %v3948 = vpop.f32.mrf.mxu0
    %v3949 = vadd.f32 %v3930, %v3948
    %v3950 = vpop.f32.mrf.mxu0
    %v3951 = vadd.f32 %v3932, %v3950
    %3952 = vdwg.mxu0
    %3953 = vmatpush.bf16.msra.mxu0 0
    %3954 = vmatpush.bf16.msra.mxu0 0
    %3955 = vmatpush.bf16.msra.mxu0 0
    %3956 = vmatpush.bf16.msra.mxu0 0
    %3957 = vmatpush.bf16.msra.mxu0 0
    %3958 = vmatpush.bf16.msra.mxu0 0
    %3959 = vmatpush.bf16.msra.mxu0 %v3852
    %3960 = vmatpush.bf16.msra.mxu0 %v3849
    %3961 = vmatmul.bf16.gmra.mxu0 %v3910
    %v3962 = vpop.f32.mrf.mxu0
    %v3963 = vadd.f32 %v3944, %v3962
    %v3964 = vpop.f32.mrf.mxu0
    %v3965 = vadd.f32 %v3946, %v3964
    %3966 = vmatmul.bf16.gmra.mxu0 %v3913
    %v3967 = vpop.f32.mrf.mxu0
    %v3968 = vadd.f32 %v3949, %v3967
    %v3969 = vpop.f32.mrf.mxu0
    %v3970 = vadd.f32 %v3951, %v3969
    %3971 = vdwg.mxu0
    %3972 = vmatpush.bf16.msra.mxu0 %v3823
    %3973 = vmatpush.bf16.msra.mxu0 %v3820
    %3974 = vmatpush.bf16.msra.mxu0 %v3817
    %3975 = vmatpush.bf16.msra.mxu0 %v3814
    %3976 = vmatpush.bf16.msra.mxu0 %v3811
    %3977 = vmatpush.bf16.msra.mxu0 %v3808
    %3978 = vmatpush.bf16.msra.mxu0 %v3805
    %3979 = vmatpush.bf16.msra.mxu0 %v3802
    %3980 = vmatmul.bf16.gmra.mxu0 %v3611
    %v3981 = vpop.f32.mrf.mxu0
    %v3982 = vadd.f32 0.0, %v3981
    %v3983 = vpop.f32.mrf.mxu0
    %v3984 = vadd.f32 0.0, %v3983
    %3985 = vmatmul.bf16.gmra.mxu0 %v3614
    %v3986 = vpop.f32.mrf.mxu0
    %v3987 = vadd.f32 0.0, %v3986
    %v3988 = vpop.f32.mrf.mxu0
    %v3989 = vadd.f32 0.0, %v3988
    %3990 = vdwg.mxu0
    %3991 = vmatpush.bf16.msra.mxu0 %v3847
    %3992 = vmatpush.bf16.msra.mxu0 %v3844
    %3993 = vmatpush.bf16.msra.mxu0 %v3841
    %3994 = vmatpush.bf16.msra.mxu0 %v3838
    %3995 = vmatpush.bf16.msra.mxu0 %v3835
    %3996 = vmatpush.bf16.msra.mxu0 %v3832
    %3997 = vmatpush.bf16.msra.mxu0 %v3829
    %3998 = vmatpush.bf16.msra.mxu0 %v3826
    %3999 = vmatmul.bf16.gmra.mxu0 %v3612
    %v4000 = vpop.f32.mrf.mxu0
    %v4001 = vadd.f32 %v3982, %v4000
    %v4002 = vpop.f32.mrf.mxu0
    %v4003 = vadd.f32 %v3984, %v4002
    %4004 = vmatmul.bf16.gmra.mxu0 %v3615
    %v4005 = vpop.f32.mrf.mxu0
    %v4006 = vadd.f32 %v3987, %v4005
    %v4007 = vpop.f32.mrf.mxu0
    %v4008 = vadd.f32 %v3989, %v4007
    %4009 = vdwg.mxu0
    %4010 = vmatpush.bf16.msra.mxu0 0
    %4011 = vmatpush.bf16.msra.mxu0 0
    %4012 = vmatpush.bf16.msra.mxu0 0
    %4013 = vmatpush.bf16.msra.mxu0 0
    %4014 = vmatpush.bf16.msra.mxu0 0
    %4015 = vmatpush.bf16.msra.mxu0 0
    %4016 = vmatpush.bf16.msra.mxu0 %v3853
    %4017 = vmatpush.bf16.msra.mxu0 %v3850
    %4018 = vmatmul.bf16.gmra.mxu0 %v3910
    %v4019 = vpop.f32.mrf.mxu0
    %v4020 = vadd.f32 %v4001, %v4019
    %v4021 = vpop.f32.mrf.mxu0
    %v4022 = vadd.f32 %v4003, %v4021
    %4023 = vmatmul.bf16.gmra.mxu0 %v3913
    %v4024 = vpop.f32.mrf.mxu0
    %v4025 = vadd.f32 %v4006, %v4024
    %v4026 = vpop.f32.mrf.mxu0
    %v4027 = vadd.f32 %v4008, %v4026
    %4028 = vdwg.mxu0
    %4029 = vmatpush.bf16.msra.mxu0 %v3824
    %4030 = vmatpush.bf16.msra.mxu0 %v3821
    %4031 = vmatpush.bf16.msra.mxu0 %v3818
    %4032 = vmatpush.bf16.msra.mxu0 %v3815
    %4033 = vmatpush.bf16.msra.mxu0 %v3812
    %4034 = vmatpush.bf16.msra.mxu0 %v3809
    %4035 = vmatpush.bf16.msra.mxu0 %v3806
    %4036 = vmatpush.bf16.msra.mxu0 %v3803
    %4037 = vmatmul.bf16.gmra.mxu0 %v3611
    %v4038 = vpop.f32.mrf.mxu0
    %v4039 = vadd.f32 0.0, %v4038
    %v4040 = vpop.f32.mrf.mxu0
    %v4041 = vadd.f32 0.0, %v4040
    %4042 = vmatmul.bf16.gmra.mxu0 %v3614
    %v4043 = vpop.f32.mrf.mxu0
    %v4044 = vadd.f32 0.0, %v4043
    %v4045 = vpop.f32.mrf.mxu0
    %v4046 = vadd.f32 0.0, %v4045
    %4047 = vdwg.mxu0
    %4048 = vmatpush.bf16.msra.mxu0 %v3848
    %4049 = vmatpush.bf16.msra.mxu0 %v3845
    %4050 = vmatpush.bf16.msra.mxu0 %v3842
    %4051 = vmatpush.bf16.msra.mxu0 %v3839
    %4052 = vmatpush.bf16.msra.mxu0 %v3836
    %4053 = vmatpush.bf16.msra.mxu0 %v3833
    %4054 = vmatpush.bf16.msra.mxu0 %v3830
    %4055 = vmatpush.bf16.msra.mxu0 %v3827
    %4056 = vmatmul.bf16.gmra.mxu0 %v3612
    %v4057 = vpop.f32.mrf.mxu0
    %v4058 = vadd.f32 %v4039, %v4057
    %v4059 = vpop.f32.mrf.mxu0
    %v4060 = vadd.f32 %v4041, %v4059
    %4061 = vmatmul.bf16.gmra.mxu0 %v3615
    %v4062 = vpop.f32.mrf.mxu0
    %v4063 = vadd.f32 %v4044, %v4062
    %v4064 = vpop.f32.mrf.mxu0
    %v4065 = vadd.f32 %v4046, %v4064
    %4066 = vdwg.mxu0
    %4067 = vmatpush.bf16.msra.mxu0 0
    %4068 = vmatpush.bf16.msra.mxu0 0
    %4069 = vmatpush.bf16.msra.mxu0 0
    %4070 = vmatpush.bf16.msra.mxu0 0
    %4071 = vmatpush.bf16.msra.mxu0 0
    %4072 = vmatpush.bf16.msra.mxu0 0
    %4073 = vmatpush.bf16.msra.mxu0 %v3854
    %4074 = vmatpush.bf16.msra.mxu0 %v3851
    %4075 = vmatmul.bf16.gmra.mxu0 %v3910
    %v4076 = vpop.f32.mrf.mxu0
    %v4077 = vadd.f32 %v4058, %v4076
    %v4078 = vpop.f32.mrf.mxu0
    %v4079 = vadd.f32 %v4060, %v4078
    %4080 = vmatmul.bf16.gmra.mxu0 %v3913
    %v4081 = vpop.f32.mrf.mxu0
    %v4082 = vadd.f32 %v4063, %v4081
    %v4083 = vpop.f32.mrf.mxu0
    %v4084 = vadd.f32 %v4065, %v4083
    %4085 = vdwg.mxu0
    %v4086 = vadd.f32 %v3418, %v3963
    %v4087 = vadd.f32 %v3419, %v4020
    %v4088 = vadd.f32 %v3420, %v4077
    %v4089 = vadd.f32 %v3421, %v3965
    %v4090 = vadd.f32 %v3422, %v4022
    %v4091 = vadd.f32 %v3423, %v4079
    %v4092 = vadd.f32 %v3424, %v3968
    %v4093 = vadd.f32 %v3425, %v4025
    %v4094 = vadd.f32 %v3426, %v4082
    %v4095 = vadd.f32 %v3427, %v3970
    %v4096 = vadd.f32 %v3428, %v4027
    %v4097 = vadd.f32 %v3429, %v4084
    %v4098 = vld [vmem:[#allocation2] sm:$0xcc]
    %v4099 = vld [vmem:[#allocation2 + $0x8] sm:$0xc]
    %v4100 = vld [vmem:[#allocation2 + $0x24] sm:$0xcc]
    %v4101 = vld [vmem:[#allocation2 + $0x2c] sm:$0xc]
    %v4110 = vrot.slane %v4098, 6
    %v4111 = vrot.slane %v4110, 4
    %v4112 = vrot.slane %v2136, 6
    %v4113 = vsel %vm840, %v4111, %v4112
    %v4114 = vrot.slane %v4099, 6
    %v4115 = vrot.slane %v4114, 4
    %v4116 = vrot.slane %v2137, 6
    %v4117 = vsel %vm840, %v4115, %v4116
    %v4118 = vrot.slane %v4112, 4
    %v4119 = vrot.slane %v3430, 6
    %v4120 = vsel %vm840, %v4118, %v4119
    %v4121 = vrot.slane %v4116, 4
    %v4122 = vrot.slane %v3431, 6
    %v4123 = vsel %vm840, %v4121, %v4122
    %v4124 = vrot.slane %v4100, 6
    %v4125 = vrot.slane %v4124, 4
    %v4126 = vrot.slane %v2142, 6
    %v4127 = vsel %vm840, %v4125, %v4126
    %v4128 = vrot.slane %v4101, 6
    %v4129 = vrot.slane %v4128, 4
    %v4130 = vrot.slane %v2143, 6
    %v4131 = vsel %vm840, %v4129, %v4130
    %v4132 = vrot.slane %v4126, 4
    %v4133 = vrot.slane %v3432, 6
    %v4134 = vsel %vm840, %v4132, %v4133
    %v4135 = vrot.slane %v4130, 4
    %v4136 = vrot.slane %v3433, 6
    %v4137 = vsel %vm840, %v4135, %v4136
    %s4138 = scalar_lea.vmem [#allocation6], 1728
    %v4139 = vld [vmem:[%s4138] sm:$0xff]
    %v4140 = vld [vmem:[%s4138 + $0x8] sm:$0xf]
    %v4141 = vld [vmem:[%s4138 + $0xc] sm:$0xff]
    %v4142 = vld [vmem:[%s4138 + $0x14] sm:$0xf]
    %v4143 = vld [vmem:[%s4138 + $0x18] sm:$0xff]
    %v4144 = vld [vmem:[%s4138 + $0x20] sm:$0xf]
    %v4145 = vld [vmem:[%s4138 + $0x24] sm:$0xff]
    %v4146 = vld [vmem:[%s4138 + $0x2c] sm:$0xf]
    %v4147 = vld [vmem:[%s4138 + $0x30] sm:$0xff]
    %v4148 = vld [vmem:[%s4138 + $0x38] sm:$0xf]
    %v4149 = vld [vmem:[%s4138 + $0x3c] sm:$0xff]
    %v4150 = vld [vmem:[%s4138 + $0x44] sm:$0xf]
    %v4151 = vld [vmem:[%s4138 + $0x48] sm:$0xff]
    %v4152 = vld [vmem:[%s4138 + $0x50] sm:$0xf]
    %v4153 = vld [vmem:[%s4138 + $0x54] sm:$0xff]
    %v4154 = vld [vmem:[%s4138 + $0x5c] sm:$0xf]
    %v4155 = vld [vmem:[%s4138 + $0x60] sm:$0xff]
    %v4156 = vld [vmem:[%s4138 + $0x68] sm:$0xf]
    %v4157 = vld [vmem:[%s4138 + $0x6c] sm:$0xff]
    %v4158 = vld [vmem:[%s4138 + $0x74] sm:$0xf]
    %v4159 = vld [vmem:[%s4138 + $0x78] sm:$0xff]
    %v4160 = vld [vmem:[%s4138 + $0x80] sm:$0xf]
    %v4161 = vld [vmem:[%s4138 + $0x84] sm:$0xff]
    %v4162 = vld [vmem:[%s4138 + $0x8c] sm:$0xf]
    %v4163 = vld [vmem:[%s4138 + $0x90] sm:$0xff]
    %v4164 = vld [vmem:[%s4138 + $0x98] sm:$0xf]
    %v4165 = vld [vmem:[%s4138 + $0x9c] sm:$0xff]
    %v4166 = vld [vmem:[%s4138 + $0xa4] sm:$0xf]
    %v4167 = vld [vmem:[%s4138 + $0xa8] sm:$0xff]
    %v4168 = vld [vmem:[%s4138 + $0xb0] sm:$0xf]
    %v4169 = vld [vmem:[%s4138 + $0xb4] sm:$0xff]
    %v4170 = vld [vmem:[%s4138 + $0xbc] sm:$0xf]
    %v4171 = vld [vmem:[%s4138 + $0xc0] sm:$0xff]
    %v4172 = vld [vmem:[%s4138 + $0xc8] sm:$0xf]
    %v4173 = vld [vmem:[%s4138 + $0xcc] sm:$0xff]
    %v4174 = vld [vmem:[%s4138 + $0xd4] sm:$0xf]
    %v4175 = vld [vmem:[%s4138 + $0xd8] sm:$0xff]
    %v4176 = vld [vmem:[%s4138 + $0xe0] sm:$0xf]
    %v4177 = vld [vmem:[%s4138 + $0xe4] sm:$0xff]
    %v4178 = vld [vmem:[%s4138 + $0xec] sm:$0xf]
    %v4179 = vld [vmem:[%s4138 + $0xf0] sm:$0xff]
    %v4180 = vld [vmem:[%s4138 + $0xf8] sm:$0xf]
    %v4181 = vld [vmem:[%s4138 + $0xfc] sm:$0xff]
    %v4182 = vld [vmem:[%s4138 + $0x104] sm:$0xf]
    %v4183 = vld [vmem:[%s4138 + $0x108] sm:$0xff]
    %v4184 = vld [vmem:[%s4138 + $0x110] sm:$0xf]
    %v4185 = vld [vmem:[%s4138 + $0x114] sm:$0xff]
    %v4186 = vld [vmem:[%s4138 + $0x11c] sm:$0xf]
    %v4187 = vld [vmem:[%s4138 + $0x120] sm:$0xff]
    %v4188 = vld [vmem:[%s4138 + $0x128] sm:$0xf]
    %v4189 = vld [vmem:[%s4138 + $0x12c] sm:$0xff]
    %v4190 = vld [vmem:[%s4138 + $0x134] sm:$0xf]
    %v4191 = vld [vmem:[%s4138 + $0x138] sm:$0xff]
    %v4192 = vld [vmem:[%s4138 + $0x140] sm:$0xf]
    %v4193 = vld [vmem:[%s4138 + $0x144] sm:$0xff]
    %v4194 = vld [vmem:[%s4138 + $0x14c] sm:$0xf]
    %v4195 = vld [vmem:[%s4138 + $0x150] sm:$0xff]
    %v4196 = vld [vmem:[%s4138 + $0x158] sm:$0xf]
    %v4197 = vld [vmem:[%s4138 + $0x15c] sm:$0xff]
    %v4198 = vld [vmem:[%s4138 + $0x164] sm:$0xf]
    %v4199 = vld [vmem:[%s4138 + $0x168] sm:$0xff]
    %v4200 = vld [vmem:[%s4138 + $0x170] sm:$0xf]
    %v4201 = vld [vmem:[%s4138 + $0x174] sm:$0xff]
    %v4202 = vld [vmem:[%s4138 + $0x17c] sm:$0xf]
    %v4203 = vld [vmem:[%s4138 + $0x180] sm:$0xff]
    %v4204 = vld [vmem:[%s4138 + $0x188] sm:$0xf]
    %v4205 = vld [vmem:[%s4138 + $0x18c] sm:$0xff]
    %v4206 = vld [vmem:[%s4138 + $0x194] sm:$0xf]
    %v4207 = vld [vmem:[%s4138 + $0x198] sm:$0xff]
    %v4208 = vld [vmem:[%s4138 + $0x1a0] sm:$0xf]
    %v4209 = vld [vmem:[%s4138 + $0x1a4] sm:$0xff]
    %v4210 = vld [vmem:[%s4138 + $0x1ac] sm:$0xf]
    %v4211 = vunpack.c.l.b16 %v4113
    %v4212 = vunpack.c.h.b16 %v4113
    %v4213 = vunpack.c.l.b16 %v4117
    %v4214 = vunpack.c.l.b16 %v4120
    %v4215 = vunpack.c.h.b16 %v4120
    %v4216 = vunpack.c.l.b16 %v4123
    %v4217 = vunpack.c.l.b16 %v4127
    %v4218 = vunpack.c.h.b16 %v4127
    %v4219 = vunpack.c.l.b16 %v4131
    %v4220 = vunpack.c.l.b16 %v4134
    %v4221 = vunpack.c.h.b16 %v4134
    %v4222 = vunpack.c.l.b16 %v4137
    %v4223 = vpack.c.b16 %v4214, %v4211
    %v4224 = vpack.c.b16 %v4215, %v4212
    %v4225 = vpack.c.b16 %v4216, %v4213
    %v4226 = vpack.c.b16 %v4220, %v4217
    %v4227 = vpack.c.b16 %v4221, %v4218
    %v4228 = vpack.c.b16 %v4222, %v4219
    %v4305 = vunpack.c.l.b16 %v4139
    %v4306 = vunpack.c.h.b16 %v4139
    %v4307 = vunpack.c.l.b16 %v4140
    %v4308 = vunpack.c.l.b16 %v4141
    %v4309 = vunpack.c.h.b16 %v4141
    %v4310 = vunpack.c.l.b16 %v4142
    %v4311 = vunpack.c.l.b16 %v4143
    %v4312 = vunpack.c.h.b16 %v4143
    %v4313 = vunpack.c.l.b16 %v4144
    %v4314 = vunpack.c.l.b16 %v4145
    %v4315 = vunpack.c.h.b16 %v4145
    %v4316 = vunpack.c.l.b16 %v4146
    %v4317 = vunpack.c.l.b16 %v4147
    %v4318 = vunpack.c.h.b16 %v4147
    %v4319 = vunpack.c.l.b16 %v4148
    %v4320 = vunpack.c.l.b16 %v4149
    %v4321 = vunpack.c.h.b16 %v4149
    %v4322 = vunpack.c.l.b16 %v4150
    %v4323 = vunpack.c.l.b16 %v4151
    %v4324 = vunpack.c.h.b16 %v4151
    %v4325 = vunpack.c.l.b16 %v4152
    %v4326 = vunpack.c.l.b16 %v4153
    %v4327 = vunpack.c.h.b16 %v4153
    %v4328 = vunpack.c.l.b16 %v4154
    %v4329 = vunpack.c.l.b16 %v4155
    %v4330 = vunpack.c.h.b16 %v4155
    %v4331 = vunpack.c.l.b16 %v4156
    %v4332 = vunpack.c.l.b16 %v4157
    %v4333 = vunpack.c.h.b16 %v4157
    %v4334 = vunpack.c.l.b16 %v4158
    %v4335 = vunpack.c.l.b16 %v4159
    %v4336 = vunpack.c.h.b16 %v4159
    %v4337 = vunpack.c.l.b16 %v4160
    %v4338 = vunpack.c.l.b16 %v4161
    %v4339 = vunpack.c.h.b16 %v4161
    %v4340 = vunpack.c.l.b16 %v4162
    %v4341 = vunpack.c.l.b16 %v4163
    %v4342 = vunpack.c.h.b16 %v4163
    %v4343 = vunpack.c.l.b16 %v4164
    %v4344 = vunpack.c.l.b16 %v4165
    %v4345 = vunpack.c.h.b16 %v4165
    %v4346 = vunpack.c.l.b16 %v4166
    %v4347 = vunpack.c.l.b16 %v4167
    %v4348 = vunpack.c.h.b16 %v4167
    %v4349 = vunpack.c.l.b16 %v4168
    %v4350 = vunpack.c.l.b16 %v4169
    %v4351 = vunpack.c.h.b16 %v4169
    %v4352 = vunpack.c.l.b16 %v4170
    %v4353 = vunpack.c.l.b16 %v4171
    %v4354 = vunpack.c.h.b16 %v4171
    %v4355 = vunpack.c.l.b16 %v4172
    %v4356 = vunpack.c.l.b16 %v4173
    %v4357 = vunpack.c.h.b16 %v4173
    %v4358 = vunpack.c.l.b16 %v4174
    %v4359 = vunpack.c.l.b16 %v4175
    %v4360 = vunpack.c.h.b16 %v4175
    %v4361 = vunpack.c.l.b16 %v4176
    %v4362 = vunpack.c.l.b16 %v4177
    %v4363 = vunpack.c.h.b16 %v4177
    %v4364 = vunpack.c.l.b16 %v4178
    %v4365 = vunpack.c.l.b16 %v4179
    %v4366 = vunpack.c.h.b16 %v4179
    %v4367 = vunpack.c.l.b16 %v4180
    %v4368 = vunpack.c.l.b16 %v4181
    %v4369 = vunpack.c.h.b16 %v4181
    %v4370 = vunpack.c.l.b16 %v4182
    %v4371 = vunpack.c.l.b16 %v4183
    %v4372 = vunpack.c.h.b16 %v4183
    %v4373 = vunpack.c.l.b16 %v4184
    %v4374 = vunpack.c.l.b16 %v4185
    %v4375 = vunpack.c.h.b16 %v4185
    %v4376 = vunpack.c.l.b16 %v4186
    %v4377 = vunpack.c.l.b16 %v4187
    %v4378 = vunpack.c.h.b16 %v4187
    %v4379 = vunpack.c.l.b16 %v4188
    %v4380 = vunpack.c.l.b16 %v4189
    %v4381 = vunpack.c.h.b16 %v4189
    %v4382 = vunpack.c.l.b16 %v4190
    %v4383 = vunpack.c.l.b16 %v4191
    %v4384 = vunpack.c.h.b16 %v4191
    %v4385 = vunpack.c.l.b16 %v4192
    %v4386 = vunpack.c.l.b16 %v4193
    %v4387 = vunpack.c.h.b16 %v4193
    %v4388 = vunpack.c.l.b16 %v4194
    %v4389 = vunpack.c.l.b16 %v4195
    %v4390 = vunpack.c.h.b16 %v4195
    %v4391 = vunpack.c.l.b16 %v4196
    %v4392 = vunpack.c.l.b16 %v4197
    %v4393 = vunpack.c.h.b16 %v4197
    %v4394 = vunpack.c.l.b16 %v4198
    %v4395 = vunpack.c.l.b16 %v4199
    %v4396 = vunpack.c.h.b16 %v4199
    %v4397 = vunpack.c.l.b16 %v4200
    %v4398 = vunpack.c.l.b16 %v4201
    %v4399 = vunpack.c.h.b16 %v4201
    %v4400 = vunpack.c.l.b16 %v4202
    %v4401 = vunpack.c.l.b16 %v4203
    %v4402 = vunpack.c.h.b16 %v4203
    %v4403 = vunpack.c.l.b16 %v4204
    %v4404 = vunpack.c.l.b16 %v4205
    %v4405 = vunpack.c.h.b16 %v4205
    %v4406 = vunpack.c.l.b16 %v4206
    %v4407 = vunpack.c.l.b16 %v4207
    %v4408 = vunpack.c.h.b16 %v4207
    %v4409 = vunpack.c.l.b16 %v4208
    %v4410 = vunpack.c.l.b16 %v4209
    %v4411 = vunpack.c.h.b16 %v4209
    %v4412 = vunpack.c.l.b16 %v4210
    %v4413 = vpack.c.b16 %v4308, %v4305
    %v4414 = vpack.c.b16 %v4309, %v4306
    %v4415 = vpack.c.b16 %v4310, %v4307
    %v4416 = vpack.c.b16 %v4314, %v4311
    %v4417 = vpack.c.b16 %v4315, %v4312
    %v4418 = vpack.c.b16 %v4316, %v4313
    %v4419 = vpack.c.b16 %v4320, %v4317
    %v4420 = vpack.c.b16 %v4321, %v4318
    %v4421 = vpack.c.b16 %v4322, %v4319
    %v4422 = vpack.c.b16 %v4326, %v4323
    %v4423 = vpack.c.b16 %v4327, %v4324
    %v4424 = vpack.c.b16 %v4328, %v4325
    %v4425 = vpack.c.b16 %v4332, %v4329
    %v4426 = vpack.c.b16 %v4333, %v4330
    %v4427 = vpack.c.b16 %v4334, %v4331
    %v4428 = vpack.c.b16 %v4338, %v4335
    %v4429 = vpack.c.b16 %v4339, %v4336
    %v4430 = vpack.c.b16 %v4340, %v4337
    %v4431 = vpack.c.b16 %v4344, %v4341
    %v4432 = vpack.c.b16 %v4345, %v4342
    %v4433 = vpack.c.b16 %v4346, %v4343
    %v4434 = vpack.c.b16 %v4350, %v4347
    %v4435 = vpack.c.b16 %v4351, %v4348
    %v4436 = vpack.c.b16 %v4352, %v4349
    %v4437 = vpack.c.b16 %v4356, %v4353
    %v4438 = vpack.c.b16 %v4357, %v4354
    %v4439 = vpack.c.b16 %v4358, %v4355
    %v4440 = vpack.c.b16 %v4362, %v4359
    %v4441 = vpack.c.b16 %v4363, %v4360
    %v4442 = vpack.c.b16 %v4364, %v4361
    %v4443 = vpack.c.b16 %v4368, %v4365
    %v4444 = vpack.c.b16 %v4369, %v4366
    %v4445 = vpack.c.b16 %v4370, %v4367
    %v4446 = vpack.c.b16 %v4374, %v4371
    %v4447 = vpack.c.b16 %v4375, %v4372
    %v4448 = vpack.c.b16 %v4376, %v4373
    %v4449 = vpack.c.b16 %v4380, %v4377
    %v4450 = vpack.c.b16 %v4381, %v4378
    %v4451 = vpack.c.b16 %v4382, %v4379
    %v4452 = vpack.c.b16 %v4386, %v4383
    %v4453 = vpack.c.b16 %v4387, %v4384
    %v4454 = vpack.c.b16 %v4388, %v4385
    %v4455 = vpack.c.b16 %v4392, %v4389
    %v4456 = vpack.c.b16 %v4393, %v4390
    %v4457 = vpack.c.b16 %v4394, %v4391
    %v4458 = vpack.c.b16 %v4398, %v4395
    %v4459 = vpack.c.b16 %v4399, %v4396
    %v4460 = vpack.c.b16 %v4400, %v4397
    %v4461 = vpack.c.b16 %v4404, %v4401
    %v4462 = vpack.c.b16 %v4405, %v4402
    %v4463 = vpack.c.b16 %v4406, %v4403
    %v4464 = vpack.c.b16 %v4410, %v4407
    %v4465 = vpack.c.b16 %v4411, %v4408
    %v4466 = vpack.c.b16 %v4412, %v4409
    %v4522 = vsel %vm1944, %v4225, 0
    %v4525 = vsel %vm1944, %v4228, 0
    %4527 = vmatpush.bf16.msra.mxu0 %v4434
    %4528 = vmatpush.bf16.msra.mxu0 %v4431
    %4529 = vmatpush.bf16.msra.mxu0 %v4428
    %4530 = vmatpush.bf16.msra.mxu0 %v4425
    %4531 = vmatpush.bf16.msra.mxu0 %v4422
    %4532 = vmatpush.bf16.msra.mxu0 %v4419
    %4533 = vmatpush.bf16.msra.mxu0 %v4416
    %4534 = vmatpush.bf16.msra.mxu0 %v4413
    %4535 = vmatmul.bf16.gmra.mxu0 %v4223
    %v4536 = vpop.f32.mrf.mxu0
    %v4537 = vadd.f32 0.0, %v4536
    %v4538 = vpop.f32.mrf.mxu0
    %v4539 = vadd.f32 0.0, %v4538
    %4540 = vmatmul.bf16.gmra.mxu0 %v4226
    %v4541 = vpop.f32.mrf.mxu0
    %v4542 = vadd.f32 0.0, %v4541
    %v4543 = vpop.f32.mrf.mxu0
    %v4544 = vadd.f32 0.0, %v4543
    %4545 = vdwg.mxu0
    %4546 = vmatpush.bf16.msra.mxu0 %v4458
    %4547 = vmatpush.bf16.msra.mxu0 %v4455
    %4548 = vmatpush.bf16.msra.mxu0 %v4452
    %4549 = vmatpush.bf16.msra.mxu0 %v4449
    %4550 = vmatpush.bf16.msra.mxu0 %v4446
    %4551 = vmatpush.bf16.msra.mxu0 %v4443
    %4552 = vmatpush.bf16.msra.mxu0 %v4440
    %4553 = vmatpush.bf16.msra.mxu0 %v4437
    %4554 = vmatmul.bf16.gmra.mxu0 %v4224
    %v4555 = vpop.f32.mrf.mxu0
    %v4556 = vadd.f32 %v4537, %v4555
    %v4557 = vpop.f32.mrf.mxu0
    %v4558 = vadd.f32 %v4539, %v4557
    %4559 = vmatmul.bf16.gmra.mxu0 %v4227
    %v4560 = vpop.f32.mrf.mxu0
    %v4561 = vadd.f32 %v4542, %v4560
    %v4562 = vpop.f32.mrf.mxu0
    %v4563 = vadd.f32 %v4544, %v4562
    %4564 = vdwg.mxu0
    %4565 = vmatpush.bf16.msra.mxu0 0
    %4566 = vmatpush.bf16.msra.mxu0 0
    %4567 = vmatpush.bf16.msra.mxu0 0
    %4568 = vmatpush.bf16.msra.mxu0 0
    %4569 = vmatpush.bf16.msra.mxu0 0
    %4570 = vmatpush.bf16.msra.mxu0 0
    %4571 = vmatpush.bf16.msra.mxu0 %v4464
    %4572 = vmatpush.bf16.msra.mxu0 %v4461
    %4573 = vmatmul.bf16.gmra.mxu0 %v4522
    %v4574 = vpop.f32.mrf.mxu0
    %v4575 = vadd.f32 %v4556, %v4574
    %v4576 = vpop.f32.mrf.mxu0
    %v4577 = vadd.f32 %v4558, %v4576
    %4578 = vmatmul.bf16.gmra.mxu0 %v4525
    %v4579 = vpop.f32.mrf.mxu0
    %v4580 = vadd.f32 %v4561, %v4579
    %v4581 = vpop.f32.mrf.mxu0
    %v4582 = vadd.f32 %v4563, %v4581
    %4583 = vdwg.mxu0
    %4584 = vmatpush.bf16.msra.mxu0 %v4435
    %4585 = vmatpush.bf16.msra.mxu0 %v4432
    %4586 = vmatpush.bf16.msra.mxu0 %v4429
    %4587 = vmatpush.bf16.msra.mxu0 %v4426
    %4588 = vmatpush.bf16.msra.mxu0 %v4423
    %4589 = vmatpush.bf16.msra.mxu0 %v4420
    %4590 = vmatpush.bf16.msra.mxu0 %v4417
    %4591 = vmatpush.bf16.msra.mxu0 %v4414
    %4592 = vmatmul.bf16.gmra.mxu0 %v4223
    %v4593 = vpop.f32.mrf.mxu0
    %v4594 = vadd.f32 0.0, %v4593
    %v4595 = vpop.f32.mrf.mxu0
    %v4596 = vadd.f32 0.0, %v4595
    %4597 = vmatmul.bf16.gmra.mxu0 %v4226
    %v4598 = vpop.f32.mrf.mxu0
    %v4599 = vadd.f32 0.0, %v4598
    %v4600 = vpop.f32.mrf.mxu0
    %v4601 = vadd.f32 0.0, %v4600
    %4602 = vdwg.mxu0
    %4603 = vmatpush.bf16.msra.mxu0 %v4459
    %4604 = vmatpush.bf16.msra.mxu0 %v4456
    %4605 = vmatpush.bf16.msra.mxu0 %v4453
    %4606 = vmatpush.bf16.msra.mxu0 %v4450
    %4607 = vmatpush.bf16.msra.mxu0 %v4447
    %4608 = vmatpush.bf16.msra.mxu0 %v4444
    %4609 = vmatpush.bf16.msra.mxu0 %v4441
    %4610 = vmatpush.bf16.msra.mxu0 %v4438
    %4611 = vmatmul.bf16.gmra.mxu0 %v4224
    %v4612 = vpop.f32.mrf.mxu0
    %v4613 = vadd.f32 %v4594, %v4612
    %v4614 = vpop.f32.mrf.mxu0
    %v4615 = vadd.f32 %v4596, %v4614
    %4616 = vmatmul.bf16.gmra.mxu0 %v4227
    %v4617 = vpop.f32.mrf.mxu0
    %v4618 = vadd.f32 %v4599, %v4617
    %v4619 = vpop.f32.mrf.mxu0
    %v4620 = vadd.f32 %v4601, %v4619
    %4621 = vdwg.mxu0
    %4622 = vmatpush.bf16.msra.mxu0 0
    %4623 = vmatpush.bf16.msra.mxu0 0
    %4624 = vmatpush.bf16.msra.mxu0 0
    %4625 = vmatpush.bf16.msra.mxu0 0
    %4626 = vmatpush.bf16.msra.mxu0 0
    %4627 = vmatpush.bf16.msra.mxu0 0
    %4628 = vmatpush.bf16.msra.mxu0 %v4465
    %4629 = vmatpush.bf16.msra.mxu0 %v4462
    %4630 = vmatmul.bf16.gmra.mxu0 %v4522
    %v4631 = vpop.f32.mrf.mxu0
    %v4632 = vadd.f32 %v4613, %v4631
    %v4633 = vpop.f32.mrf.mxu0
    %v4634 = vadd.f32 %v4615, %v4633
    %4635 = vmatmul.bf16.gmra.mxu0 %v4525
    %v4636 = vpop.f32.mrf.mxu0
    %v4637 = vadd.f32 %v4618, %v4636
    %v4638 = vpop.f32.mrf.mxu0
    %v4639 = vadd.f32 %v4620, %v4638
    %4640 = vdwg.mxu0
    %4641 = vmatpush.bf16.msra.mxu0 %v4436
    %4642 = vmatpush.bf16.msra.mxu0 %v4433
    %4643 = vmatpush.bf16.msra.mxu0 %v4430
    %4644 = vmatpush.bf16.msra.mxu0 %v4427
    %4645 = vmatpush.bf16.msra.mxu0 %v4424
    %4646 = vmatpush.bf16.msra.mxu0 %v4421
    %4647 = vmatpush.bf16.msra.mxu0 %v4418
    %4648 = vmatpush.bf16.msra.mxu0 %v4415
    %4649 = vmatmul.bf16.gmra.mxu0 %v4223
    %v4650 = vpop.f32.mrf.mxu0
    %v4651 = vadd.f32 0.0, %v4650
    %v4652 = vpop.f32.mrf.mxu0
    %v4653 = vadd.f32 0.0, %v4652
    %4654 = vmatmul.bf16.gmra.mxu0 %v4226
    %v4655 = vpop.f32.mrf.mxu0
    %v4656 = vadd.f32 0.0, %v4655
    %v4657 = vpop.f32.mrf.mxu0
    %v4658 = vadd.f32 0.0, %v4657
    %4659 = vdwg.mxu0
    %4660 = vmatpush.bf16.msra.mxu0 %v4460
    %4661 = vmatpush.bf16.msra.mxu0 %v4457
    %4662 = vmatpush.bf16.msra.mxu0 %v4454
    %4663 = vmatpush.bf16.msra.mxu0 %v4451
    %4664 = vmatpush.bf16.msra.mxu0 %v4448
    %4665 = vmatpush.bf16.msra.mxu0 %v4445
    %4666 = vmatpush.bf16.msra.mxu0 %v4442
    %4667 = vmatpush.bf16.msra.mxu0 %v4439
    %4668 = vmatmul.bf16.gmra.mxu0 %v4224
    %v4669 = vpop.f32.mrf.mxu0
    %v4670 = vadd.f32 %v4651, %v4669
    %v4671 = vpop.f32.mrf.mxu0
    %v4672 = vadd.f32 %v4653, %v4671
    %4673 = vmatmul.bf16.gmra.mxu0 %v4227
    %v4674 = vpop.f32.mrf.mxu0
    %v4675 = vadd.f32 %v4656, %v4674
    %v4676 = vpop.f32.mrf.mxu0
    %v4677 = vadd.f32 %v4658, %v4676
    %4678 = vdwg.mxu0
    %4679 = vmatpush.bf16.msra.mxu0 0
    %4680 = vmatpush.bf16.msra.mxu0 0
    %4681 = vmatpush.bf16.msra.mxu0 0
    %4682 = vmatpush.bf16.msra.mxu0 0
    %4683 = vmatpush.bf16.msra.mxu0 0
    %4684 = vmatpush.bf16.msra.mxu0 0
    %4685 = vmatpush.bf16.msra.mxu0 %v4466
    %4686 = vmatpush.bf16.msra.mxu0 %v4463
    %4687 = vmatmul.bf16.gmra.mxu0 %v4522
    %v4688 = vpop.f32.mrf.mxu0
    %v4689 = vadd.f32 %v4670, %v4688
    %v4690 = vpop.f32.mrf.mxu0
    %v4691 = vadd.f32 %v4672, %v4690
    %4692 = vmatmul.bf16.gmra.mxu0 %v4525
    %v4693 = vpop.f32.mrf.mxu0
    %v4694 = vadd.f32 %v4675, %v4693
    %v4695 = vpop.f32.mrf.mxu0
    %v4696 = vadd.f32 %v4677, %v4695
    %4697 = vdwg.mxu0
    %v4698 = vadd.f32 %v4086, %v4575
    %v4699 = vadd.f32 %v4087, %v4632
    %v4700 = vadd.f32 %v4088, %v4689
    %v4701 = vadd.f32 %v4089, %v4577
    %v4702 = vadd.f32 %v4090, %v4634
    %v4703 = vadd.f32 %v4091, %v4691
    %v4704 = vadd.f32 %v4092, %v4580
    %v4705 = vadd.f32 %v4093, %v4637
    %v4706 = vadd.f32 %v4094, %v4694
    %v4707 = vadd.f32 %v4095, %v4582
    %v4708 = vadd.f32 %v4096, %v4639
    %v4709 = vadd.f32 %v4097, %v4696
    %v4710 = vld [vmem:[#allocation2 + $0x18] sm:$0x77]
    %v4711 = vld [vmem:[#allocation2 + $0x20] sm:$0x7]
    %v4712 = vld [vmem:[#allocation2 + $0x3c] sm:$0x77]
    %v4713 = vld [vmem:[#allocation2 + $0x44] sm:$0x7]
    %v4715 = vshrl.u32 %v4098, 16
    %v4717 = vrot.slane %v4715, 6
    %v4718 = vshll.u32 %v4098, 16
    %v4720 = vrot.slane %v4718, 7
    %v4721 = vor.u32 %v4717, %v4720
    %v4722 = vrot.slane %v4721, 4
    %v4723 = vrot.slane %v2174, 6
    %v4724 = vrot.slane %v2156, 7
    %v4725 = vor.u32 %v4723, %v4724
    %v4726 = vsel %vm1001, %v4722, %v4725
    %v4728 = vshrl.u32 %v4099, 16
    %v4730 = vrot.slane %v4728, 6
    %v4731 = vshll.u32 %v4099, 16
    %v4733 = vrot.slane %v4731, 7
    %v4734 = vor.u32 %v4730, %v4733
    %v4735 = vrot.slane %v4734, 4
    %v4736 = vrot.slane %v2184, 6
    %v4737 = vrot.slane %v2170, 7
    %v4738 = vor.u32 %v4736, %v4737
    %v4739 = vsel %vm1001, %v4735, %v4738
    %v4740 = vrot.slane %v4725, 4
    %v4742 = vshrl.u32 %v4710, 16
    %v4744 = vrot.slane %v4742, 6
    %v4745 = vshll.u32 %v4710, 16
    %v4747 = vrot.slane %v4745, 7
    %v4748 = vor.u32 %v4744, %v4747
    %v4749 = vsel %vm1001, %v4740, %v4748
    %v4750 = vrot.slane %v4738, 4
    %v4752 = vshrl.u32 %v4711, 16
    %v4754 = vrot.slane %v4752, 6
    %v4755 = vshll.u32 %v4711, 16
    %v4757 = vrot.slane %v4755, 7
    %v4758 = vor.u32 %v4754, %v4757
    %v4759 = vsel %vm1001, %v4750, %v4758
    %v4761 = vshrl.u32 %v4100, 16
    %v4763 = vrot.slane %v4761, 6
    %v4764 = vshll.u32 %v4100, 16
    %v4766 = vrot.slane %v4764, 7
    %v4767 = vor.u32 %v4763, %v4766
    %v4768 = vrot.slane %v4767, 4
    %v4769 = vrot.slane %v2222, 6
    %v4770 = vrot.slane %v2204, 7
    %v4771 = vor.u32 %v4769, %v4770
    %v4772 = vsel %vm1001, %v4768, %v4771
    %v4774 = vshrl.u32 %v4101, 16
    %v4776 = vrot.slane %v4774, 6
    %v4777 = vshll.u32 %v4101, 16
    %v4779 = vrot.slane %v4777, 7
    %v4780 = vor.u32 %v4776, %v4779
    %v4781 = vrot.slane %v4780, 4
    %v4782 = vrot.slane %v2232, 6
    %v4783 = vrot.slane %v2218, 7
    %v4784 = vor.u32 %v4782, %v4783
    %v4785 = vsel %vm1001, %v4781, %v4784
    %v4786 = vrot.slane %v4771, 4
    %v4788 = vshrl.u32 %v4712, 16
    %v4790 = vrot.slane %v4788, 6
    %v4791 = vshll.u32 %v4712, 16
    %v4793 = vrot.slane %v4791, 7
    %v4794 = vor.u32 %v4790, %v4793
    %v4795 = vsel %vm1001, %v4786, %v4794
    %v4796 = vrot.slane %v4784, 4
    %v4798 = vshrl.u32 %v4713, 16
    %v4800 = vrot.slane %v4798, 6
    %v4801 = vshll.u32 %v4713, 16
    %v4803 = vrot.slane %v4801, 7
    %v4804 = vor.u32 %v4800, %v4803
    %v4805 = vsel %vm1001, %v4796, %v4804
    %s4806 = scalar_lea.vmem [#allocation6], 2160
    %v4807 = vld [vmem:[%s4806] sm:$0xff]
    %v4808 = vld [vmem:[%s4806 + $0x8] sm:$0xf]
    %v4809 = vld [vmem:[%s4806 + $0xc] sm:$0xff]
    %v4810 = vld [vmem:[%s4806 + $0x14] sm:$0xf]
    %v4811 = vld [vmem:[%s4806 + $0x18] sm:$0xff]
    %v4812 = vld [vmem:[%s4806 + $0x20] sm:$0xf]
    %v4813 = vld [vmem:[%s4806 + $0x24] sm:$0xff]
    %v4814 = vld [vmem:[%s4806 + $0x2c] sm:$0xf]
    %v4815 = vld [vmem:[%s4806 + $0x30] sm:$0xff]
    %v4816 = vld [vmem:[%s4806 + $0x38] sm:$0xf]
    %v4817 = vld [vmem:[%s4806 + $0x3c] sm:$0xff]
    %v4818 = vld [vmem:[%s4806 + $0x44] sm:$0xf]
    %v4819 = vld [vmem:[%s4806 + $0x48] sm:$0xff]
    %v4820 = vld [vmem:[%s4806 + $0x50] sm:$0xf]
    %v4821 = vld [vmem:[%s4806 + $0x54] sm:$0xff]
    %v4822 = vld [vmem:[%s4806 + $0x5c] sm:$0xf]
    %v4823 = vld [vmem:[%s4806 + $0x60] sm:$0xff]
    %v4824 = vld [vmem:[%s4806 + $0x68] sm:$0xf]
    %v4825 = vld [vmem:[%s4806 + $0x6c] sm:$0xff]
    %v4826 = vld [vmem:[%s4806 + $0x74] sm:$0xf]
    %v4827 = vld [vmem:[%s4806 + $0x78] sm:$0xff]
    %v4828 = vld [vmem:[%s4806 + $0x80] sm:$0xf]
    %v4829 = vld [vmem:[%s4806 + $0x84] sm:$0xff]
    %v4830 = vld [vmem:[%s4806 + $0x8c] sm:$0xf]
    %v4831 = vld [vmem:[%s4806 + $0x90] sm:$0xff]
    %v4832 = vld [vmem:[%s4806 + $0x98] sm:$0xf]
    %v4833 = vld [vmem:[%s4806 + $0x9c] sm:$0xff]
    %v4834 = vld [vmem:[%s4806 + $0xa4] sm:$0xf]
    %v4835 = vld [vmem:[%s4806 + $0xa8] sm:$0xff]
    %v4836 = vld [vmem:[%s4806 + $0xb0] sm:$0xf]
    %v4837 = vld [vmem:[%s4806 + $0xb4] sm:$0xff]
    %v4838 = vld [vmem:[%s4806 + $0xbc] sm:$0xf]
    %v4839 = vld [vmem:[%s4806 + $0xc0] sm:$0xff]
    %v4840 = vld [vmem:[%s4806 + $0xc8] sm:$0xf]
    %v4841 = vld [vmem:[%s4806 + $0xcc] sm:$0xff]
    %v4842 = vld [vmem:[%s4806 + $0xd4] sm:$0xf]
    %v4843 = vld [vmem:[%s4806 + $0xd8] sm:$0xff]
    %v4844 = vld [vmem:[%s4806 + $0xe0] sm:$0xf]
    %v4845 = vld [vmem:[%s4806 + $0xe4] sm:$0xff]
    %v4846 = vld [vmem:[%s4806 + $0xec] sm:$0xf]
    %v4847 = vld [vmem:[%s4806 + $0xf0] sm:$0xff]
    %v4848 = vld [vmem:[%s4806 + $0xf8] sm:$0xf]
    %v4849 = vld [vmem:[%s4806 + $0xfc] sm:$0xff]
    %v4850 = vld [vmem:[%s4806 + $0x104] sm:$0xf]
    %v4851 = vld [vmem:[%s4806 + $0x108] sm:$0xff]
    %v4852 = vld [vmem:[%s4806 + $0x110] sm:$0xf]
    %v4853 = vld [vmem:[%s4806 + $0x114] sm:$0xff]
    %v4854 = vld [vmem:[%s4806 + $0x11c] sm:$0xf]
    %v4855 = vld [vmem:[%s4806 + $0x120] sm:$0xff]
    %v4856 = vld [vmem:[%s4806 + $0x128] sm:$0xf]
    %v4857 = vld [vmem:[%s4806 + $0x12c] sm:$0xff]
    %v4858 = vld [vmem:[%s4806 + $0x134] sm:$0xf]
    %v4859 = vld [vmem:[%s4806 + $0x138] sm:$0xff]
    %v4860 = vld [vmem:[%s4806 + $0x140] sm:$0xf]
    %v4861 = vld [vmem:[%s4806 + $0x144] sm:$0xff]
    %v4862 = vld [vmem:[%s4806 + $0x14c] sm:$0xf]
    %v4863 = vld [vmem:[%s4806 + $0x150] sm:$0xff]
    %v4864 = vld [vmem:[%s4806 + $0x158] sm:$0xf]
    %v4865 = vld [vmem:[%s4806 + $0x15c] sm:$0xff]
    %v4866 = vld [vmem:[%s4806 + $0x164] sm:$0xf]
    %v4867 = vld [vmem:[%s4806 + $0x168] sm:$0xff]
    %v4868 = vld [vmem:[%s4806 + $0x170] sm:$0xf]
    %v4869 = vld [vmem:[%s4806 + $0x174] sm:$0xff]
    %v4870 = vld [vmem:[%s4806 + $0x17c] sm:$0xf]
    %v4871 = vld [vmem:[%s4806 + $0x180] sm:$0xff]
    %v4872 = vld [vmem:[%s4806 + $0x188] sm:$0xf]
    %v4873 = vld [vmem:[%s4806 + $0x18c] sm:$0xff]
    %v4874 = vld [vmem:[%s4806 + $0x194] sm:$0xf]
    %v4875 = vld [vmem:[%s4806 + $0x198] sm:$0xff]
    %v4876 = vld [vmem:[%s4806 + $0x1a0] sm:$0xf]
    %v4877 = vld [vmem:[%s4806 + $0x1a4] sm:$0xff]
    %v4878 = vld [vmem:[%s4806 + $0x1ac] sm:$0xf]
    %v4879 = vunpack.c.l.b16 %v4726
    %v4880 = vunpack.c.h.b16 %v4726
    %v4881 = vunpack.c.l.b16 %v4739
    %v4882 = vunpack.c.l.b16 %v4749
    %v4883 = vunpack.c.h.b16 %v4749
    %v4884 = vunpack.c.l.b16 %v4759
    %v4885 = vunpack.c.l.b16 %v4772
    %v4886 = vunpack.c.h.b16 %v4772
    %v4887 = vunpack.c.l.b16 %v4785
    %v4888 = vunpack.c.l.b16 %v4795
    %v4889 = vunpack.c.h.b16 %v4795
    %v4890 = vunpack.c.l.b16 %v4805
    %v4891 = vpack.c.b16 %v4882, %v4879
    %v4892 = vpack.c.b16 %v4883, %v4880
    %v4893 = vpack.c.b16 %v4884, %v4881
    %v4894 = vpack.c.b16 %v4888, %v4885
    %v4895 = vpack.c.b16 %v4889, %v4886
    %v4896 = vpack.c.b16 %v4890, %v4887
    %v4973 = vunpack.c.l.b16 %v4807
    %v4974 = vunpack.c.h.b16 %v4807
    %v4975 = vunpack.c.l.b16 %v4808
    %v4976 = vunpack.c.l.b16 %v4809
    %v4977 = vunpack.c.h.b16 %v4809
    %v4978 = vunpack.c.l.b16 %v4810
    %v4979 = vunpack.c.l.b16 %v4811
    %v4980 = vunpack.c.h.b16 %v4811
    %v4981 = vunpack.c.l.b16 %v4812
    %v4982 = vunpack.c.l.b16 %v4813
    %v4983 = vunpack.c.h.b16 %v4813
    %v4984 = vunpack.c.l.b16 %v4814
    %v4985 = vunpack.c.l.b16 %v4815
    %v4986 = vunpack.c.h.b16 %v4815
    %v4987 = vunpack.c.l.b16 %v4816
    %v4988 = vunpack.c.l.b16 %v4817
    %v4989 = vunpack.c.h.b16 %v4817
    %v4990 = vunpack.c.l.b16 %v4818
    %v4991 = vunpack.c.l.b16 %v4819
    %v4992 = vunpack.c.h.b16 %v4819
    %v4993 = vunpack.c.l.b16 %v4820
    %v4994 = vunpack.c.l.b16 %v4821
    %v4995 = vunpack.c.h.b16 %v4821
    %v4996 = vunpack.c.l.b16 %v4822
    %v4997 = vunpack.c.l.b16 %v4823
    %v4998 = vunpack.c.h.b16 %v4823
    %v4999 = vunpack.c.l.b16 %v4824
    %v5000 = vunpack.c.l.b16 %v4825
    %v5001 = vunpack.c.h.b16 %v4825
    %v5002 = vunpack.c.l.b16 %v4826
    %v5003 = vunpack.c.l.b16 %v4827
    %v5004 = vunpack.c.h.b16 %v4827
    %v5005 = vunpack.c.l.b16 %v4828
    %v5006 = vunpack.c.l.b16 %v4829
    %v5007 = vunpack.c.h.b16 %v4829
    %v5008 = vunpack.c.l.b16 %v4830
    %v5009 = vunpack.c.l.b16 %v4831
    %v5010 = vunpack.c.h.b16 %v4831
    %v5011 = vunpack.c.l.b16 %v4832
    %v5012 = vunpack.c.l.b16 %v4833
    %v5013 = vunpack.c.h.b16 %v4833
    %v5014 = vunpack.c.l.b16 %v4834
    %v5015 = vunpack.c.l.b16 %v4835
    %v5016 = vunpack.c.h.b16 %v4835
    %v5017 = vunpack.c.l.b16 %v4836
    %v5018 = vunpack.c.l.b16 %v4837
    %v5019 = vunpack.c.h.b16 %v4837
    %v5020 = vunpack.c.l.b16 %v4838
    %v5021 = vunpack.c.l.b16 %v4839
    %v5022 = vunpack.c.h.b16 %v4839
    %v5023 = vunpack.c.l.b16 %v4840
    %v5024 = vunpack.c.l.b16 %v4841
    %v5025 = vunpack.c.h.b16 %v4841
    %v5026 = vunpack.c.l.b16 %v4842
    %v5027 = vunpack.c.l.b16 %v4843
    %v5028 = vunpack.c.h.b16 %v4843
    %v5029 = vunpack.c.l.b16 %v4844
    %v5030 = vunpack.c.l.b16 %v4845
    %v5031 = vunpack.c.h.b16 %v4845
    %v5032 = vunpack.c.l.b16 %v4846
    %v5033 = vunpack.c.l.b16 %v4847
    %v5034 = vunpack.c.h.b16 %v4847
    %v5035 = vunpack.c.l.b16 %v4848
    %v5036 = vunpack.c.l.b16 %v4849
    %v5037 = vunpack.c.h.b16 %v4849
    %v5038 = vunpack.c.l.b16 %v4850
    %v5039 = vunpack.c.l.b16 %v4851
    %v5040 = vunpack.c.h.b16 %v4851
    %v5041 = vunpack.c.l.b16 %v4852
    %v5042 = vunpack.c.l.b16 %v4853
    %v5043 = vunpack.c.h.b16 %v4853
    %v5044 = vunpack.c.l.b16 %v4854
    %v5045 = vunpack.c.l.b16 %v4855
    %v5046 = vunpack.c.h.b16 %v4855
    %v5047 = vunpack.c.l.b16 %v4856
    %v5048 = vunpack.c.l.b16 %v4857
    %v5049 = vunpack.c.h.b16 %v4857
    %v5050 = vunpack.c.l.b16 %v4858
    %v5051 = vunpack.c.l.b16 %v4859
    %v5052 = vunpack.c.h.b16 %v4859
    %v5053 = vunpack.c.l.b16 %v4860
    %v5054 = vunpack.c.l.b16 %v4861
    %v5055 = vunpack.c.h.b16 %v4861
    %v5056 = vunpack.c.l.b16 %v4862
    %v5057 = vunpack.c.l.b16 %v4863
    %v5058 = vunpack.c.h.b16 %v4863
    %v5059 = vunpack.c.l.b16 %v4864
    %v5060 = vunpack.c.l.b16 %v4865
    %v5061 = vunpack.c.h.b16 %v4865
    %v5062 = vunpack.c.l.b16 %v4866
    %v5063 = vunpack.c.l.b16 %v4867
    %v5064 = vunpack.c.h.b16 %v4867
    %v5065 = vunpack.c.l.b16 %v4868
    %v5066 = vunpack.c.l.b16 %v4869
    %v5067 = vunpack.c.h.b16 %v4869
    %v5068 = vunpack.c.l.b16 %v4870
    %v5069 = vunpack.c.l.b16 %v4871
    %v5070 = vunpack.c.h.b16 %v4871
    %v5071 = vunpack.c.l.b16 %v4872
    %v5072 = vunpack.c.l.b16 %v4873
    %v5073 = vunpack.c.h.b16 %v4873
    %v5074 = vunpack.c.l.b16 %v4874
    %v5075 = vunpack.c.l.b16 %v4875
    %v5076 = vunpack.c.h.b16 %v4875
    %v5077 = vunpack.c.l.b16 %v4876
    %v5078 = vunpack.c.l.b16 %v4877
    %v5079 = vunpack.c.h.b16 %v4877
    %v5080 = vunpack.c.l.b16 %v4878
    %v5081 = vpack.c.b16 %v4976, %v4973
    %v5082 = vpack.c.b16 %v4977, %v4974
    %v5083 = vpack.c.b16 %v4978, %v4975
    %v5084 = vpack.c.b16 %v4982, %v4979
    %v5085 = vpack.c.b16 %v4983, %v4980
    %v5086 = vpack.c.b16 %v4984, %v4981
    %v5087 = vpack.c.b16 %v4988, %v4985
    %v5088 = vpack.c.b16 %v4989, %v4986
    %v5089 = vpack.c.b16 %v4990, %v4987
    %v5090 = vpack.c.b16 %v4994, %v4991
    %v5091 = vpack.c.b16 %v4995, %v4992
    %v5092 = vpack.c.b16 %v4996, %v4993
    %v5093 = vpack.c.b16 %v5000, %v4997
    %v5094 = vpack.c.b16 %v5001, %v4998
    %v5095 = vpack.c.b16 %v5002, %v4999
    %v5096 = vpack.c.b16 %v5006, %v5003
    %v5097 = vpack.c.b16 %v5007, %v5004
    %v5098 = vpack.c.b16 %v5008, %v5005
    %v5099 = vpack.c.b16 %v5012, %v5009
    %v5100 = vpack.c.b16 %v5013, %v5010
    %v5101 = vpack.c.b16 %v5014, %v5011
    %v5102 = vpack.c.b16 %v5018, %v5015
    %v5103 = vpack.c.b16 %v5019, %v5016
    %v5104 = vpack.c.b16 %v5020, %v5017
    %v5105 = vpack.c.b16 %v5024, %v5021
    %v5106 = vpack.c.b16 %v5025, %v5022
    %v5107 = vpack.c.b16 %v5026, %v5023
    %v5108 = vpack.c.b16 %v5030, %v5027
    %v5109 = vpack.c.b16 %v5031, %v5028
    %v5110 = vpack.c.b16 %v5032, %v5029
    %v5111 = vpack.c.b16 %v5036, %v5033
    %v5112 = vpack.c.b16 %v5037, %v5034
    %v5113 = vpack.c.b16 %v5038, %v5035
    %v5114 = vpack.c.b16 %v5042, %v5039
    %v5115 = vpack.c.b16 %v5043, %v5040
    %v5116 = vpack.c.b16 %v5044, %v5041
    %v5117 = vpack.c.b16 %v5048, %v5045
    %v5118 = vpack.c.b16 %v5049, %v5046
    %v5119 = vpack.c.b16 %v5050, %v5047
    %v5120 = vpack.c.b16 %v5054, %v5051
    %v5121 = vpack.c.b16 %v5055, %v5052
    %v5122 = vpack.c.b16 %v5056, %v5053
    %v5123 = vpack.c.b16 %v5060, %v5057
    %v5124 = vpack.c.b16 %v5061, %v5058
    %v5125 = vpack.c.b16 %v5062, %v5059
    %v5126 = vpack.c.b16 %v5066, %v5063
    %v5127 = vpack.c.b16 %v5067, %v5064
    %v5128 = vpack.c.b16 %v5068, %v5065
    %v5129 = vpack.c.b16 %v5072, %v5069
    %v5130 = vpack.c.b16 %v5073, %v5070
    %v5131 = vpack.c.b16 %v5074, %v5071
    %v5132 = vpack.c.b16 %v5078, %v5075
    %v5133 = vpack.c.b16 %v5079, %v5076
    %v5134 = vpack.c.b16 %v5080, %v5077
    %v5190 = vsel %vm1944, %v4893, 0
    %v5193 = vsel %vm1944, %v4896, 0
    %5195 = vmatpush.bf16.msra.mxu0 %v5102
    %5196 = vmatpush.bf16.msra.mxu0 %v5099
    %5197 = vmatpush.bf16.msra.mxu0 %v5096
    %5198 = vmatpush.bf16.msra.mxu0 %v5093
    %5199 = vmatpush.bf16.msra.mxu0 %v5090
    %5200 = vmatpush.bf16.msra.mxu0 %v5087
    %5201 = vmatpush.bf16.msra.mxu0 %v5084
    %5202 = vmatpush.bf16.msra.mxu0 %v5081
    %5203 = vmatmul.bf16.gmra.mxu0 %v4891
    %v5204 = vpop.f32.mrf.mxu0
    %v5205 = vadd.f32 0.0, %v5204
    %v5206 = vpop.f32.mrf.mxu0
    %v5207 = vadd.f32 0.0, %v5206
    %5208 = vmatmul.bf16.gmra.mxu0 %v4894
    %v5209 = vpop.f32.mrf.mxu0
    %v5210 = vadd.f32 0.0, %v5209
    %v5211 = vpop.f32.mrf.mxu0
    %v5212 = vadd.f32 0.0, %v5211
    %5213 = vdwg.mxu0
    %5214 = vmatpush.bf16.msra.mxu0 %v5126
    %5215 = vmatpush.bf16.msra.mxu0 %v5123
    %5216 = vmatpush.bf16.msra.mxu0 %v5120
    %5217 = vmatpush.bf16.msra.mxu0 %v5117
    %5218 = vmatpush.bf16.msra.mxu0 %v5114
    %5219 = vmatpush.bf16.msra.mxu0 %v5111
    %5220 = vmatpush.bf16.msra.mxu0 %v5108
    %5221 = vmatpush.bf16.msra.mxu0 %v5105
    %5222 = vmatmul.bf16.gmra.mxu0 %v4892
    %v5223 = vpop.f32.mrf.mxu0
    %v5224 = vadd.f32 %v5205, %v5223
    %v5225 = vpop.f32.mrf.mxu0
    %v5226 = vadd.f32 %v5207, %v5225
    %5227 = vmatmul.bf16.gmra.mxu0 %v4895
    %v5228 = vpop.f32.mrf.mxu0
    %v5229 = vadd.f32 %v5210, %v5228
    %v5230 = vpop.f32.mrf.mxu0
    %v5231 = vadd.f32 %v5212, %v5230
    %5232 = vdwg.mxu0
    %5233 = vmatpush.bf16.msra.mxu0 0
    %5234 = vmatpush.bf16.msra.mxu0 0
    %5235 = vmatpush.bf16.msra.mxu0 0
    %5236 = vmatpush.bf16.msra.mxu0 0
    %5237 = vmatpush.bf16.msra.mxu0 0
    %5238 = vmatpush.bf16.msra.mxu0 0
    %5239 = vmatpush.bf16.msra.mxu0 %v5132
    %5240 = vmatpush.bf16.msra.mxu0 %v5129
    %5241 = vmatmul.bf16.gmra.mxu0 %v5190
    %v5242 = vpop.f32.mrf.mxu0
    %v5243 = vadd.f32 %v5224, %v5242
    %v5244 = vpop.f32.mrf.mxu0
    %v5245 = vadd.f32 %v5226, %v5244
    %5246 = vmatmul.bf16.gmra.mxu0 %v5193
    %v5247 = vpop.f32.mrf.mxu0
    %v5248 = vadd.f32 %v5229, %v5247
    %v5249 = vpop.f32.mrf.mxu0
    %v5250 = vadd.f32 %v5231, %v5249
    %5251 = vdwg.mxu0
    %5252 = vmatpush.bf16.msra.mxu0 %v5103
    %5253 = vmatpush.bf16.msra.mxu0 %v5100
    %5254 = vmatpush.bf16.msra.mxu0 %v5097
    %5255 = vmatpush.bf16.msra.mxu0 %v5094
    %5256 = vmatpush.bf16.msra.mxu0 %v5091
    %5257 = vmatpush.bf16.msra.mxu0 %v5088
    %5258 = vmatpush.bf16.msra.mxu0 %v5085
    %5259 = vmatpush.bf16.msra.mxu0 %v5082
    %5260 = vmatmul.bf16.gmra.mxu0 %v4891
    %v5261 = vpop.f32.mrf.mxu0
    %v5262 = vadd.f32 0.0, %v5261
    %v5263 = vpop.f32.mrf.mxu0
    %v5264 = vadd.f32 0.0, %v5263
    %5265 = vmatmul.bf16.gmra.mxu0 %v4894
    %v5266 = vpop.f32.mrf.mxu0
    %v5267 = vadd.f32 0.0, %v5266
    %v5268 = vpop.f32.mrf.mxu0
    %v5269 = vadd.f32 0.0, %v5268
    %5270 = vdwg.mxu0
    %5271 = vmatpush.bf16.msra.mxu0 %v5127
    %5272 = vmatpush.bf16.msra.mxu0 %v5124
    %5273 = vmatpush.bf16.msra.mxu0 %v5121
    %5274 = vmatpush.bf16.msra.mxu0 %v5118
    %5275 = vmatpush.bf16.msra.mxu0 %v5115
    %5276 = vmatpush.bf16.msra.mxu0 %v5112
    %5277 = vmatpush.bf16.msra.mxu0 %v5109
    %5278 = vmatpush.bf16.msra.mxu0 %v5106
    %5279 = vmatmul.bf16.gmra.mxu0 %v4892
    %v5280 = vpop.f32.mrf.mxu0
    %v5281 = vadd.f32 %v5262, %v5280
    %v5282 = vpop.f32.mrf.mxu0
    %v5283 = vadd.f32 %v5264, %v5282
    %5284 = vmatmul.bf16.gmra.mxu0 %v4895
    %v5285 = vpop.f32.mrf.mxu0
    %v5286 = vadd.f32 %v5267, %v5285
    %v5287 = vpop.f32.mrf.mxu0
    %v5288 = vadd.f32 %v5269, %v5287
    %5289 = vdwg.mxu0
    %5290 = vmatpush.bf16.msra.mxu0 0
    %5291 = vmatpush.bf16.msra.mxu0 0
    %5292 = vmatpush.bf16.msra.mxu0 0
    %5293 = vmatpush.bf16.msra.mxu0 0
    %5294 = vmatpush.bf16.msra.mxu0 0
    %5295 = vmatpush.bf16.msra.mxu0 0
    %5296 = vmatpush.bf16.msra.mxu0 %v5133
    %5297 = vmatpush.bf16.msra.mxu0 %v5130
    %5298 = vmatmul.bf16.gmra.mxu0 %v5190
    %v5299 = vpop.f32.mrf.mxu0
    %v5300 = vadd.f32 %v5281, %v5299
    %v5301 = vpop.f32.mrf.mxu0
    %v5302 = vadd.f32 %v5283, %v5301
    %5303 = vmatmul.bf16.gmra.mxu0 %v5193
    %v5304 = vpop.f32.mrf.mxu0
    %v5305 = vadd.f32 %v5286, %v5304
    %v5306 = vpop.f32.mrf.mxu0
    %v5307 = vadd.f32 %v5288, %v5306
    %5308 = vdwg.mxu0
    %5309 = vmatpush.bf16.msra.mxu0 %v5104
    %5310 = vmatpush.bf16.msra.mxu0 %v5101
    %5311 = vmatpush.bf16.msra.mxu0 %v5098
    %5312 = vmatpush.bf16.msra.mxu0 %v5095
    %5313 = vmatpush.bf16.msra.mxu0 %v5092
    %5314 = vmatpush.bf16.msra.mxu0 %v5089
    %5315 = vmatpush.bf16.msra.mxu0 %v5086
    %5316 = vmatpush.bf16.msra.mxu0 %v5083
    %5317 = vmatmul.bf16.gmra.mxu0 %v4891
    %v5318 = vpop.f32.mrf.mxu0
    %v5319 = vadd.f32 0.0, %v5318
    %v5320 = vpop.f32.mrf.mxu0
    %v5321 = vadd.f32 0.0, %v5320
    %5322 = vmatmul.bf16.gmra.mxu0 %v4894
    %v5323 = vpop.f32.mrf.mxu0
    %v5324 = vadd.f32 0.0, %v5323
    %v5325 = vpop.f32.mrf.mxu0
    %v5326 = vadd.f32 0.0, %v5325
    %5327 = vdwg.mxu0
    %5328 = vmatpush.bf16.msra.mxu0 %v5128
    %5329 = vmatpush.bf16.msra.mxu0 %v5125
    %5330 = vmatpush.bf16.msra.mxu0 %v5122
    %5331 = vmatpush.bf16.msra.mxu0 %v5119
    %5332 = vmatpush.bf16.msra.mxu0 %v5116
    %5333 = vmatpush.bf16.msra.mxu0 %v5113
    %5334 = vmatpush.bf16.msra.mxu0 %v5110
    %5335 = vmatpush.bf16.msra.mxu0 %v5107
    %5336 = vmatmul.bf16.gmra.mxu0 %v4892
    %v5337 = vpop.f32.mrf.mxu0
    %v5338 = vadd.f32 %v5319, %v5337
    %v5339 = vpop.f32.mrf.mxu0
    %v5340 = vadd.f32 %v5321, %v5339
    %5341 = vmatmul.bf16.gmra.mxu0 %v4895
    %v5342 = vpop.f32.mrf.mxu0
    %v5343 = vadd.f32 %v5324, %v5342
    %v5344 = vpop.f32.mrf.mxu0
    %v5345 = vadd.f32 %v5326, %v5344
    %5346 = vdwg.mxu0
    %5347 = vmatpush.bf16.msra.mxu0 0
    %5348 = vmatpush.bf16.msra.mxu0 0
    %5349 = vmatpush.bf16.msra.mxu0 0
    %5350 = vmatpush.bf16.msra.mxu0 0
    %5351 = vmatpush.bf16.msra.mxu0 0
    %5352 = vmatpush.bf16.msra.mxu0 0
    %5353 = vmatpush.bf16.msra.mxu0 %v5134
    %5354 = vmatpush.bf16.msra.mxu0 %v5131
    %5355 = vmatmul.bf16.gmra.mxu0 %v5190
    %v5356 = vpop.f32.mrf.mxu0
    %v5357 = vadd.f32 %v5338, %v5356
    %v5358 = vpop.f32.mrf.mxu0
    %v5359 = vadd.f32 %v5340, %v5358
    %5360 = vmatmul.bf16.gmra.mxu0 %v5193
    %v5361 = vpop.f32.mrf.mxu0
    %v5362 = vadd.f32 %v5343, %v5361
    %v5363 = vpop.f32.mrf.mxu0
    %v5364 = vadd.f32 %v5345, %v5363
    %5365 = vdwg.mxu0
    %v5366 = vadd.f32 %v4698, %v5243
    %v5367 = vadd.f32 %v4699, %v5300
    %v5368 = vadd.f32 %v4700, %v5357
    %v5369 = vadd.f32 %v4701, %v5245
    %v5370 = vadd.f32 %v4702, %v5302
    %v5371 = vadd.f32 %v4703, %v5359
    %v5372 = vadd.f32 %v4704, %v5248
    %v5373 = vadd.f32 %v4705, %v5305
    %v5374 = vadd.f32 %v4706, %v5362
    %v5375 = vadd.f32 %v4707, %v5250
    %v5376 = vadd.f32 %v4708, %v5307
    %v5377 = vadd.f32 %v4709, %v5364
    %v5378 = vld [vmem:[#allocation2] sm:$0x88]
    %v5379 = vld [vmem:[#allocation2 + $0x8] sm:$0x8]
    %v5380 = vld [vmem:[#allocation2 + $0x24] sm:$0x88]
    %v5381 = vld [vmem:[#allocation2 + $0x2c] sm:$0x8]
    %v5390 = vrot.slane %v5378, 7
    %v5391 = vrot.slane %v5390, 4
    %v5392 = vrot.slane %v2136, 7
    %v5393 = vsel %vm1198, %v5391, %v5392
    %v5394 = vrot.slane %v5379, 7
    %v5395 = vrot.slane %v5394, 4
    %v5396 = vrot.slane %v2137, 7
    %v5397 = vsel %vm1198, %v5395, %v5396
    %v5398 = vrot.slane %v5392, 4
    %v5399 = vrot.slane %v4710, 7
    %v5400 = vsel %vm1198, %v5398, %v5399
    %v5401 = vrot.slane %v5396, 4
    %v5402 = vrot.slane %v4711, 7
    %v5403 = vsel %vm1198, %v5401, %v5402
    %v5404 = vrot.slane %v5380, 7
    %v5405 = vrot.slane %v5404, 4
    %v5406 = vrot.slane %v2142, 7
    %v5407 = vsel %vm1198, %v5405, %v5406
    %v5408 = vrot.slane %v5381, 7
    %v5409 = vrot.slane %v5408, 4
    %v5410 = vrot.slane %v2143, 7
    %v5411 = vsel %vm1198, %v5409, %v5410
    %v5412 = vrot.slane %v5406, 4
    %v5413 = vrot.slane %v4712, 7
    %v5414 = vsel %vm1198, %v5412, %v5413
    %v5415 = vrot.slane %v5410, 4
    %v5416 = vrot.slane %v4713, 7
    %v5417 = vsel %vm1198, %v5415, %v5416
    %s5418 = scalar_lea.vmem [#allocation6], 2592
    %v5419 = vld [vmem:[%s5418] sm:$0xff]
    %v5420 = vld [vmem:[%s5418 + $0x8] sm:$0xf]
    %v5421 = vld [vmem:[%s5418 + $0xc] sm:$0xff]
    %v5422 = vld [vmem:[%s5418 + $0x14] sm:$0xf]
    %v5423 = vld [vmem:[%s5418 + $0x18] sm:$0xff]
    %v5424 = vld [vmem:[%s5418 + $0x20] sm:$0xf]
    %v5425 = vld [vmem:[%s5418 + $0x24] sm:$0xff]
    %v5426 = vld [vmem:[%s5418 + $0x2c] sm:$0xf]
    %v5427 = vld [vmem:[%s5418 + $0x30] sm:$0xff]
    %v5428 = vld [vmem:[%s5418 + $0x38] sm:$0xf]
    %v5429 = vld [vmem:[%s5418 + $0x3c] sm:$0xff]
    %v5430 = vld [vmem:[%s5418 + $0x44] sm:$0xf]
    %v5431 = vld [vmem:[%s5418 + $0x48] sm:$0xff]
    %v5432 = vld [vmem:[%s5418 + $0x50] sm:$0xf]
    %v5433 = vld [vmem:[%s5418 + $0x54] sm:$0xff]
    %v5434 = vld [vmem:[%s5418 + $0x5c] sm:$0xf]
    %v5435 = vld [vmem:[%s5418 + $0x60] sm:$0xff]
    %v5436 = vld [vmem:[%s5418 + $0x68] sm:$0xf]
    %v5437 = vld [vmem:[%s5418 + $0x6c] sm:$0xff]
    %v5438 = vld [vmem:[%s5418 + $0x74] sm:$0xf]
    %v5439 = vld [vmem:[%s5418 + $0x78] sm:$0xff]
    %v5440 = vld [vmem:[%s5418 + $0x80] sm:$0xf]
    %v5441 = vld [vmem:[%s5418 + $0x84] sm:$0xff]
    %v5442 = vld [vmem:[%s5418 + $0x8c] sm:$0xf]
    %v5443 = vld [vmem:[%s5418 + $0x90] sm:$0xff]
    %v5444 = vld [vmem:[%s5418 + $0x98] sm:$0xf]
    %v5445 = vld [vmem:[%s5418 + $0x9c] sm:$0xff]
    %v5446 = vld [vmem:[%s5418 + $0xa4] sm:$0xf]
    %v5447 = vld [vmem:[%s5418 + $0xa8] sm:$0xff]
    %v5448 = vld [vmem:[%s5418 + $0xb0] sm:$0xf]
    %v5449 = vld [vmem:[%s5418 + $0xb4] sm:$0xff]
    %v5450 = vld [vmem:[%s5418 + $0xbc] sm:$0xf]
    %v5451 = vld [vmem:[%s5418 + $0xc0] sm:$0xff]
    %v5452 = vld [vmem:[%s5418 + $0xc8] sm:$0xf]
    %v5453 = vld [vmem:[%s5418 + $0xcc] sm:$0xff]
    %v5454 = vld [vmem:[%s5418 + $0xd4] sm:$0xf]
    %v5455 = vld [vmem:[%s5418 + $0xd8] sm:$0xff]
    %v5456 = vld [vmem:[%s5418 + $0xe0] sm:$0xf]
    %v5457 = vld [vmem:[%s5418 + $0xe4] sm:$0xff]
    %v5458 = vld [vmem:[%s5418 + $0xec] sm:$0xf]
    %v5459 = vld [vmem:[%s5418 + $0xf0] sm:$0xff]
    %v5460 = vld [vmem:[%s5418 + $0xf8] sm:$0xf]
    %v5461 = vld [vmem:[%s5418 + $0xfc] sm:$0xff]
    %v5462 = vld [vmem:[%s5418 + $0x104] sm:$0xf]
    %v5463 = vld [vmem:[%s5418 + $0x108] sm:$0xff]
    %v5464 = vld [vmem:[%s5418 + $0x110] sm:$0xf]
    %v5465 = vld [vmem:[%s5418 + $0x114] sm:$0xff]
    %v5466 = vld [vmem:[%s5418 + $0x11c] sm:$0xf]
    %v5467 = vld [vmem:[%s5418 + $0x120] sm:$0xff]
    %v5468 = vld [vmem:[%s5418 + $0x128] sm:$0xf]
    %v5469 = vld [vmem:[%s5418 + $0x12c] sm:$0xff]
    %v5470 = vld [vmem:[%s5418 + $0x134] sm:$0xf]
    %v5471 = vld [vmem:[%s5418 + $0x138] sm:$0xff]
    %v5472 = vld [vmem:[%s5418 + $0x140] sm:$0xf]
    %v5473 = vld [vmem:[%s5418 + $0x144] sm:$0xff]
    %v5474 = vld [vmem:[%s5418 + $0x14c] sm:$0xf]
    %v5475 = vld [vmem:[%s5418 + $0x150] sm:$0xff]
    %v5476 = vld [vmem:[%s5418 + $0x158] sm:$0xf]
    %v5477 = vld [vmem:[%s5418 + $0x15c] sm:$0xff]
    %v5478 = vld [vmem:[%s5418 + $0x164] sm:$0xf]
    %v5479 = vld [vmem:[%s5418 + $0x168] sm:$0xff]
    %v5480 = vld [vmem:[%s5418 + $0x170] sm:$0xf]
    %v5481 = vld [vmem:[%s5418 + $0x174] sm:$0xff]
    %v5482 = vld [vmem:[%s5418 + $0x17c] sm:$0xf]
    %v5483 = vld [vmem:[%s5418 + $0x180] sm:$0xff]
    %v5484 = vld [vmem:[%s5418 + $0x188] sm:$0xf]
    %v5485 = vld [vmem:[%s5418 + $0x18c] sm:$0xff]
    %v5486 = vld [vmem:[%s5418 + $0x194] sm:$0xf]
    %v5487 = vld [vmem:[%s5418 + $0x198] sm:$0xff]
    %v5488 = vld [vmem:[%s5418 + $0x1a0] sm:$0xf]
    %v5489 = vld [vmem:[%s5418 + $0x1a4] sm:$0xff]
    %v5490 = vld [vmem:[%s5418 + $0x1ac] sm:$0xf]
    %v5491 = vunpack.c.l.b16 %v5393
    %v5492 = vunpack.c.h.b16 %v5393
    %v5493 = vunpack.c.l.b16 %v5397
    %v5494 = vunpack.c.l.b16 %v5400
    %v5495 = vunpack.c.h.b16 %v5400
    %v5496 = vunpack.c.l.b16 %v5403
    %v5497 = vunpack.c.l.b16 %v5407
    %v5498 = vunpack.c.h.b16 %v5407
    %v5499 = vunpack.c.l.b16 %v5411
    %v5500 = vunpack.c.l.b16 %v5414
    %v5501 = vunpack.c.h.b16 %v5414
    %v5502 = vunpack.c.l.b16 %v5417
    %v5503 = vpack.c.b16 %v5494, %v5491
    %v5504 = vpack.c.b16 %v5495, %v5492
    %v5505 = vpack.c.b16 %v5496, %v5493
    %v5506 = vpack.c.b16 %v5500, %v5497
    %v5507 = vpack.c.b16 %v5501, %v5498
    %v5508 = vpack.c.b16 %v5502, %v5499
    %v5585 = vunpack.c.l.b16 %v5419
    %v5586 = vunpack.c.h.b16 %v5419
    %v5587 = vunpack.c.l.b16 %v5420
    %v5588 = vunpack.c.l.b16 %v5421
    %v5589 = vunpack.c.h.b16 %v5421
    %v5590 = vunpack.c.l.b16 %v5422
    %v5591 = vunpack.c.l.b16 %v5423
    %v5592 = vunpack.c.h.b16 %v5423
    %v5593 = vunpack.c.l.b16 %v5424
    %v5594 = vunpack.c.l.b16 %v5425
    %v5595 = vunpack.c.h.b16 %v5425
    %v5596 = vunpack.c.l.b16 %v5426
    %v5597 = vunpack.c.l.b16 %v5427
    %v5598 = vunpack.c.h.b16 %v5427
    %v5599 = vunpack.c.l.b16 %v5428
    %v5600 = vunpack.c.l.b16 %v5429
    %v5601 = vunpack.c.h.b16 %v5429
    %v5602 = vunpack.c.l.b16 %v5430
    %v5603 = vunpack.c.l.b16 %v5431
    %v5604 = vunpack.c.h.b16 %v5431
    %v5605 = vunpack.c.l.b16 %v5432
    %v5606 = vunpack.c.l.b16 %v5433
    %v5607 = vunpack.c.h.b16 %v5433
    %v5608 = vunpack.c.l.b16 %v5434
    %v5609 = vunpack.c.l.b16 %v5435
    %v5610 = vunpack.c.h.b16 %v5435
    %v5611 = vunpack.c.l.b16 %v5436
    %v5612 = vunpack.c.l.b16 %v5437
    %v5613 = vunpack.c.h.b16 %v5437
    %v5614 = vunpack.c.l.b16 %v5438
    %v5615 = vunpack.c.l.b16 %v5439
    %v5616 = vunpack.c.h.b16 %v5439
    %v5617 = vunpack.c.l.b16 %v5440
    %v5618 = vunpack.c.l.b16 %v5441
    %v5619 = vunpack.c.h.b16 %v5441
    %v5620 = vunpack.c.l.b16 %v5442
    %v5621 = vunpack.c.l.b16 %v5443
    %v5622 = vunpack.c.h.b16 %v5443
    %v5623 = vunpack.c.l.b16 %v5444
    %v5624 = vunpack.c.l.b16 %v5445
    %v5625 = vunpack.c.h.b16 %v5445
    %v5626 = vunpack.c.l.b16 %v5446
    %v5627 = vunpack.c.l.b16 %v5447
    %v5628 = vunpack.c.h.b16 %v5447
    %v5629 = vunpack.c.l.b16 %v5448
    %v5630 = vunpack.c.l.b16 %v5449
    %v5631 = vunpack.c.h.b16 %v5449
    %v5632 = vunpack.c.l.b16 %v5450
    %v5633 = vunpack.c.l.b16 %v5451
    %v5634 = vunpack.c.h.b16 %v5451
    %v5635 = vunpack.c.l.b16 %v5452
    %v5636 = vunpack.c.l.b16 %v5453
    %v5637 = vunpack.c.h.b16 %v5453
    %v5638 = vunpack.c.l.b16 %v5454
    %v5639 = vunpack.c.l.b16 %v5455
    %v5640 = vunpack.c.h.b16 %v5455
    %v5641 = vunpack.c.l.b16 %v5456
    %v5642 = vunpack.c.l.b16 %v5457
    %v5643 = vunpack.c.h.b16 %v5457
    %v5644 = vunpack.c.l.b16 %v5458
    %v5645 = vunpack.c.l.b16 %v5459
    %v5646 = vunpack.c.h.b16 %v5459
    %v5647 = vunpack.c.l.b16 %v5460
    %v5648 = vunpack.c.l.b16 %v5461
    %v5649 = vunpack.c.h.b16 %v5461
    %v5650 = vunpack.c.l.b16 %v5462
    %v5651 = vunpack.c.l.b16 %v5463
    %v5652 = vunpack.c.h.b16 %v5463
    %v5653 = vunpack.c.l.b16 %v5464
    %v5654 = vunpack.c.l.b16 %v5465
    %v5655 = vunpack.c.h.b16 %v5465
    %v5656 = vunpack.c.l.b16 %v5466
    %v5657 = vunpack.c.l.b16 %v5467
    %v5658 = vunpack.c.h.b16 %v5467
    %v5659 = vunpack.c.l.b16 %v5468
    %v5660 = vunpack.c.l.b16 %v5469
    %v5661 = vunpack.c.h.b16 %v5469
    %v5662 = vunpack.c.l.b16 %v5470
    %v5663 = vunpack.c.l.b16 %v5471
    %v5664 = vunpack.c.h.b16 %v5471
    %v5665 = vunpack.c.l.b16 %v5472
    %v5666 = vunpack.c.l.b16 %v5473
    %v5667 = vunpack.c.h.b16 %v5473
    %v5668 = vunpack.c.l.b16 %v5474
    %v5669 = vunpack.c.l.b16 %v5475
    %v5670 = vunpack.c.h.b16 %v5475
    %v5671 = vunpack.c.l.b16 %v5476
    %v5672 = vunpack.c.l.b16 %v5477
    %v5673 = vunpack.c.h.b16 %v5477
    %v5674 = vunpack.c.l.b16 %v5478
    %v5675 = vunpack.c.l.b16 %v5479
    %v5676 = vunpack.c.h.b16 %v5479
    %v5677 = vunpack.c.l.b16 %v5480
    %v5678 = vunpack.c.l.b16 %v5481
    %v5679 = vunpack.c.h.b16 %v5481
    %v5680 = vunpack.c.l.b16 %v5482
    %v5681 = vunpack.c.l.b16 %v5483
    %v5682 = vunpack.c.h.b16 %v5483
    %v5683 = vunpack.c.l.b16 %v5484
    %v5684 = vunpack.c.l.b16 %v5485
    %v5685 = vunpack.c.h.b16 %v5485
    %v5686 = vunpack.c.l.b16 %v5486
    %v5687 = vunpack.c.l.b16 %v5487
    %v5688 = vunpack.c.h.b16 %v5487
    %v5689 = vunpack.c.l.b16 %v5488
    %v5690 = vunpack.c.l.b16 %v5489
    %v5691 = vunpack.c.h.b16 %v5489
    %v5692 = vunpack.c.l.b16 %v5490
    %v5693 = vpack.c.b16 %v5588, %v5585
    %v5694 = vpack.c.b16 %v5589, %v5586
    %v5695 = vpack.c.b16 %v5590, %v5587
    %v5696 = vpack.c.b16 %v5594, %v5591
    %v5697 = vpack.c.b16 %v5595, %v5592
    %v5698 = vpack.c.b16 %v5596, %v5593
    %v5699 = vpack.c.b16 %v5600, %v5597
    %v5700 = vpack.c.b16 %v5601, %v5598
    %v5701 = vpack.c.b16 %v5602, %v5599
    %v5702 = vpack.c.b16 %v5606, %v5603
    %v5703 = vpack.c.b16 %v5607, %v5604
    %v5704 = vpack.c.b16 %v5608, %v5605
    %v5705 = vpack.c.b16 %v5612, %v5609
    %v5706 = vpack.c.b16 %v5613, %v5610
    %v5707 = vpack.c.b16 %v5614, %v5611
    %v5708 = vpack.c.b16 %v5618, %v5615
    %v5709 = vpack.c.b16 %v5619, %v5616
    %v5710 = vpack.c.b16 %v5620, %v5617
    %v5711 = vpack.c.b16 %v5624, %v5621
    %v5712 = vpack.c.b16 %v5625, %v5622
    %v5713 = vpack.c.b16 %v5626, %v5623
    %v5714 = vpack.c.b16 %v5630, %v5627
    %v5715 = vpack.c.b16 %v5631, %v5628
    %v5716 = vpack.c.b16 %v5632, %v5629
    %v5717 = vpack.c.b16 %v5636, %v5633
    %v5718 = vpack.c.b16 %v5637, %v5634
    %v5719 = vpack.c.b16 %v5638, %v5635
    %v5720 = vpack.c.b16 %v5642, %v5639
    %v5721 = vpack.c.b16 %v5643, %v5640
    %v5722 = vpack.c.b16 %v5644, %v5641
    %v5723 = vpack.c.b16 %v5648, %v5645
    %v5724 = vpack.c.b16 %v5649, %v5646
    %v5725 = vpack.c.b16 %v5650, %v5647
    %v5726 = vpack.c.b16 %v5654, %v5651
    %v5727 = vpack.c.b16 %v5655, %v5652
    %v5728 = vpack.c.b16 %v5656, %v5653
    %v5729 = vpack.c.b16 %v5660, %v5657
    %v5730 = vpack.c.b16 %v5661, %v5658
    %v5731 = vpack.c.b16 %v5662, %v5659
    %v5732 = vpack.c.b16 %v5666, %v5663
    %v5733 = vpack.c.b16 %v5667, %v5664
    %v5734 = vpack.c.b16 %v5668, %v5665
    %v5735 = vpack.c.b16 %v5672, %v5669
    %v5736 = vpack.c.b16 %v5673, %v5670
    %v5737 = vpack.c.b16 %v5674, %v5671
    %v5738 = vpack.c.b16 %v5678, %v5675
    %v5739 = vpack.c.b16 %v5679, %v5676
    %v5740 = vpack.c.b16 %v5680, %v5677
    %v5741 = vpack.c.b16 %v5684, %v5681
    %v5742 = vpack.c.b16 %v5685, %v5682
    %v5743 = vpack.c.b16 %v5686, %v5683
    %v5744 = vpack.c.b16 %v5690, %v5687
    %v5745 = vpack.c.b16 %v5691, %v5688
    %v5746 = vpack.c.b16 %v5692, %v5689
    %v5802 = vsel %vm1944, %v5505, 0
    %v5805 = vsel %vm1944, %v5508, 0
    %5807 = vmatpush.bf16.msra.mxu0 %v5714
    %5808 = vmatpush.bf16.msra.mxu0 %v5711
    %5809 = vmatpush.bf16.msra.mxu0 %v5708
    %5810 = vmatpush.bf16.msra.mxu0 %v5705
    %5811 = vmatpush.bf16.msra.mxu0 %v5702
    %5812 = vmatpush.bf16.msra.mxu0 %v5699
    %5813 = vmatpush.bf16.msra.mxu0 %v5696
    %5814 = vmatpush.bf16.msra.mxu0 %v5693
    %5815 = vmatmul.bf16.gmra.mxu0 %v5503
    %v5816 = vpop.f32.mrf.mxu0
    %v5817 = vadd.f32 0.0, %v5816
    %v5818 = vpop.f32.mrf.mxu0
    %v5819 = vadd.f32 0.0, %v5818
    %5820 = vmatmul.bf16.gmra.mxu0 %v5506
    %v5821 = vpop.f32.mrf.mxu0
    %v5822 = vadd.f32 0.0, %v5821
    %v5823 = vpop.f32.mrf.mxu0
    %v5824 = vadd.f32 0.0, %v5823
    %5825 = vdwg.mxu0
    %5826 = vmatpush.bf16.msra.mxu0 %v5738
    %5827 = vmatpush.bf16.msra.mxu0 %v5735
    %5828 = vmatpush.bf16.msra.mxu0 %v5732
    %5829 = vmatpush.bf16.msra.mxu0 %v5729
    %5830 = vmatpush.bf16.msra.mxu0 %v5726
    %5831 = vmatpush.bf16.msra.mxu0 %v5723
    %5832 = vmatpush.bf16.msra.mxu0 %v5720
    %5833 = vmatpush.bf16.msra.mxu0 %v5717
    %5834 = vmatmul.bf16.gmra.mxu0 %v5504
    %v5835 = vpop.f32.mrf.mxu0
    %v5836 = vadd.f32 %v5817, %v5835
    %v5837 = vpop.f32.mrf.mxu0
    %v5838 = vadd.f32 %v5819, %v5837
    %5839 = vmatmul.bf16.gmra.mxu0 %v5507
    %v5840 = vpop.f32.mrf.mxu0
    %v5841 = vadd.f32 %v5822, %v5840
    %v5842 = vpop.f32.mrf.mxu0
    %v5843 = vadd.f32 %v5824, %v5842
    %5844 = vdwg.mxu0
    %5845 = vmatpush.bf16.msra.mxu0 0
    %5846 = vmatpush.bf16.msra.mxu0 0
    %5847 = vmatpush.bf16.msra.mxu0 0
    %5848 = vmatpush.bf16.msra.mxu0 0
    %5849 = vmatpush.bf16.msra.mxu0 0
    %5850 = vmatpush.bf16.msra.mxu0 0
    %5851 = vmatpush.bf16.msra.mxu0 %v5744
    %5852 = vmatpush.bf16.msra.mxu0 %v5741
    %5853 = vmatmul.bf16.gmra.mxu0 %v5802
    %v5854 = vpop.f32.mrf.mxu0
    %v5855 = vadd.f32 %v5836, %v5854
    %v5856 = vpop.f32.mrf.mxu0
    %v5857 = vadd.f32 %v5838, %v5856
    %5858 = vmatmul.bf16.gmra.mxu0 %v5805
    %v5859 = vpop.f32.mrf.mxu0
    %v5860 = vadd.f32 %v5841, %v5859
    %v5861 = vpop.f32.mrf.mxu0
    %v5862 = vadd.f32 %v5843, %v5861
    %5863 = vdwg.mxu0
    %5864 = vmatpush.bf16.msra.mxu0 %v5715
    %5865 = vmatpush.bf16.msra.mxu0 %v5712
    %5866 = vmatpush.bf16.msra.mxu0 %v5709
    %5867 = vmatpush.bf16.msra.mxu0 %v5706
    %5868 = vmatpush.bf16.msra.mxu0 %v5703
    %5869 = vmatpush.bf16.msra.mxu0 %v5700
    %5870 = vmatpush.bf16.msra.mxu0 %v5697
    %5871 = vmatpush.bf16.msra.mxu0 %v5694
    %5872 = vmatmul.bf16.gmra.mxu0 %v5503
    %v5873 = vpop.f32.mrf.mxu0
    %v5874 = vadd.f32 0.0, %v5873
    %v5875 = vpop.f32.mrf.mxu0
    %v5876 = vadd.f32 0.0, %v5875
    %5877 = vmatmul.bf16.gmra.mxu0 %v5506
    %v5878 = vpop.f32.mrf.mxu0
    %v5879 = vadd.f32 0.0, %v5878
    %v5880 = vpop.f32.mrf.mxu0
    %v5881 = vadd.f32 0.0, %v5880
    %5882 = vdwg.mxu0
    %5883 = vmatpush.bf16.msra.mxu0 %v5739
    %5884 = vmatpush.bf16.msra.mxu0 %v5736
    %5885 = vmatpush.bf16.msra.mxu0 %v5733
    %5886 = vmatpush.bf16.msra.mxu0 %v5730
    %5887 = vmatpush.bf16.msra.mxu0 %v5727
    %5888 = vmatpush.bf16.msra.mxu0 %v5724
    %5889 = vmatpush.bf16.msra.mxu0 %v5721
    %5890 = vmatpush.bf16.msra.mxu0 %v5718
    %5891 = vmatmul.bf16.gmra.mxu0 %v5504
    %v5892 = vpop.f32.mrf.mxu0
    %v5893 = vadd.f32 %v5874, %v5892
    %v5894 = vpop.f32.mrf.mxu0
    %v5895 = vadd.f32 %v5876, %v5894
    %5896 = vmatmul.bf16.gmra.mxu0 %v5507
    %v5897 = vpop.f32.mrf.mxu0
    %v5898 = vadd.f32 %v5879, %v5897
    %v5899 = vpop.f32.mrf.mxu0
    %v5900 = vadd.f32 %v5881, %v5899
    %5901 = vdwg.mxu0
    %5902 = vmatpush.bf16.msra.mxu0 0
    %5903 = vmatpush.bf16.msra.mxu0 0
    %5904 = vmatpush.bf16.msra.mxu0 0
    %5905 = vmatpush.bf16.msra.mxu0 0
    %5906 = vmatpush.bf16.msra.mxu0 0
    %5907 = vmatpush.bf16.msra.mxu0 0
    %5908 = vmatpush.bf16.msra.mxu0 %v5745
    %5909 = vmatpush.bf16.msra.mxu0 %v5742
    %5910 = vmatmul.bf16.gmra.mxu0 %v5802
    %v5911 = vpop.f32.mrf.mxu0
    %v5912 = vadd.f32 %v5893, %v5911
    %v5913 = vpop.f32.mrf.mxu0
    %v5914 = vadd.f32 %v5895, %v5913
    %5915 = vmatmul.bf16.gmra.mxu0 %v5805
    %v5916 = vpop.f32.mrf.mxu0
    %v5917 = vadd.f32 %v5898, %v5916
    %v5918 = vpop.f32.mrf.mxu0
    %v5919 = vadd.f32 %v5900, %v5918
    %5920 = vdwg.mxu0
    %5921 = vmatpush.bf16.msra.mxu0 %v5716
    %5922 = vmatpush.bf16.msra.mxu0 %v5713
    %5923 = vmatpush.bf16.msra.mxu0 %v5710
    %5924 = vmatpush.bf16.msra.mxu0 %v5707
    %5925 = vmatpush.bf16.msra.mxu0 %v5704
    %5926 = vmatpush.bf16.msra.mxu0 %v5701
    %5927 = vmatpush.bf16.msra.mxu0 %v5698
    %5928 = vmatpush.bf16.msra.mxu0 %v5695
    %5929 = vmatmul.bf16.gmra.mxu0 %v5503
    %v5930 = vpop.f32.mrf.mxu0
    %v5931 = vadd.f32 0.0, %v5930
    %v5932 = vpop.f32.mrf.mxu0
    %v5933 = vadd.f32 0.0, %v5932
    %5934 = vmatmul.bf16.gmra.mxu0 %v5506
    %v5935 = vpop.f32.mrf.mxu0
    %v5936 = vadd.f32 0.0, %v5935
    %v5937 = vpop.f32.mrf.mxu0
    %v5938 = vadd.f32 0.0, %v5937
    %5939 = vdwg.mxu0
    %5940 = vmatpush.bf16.msra.mxu0 %v5740
    %5941 = vmatpush.bf16.msra.mxu0 %v5737
    %5942 = vmatpush.bf16.msra.mxu0 %v5734
    %5943 = vmatpush.bf16.msra.mxu0 %v5731
    %5944 = vmatpush.bf16.msra.mxu0 %v5728
    %5945 = vmatpush.bf16.msra.mxu0 %v5725
    %5946 = vmatpush.bf16.msra.mxu0 %v5722
    %5947 = vmatpush.bf16.msra.mxu0 %v5719
    %5948 = vmatmul.bf16.gmra.mxu0 %v5504
    %v5949 = vpop.f32.mrf.mxu0
    %v5950 = vadd.f32 %v5931, %v5949
    %v5951 = vpop.f32.mrf.mxu0
    %v5952 = vadd.f32 %v5933, %v5951
    %5953 = vmatmul.bf16.gmra.mxu0 %v5507
    %v5954 = vpop.f32.mrf.mxu0
    %v5955 = vadd.f32 %v5936, %v5954
    %v5956 = vpop.f32.mrf.mxu0
    %v5957 = vadd.f32 %v5938, %v5956
    %5958 = vdwg.mxu0
    %5959 = vmatpush.bf16.msra.mxu0 0
    %5960 = vmatpush.bf16.msra.mxu0 0
    %5961 = vmatpush.bf16.msra.mxu0 0
    %5962 = vmatpush.bf16.msra.mxu0 0
    %5963 = vmatpush.bf16.msra.mxu0 0
    %5964 = vmatpush.bf16.msra.mxu0 0
    %5965 = vmatpush.bf16.msra.mxu0 %v5746
    %5966 = vmatpush.bf16.msra.mxu0 %v5743
    %5967 = vmatmul.bf16.gmra.mxu0 %v5802
    %v5968 = vpop.f32.mrf.mxu0
    %v5969 = vadd.f32 %v5950, %v5968
    %v5970 = vpop.f32.mrf.mxu0
    %v5971 = vadd.f32 %v5952, %v5970
    %5972 = vmatmul.bf16.gmra.mxu0 %v5805
    %v5973 = vpop.f32.mrf.mxu0
    %v5974 = vadd.f32 %v5955, %v5973
    %v5975 = vpop.f32.mrf.mxu0
    %v5976 = vadd.f32 %v5957, %v5975
    %5977 = vdwg.mxu0
    %v5978 = vadd.f32 %v5366, %v5855
    %v5979 = vadd.f32 %v5367, %v5912
    %v5980 = vadd.f32 %v5368, %v5969
    %v5981 = vadd.f32 %v5369, %v5857
    %v5982 = vadd.f32 %v5370, %v5914
    %v5983 = vadd.f32 %v5371, %v5971
    %v5984 = vadd.f32 %v5372, %v5860
    %v5985 = vadd.f32 %v5373, %v5917
    %v5986 = vadd.f32 %v5374, %v5974
    %v5987 = vadd.f32 %v5375, %v5862
    %v5988 = vadd.f32 %v5376, %v5919
    %v5989 = vadd.f32 %v5377, %v5976
    %v5990 = vmax.f32 %v5978, 0.0
    %v5991 = vmax.f32 %v5979, 0.0
    %v5992 = vmax.f32 %v5980, 0.0
    %v5993 = vmax.f32 %v5981, 0.0
    %v5994 = vmax.f32 %v5982, 0.0
    %v5995 = vmax.f32 %v5983, 0.0
    %v5996 = vmax.f32 %v5984, 0.0
    %v5997 = vmax.f32 %v5985, 0.0
    %v5998 = vmax.f32 %v5986, 0.0
    %v5999 = vmax.f32 %v5987, 0.0
    %v6000 = vmax.f32 %v5988, 0.0
    %v6001 = vmax.f32 %v5989, 0.0
    %6002 = vst [vmem:[#allocation3] sm:$0x77] 0
    %vm6003 = vcmask 256000
    %6004 = vst.msk [vmem:[#allocation3 + $0x8] sm:$0x7] %vm6003, 0
    %6005 = vst [vmem:[#allocation3 + $0x30] sm:$0x77] 0
    %6006 = vst.msk [vmem:[#allocation3 + $0x38] sm:$0x7] %vm6003, 0
    %6007 = vst [vmem:[#allocation3 + $0x18] sm:$0x88] 0
    %vm6008 = vcmask 257027
    %6009 = vst.msk [vmem:[#allocation3 + $0x20] sm:$0x8] %vm6008, 0
    %6010 = vst [vmem:[#allocation3 + $0x24] sm:$0x33] 0
    %vm6011 = vcmask 254976
    %6012 = vst.msk [vmem:[#allocation3 + $0x2c] sm:$0x3] %vm6011, 0
    %6013 = vst [vmem:[#allocation3 + $0x48] sm:$0x88] 0
    %6014 = vst.msk [vmem:[#allocation3 + $0x50] sm:$0x8] %vm6008, 0
    %6015 = vst [vmem:[#allocation3 + $0x54] sm:$0x33] 0
    %6016 = vst.msk [vmem:[#allocation3 + $0x5c] sm:$0x3] %vm6011, 0
    %v6017 = vpack.c.bf16 %v5991, %v5990
    %v6018 = vpack.c.bf16 %v5992, %v5992
    %v6019 = vpack.c.bf16 %v5994, %v5993
    %v6020 = vpack.c.bf16 %v5995, %v5995
    %v6021 = vpack.c.bf16 %v5997, %v5996
    %v6022 = vpack.c.bf16 %v5998, %v5998
    %v6023 = vpack.c.bf16 %v6000, %v5999
    %v6024 = vpack.c.bf16 %v6001, %v6001
    %v6033 = vrot.slane %v6017, 5
    %v6034 = vrot.slane %v6018, 5
    %v6035 = vrot.slane %v6033, 4
    %v6036 = vrot.slane %v6019, 5
    %v6037 = vsel %vm482, %v6035, %v6036
    %v6038 = vrot.slane %v6034, 4
    %v6039 = vrot.slane %v6020, 5
    %v6040 = vsel %vm482, %v6038, %v6039
    %v6041 = vrot.slane %v6036, 4
    %v6042 = vrot.slane %v6039, 4
    %v6043 = vrot.slane %v6021, 5
    %v6044 = vrot.slane %v6022, 5
    %v6045 = vrot.slane %v6043, 4
    %v6046 = vrot.slane %v6023, 5
    %v6047 = vsel %vm482, %v6045, %v6046
    %v6048 = vrot.slane %v6044, 4
    %v6049 = vrot.slane %v6024, 5
    %v6050 = vsel %vm482, %v6048, %v6049
    %v6051 = vrot.slane %v6046, 4
    %v6052 = vrot.slane %v6049, 4
    %6065 = vst [vmem:[#allocation3] sm:$0x88] %v6033
    %6066 = vst.msk [vmem:[#allocation3 + $0x8] sm:$0x8] %vm6008, %v6034
    %6067 = vst [vmem:[#allocation3 + $0xc] sm:$0xff] %v6037
    %6068 = vst.msk [vmem:[#allocation3 + $0x14] sm:$0xf] %vm1516, %v6040
    %6069 = vst [vmem:[#allocation3 + $0x18] sm:$0x77] %v6041
    %6070 = vst.msk [vmem:[#allocation3 + $0x20] sm:$0x7] %vm6003, %v6042
    %6071 = vst [vmem:[#allocation3 + $0x30] sm:$0x88] %v6043
    %6072 = vst.msk [vmem:[#allocation3 + $0x38] sm:$0x8] %vm6008, %v6044
    %6073 = vst [vmem:[#allocation3 + $0x3c] sm:$0xff] %v6047
    %6074 = vst.msk [vmem:[#allocation3 + $0x44] sm:$0xf] %vm1516, %v6050
    %6075 = vst [vmem:[#allocation3 + $0x48] sm:$0x77] %v6051
    %6076 = vst.msk [vmem:[#allocation3 + $0x50] sm:$0x7] %vm6003, %v6052
    %v6077 = vld [vmem:[#allocation12] sm:$0x7]
    %v6079 = vperm.slane %v6077, 0
    %v6080 = vperm.slane %v6077, 1
    %v6081 = vperm.slane %v6077, 2
    %v6085 = vld [vmem:[#allocation3] sm:$0xff]
    %v6086 = vld [vmem:[#allocation3 + $0x8] sm:$0xf]
    %v6087 = vld [vmem:[#allocation3 + $0xc] sm:$0xff]
    %v6088 = vld [vmem:[#allocation3 + $0x14] sm:$0xf]
    %v6089 = vld [vmem:[#allocation3 + $0x30] sm:$0xff]
    %v6090 = vld [vmem:[#allocation3 + $0x38] sm:$0xf]
    %v6091 = vld [vmem:[#allocation3 + $0x3c] sm:$0xff]
    %v6092 = vld [vmem:[#allocation3 + $0x44] sm:$0xf]
    %v6093 = vld [vmem:[#allocation8] sm:$0xff]
    %v6094 = vld [vmem:[#allocation8 + $0x8] sm:$0xf]
    %v6095 = vld [vmem:[#allocation8 + $0xc] sm:$0xff]
    %v6096 = vld [vmem:[#allocation8 + $0x14] sm:$0xf]
    %v6097 = vld [vmem:[#allocation8 + $0x18] sm:$0xff]
    %v6098 = vld [vmem:[#allocation8 + $0x20] sm:$0xf]
    %v6099 = vld [vmem:[#allocation8 + $0x24] sm:$0xff]
    %v6100 = vld [vmem:[#allocation8 + $0x2c] sm:$0xf]
    %v6101 = vld [vmem:[#allocation8 + $0x30] sm:$0xff]
    %v6102 = vld [vmem:[#allocation8 + $0x38] sm:$0xf]
    %v6103 = vld [vmem:[#allocation8 + $0x3c] sm:$0xff]
    %v6104 = vld [vmem:[#allocation8 + $0x44] sm:$0xf]
    %v6105 = vld [vmem:[#allocation8 + $0x48] sm:$0xff]
    %v6106 = vld [vmem:[#allocation8 + $0x50] sm:$0xf]
    %v6107 = vld [vmem:[#allocation8 + $0x54] sm:$0xff]
    %v6108 = vld [vmem:[#allocation8 + $0x5c] sm:$0xf]
    %v6109 = vld [vmem:[#allocation8 + $0x60] sm:$0xff]
    %v6110 = vld [vmem:[#allocation8 + $0x68] sm:$0xf]
    %v6111 = vld [vmem:[#allocation8 + $0x6c] sm:$0xff]
    %v6112 = vld [vmem:[#allocation8 + $0x74] sm:$0xf]
    %v6113 = vld [vmem:[#allocation8 + $0x78] sm:$0xff]
    %v6114 = vld [vmem:[#allocation8 + $0x80] sm:$0xf]
    %v6115 = vld [vmem:[#allocation8 + $0x84] sm:$0xff]
    %v6116 = vld [vmem:[#allocation8 + $0x8c] sm:$0xf]
    %v6117 = vld [vmem:[#allocation8 + $0x90] sm:$0xff]
    %v6118 = vld [vmem:[#allocation8 + $0x98] sm:$0xf]
    %v6119 = vld [vmem:[#allocation8 + $0x9c] sm:$0xff]
    %v6120 = vld [vmem:[#allocation8 + $0xa4] sm:$0xf]
    %v6121 = vld [vmem:[#allocation8 + $0xa8] sm:$0xff]
    %v6122 = vld [vmem:[#allocation8 + $0xb0] sm:$0xf]
    %v6123 = vld [vmem:[#allocation8 + $0xb4] sm:$0xff]
    %v6124 = vld [vmem:[#allocation8 + $0xbc] sm:$0xf]
    %v6125 = vld [vmem:[#allocation8 + $0xc0] sm:$0xff]
    %v6126 = vld [vmem:[#allocation8 + $0xc8] sm:$0xf]
    %v6127 = vld [vmem:[#allocation8 + $0xcc] sm:$0xff]
    %v6128 = vld [vmem:[#allocation8 + $0xd4] sm:$0xf]
    %v6129 = vld [vmem:[#allocation8 + $0xd8] sm:$0xff]
    %v6130 = vld [vmem:[#allocation8 + $0xe0] sm:$0xf]
    %v6131 = vld [vmem:[#allocation8 + $0xe4] sm:$0xff]
    %v6132 = vld [vmem:[#allocation8 + $0xec] sm:$0xf]
    %v6133 = vld [vmem:[#allocation8 + $0xf0] sm:$0xff]
    %v6134 = vld [vmem:[#allocation8 + $0xf8] sm:$0xf]
    %v6135 = vld [vmem:[#allocation8 + $0xfc] sm:$0xff]
    %v6136 = vld [vmem:[#allocation8 + $0x104] sm:$0xf]
    %v6137 = vld [vmem:[#allocation8 + $0x108] sm:$0xff]
    %v6138 = vld [vmem:[#allocation8 + $0x110] sm:$0xf]
    %v6139 = vld [vmem:[#allocation8 + $0x114] sm:$0xff]
    %v6140 = vld [vmem:[#allocation8 + $0x11c] sm:$0xf]
    %v6141 = vld [vmem:[#allocation8 + $0x120] sm:$0xff]
    %v6142 = vld [vmem:[#allocation8 + $0x128] sm:$0xf]
    %v6143 = vld [vmem:[#allocation8 + $0x12c] sm:$0xff]
    %v6144 = vld [vmem:[#allocation8 + $0x134] sm:$0xf]
    %v6145 = vld [vmem:[#allocation8 + $0x138] sm:$0xff]
    %v6146 = vld [vmem:[#allocation8 + $0x140] sm:$0xf]
    %v6147 = vld [vmem:[#allocation8 + $0x144] sm:$0xff]
    %v6148 = vld [vmem:[#allocation8 + $0x14c] sm:$0xf]
    %v6149 = vld [vmem:[#allocation8 + $0x150] sm:$0xff]
    %v6150 = vld [vmem:[#allocation8 + $0x158] sm:$0xf]
    %v6151 = vld [vmem:[#allocation8 + $0x15c] sm:$0xff]
    %v6152 = vld [vmem:[#allocation8 + $0x164] sm:$0xf]
    %v6153 = vld [vmem:[#allocation8 + $0x168] sm:$0xff]
    %v6154 = vld [vmem:[#allocation8 + $0x170] sm:$0xf]
    %v6155 = vld [vmem:[#allocation8 + $0x174] sm:$0xff]
    %v6156 = vld [vmem:[#allocation8 + $0x17c] sm:$0xf]
    %v6157 = vld [vmem:[#allocation8 + $0x180] sm:$0xff]
    %v6158 = vld [vmem:[#allocation8 + $0x188] sm:$0xf]
    %v6159 = vld [vmem:[#allocation8 + $0x18c] sm:$0xff]
    %v6160 = vld [vmem:[#allocation8 + $0x194] sm:$0xf]
    %v6161 = vld [vmem:[#allocation8 + $0x198] sm:$0xff]
    %v6162 = vld [vmem:[#allocation8 + $0x1a0] sm:$0xf]
    %v6163 = vld [vmem:[#allocation8 + $0x1a4] sm:$0xff]
    %v6164 = vld [vmem:[#allocation8 + $0x1ac] sm:$0xf]
    %v6173 = vunpack.c.l.b16 %v6085
    %v6174 = vunpack.c.h.b16 %v6085
    %v6175 = vunpack.c.l.b16 %v6086
    %v6176 = vunpack.c.l.b16 %v6087
    %v6177 = vunpack.c.h.b16 %v6087
    %v6178 = vunpack.c.l.b16 %v6088
    %v6179 = vunpack.c.l.b16 %v6089
    %v6180 = vunpack.c.h.b16 %v6089
    %v6181 = vunpack.c.l.b16 %v6090
    %v6182 = vunpack.c.l.b16 %v6091
    %v6183 = vunpack.c.h.b16 %v6091
    %v6184 = vunpack.c.l.b16 %v6092
    %v6185 = vpack.c.b16 %v6176, %v6173
    %v6186 = vpack.c.b16 %v6177, %v6174
    %v6187 = vpack.c.b16 %v6178, %v6175
    %v6188 = vpack.c.b16 %v6182, %v6179
    %v6189 = vpack.c.b16 %v6183, %v6180
    %v6190 = vpack.c.b16 %v6184, %v6181
    %v6267 = vunpack.c.l.b16 %v6093
    %v6268 = vunpack.c.h.b16 %v6093
    %v6269 = vunpack.c.l.b16 %v6094
    %v6270 = vunpack.c.l.b16 %v6095
    %v6271 = vunpack.c.h.b16 %v6095
    %v6272 = vunpack.c.l.b16 %v6096
    %v6273 = vunpack.c.l.b16 %v6097
    %v6274 = vunpack.c.h.b16 %v6097
    %v6275 = vunpack.c.l.b16 %v6098
    %v6276 = vunpack.c.l.b16 %v6099
    %v6277 = vunpack.c.h.b16 %v6099
    %v6278 = vunpack.c.l.b16 %v6100
    %v6279 = vunpack.c.l.b16 %v6101
    %v6280 = vunpack.c.h.b16 %v6101
    %v6281 = vunpack.c.l.b16 %v6102
    %v6282 = vunpack.c.l.b16 %v6103
    %v6283 = vunpack.c.h.b16 %v6103
    %v6284 = vunpack.c.l.b16 %v6104
    %v6285 = vunpack.c.l.b16 %v6105
    %v6286 = vunpack.c.h.b16 %v6105
    %v6287 = vunpack.c.l.b16 %v6106
    %v6288 = vunpack.c.l.b16 %v6107
    %v6289 = vunpack.c.h.b16 %v6107
    %v6290 = vunpack.c.l.b16 %v6108
    %v6291 = vunpack.c.l.b16 %v6109
    %v6292 = vunpack.c.h.b16 %v6109
    %v6293 = vunpack.c.l.b16 %v6110
    %v6294 = vunpack.c.l.b16 %v6111
    %v6295 = vunpack.c.h.b16 %v6111
    %v6296 = vunpack.c.l.b16 %v6112
    %v6297 = vunpack.c.l.b16 %v6113
    %v6298 = vunpack.c.h.b16 %v6113
    %v6299 = vunpack.c.l.b16 %v6114
    %v6300 = vunpack.c.l.b16 %v6115
    %v6301 = vunpack.c.h.b16 %v6115
    %v6302 = vunpack.c.l.b16 %v6116
    %v6303 = vunpack.c.l.b16 %v6117
    %v6304 = vunpack.c.h.b16 %v6117
    %v6305 = vunpack.c.l.b16 %v6118
    %v6306 = vunpack.c.l.b16 %v6119
    %v6307 = vunpack.c.h.b16 %v6119
    %v6308 = vunpack.c.l.b16 %v6120
    %v6309 = vunpack.c.l.b16 %v6121
    %v6310 = vunpack.c.h.b16 %v6121
    %v6311 = vunpack.c.l.b16 %v6122
    %v6312 = vunpack.c.l.b16 %v6123
    %v6313 = vunpack.c.h.b16 %v6123
    %v6314 = vunpack.c.l.b16 %v6124
    %v6315 = vunpack.c.l.b16 %v6125
    %v6316 = vunpack.c.h.b16 %v6125
    %v6317 = vunpack.c.l.b16 %v6126
    %v6318 = vunpack.c.l.b16 %v6127
    %v6319 = vunpack.c.h.b16 %v6127
    %v6320 = vunpack.c.l.b16 %v6128
    %v6321 = vunpack.c.l.b16 %v6129
    %v6322 = vunpack.c.h.b16 %v6129
    %v6323 = vunpack.c.l.b16 %v6130
    %v6324 = vunpack.c.l.b16 %v6131
    %v6325 = vunpack.c.h.b16 %v6131
    %v6326 = vunpack.c.l.b16 %v6132
    %v6327 = vunpack.c.l.b16 %v6133
    %v6328 = vunpack.c.h.b16 %v6133
    %v6329 = vunpack.c.l.b16 %v6134
    %v6330 = vunpack.c.l.b16 %v6135
    %v6331 = vunpack.c.h.b16 %v6135
    %v6332 = vunpack.c.l.b16 %v6136
    %v6333 = vunpack.c.l.b16 %v6137
    %v6334 = vunpack.c.h.b16 %v6137
    %v6335 = vunpack.c.l.b16 %v6138
    %v6336 = vunpack.c.l.b16 %v6139
    %v6337 = vunpack.c.h.b16 %v6139
    %v6338 = vunpack.c.l.b16 %v6140
    %v6339 = vunpack.c.l.b16 %v6141
    %v6340 = vunpack.c.h.b16 %v6141
    %v6341 = vunpack.c.l.b16 %v6142
    %v6342 = vunpack.c.l.b16 %v6143
    %v6343 = vunpack.c.h.b16 %v6143
    %v6344 = vunpack.c.l.b16 %v6144
    %v6345 = vunpack.c.l.b16 %v6145
    %v6346 = vunpack.c.h.b16 %v6145
    %v6347 = vunpack.c.l.b16 %v6146
    %v6348 = vunpack.c.l.b16 %v6147
    %v6349 = vunpack.c.h.b16 %v6147
    %v6350 = vunpack.c.l.b16 %v6148
    %v6351 = vunpack.c.l.b16 %v6149
    %v6352 = vunpack.c.h.b16 %v6149
    %v6353 = vunpack.c.l.b16 %v6150
    %v6354 = vunpack.c.l.b16 %v6151
    %v6355 = vunpack.c.h.b16 %v6151
    %v6356 = vunpack.c.l.b16 %v6152
    %v6357 = vunpack.c.l.b16 %v6153
    %v6358 = vunpack.c.h.b16 %v6153
    %v6359 = vunpack.c.l.b16 %v6154
    %v6360 = vunpack.c.l.b16 %v6155
    %v6361 = vunpack.c.h.b16 %v6155
    %v6362 = vunpack.c.l.b16 %v6156
    %v6363 = vunpack.c.l.b16 %v6157
    %v6364 = vunpack.c.h.b16 %v6157
    %v6365 = vunpack.c.l.b16 %v6158
    %v6366 = vunpack.c.l.b16 %v6159
    %v6367 = vunpack.c.h.b16 %v6159
    %v6368 = vunpack.c.l.b16 %v6160
    %v6369 = vunpack.c.l.b16 %v6161
    %v6370 = vunpack.c.h.b16 %v6161
    %v6371 = vunpack.c.l.b16 %v6162
    %v6372 = vunpack.c.l.b16 %v6163
    %v6373 = vunpack.c.h.b16 %v6163
    %v6374 = vunpack.c.l.b16 %v6164
    %v6375 = vpack.c.b16 %v6270, %v6267
    %v6376 = vpack.c.b16 %v6271, %v6268
    %v6377 = vpack.c.b16 %v6272, %v6269
    %v6378 = vpack.c.b16 %v6276, %v6273
    %v6379 = vpack.c.b16 %v6277, %v6274
    %v6380 = vpack.c.b16 %v6278, %v6275
    %v6381 = vpack.c.b16 %v6282, %v6279
    %v6382 = vpack.c.b16 %v6283, %v6280
    %v6383 = vpack.c.b16 %v6284, %v6281
    %v6384 = vpack.c.b16 %v6288, %v6285
    %v6385 = vpack.c.b16 %v6289, %v6286
    %v6386 = vpack.c.b16 %v6290, %v6287
    %v6387 = vpack.c.b16 %v6294, %v6291
    %v6388 = vpack.c.b16 %v6295, %v6292
    %v6389 = vpack.c.b16 %v6296, %v6293
    %v6390 = vpack.c.b16 %v6300, %v6297
    %v6391 = vpack.c.b16 %v6301, %v6298
    %v6392 = vpack.c.b16 %v6302, %v6299
    %v6393 = vpack.c.b16 %v6306, %v6303
    %v6394 = vpack.c.b16 %v6307, %v6304
    %v6395 = vpack.c.b16 %v6308, %v6305
    %v6396 = vpack.c.b16 %v6312, %v6309
    %v6397 = vpack.c.b16 %v6313, %v6310
    %v6398 = vpack.c.b16 %v6314, %v6311
    %v6399 = vpack.c.b16 %v6318, %v6315
    %v6400 = vpack.c.b16 %v6319, %v6316
    %v6401 = vpack.c.b16 %v6320, %v6317
    %v6402 = vpack.c.b16 %v6324, %v6321
    %v6403 = vpack.c.b16 %v6325, %v6322
    %v6404 = vpack.c.b16 %v6326, %v6323
    %v6405 = vpack.c.b16 %v6330, %v6327
    %v6406 = vpack.c.b16 %v6331, %v6328
    %v6407 = vpack.c.b16 %v6332, %v6329
    %v6408 = vpack.c.b16 %v6336, %v6333
    %v6409 = vpack.c.b16 %v6337, %v6334
    %v6410 = vpack.c.b16 %v6338, %v6335
    %v6411 = vpack.c.b16 %v6342, %v6339
    %v6412 = vpack.c.b16 %v6343, %v6340
    %v6413 = vpack.c.b16 %v6344, %v6341
    %v6414 = vpack.c.b16 %v6348, %v6345
    %v6415 = vpack.c.b16 %v6349, %v6346
    %v6416 = vpack.c.b16 %v6350, %v6347
    %v6417 = vpack.c.b16 %v6354, %v6351
    %v6418 = vpack.c.b16 %v6355, %v6352
    %v6419 = vpack.c.b16 %v6356, %v6353
    %v6420 = vpack.c.b16 %v6360, %v6357
    %v6421 = vpack.c.b16 %v6361, %v6358
    %v6422 = vpack.c.b16 %v6362, %v6359
    %v6423 = vpack.c.b16 %v6366, %v6363
    %v6424 = vpack.c.b16 %v6367, %v6364
    %v6425 = vpack.c.b16 %v6368, %v6365
    %v6426 = vpack.c.b16 %v6372, %v6369
    %v6427 = vpack.c.b16 %v6373, %v6370
    %v6428 = vpack.c.b16 %v6374, %v6371
    %v6484 = vsel %vm1944, %v6187, 0
    %v6487 = vsel %vm1944, %v6190, 0
    %6489 = vmatpush.bf16.msra.mxu0 %v6396
    %6490 = vmatpush.bf16.msra.mxu0 %v6393
    %6491 = vmatpush.bf16.msra.mxu0 %v6390
    %6492 = vmatpush.bf16.msra.mxu0 %v6387
    %6493 = vmatpush.bf16.msra.mxu0 %v6384
    %6494 = vmatpush.bf16.msra.mxu0 %v6381
    %6495 = vmatpush.bf16.msra.mxu0 %v6378
    %6496 = vmatpush.bf16.msra.mxu0 %v6375
    %6497 = vmatmul.bf16.gmra.mxu0 %v6185
    %v6498 = vpop.f32.mrf.mxu0
    %v6499 = vadd.f32 0.0, %v6498
    %v6500 = vpop.f32.mrf.mxu0
    %v6501 = vadd.f32 0.0, %v6500
    %6502 = vmatmul.bf16.gmra.mxu0 %v6188
    %v6503 = vpop.f32.mrf.mxu0
    %v6504 = vadd.f32 0.0, %v6503
    %v6505 = vpop.f32.mrf.mxu0
    %v6506 = vadd.f32 0.0, %v6505
    %6507 = vdwg.mxu0
    %6508 = vmatpush.bf16.msra.mxu0 %v6420
    %6509 = vmatpush.bf16.msra.mxu0 %v6417
    %6510 = vmatpush.bf16.msra.mxu0 %v6414
    %6511 = vmatpush.bf16.msra.mxu0 %v6411
    %6512 = vmatpush.bf16.msra.mxu0 %v6408
    %6513 = vmatpush.bf16.msra.mxu0 %v6405
    %6514 = vmatpush.bf16.msra.mxu0 %v6402
    %6515 = vmatpush.bf16.msra.mxu0 %v6399
    %6516 = vmatmul.bf16.gmra.mxu0 %v6186
    %v6517 = vpop.f32.mrf.mxu0
    %v6518 = vadd.f32 %v6499, %v6517
    %v6519 = vpop.f32.mrf.mxu0
    %v6520 = vadd.f32 %v6501, %v6519
    %6521 = vmatmul.bf16.gmra.mxu0 %v6189
    %v6522 = vpop.f32.mrf.mxu0
    %v6523 = vadd.f32 %v6504, %v6522
    %v6524 = vpop.f32.mrf.mxu0
    %v6525 = vadd.f32 %v6506, %v6524
    %6526 = vdwg.mxu0
    %6527 = vmatpush.bf16.msra.mxu0 0
    %6528 = vmatpush.bf16.msra.mxu0 0
    %6529 = vmatpush.bf16.msra.mxu0 0
    %6530 = vmatpush.bf16.msra.mxu0 0
    %6531 = vmatpush.bf16.msra.mxu0 0
    %6532 = vmatpush.bf16.msra.mxu0 0
    %6533 = vmatpush.bf16.msra.mxu0 %v6426
    %6534 = vmatpush.bf16.msra.mxu0 %v6423
    %6535 = vmatmul.bf16.gmra.mxu0 %v6484
    %v6536 = vpop.f32.mrf.mxu0
    %v6537 = vadd.f32 %v6518, %v6536
    %v6538 = vpop.f32.mrf.mxu0
    %v6539 = vadd.f32 %v6520, %v6538
    %6540 = vmatmul.bf16.gmra.mxu0 %v6487
    %v6541 = vpop.f32.mrf.mxu0
    %v6542 = vadd.f32 %v6523, %v6541
    %v6543 = vpop.f32.mrf.mxu0
    %v6544 = vadd.f32 %v6525, %v6543
    %6545 = vdwg.mxu0
    %6546 = vmatpush.bf16.msra.mxu0 %v6397
    %6547 = vmatpush.bf16.msra.mxu0 %v6394
    %6548 = vmatpush.bf16.msra.mxu0 %v6391
    %6549 = vmatpush.bf16.msra.mxu0 %v6388
    %6550 = vmatpush.bf16.msra.mxu0 %v6385
    %6551 = vmatpush.bf16.msra.mxu0 %v6382
    %6552 = vmatpush.bf16.msra.mxu0 %v6379
    %6553 = vmatpush.bf16.msra.mxu0 %v6376
    %6554 = vmatmul.bf16.gmra.mxu0 %v6185
    %v6555 = vpop.f32.mrf.mxu0
    %v6556 = vadd.f32 0.0, %v6555
    %v6557 = vpop.f32.mrf.mxu0
    %v6558 = vadd.f32 0.0, %v6557
    %6559 = vmatmul.bf16.gmra.mxu0 %v6188
    %v6560 = vpop.f32.mrf.mxu0
    %v6561 = vadd.f32 0.0, %v6560
    %v6562 = vpop.f32.mrf.mxu0
    %v6563 = vadd.f32 0.0, %v6562
    %6564 = vdwg.mxu0
    %6565 = vmatpush.bf16.msra.mxu0 %v6421
    %6566 = vmatpush.bf16.msra.mxu0 %v6418
    %6567 = vmatpush.bf16.msra.mxu0 %v6415
    %6568 = vmatpush.bf16.msra.mxu0 %v6412
    %6569 = vmatpush.bf16.msra.mxu0 %v6409
    %6570 = vmatpush.bf16.msra.mxu0 %v6406
    %6571 = vmatpush.bf16.msra.mxu0 %v6403
    %6572 = vmatpush.bf16.msra.mxu0 %v6400
    %6573 = vmatmul.bf16.gmra.mxu0 %v6186
    %v6574 = vpop.f32.mrf.mxu0
    %v6575 = vadd.f32 %v6556, %v6574
    %v6576 = vpop.f32.mrf.mxu0
    %v6577 = vadd.f32 %v6558, %v6576
    %6578 = vmatmul.bf16.gmra.mxu0 %v6189
    %v6579 = vpop.f32.mrf.mxu0
    %v6580 = vadd.f32 %v6561, %v6579
    %v6581 = vpop.f32.mrf.mxu0
    %v6582 = vadd.f32 %v6563, %v6581
    %6583 = vdwg.mxu0
    %6584 = vmatpush.bf16.msra.mxu0 0
    %6585 = vmatpush.bf16.msra.mxu0 0
    %6586 = vmatpush.bf16.msra.mxu0 0
    %6587 = vmatpush.bf16.msra.mxu0 0
    %6588 = vmatpush.bf16.msra.mxu0 0
    %6589 = vmatpush.bf16.msra.mxu0 0
    %6590 = vmatpush.bf16.msra.mxu0 %v6427
    %6591 = vmatpush.bf16.msra.mxu0 %v6424
    %6592 = vmatmul.bf16.gmra.mxu0 %v6484
    %v6593 = vpop.f32.mrf.mxu0
    %v6594 = vadd.f32 %v6575, %v6593
    %v6595 = vpop.f32.mrf.mxu0
    %v6596 = vadd.f32 %v6577, %v6595
    %6597 = vmatmul.bf16.gmra.mxu0 %v6487
    %v6598 = vpop.f32.mrf.mxu0
    %v6599 = vadd.f32 %v6580, %v6598
    %v6600 = vpop.f32.mrf.mxu0
    %v6601 = vadd.f32 %v6582, %v6600
    %6602 = vdwg.mxu0
    %6603 = vmatpush.bf16.msra.mxu0 %v6398
    %6604 = vmatpush.bf16.msra.mxu0 %v6395
    %6605 = vmatpush.bf16.msra.mxu0 %v6392
    %6606 = vmatpush.bf16.msra.mxu0 %v6389
    %6607 = vmatpush.bf16.msra.mxu0 %v6386
    %6608 = vmatpush.bf16.msra.mxu0 %v6383
    %6609 = vmatpush.bf16.msra.mxu0 %v6380
    %6610 = vmatpush.bf16.msra.mxu0 %v6377
    %6611 = vmatmul.bf16.gmra.mxu0 %v6185
    %v6612 = vpop.f32.mrf.mxu0
    %v6613 = vadd.f32 0.0, %v6612
    %v6614 = vpop.f32.mrf.mxu0
    %v6615 = vadd.f32 0.0, %v6614
    %6616 = vmatmul.bf16.gmra.mxu0 %v6188
    %v6617 = vpop.f32.mrf.mxu0
    %v6618 = vadd.f32 0.0, %v6617
    %v6619 = vpop.f32.mrf.mxu0
    %v6620 = vadd.f32 0.0, %v6619
    %6621 = vdwg.mxu0
    %6622 = vmatpush.bf16.msra.mxu0 %v6422
    %6623 = vmatpush.bf16.msra.mxu0 %v6419
    %6624 = vmatpush.bf16.msra.mxu0 %v6416
    %6625 = vmatpush.bf16.msra.mxu0 %v6413
    %6626 = vmatpush.bf16.msra.mxu0 %v6410
    %6627 = vmatpush.bf16.msra.mxu0 %v6407
    %6628 = vmatpush.bf16.msra.mxu0 %v6404
    %6629 = vmatpush.bf16.msra.mxu0 %v6401
    %6630 = vmatmul.bf16.gmra.mxu0 %v6186
    %v6631 = vpop.f32.mrf.mxu0
    %v6632 = vadd.f32 %v6613, %v6631
    %v6633 = vpop.f32.mrf.mxu0
    %v6634 = vadd.f32 %v6615, %v6633
    %6635 = vmatmul.bf16.gmra.mxu0 %v6189
    %v6636 = vpop.f32.mrf.mxu0
    %v6637 = vadd.f32 %v6618, %v6636
    %v6638 = vpop.f32.mrf.mxu0
    %v6639 = vadd.f32 %v6620, %v6638
    %6640 = vdwg.mxu0
    %6641 = vmatpush.bf16.msra.mxu0 0
    %6642 = vmatpush.bf16.msra.mxu0 0
    %6643 = vmatpush.bf16.msra.mxu0 0
    %6644 = vmatpush.bf16.msra.mxu0 0
    %6645 = vmatpush.bf16.msra.mxu0 0
    %6646 = vmatpush.bf16.msra.mxu0 0
    %6647 = vmatpush.bf16.msra.mxu0 %v6428
    %6648 = vmatpush.bf16.msra.mxu0 %v6425
    %6649 = vmatmul.bf16.gmra.mxu0 %v6484
    %v6650 = vpop.f32.mrf.mxu0
    %v6651 = vadd.f32 %v6632, %v6650
    %v6652 = vpop.f32.mrf.mxu0
    %v6653 = vadd.f32 %v6634, %v6652
    %6654 = vmatmul.bf16.gmra.mxu0 %v6487
    %v6655 = vpop.f32.mrf.mxu0
    %v6656 = vadd.f32 %v6637, %v6655
    %v6657 = vpop.f32.mrf.mxu0
    %v6658 = vadd.f32 %v6639, %v6657
    %6659 = vdwg.mxu0
    %v6660 = vadd.f32 %v6079, %v6537
    %v6661 = vadd.f32 %v6080, %v6594
    %v6662 = vadd.f32 %v6081, %v6651
    %v6663 = vadd.f32 %v6079, %v6539
    %v6664 = vadd.f32 %v6080, %v6596
    %v6665 = vadd.f32 %v6081, %v6653
    %v6666 = vadd.f32 %v6079, %v6542
    %v6667 = vadd.f32 %v6080, %v6599
    %v6668 = vadd.f32 %v6081, %v6656
    %v6669 = vadd.f32 %v6079, %v6544
    %v6670 = vadd.f32 %v6080, %v6601
    %v6671 = vadd.f32 %v6081, %v6658
    %v6672 = vld [vmem:[#allocation3] sm:$0xee]
    %v6673 = vld [vmem:[#allocation3 + $0x8] sm:$0xe]
    %v6674 = vld [vmem:[#allocation3 + $0xc] sm:$0xff]
    %v6675 = vld [vmem:[#allocation3 + $0x14] sm:$0xf]
    %v6676 = vld [vmem:[#allocation3 + $0x18] sm:$0x11]
    %v6677 = vld [vmem:[#allocation3 + $0x20] sm:$0x1]
    %v6678 = vld [vmem:[#allocation3 + $0x30] sm:$0xee]
    %v6679 = vld [vmem:[#allocation3 + $0x38] sm:$0xe]
    %v6680 = vld [vmem:[#allocation3 + $0x3c] sm:$0xff]
    %v6681 = vld [vmem:[#allocation3 + $0x44] sm:$0xf]
    %v6682 = vld [vmem:[#allocation3 + $0x48] sm:$0x11]
    %v6683 = vld [vmem:[#allocation3 + $0x50] sm:$0x1]
    %v6696 = vrot.slane %v6672, 5
    %v6697 = vrot.slane %v6696, 4
    %v6698 = vrot.slane %v6674, 5
    %v6699 = vsel %vm482, %v6697, %v6698
    %v6700 = vrot.slane %v6673, 5
    %v6701 = vrot.slane %v6700, 4
    %v6702 = vrot.slane %v6675, 5
    %v6703 = vsel %vm482, %v6701, %v6702
    %v6704 = vrot.slane %v6698, 4
    %v6705 = vrot.slane %v6676, 5
    %v6706 = vsel %vm482, %v6704, %v6705
    %v6707 = vrot.slane %v6702, 4
    %v6708 = vrot.slane %v6677, 5
    %v6709 = vsel %vm482, %v6707, %v6708
    %v6710 = vrot.slane %v6678, 5
    %v6711 = vrot.slane %v6710, 4
    %v6712 = vrot.slane %v6680, 5
    %v6713 = vsel %vm482, %v6711, %v6712
    %v6714 = vrot.slane %v6679, 5
    %v6715 = vrot.slane %v6714, 4
    %v6716 = vrot.slane %v6681, 5
    %v6717 = vsel %vm482, %v6715, %v6716
    %v6718 = vrot.slane %v6712, 4
    %v6719 = vrot.slane %v6682, 5
    %v6720 = vsel %vm482, %v6718, %v6719
    %v6721 = vrot.slane %v6716, 4
    %v6722 = vrot.slane %v6683, 5
    %v6723 = vsel %vm482, %v6721, %v6722
    %s6724 = scalar_lea.vmem [#allocation8], 432
    %v6725 = vld [vmem:[%s6724] sm:$0xff]
    %v6726 = vld [vmem:[%s6724 + $0x8] sm:$0xf]
    %v6727 = vld [vmem:[%s6724 + $0xc] sm:$0xff]
    %v6728 = vld [vmem:[%s6724 + $0x14] sm:$0xf]
    %v6729 = vld [vmem:[%s6724 + $0x18] sm:$0xff]
    %v6730 = vld [vmem:[%s6724 + $0x20] sm:$0xf]
    %v6731 = vld [vmem:[%s6724 + $0x24] sm:$0xff]
    %v6732 = vld [vmem:[%s6724 + $0x2c] sm:$0xf]
    %v6733 = vld [vmem:[%s6724 + $0x30] sm:$0xff]
    %v6734 = vld [vmem:[%s6724 + $0x38] sm:$0xf]
    %v6735 = vld [vmem:[%s6724 + $0x3c] sm:$0xff]
    %v6736 = vld [vmem:[%s6724 + $0x44] sm:$0xf]
    %v6737 = vld [vmem:[%s6724 + $0x48] sm:$0xff]
    %v6738 = vld [vmem:[%s6724 + $0x50] sm:$0xf]
    %v6739 = vld [vmem:[%s6724 + $0x54] sm:$0xff]
    %v6740 = vld [vmem:[%s6724 + $0x5c] sm:$0xf]
    %v6741 = vld [vmem:[%s6724 + $0x60] sm:$0xff]
    %v6742 = vld [vmem:[%s6724 + $0x68] sm:$0xf]
    %v6743 = vld [vmem:[%s6724 + $0x6c] sm:$0xff]
    %v6744 = vld [vmem:[%s6724 + $0x74] sm:$0xf]
    %v6745 = vld [vmem:[%s6724 + $0x78] sm:$0xff]
    %v6746 = vld [vmem:[%s6724 + $0x80] sm:$0xf]
    %v6747 = vld [vmem:[%s6724 + $0x84] sm:$0xff]
    %v6748 = vld [vmem:[%s6724 + $0x8c] sm:$0xf]
    %v6749 = vld [vmem:[%s6724 + $0x90] sm:$0xff]
    %v6750 = vld [vmem:[%s6724 + $0x98] sm:$0xf]
    %v6751 = vld [vmem:[%s6724 + $0x9c] sm:$0xff]
    %v6752 = vld [vmem:[%s6724 + $0xa4] sm:$0xf]
    %v6753 = vld [vmem:[%s6724 + $0xa8] sm:$0xff]
    %v6754 = vld [vmem:[%s6724 + $0xb0] sm:$0xf]
    %v6755 = vld [vmem:[%s6724 + $0xb4] sm:$0xff]
    %v6756 = vld [vmem:[%s6724 + $0xbc] sm:$0xf]
    %v6757 = vld [vmem:[%s6724 + $0xc0] sm:$0xff]
    %v6758 = vld [vmem:[%s6724 + $0xc8] sm:$0xf]
    %v6759 = vld [vmem:[%s6724 + $0xcc] sm:$0xff]
    %v6760 = vld [vmem:[%s6724 + $0xd4] sm:$0xf]
    %v6761 = vld [vmem:[%s6724 + $0xd8] sm:$0xff]
    %v6762 = vld [vmem:[%s6724 + $0xe0] sm:$0xf]
    %v6763 = vld [vmem:[%s6724 + $0xe4] sm:$0xff]
    %v6764 = vld [vmem:[%s6724 + $0xec] sm:$0xf]
    %v6765 = vld [vmem:[%s6724 + $0xf0] sm:$0xff]
    %v6766 = vld [vmem:[%s6724 + $0xf8] sm:$0xf]
    %v6767 = vld [vmem:[%s6724 + $0xfc] sm:$0xff]
    %v6768 = vld [vmem:[%s6724 + $0x104] sm:$0xf]
    %v6769 = vld [vmem:[%s6724 + $0x108] sm:$0xff]
    %v6770 = vld [vmem:[%s6724 + $0x110] sm:$0xf]
    %v6771 = vld [vmem:[%s6724 + $0x114] sm:$0xff]
    %v6772 = vld [vmem:[%s6724 + $0x11c] sm:$0xf]
    %v6773 = vld [vmem:[%s6724 + $0x120] sm:$0xff]
    %v6774 = vld [vmem:[%s6724 + $0x128] sm:$0xf]
    %v6775 = vld [vmem:[%s6724 + $0x12c] sm:$0xff]
    %v6776 = vld [vmem:[%s6724 + $0x134] sm:$0xf]
    %v6777 = vld [vmem:[%s6724 + $0x138] sm:$0xff]
    %v6778 = vld [vmem:[%s6724 + $0x140] sm:$0xf]
    %v6779 = vld [vmem:[%s6724 + $0x144] sm:$0xff]
    %v6780 = vld [vmem:[%s6724 + $0x14c] sm:$0xf]
    %v6781 = vld [vmem:[%s6724 + $0x150] sm:$0xff]
    %v6782 = vld [vmem:[%s6724 + $0x158] sm:$0xf]
    %v6783 = vld [vmem:[%s6724 + $0x15c] sm:$0xff]
    %v6784 = vld [vmem:[%s6724 + $0x164] sm:$0xf]
    %v6785 = vld [vmem:[%s6724 + $0x168] sm:$0xff]
    %v6786 = vld [vmem:[%s6724 + $0x170] sm:$0xf]
    %v6787 = vld [vmem:[%s6724 + $0x174] sm:$0xff]
    %v6788 = vld [vmem:[%s6724 + $0x17c] sm:$0xf]
    %v6789 = vld [vmem:[%s6724 + $0x180] sm:$0xff]
    %v6790 = vld [vmem:[%s6724 + $0x188] sm:$0xf]
    %v6791 = vld [vmem:[%s6724 + $0x18c] sm:$0xff]
    %v6792 = vld [vmem:[%s6724 + $0x194] sm:$0xf]
    %v6793 = vld [vmem:[%s6724 + $0x198] sm:$0xff]
    %v6794 = vld [vmem:[%s6724 + $0x1a0] sm:$0xf]
    %v6795 = vld [vmem:[%s6724 + $0x1a4] sm:$0xff]
    %v6796 = vld [vmem:[%s6724 + $0x1ac] sm:$0xf]
    %v6797 = vunpack.c.l.b16 %v6699
    %v6798 = vunpack.c.h.b16 %v6699
    %v6799 = vunpack.c.l.b16 %v6703
    %v6800 = vunpack.c.l.b16 %v6706
    %v6801 = vunpack.c.h.b16 %v6706
    %v6802 = vunpack.c.l.b16 %v6709
    %v6803 = vunpack.c.l.b16 %v6713
    %v6804 = vunpack.c.h.b16 %v6713
    %v6805 = vunpack.c.l.b16 %v6717
    %v6806 = vunpack.c.l.b16 %v6720
    %v6807 = vunpack.c.h.b16 %v6720
    %v6808 = vunpack.c.l.b16 %v6723
    %v6809 = vpack.c.b16 %v6800, %v6797
    %v6810 = vpack.c.b16 %v6801, %v6798
    %v6811 = vpack.c.b16 %v6802, %v6799
    %v6812 = vpack.c.b16 %v6806, %v6803
    %v6813 = vpack.c.b16 %v6807, %v6804
    %v6814 = vpack.c.b16 %v6808, %v6805
    %v6891 = vunpack.c.l.b16 %v6725
    %v6892 = vunpack.c.h.b16 %v6725
    %v6893 = vunpack.c.l.b16 %v6726
    %v6894 = vunpack.c.l.b16 %v6727
    %v6895 = vunpack.c.h.b16 %v6727
    %v6896 = vunpack.c.l.b16 %v6728
    %v6897 = vunpack.c.l.b16 %v6729
    %v6898 = vunpack.c.h.b16 %v6729
    %v6899 = vunpack.c.l.b16 %v6730
    %v6900 = vunpack.c.l.b16 %v6731
    %v6901 = vunpack.c.h.b16 %v6731
    %v6902 = vunpack.c.l.b16 %v6732
    %v6903 = vunpack.c.l.b16 %v6733
    %v6904 = vunpack.c.h.b16 %v6733
    %v6905 = vunpack.c.l.b16 %v6734
    %v6906 = vunpack.c.l.b16 %v6735
    %v6907 = vunpack.c.h.b16 %v6735
    %v6908 = vunpack.c.l.b16 %v6736
    %v6909 = vunpack.c.l.b16 %v6737
    %v6910 = vunpack.c.h.b16 %v6737
    %v6911 = vunpack.c.l.b16 %v6738
    %v6912 = vunpack.c.l.b16 %v6739
    %v6913 = vunpack.c.h.b16 %v6739
    %v6914 = vunpack.c.l.b16 %v6740
    %v6915 = vunpack.c.l.b16 %v6741
    %v6916 = vunpack.c.h.b16 %v6741
    %v6917 = vunpack.c.l.b16 %v6742
    %v6918 = vunpack.c.l.b16 %v6743
    %v6919 = vunpack.c.h.b16 %v6743
    %v6920 = vunpack.c.l.b16 %v6744
    %v6921 = vunpack.c.l.b16 %v6745
    %v6922 = vunpack.c.h.b16 %v6745
    %v6923 = vunpack.c.l.b16 %v6746
    %v6924 = vunpack.c.l.b16 %v6747
    %v6925 = vunpack.c.h.b16 %v6747
    %v6926 = vunpack.c.l.b16 %v6748
    %v6927 = vunpack.c.l.b16 %v6749
    %v6928 = vunpack.c.h.b16 %v6749
    %v6929 = vunpack.c.l.b16 %v6750
    %v6930 = vunpack.c.l.b16 %v6751
    %v6931 = vunpack.c.h.b16 %v6751
    %v6932 = vunpack.c.l.b16 %v6752
    %v6933 = vunpack.c.l.b16 %v6753
    %v6934 = vunpack.c.h.b16 %v6753
    %v6935 = vunpack.c.l.b16 %v6754
    %v6936 = vunpack.c.l.b16 %v6755
    %v6937 = vunpack.c.h.b16 %v6755
    %v6938 = vunpack.c.l.b16 %v6756
    %v6939 = vunpack.c.l.b16 %v6757
    %v6940 = vunpack.c.h.b16 %v6757
    %v6941 = vunpack.c.l.b16 %v6758
    %v6942 = vunpack.c.l.b16 %v6759
    %v6943 = vunpack.c.h.b16 %v6759
    %v6944 = vunpack.c.l.b16 %v6760
    %v6945 = vunpack.c.l.b16 %v6761
    %v6946 = vunpack.c.h.b16 %v6761
    %v6947 = vunpack.c.l.b16 %v6762
    %v6948 = vunpack.c.l.b16 %v6763
    %v6949 = vunpack.c.h.b16 %v6763
    %v6950 = vunpack.c.l.b16 %v6764
    %v6951 = vunpack.c.l.b16 %v6765
    %v6952 = vunpack.c.h.b16 %v6765
    %v6953 = vunpack.c.l.b16 %v6766
    %v6954 = vunpack.c.l.b16 %v6767
    %v6955 = vunpack.c.h.b16 %v6767
    %v6956 = vunpack.c.l.b16 %v6768
    %v6957 = vunpack.c.l.b16 %v6769
    %v6958 = vunpack.c.h.b16 %v6769
    %v6959 = vunpack.c.l.b16 %v6770
    %v6960 = vunpack.c.l.b16 %v6771
    %v6961 = vunpack.c.h.b16 %v6771
    %v6962 = vunpack.c.l.b16 %v6772
    %v6963 = vunpack.c.l.b16 %v6773
    %v6964 = vunpack.c.h.b16 %v6773
    %v6965 = vunpack.c.l.b16 %v6774
    %v6966 = vunpack.c.l.b16 %v6775
    %v6967 = vunpack.c.h.b16 %v6775
    %v6968 = vunpack.c.l.b16 %v6776
    %v6969 = vunpack.c.l.b16 %v6777
    %v6970 = vunpack.c.h.b16 %v6777
    %v6971 = vunpack.c.l.b16 %v6778
    %v6972 = vunpack.c.l.b16 %v6779
    %v6973 = vunpack.c.h.b16 %v6779
    %v6974 = vunpack.c.l.b16 %v6780
    %v6975 = vunpack.c.l.b16 %v6781
    %v6976 = vunpack.c.h.b16 %v6781
    %v6977 = vunpack.c.l.b16 %v6782
    %v6978 = vunpack.c.l.b16 %v6783
    %v6979 = vunpack.c.h.b16 %v6783
    %v6980 = vunpack.c.l.b16 %v6784
    %v6981 = vunpack.c.l.b16 %v6785
    %v6982 = vunpack.c.h.b16 %v6785
    %v6983 = vunpack.c.l.b16 %v6786
    %v6984 = vunpack.c.l.b16 %v6787
    %v6985 = vunpack.c.h.b16 %v6787
    %v6986 = vunpack.c.l.b16 %v6788
    %v6987 = vunpack.c.l.b16 %v6789
    %v6988 = vunpack.c.h.b16 %v6789
    %v6989 = vunpack.c.l.b16 %v6790
    %v6990 = vunpack.c.l.b16 %v6791
    %v6991 = vunpack.c.h.b16 %v6791
    %v6992 = vunpack.c.l.b16 %v6792
    %v6993 = vunpack.c.l.b16 %v6793
    %v6994 = vunpack.c.h.b16 %v6793
    %v6995 = vunpack.c.l.b16 %v6794
    %v6996 = vunpack.c.l.b16 %v6795
    %v6997 = vunpack.c.h.b16 %v6795
    %v6998 = vunpack.c.l.b16 %v6796
    %v6999 = vpack.c.b16 %v6894, %v6891
    %v7000 = vpack.c.b16 %v6895, %v6892
    %v7001 = vpack.c.b16 %v6896, %v6893
    %v7002 = vpack.c.b16 %v6900, %v6897
    %v7003 = vpack.c.b16 %v6901, %v6898
    %v7004 = vpack.c.b16 %v6902, %v6899
    %v7005 = vpack.c.b16 %v6906, %v6903
    %v7006 = vpack.c.b16 %v6907, %v6904
    %v7007 = vpack.c.b16 %v6908, %v6905
    %v7008 = vpack.c.b16 %v6912, %v6909
    %v7009 = vpack.c.b16 %v6913, %v6910
    %v7010 = vpack.c.b16 %v6914, %v6911
    %v7011 = vpack.c.b16 %v6918, %v6915
    %v7012 = vpack.c.b16 %v6919, %v6916
    %v7013 = vpack.c.b16 %v6920, %v6917
    %v7014 = vpack.c.b16 %v6924, %v6921
    %v7015 = vpack.c.b16 %v6925, %v6922
    %v7016 = vpack.c.b16 %v6926, %v6923
    %v7017 = vpack.c.b16 %v6930, %v6927
    %v7018 = vpack.c.b16 %v6931, %v6928
    %v7019 = vpack.c.b16 %v6932, %v6929
    %v7020 = vpack.c.b16 %v6936, %v6933
    %v7021 = vpack.c.b16 %v6937, %v6934
    %v7022 = vpack.c.b16 %v6938, %v6935
    %v7023 = vpack.c.b16 %v6942, %v6939
    %v7024 = vpack.c.b16 %v6943, %v6940
    %v7025 = vpack.c.b16 %v6944, %v6941
    %v7026 = vpack.c.b16 %v6948, %v6945
    %v7027 = vpack.c.b16 %v6949, %v6946
    %v7028 = vpack.c.b16 %v6950, %v6947
    %v7029 = vpack.c.b16 %v6954, %v6951
    %v7030 = vpack.c.b16 %v6955, %v6952
    %v7031 = vpack.c.b16 %v6956, %v6953
    %v7032 = vpack.c.b16 %v6960, %v6957
    %v7033 = vpack.c.b16 %v6961, %v6958
    %v7034 = vpack.c.b16 %v6962, %v6959
    %v7035 = vpack.c.b16 %v6966, %v6963
    %v7036 = vpack.c.b16 %v6967, %v6964
    %v7037 = vpack.c.b16 %v6968, %v6965
    %v7038 = vpack.c.b16 %v6972, %v6969
    %v7039 = vpack.c.b16 %v6973, %v6970
    %v7040 = vpack.c.b16 %v6974, %v6971
    %v7041 = vpack.c.b16 %v6978, %v6975
    %v7042 = vpack.c.b16 %v6979, %v6976
    %v7043 = vpack.c.b16 %v6980, %v6977
    %v7044 = vpack.c.b16 %v6984, %v6981
    %v7045 = vpack.c.b16 %v6985, %v6982
    %v7046 = vpack.c.b16 %v6986, %v6983
    %v7047 = vpack.c.b16 %v6990, %v6987
    %v7048 = vpack.c.b16 %v6991, %v6988
    %v7049 = vpack.c.b16 %v6992, %v6989
    %v7050 = vpack.c.b16 %v6996, %v6993
    %v7051 = vpack.c.b16 %v6997, %v6994
    %v7052 = vpack.c.b16 %v6998, %v6995
    %v7108 = vsel %vm1944, %v6811, 0
    %v7111 = vsel %vm1944, %v6814, 0
    %7113 = vmatpush.bf16.msra.mxu0 %v7020
    %7114 = vmatpush.bf16.msra.mxu0 %v7017
    %7115 = vmatpush.bf16.msra.mxu0 %v7014
    %7116 = vmatpush.bf16.msra.mxu0 %v7011
    %7117 = vmatpush.bf16.msra.mxu0 %v7008
    %7118 = vmatpush.bf16.msra.mxu0 %v7005
    %7119 = vmatpush.bf16.msra.mxu0 %v7002
    %7120 = vmatpush.bf16.msra.mxu0 %v6999
    %7121 = vmatmul.bf16.gmra.mxu0 %v6809
    %v7122 = vpop.f32.mrf.mxu0
    %v7123 = vadd.f32 0.0, %v7122
    %v7124 = vpop.f32.mrf.mxu0
    %v7125 = vadd.f32 0.0, %v7124
    %7126 = vmatmul.bf16.gmra.mxu0 %v6812
    %v7127 = vpop.f32.mrf.mxu0
    %v7128 = vadd.f32 0.0, %v7127
    %v7129 = vpop.f32.mrf.mxu0
    %v7130 = vadd.f32 0.0, %v7129
    %7131 = vdwg.mxu0
    %7132 = vmatpush.bf16.msra.mxu0 %v7044
    %7133 = vmatpush.bf16.msra.mxu0 %v7041
    %7134 = vmatpush.bf16.msra.mxu0 %v7038
    %7135 = vmatpush.bf16.msra.mxu0 %v7035
    %7136 = vmatpush.bf16.msra.mxu0 %v7032
    %7137 = vmatpush.bf16.msra.mxu0 %v7029
    %7138 = vmatpush.bf16.msra.mxu0 %v7026
    %7139 = vmatpush.bf16.msra.mxu0 %v7023
    %7140 = vmatmul.bf16.gmra.mxu0 %v6810
    %v7141 = vpop.f32.mrf.mxu0
    %v7142 = vadd.f32 %v7123, %v7141
    %v7143 = vpop.f32.mrf.mxu0
    %v7144 = vadd.f32 %v7125, %v7143
    %7145 = vmatmul.bf16.gmra.mxu0 %v6813
    %v7146 = vpop.f32.mrf.mxu0
    %v7147 = vadd.f32 %v7128, %v7146
    %v7148 = vpop.f32.mrf.mxu0
    %v7149 = vadd.f32 %v7130, %v7148
    %7150 = vdwg.mxu0
    %7151 = vmatpush.bf16.msra.mxu0 0
    %7152 = vmatpush.bf16.msra.mxu0 0
    %7153 = vmatpush.bf16.msra.mxu0 0
    %7154 = vmatpush.bf16.msra.mxu0 0
    %7155 = vmatpush.bf16.msra.mxu0 0
    %7156 = vmatpush.bf16.msra.mxu0 0
    %7157 = vmatpush.bf16.msra.mxu0 %v7050
    %7158 = vmatpush.bf16.msra.mxu0 %v7047
    %7159 = vmatmul.bf16.gmra.mxu0 %v7108
    %v7160 = vpop.f32.mrf.mxu0
    %v7161 = vadd.f32 %v7142, %v7160
    %v7162 = vpop.f32.mrf.mxu0
    %v7163 = vadd.f32 %v7144, %v7162
    %7164 = vmatmul.bf16.gmra.mxu0 %v7111
    %v7165 = vpop.f32.mrf.mxu0
    %v7166 = vadd.f32 %v7147, %v7165
    %v7167 = vpop.f32.mrf.mxu0
    %v7168 = vadd.f32 %v7149, %v7167
    %7169 = vdwg.mxu0
    %7170 = vmatpush.bf16.msra.mxu0 %v7021
    %7171 = vmatpush.bf16.msra.mxu0 %v7018
    %7172 = vmatpush.bf16.msra.mxu0 %v7015
    %7173 = vmatpush.bf16.msra.mxu0 %v7012
    %7174 = vmatpush.bf16.msra.mxu0 %v7009
    %7175 = vmatpush.bf16.msra.mxu0 %v7006
    %7176 = vmatpush.bf16.msra.mxu0 %v7003
    %7177 = vmatpush.bf16.msra.mxu0 %v7000
    %7178 = vmatmul.bf16.gmra.mxu0 %v6809
    %v7179 = vpop.f32.mrf.mxu0
    %v7180 = vadd.f32 0.0, %v7179
    %v7181 = vpop.f32.mrf.mxu0
    %v7182 = vadd.f32 0.0, %v7181
    %7183 = vmatmul.bf16.gmra.mxu0 %v6812
    %v7184 = vpop.f32.mrf.mxu0
    %v7185 = vadd.f32 0.0, %v7184
    %v7186 = vpop.f32.mrf.mxu0
    %v7187 = vadd.f32 0.0, %v7186
    %7188 = vdwg.mxu0
    %7189 = vmatpush.bf16.msra.mxu0 %v7045
    %7190 = vmatpush.bf16.msra.mxu0 %v7042
    %7191 = vmatpush.bf16.msra.mxu0 %v7039
    %7192 = vmatpush.bf16.msra.mxu0 %v7036
    %7193 = vmatpush.bf16.msra.mxu0 %v7033
    %7194 = vmatpush.bf16.msra.mxu0 %v7030
    %7195 = vmatpush.bf16.msra.mxu0 %v7027
    %7196 = vmatpush.bf16.msra.mxu0 %v7024
    %7197 = vmatmul.bf16.gmra.mxu0 %v6810
    %v7198 = vpop.f32.mrf.mxu0
    %v7199 = vadd.f32 %v7180, %v7198
    %v7200 = vpop.f32.mrf.mxu0
    %v7201 = vadd.f32 %v7182, %v7200
    %7202 = vmatmul.bf16.gmra.mxu0 %v6813
    %v7203 = vpop.f32.mrf.mxu0
    %v7204 = vadd.f32 %v7185, %v7203
    %v7205 = vpop.f32.mrf.mxu0
    %v7206 = vadd.f32 %v7187, %v7205
    %7207 = vdwg.mxu0
    %7208 = vmatpush.bf16.msra.mxu0 0
    %7209 = vmatpush.bf16.msra.mxu0 0
    %7210 = vmatpush.bf16.msra.mxu0 0
    %7211 = vmatpush.bf16.msra.mxu0 0
    %7212 = vmatpush.bf16.msra.mxu0 0
    %7213 = vmatpush.bf16.msra.mxu0 0
    %7214 = vmatpush.bf16.msra.mxu0 %v7051
    %7215 = vmatpush.bf16.msra.mxu0 %v7048
    %7216 = vmatmul.bf16.gmra.mxu0 %v7108
    %v7217 = vpop.f32.mrf.mxu0
    %v7218 = vadd.f32 %v7199, %v7217
    %v7219 = vpop.f32.mrf.mxu0
    %v7220 = vadd.f32 %v7201, %v7219
    %7221 = vmatmul.bf16.gmra.mxu0 %v7111
    %v7222 = vpop.f32.mrf.mxu0
    %v7223 = vadd.f32 %v7204, %v7222
    %v7224 = vpop.f32.mrf.mxu0
    %v7225 = vadd.f32 %v7206, %v7224
    %7226 = vdwg.mxu0
    %7227 = vmatpush.bf16.msra.mxu0 %v7022
    %7228 = vmatpush.bf16.msra.mxu0 %v7019
    %7229 = vmatpush.bf16.msra.mxu0 %v7016
    %7230 = vmatpush.bf16.msra.mxu0 %v7013
    %7231 = vmatpush.bf16.msra.mxu0 %v7010
    %7232 = vmatpush.bf16.msra.mxu0 %v7007
    %7233 = vmatpush.bf16.msra.mxu0 %v7004
    %7234 = vmatpush.bf16.msra.mxu0 %v7001
    %7235 = vmatmul.bf16.gmra.mxu0 %v6809
    %v7236 = vpop.f32.mrf.mxu0
    %v7237 = vadd.f32 0.0, %v7236
    %v7238 = vpop.f32.mrf.mxu0
    %v7239 = vadd.f32 0.0, %v7238
    %7240 = vmatmul.bf16.gmra.mxu0 %v6812
    %v7241 = vpop.f32.mrf.mxu0
    %v7242 = vadd.f32 0.0, %v7241
    %v7243 = vpop.f32.mrf.mxu0
    %v7244 = vadd.f32 0.0, %v7243
    %7245 = vdwg.mxu0
    %7246 = vmatpush.bf16.msra.mxu0 %v7046
    %7247 = vmatpush.bf16.msra.mxu0 %v7043
    %7248 = vmatpush.bf16.msra.mxu0 %v7040
    %7249 = vmatpush.bf16.msra.mxu0 %v7037
    %7250 = vmatpush.bf16.msra.mxu0 %v7034
    %7251 = vmatpush.bf16.msra.mxu0 %v7031
    %7252 = vmatpush.bf16.msra.mxu0 %v7028
    %7253 = vmatpush.bf16.msra.mxu0 %v7025
    %7254 = vmatmul.bf16.gmra.mxu0 %v6810
    %v7255 = vpop.f32.mrf.mxu0
    %v7256 = vadd.f32 %v7237, %v7255
    %v7257 = vpop.f32.mrf.mxu0
    %v7258 = vadd.f32 %v7239, %v7257
    %7259 = vmatmul.bf16.gmra.mxu0 %v6813
    %v7260 = vpop.f32.mrf.mxu0
    %v7261 = vadd.f32 %v7242, %v7260
    %v7262 = vpop.f32.mrf.mxu0
    %v7263 = vadd.f32 %v7244, %v7262
    %7264 = vdwg.mxu0
    %7265 = vmatpush.bf16.msra.mxu0 0
    %7266 = vmatpush.bf16.msra.mxu0 0
    %7267 = vmatpush.bf16.msra.mxu0 0
    %7268 = vmatpush.bf16.msra.mxu0 0
    %7269 = vmatpush.bf16.msra.mxu0 0
    %7270 = vmatpush.bf16.msra.mxu0 0
    %7271 = vmatpush.bf16.msra.mxu0 %v7052
    %7272 = vmatpush.bf16.msra.mxu0 %v7049
    %7273 = vmatmul.bf16.gmra.mxu0 %v7108
    %v7274 = vpop.f32.mrf.mxu0
    %v7275 = vadd.f32 %v7256, %v7274
    %v7276 = vpop.f32.mrf.mxu0
    %v7277 = vadd.f32 %v7258, %v7276
    %7278 = vmatmul.bf16.gmra.mxu0 %v7111
    %v7279 = vpop.f32.mrf.mxu0
    %v7280 = vadd.f32 %v7261, %v7279
    %v7281 = vpop.f32.mrf.mxu0
    %v7282 = vadd.f32 %v7263, %v7281
    %7283 = vdwg.mxu0
    %v7284 = vadd.f32 %v6660, %v7161
    %v7285 = vadd.f32 %v6661, %v7218
    %v7286 = vadd.f32 %v6662, %v7275
    %v7287 = vadd.f32 %v6663, %v7163
    %v7288 = vadd.f32 %v6664, %v7220
    %v7289 = vadd.f32 %v6665, %v7277
    %v7290 = vadd.f32 %v6666, %v7166
    %v7291 = vadd.f32 %v6667, %v7223
    %v7292 = vadd.f32 %v6668, %v7280
    %v7293 = vadd.f32 %v6669, %v7168
    %v7294 = vadd.f32 %v6670, %v7225
    %v7295 = vadd.f32 %v6671, %v7282
    %v7296 = vld [vmem:[#allocation3] sm:$0xcc]
    %v7297 = vld [vmem:[#allocation3 + $0x8] sm:$0xc]
    %v7298 = vld [vmem:[#allocation3 + $0x18] sm:$0x33]
    %v7299 = vld [vmem:[#allocation3 + $0x20] sm:$0x3]
    %v7300 = vld [vmem:[#allocation3 + $0x30] sm:$0xcc]
    %v7301 = vld [vmem:[#allocation3 + $0x38] sm:$0xc]
    %v7302 = vld [vmem:[#allocation3 + $0x48] sm:$0x33]
    %v7303 = vld [vmem:[#allocation3 + $0x50] sm:$0x3]
    %v7312 = vrot.slane %v7296, 6
    %v7313 = vrot.slane %v7312, 4
    %v7314 = vrot.slane %v6674, 6
    %v7315 = vsel %vm840, %v7313, %v7314
    %v7316 = vrot.slane %v7297, 6
    %v7317 = vrot.slane %v7316, 4
    %v7318 = vrot.slane %v6675, 6
    %v7319 = vsel %vm840, %v7317, %v7318
    %v7320 = vrot.slane %v7314, 4
    %v7321 = vrot.slane %v7298, 6
    %v7322 = vsel %vm840, %v7320, %v7321
    %v7323 = vrot.slane %v7318, 4
    %v7324 = vrot.slane %v7299, 6
    %v7325 = vsel %vm840, %v7323, %v7324
    %v7326 = vrot.slane %v7300, 6
    %v7327 = vrot.slane %v7326, 4
    %v7328 = vrot.slane %v6680, 6
    %v7329 = vsel %vm840, %v7327, %v7328
    %v7330 = vrot.slane %v7301, 6
    %v7331 = vrot.slane %v7330, 4
    %v7332 = vrot.slane %v6681, 6
    %v7333 = vsel %vm840, %v7331, %v7332
    %v7334 = vrot.slane %v7328, 4
    %v7335 = vrot.slane %v7302, 6
    %v7336 = vsel %vm840, %v7334, %v7335
    %v7337 = vrot.slane %v7332, 4
    %v7338 = vrot.slane %v7303, 6
    %v7339 = vsel %vm840, %v7337, %v7338
    %s7340 = scalar_lea.vmem [#allocation8], 864
    %v7341 = vld [vmem:[%s7340] sm:$0xff]
    %v7342 = vld [vmem:[%s7340 + $0x8] sm:$0xf]
    %v7343 = vld [vmem:[%s7340 + $0xc] sm:$0xff]
    %v7344 = vld [vmem:[%s7340 + $0x14] sm:$0xf]
    %v7345 = vld [vmem:[%s7340 + $0x18] sm:$0xff]
    %v7346 = vld [vmem:[%s7340 + $0x20] sm:$0xf]
    %v7347 = vld [vmem:[%s7340 + $0x24] sm:$0xff]
    %v7348 = vld [vmem:[%s7340 + $0x2c] sm:$0xf]
    %v7349 = vld [vmem:[%s7340 + $0x30] sm:$0xff]
    %v7350 = vld [vmem:[%s7340 + $0x38] sm:$0xf]
    %v7351 = vld [vmem:[%s7340 + $0x3c] sm:$0xff]
    %v7352 = vld [vmem:[%s7340 + $0x44] sm:$0xf]
    %v7353 = vld [vmem:[%s7340 + $0x48] sm:$0xff]
    %v7354 = vld [vmem:[%s7340 + $0x50] sm:$0xf]
    %v7355 = vld [vmem:[%s7340 + $0x54] sm:$0xff]
    %v7356 = vld [vmem:[%s7340 + $0x5c] sm:$0xf]
    %v7357 = vld [vmem:[%s7340 + $0x60] sm:$0xff]
    %v7358 = vld [vmem:[%s7340 + $0x68] sm:$0xf]
    %v7359 = vld [vmem:[%s7340 + $0x6c] sm:$0xff]
    %v7360 = vld [vmem:[%s7340 + $0x74] sm:$0xf]
    %v7361 = vld [vmem:[%s7340 + $0x78] sm:$0xff]
    %v7362 = vld [vmem:[%s7340 + $0x80] sm:$0xf]
    %v7363 = vld [vmem:[%s7340 + $0x84] sm:$0xff]
    %v7364 = vld [vmem:[%s7340 + $0x8c] sm:$0xf]
    %v7365 = vld [vmem:[%s7340 + $0x90] sm:$0xff]
    %v7366 = vld [vmem:[%s7340 + $0x98] sm:$0xf]
    %v7367 = vld [vmem:[%s7340 + $0x9c] sm:$0xff]
    %v7368 = vld [vmem:[%s7340 + $0xa4] sm:$0xf]
    %v7369 = vld [vmem:[%s7340 + $0xa8] sm:$0xff]
    %v7370 = vld [vmem:[%s7340 + $0xb0] sm:$0xf]
    %v7371 = vld [vmem:[%s7340 + $0xb4] sm:$0xff]
    %v7372 = vld [vmem:[%s7340 + $0xbc] sm:$0xf]
    %v7373 = vld [vmem:[%s7340 + $0xc0] sm:$0xff]
    %v7374 = vld [vmem:[%s7340 + $0xc8] sm:$0xf]
    %v7375 = vld [vmem:[%s7340 + $0xcc] sm:$0xff]
    %v7376 = vld [vmem:[%s7340 + $0xd4] sm:$0xf]
    %v7377 = vld [vmem:[%s7340 + $0xd8] sm:$0xff]
    %v7378 = vld [vmem:[%s7340 + $0xe0] sm:$0xf]
    %v7379 = vld [vmem:[%s7340 + $0xe4] sm:$0xff]
    %v7380 = vld [vmem:[%s7340 + $0xec] sm:$0xf]
    %v7381 = vld [vmem:[%s7340 + $0xf0] sm:$0xff]
    %v7382 = vld [vmem:[%s7340 + $0xf8] sm:$0xf]
    %v7383 = vld [vmem:[%s7340 + $0xfc] sm:$0xff]
    %v7384 = vld [vmem:[%s7340 + $0x104] sm:$0xf]
    %v7385 = vld [vmem:[%s7340 + $0x108] sm:$0xff]
    %v7386 = vld [vmem:[%s7340 + $0x110] sm:$0xf]
    %v7387 = vld [vmem:[%s7340 + $0x114] sm:$0xff]
    %v7388 = vld [vmem:[%s7340 + $0x11c] sm:$0xf]
    %v7389 = vld [vmem:[%s7340 + $0x120] sm:$0xff]
    %v7390 = vld [vmem:[%s7340 + $0x128] sm:$0xf]
    %v7391 = vld [vmem:[%s7340 + $0x12c] sm:$0xff]
    %v7392 = vld [vmem:[%s7340 + $0x134] sm:$0xf]
    %v7393 = vld [vmem:[%s7340 + $0x138] sm:$0xff]
    %v7394 = vld [vmem:[%s7340 + $0x140] sm:$0xf]
    %v7395 = vld [vmem:[%s7340 + $0x144] sm:$0xff]
    %v7396 = vld [vmem:[%s7340 + $0x14c] sm:$0xf]
    %v7397 = vld [vmem:[%s7340 + $0x150] sm:$0xff]
    %v7398 = vld [vmem:[%s7340 + $0x158] sm:$0xf]
    %v7399 = vld [vmem:[%s7340 + $0x15c] sm:$0xff]
    %v7400 = vld [vmem:[%s7340 + $0x164] sm:$0xf]
    %v7401 = vld [vmem:[%s7340 + $0x168] sm:$0xff]
    %v7402 = vld [vmem:[%s7340 + $0x170] sm:$0xf]
    %v7403 = vld [vmem:[%s7340 + $0x174] sm:$0xff]
    %v7404 = vld [vmem:[%s7340 + $0x17c] sm:$0xf]
    %v7405 = vld [vmem:[%s7340 + $0x180] sm:$0xff]
    %v7406 = vld [vmem:[%s7340 + $0x188] sm:$0xf]
    %v7407 = vld [vmem:[%s7340 + $0x18c] sm:$0xff]
    %v7408 = vld [vmem:[%s7340 + $0x194] sm:$0xf]
    %v7409 = vld [vmem:[%s7340 + $0x198] sm:$0xff]
    %v7410 = vld [vmem:[%s7340 + $0x1a0] sm:$0xf]
    %v7411 = vld [vmem:[%s7340 + $0x1a4] sm:$0xff]
    %v7412 = vld [vmem:[%s7340 + $0x1ac] sm:$0xf]
    %v7413 = vunpack.c.l.b16 %v7315
    %v7414 = vunpack.c.h.b16 %v7315
    %v7415 = vunpack.c.l.b16 %v7319
    %v7416 = vunpack.c.l.b16 %v7322
    %v7417 = vunpack.c.h.b16 %v7322
    %v7418 = vunpack.c.l.b16 %v7325
    %v7419 = vunpack.c.l.b16 %v7329
    %v7420 = vunpack.c.h.b16 %v7329
    %v7421 = vunpack.c.l.b16 %v7333
    %v7422 = vunpack.c.l.b16 %v7336
    %v7423 = vunpack.c.h.b16 %v7336
    %v7424 = vunpack.c.l.b16 %v7339
    %v7425 = vpack.c.b16 %v7416, %v7413
    %v7426 = vpack.c.b16 %v7417, %v7414
    %v7427 = vpack.c.b16 %v7418, %v7415
    %v7428 = vpack.c.b16 %v7422, %v7419
    %v7429 = vpack.c.b16 %v7423, %v7420
    %v7430 = vpack.c.b16 %v7424, %v7421
    %v7507 = vunpack.c.l.b16 %v7341
    %v7508 = vunpack.c.h.b16 %v7341
    %v7509 = vunpack.c.l.b16 %v7342
    %v7510 = vunpack.c.l.b16 %v7343
    %v7511 = vunpack.c.h.b16 %v7343
    %v7512 = vunpack.c.l.b16 %v7344
    %v7513 = vunpack.c.l.b16 %v7345
    %v7514 = vunpack.c.h.b16 %v7345
    %v7515 = vunpack.c.l.b16 %v7346
    %v7516 = vunpack.c.l.b16 %v7347
    %v7517 = vunpack.c.h.b16 %v7347
    %v7518 = vunpack.c.l.b16 %v7348
    %v7519 = vunpack.c.l.b16 %v7349
    %v7520 = vunpack.c.h.b16 %v7349
    %v7521 = vunpack.c.l.b16 %v7350
    %v7522 = vunpack.c.l.b16 %v7351
    %v7523 = vunpack.c.h.b16 %v7351
    %v7524 = vunpack.c.l.b16 %v7352
    %v7525 = vunpack.c.l.b16 %v7353
    %v7526 = vunpack.c.h.b16 %v7353
    %v7527 = vunpack.c.l.b16 %v7354
    %v7528 = vunpack.c.l.b16 %v7355
    %v7529 = vunpack.c.h.b16 %v7355
    %v7530 = vunpack.c.l.b16 %v7356
    %v7531 = vunpack.c.l.b16 %v7357
    %v7532 = vunpack.c.h.b16 %v7357
    %v7533 = vunpack.c.l.b16 %v7358
    %v7534 = vunpack.c.l.b16 %v7359
    %v7535 = vunpack.c.h.b16 %v7359
    %v7536 = vunpack.c.l.b16 %v7360
    %v7537 = vunpack.c.l.b16 %v7361
    %v7538 = vunpack.c.h.b16 %v7361
    %v7539 = vunpack.c.l.b16 %v7362
    %v7540 = vunpack.c.l.b16 %v7363
    %v7541 = vunpack.c.h.b16 %v7363
    %v7542 = vunpack.c.l.b16 %v7364
    %v7543 = vunpack.c.l.b16 %v7365
    %v7544 = vunpack.c.h.b16 %v7365
    %v7545 = vunpack.c.l.b16 %v7366
    %v7546 = vunpack.c.l.b16 %v7367
    %v7547 = vunpack.c.h.b16 %v7367
    %v7548 = vunpack.c.l.b16 %v7368
    %v7549 = vunpack.c.l.b16 %v7369
    %v7550 = vunpack.c.h.b16 %v7369
    %v7551 = vunpack.c.l.b16 %v7370
    %v7552 = vunpack.c.l.b16 %v7371
    %v7553 = vunpack.c.h.b16 %v7371
    %v7554 = vunpack.c.l.b16 %v7372
    %v7555 = vunpack.c.l.b16 %v7373
    %v7556 = vunpack.c.h.b16 %v7373
    %v7557 = vunpack.c.l.b16 %v7374
    %v7558 = vunpack.c.l.b16 %v7375
    %v7559 = vunpack.c.h.b16 %v7375
    %v7560 = vunpack.c.l.b16 %v7376
    %v7561 = vunpack.c.l.b16 %v7377
    %v7562 = vunpack.c.h.b16 %v7377
    %v7563 = vunpack.c.l.b16 %v7378
    %v7564 = vunpack.c.l.b16 %v7379
    %v7565 = vunpack.c.h.b16 %v7379
    %v7566 = vunpack.c.l.b16 %v7380
    %v7567 = vunpack.c.l.b16 %v7381
    %v7568 = vunpack.c.h.b16 %v7381
    %v7569 = vunpack.c.l.b16 %v7382
    %v7570 = vunpack.c.l.b16 %v7383
    %v7571 = vunpack.c.h.b16 %v7383
    %v7572 = vunpack.c.l.b16 %v7384
    %v7573 = vunpack.c.l.b16 %v7385
    %v7574 = vunpack.c.h.b16 %v7385
    %v7575 = vunpack.c.l.b16 %v7386
    %v7576 = vunpack.c.l.b16 %v7387
    %v7577 = vunpack.c.h.b16 %v7387
    %v7578 = vunpack.c.l.b16 %v7388
    %v7579 = vunpack.c.l.b16 %v7389
    %v7580 = vunpack.c.h.b16 %v7389
    %v7581 = vunpack.c.l.b16 %v7390
    %v7582 = vunpack.c.l.b16 %v7391
    %v7583 = vunpack.c.h.b16 %v7391
    %v7584 = vunpack.c.l.b16 %v7392
    %v7585 = vunpack.c.l.b16 %v7393
    %v7586 = vunpack.c.h.b16 %v7393
    %v7587 = vunpack.c.l.b16 %v7394
    %v7588 = vunpack.c.l.b16 %v7395
    %v7589 = vunpack.c.h.b16 %v7395
    %v7590 = vunpack.c.l.b16 %v7396
    %v7591 = vunpack.c.l.b16 %v7397
    %v7592 = vunpack.c.h.b16 %v7397
    %v7593 = vunpack.c.l.b16 %v7398
    %v7594 = vunpack.c.l.b16 %v7399
    %v7595 = vunpack.c.h.b16 %v7399
    %v7596 = vunpack.c.l.b16 %v7400
    %v7597 = vunpack.c.l.b16 %v7401
    %v7598 = vunpack.c.h.b16 %v7401
    %v7599 = vunpack.c.l.b16 %v7402
    %v7600 = vunpack.c.l.b16 %v7403
    %v7601 = vunpack.c.h.b16 %v7403
    %v7602 = vunpack.c.l.b16 %v7404
    %v7603 = vunpack.c.l.b16 %v7405
    %v7604 = vunpack.c.h.b16 %v7405
    %v7605 = vunpack.c.l.b16 %v7406
    %v7606 = vunpack.c.l.b16 %v7407
    %v7607 = vunpack.c.h.b16 %v7407
    %v7608 = vunpack.c.l.b16 %v7408
    %v7609 = vunpack.c.l.b16 %v7409
    %v7610 = vunpack.c.h.b16 %v7409
    %v7611 = vunpack.c.l.b16 %v7410
    %v7612 = vunpack.c.l.b16 %v7411
    %v7613 = vunpack.c.h.b16 %v7411
    %v7614 = vunpack.c.l.b16 %v7412
    %v7615 = vpack.c.b16 %v7510, %v7507
    %v7616 = vpack.c.b16 %v7511, %v7508
    %v7617 = vpack.c.b16 %v7512, %v7509
    %v7618 = vpack.c.b16 %v7516, %v7513
    %v7619 = vpack.c.b16 %v7517, %v7514
    %v7620 = vpack.c.b16 %v7518, %v7515
    %v7621 = vpack.c.b16 %v7522, %v7519
    %v7622 = vpack.c.b16 %v7523, %v7520
    %v7623 = vpack.c.b16 %v7524, %v7521
    %v7624 = vpack.c.b16 %v7528, %v7525
    %v7625 = vpack.c.b16 %v7529, %v7526
    %v7626 = vpack.c.b16 %v7530, %v7527
    %v7627 = vpack.c.b16 %v7534, %v7531
    %v7628 = vpack.c.b16 %v7535, %v7532
    %v7629 = vpack.c.b16 %v7536, %v7533
    %v7630 = vpack.c.b16 %v7540, %v7537
    %v7631 = vpack.c.b16 %v7541, %v7538
    %v7632 = vpack.c.b16 %v7542, %v7539
    %v7633 = vpack.c.b16 %v7546, %v7543
    %v7634 = vpack.c.b16 %v7547, %v7544
    %v7635 = vpack.c.b16 %v7548, %v7545
    %v7636 = vpack.c.b16 %v7552, %v7549
    %v7637 = vpack.c.b16 %v7553, %v7550
    %v7638 = vpack.c.b16 %v7554, %v7551
    %v7639 = vpack.c.b16 %v7558, %v7555
    %v7640 = vpack.c.b16 %v7559, %v7556
    %v7641 = vpack.c.b16 %v7560, %v7557
    %v7642 = vpack.c.b16 %v7564, %v7561
    %v7643 = vpack.c.b16 %v7565, %v7562
    %v7644 = vpack.c.b16 %v7566, %v7563
    %v7645 = vpack.c.b16 %v7570, %v7567
    %v7646 = vpack.c.b16 %v7571, %v7568
    %v7647 = vpack.c.b16 %v7572, %v7569
    %v7648 = vpack.c.b16 %v7576, %v7573
    %v7649 = vpack.c.b16 %v7577, %v7574
    %v7650 = vpack.c.b16 %v7578, %v7575
    %v7651 = vpack.c.b16 %v7582, %v7579
    %v7652 = vpack.c.b16 %v7583, %v7580
    %v7653 = vpack.c.b16 %v7584, %v7581
    %v7654 = vpack.c.b16 %v7588, %v7585
    %v7655 = vpack.c.b16 %v7589, %v7586
    %v7656 = vpack.c.b16 %v7590, %v7587
    %v7657 = vpack.c.b16 %v7594, %v7591
    %v7658 = vpack.c.b16 %v7595, %v7592
    %v7659 = vpack.c.b16 %v7596, %v7593
    %v7660 = vpack.c.b16 %v7600, %v7597
    %v7661 = vpack.c.b16 %v7601, %v7598
    %v7662 = vpack.c.b16 %v7602, %v7599
    %v7663 = vpack.c.b16 %v7606, %v7603
    %v7664 = vpack.c.b16 %v7607, %v7604
    %v7665 = vpack.c.b16 %v7608, %v7605
    %v7666 = vpack.c.b16 %v7612, %v7609
    %v7667 = vpack.c.b16 %v7613, %v7610
    %v7668 = vpack.c.b16 %v7614, %v7611
    %v7724 = vsel %vm1944, %v7427, 0
    %v7727 = vsel %vm1944, %v7430, 0
    %7729 = vmatpush.bf16.msra.mxu0 %v7636
    %7730 = vmatpush.bf16.msra.mxu0 %v7633
    %7731 = vmatpush.bf16.msra.mxu0 %v7630
    %7732 = vmatpush.bf16.msra.mxu0 %v7627
    %7733 = vmatpush.bf16.msra.mxu0 %v7624
    %7734 = vmatpush.bf16.msra.mxu0 %v7621
    %7735 = vmatpush.bf16.msra.mxu0 %v7618
    %7736 = vmatpush.bf16.msra.mxu0 %v7615
    %7737 = vmatmul.bf16.gmra.mxu0 %v7425
    %v7738 = vpop.f32.mrf.mxu0
    %v7739 = vadd.f32 0.0, %v7738
    %v7740 = vpop.f32.mrf.mxu0
    %v7741 = vadd.f32 0.0, %v7740
    %7742 = vmatmul.bf16.gmra.mxu0 %v7428
    %v7743 = vpop.f32.mrf.mxu0
    %v7744 = vadd.f32 0.0, %v7743
    %v7745 = vpop.f32.mrf.mxu0
    %v7746 = vadd.f32 0.0, %v7745
    %7747 = vdwg.mxu0
    %7748 = vmatpush.bf16.msra.mxu0 %v7660
    %7749 = vmatpush.bf16.msra.mxu0 %v7657
    %7750 = vmatpush.bf16.msra.mxu0 %v7654
    %7751 = vmatpush.bf16.msra.mxu0 %v7651
    %7752 = vmatpush.bf16.msra.mxu0 %v7648
    %7753 = vmatpush.bf16.msra.mxu0 %v7645
    %7754 = vmatpush.bf16.msra.mxu0 %v7642
    %7755 = vmatpush.bf16.msra.mxu0 %v7639
    %7756 = vmatmul.bf16.gmra.mxu0 %v7426
    %v7757 = vpop.f32.mrf.mxu0
    %v7758 = vadd.f32 %v7739, %v7757
    %v7759 = vpop.f32.mrf.mxu0
    %v7760 = vadd.f32 %v7741, %v7759
    %7761 = vmatmul.bf16.gmra.mxu0 %v7429
    %v7762 = vpop.f32.mrf.mxu0
    %v7763 = vadd.f32 %v7744, %v7762
    %v7764 = vpop.f32.mrf.mxu0
    %v7765 = vadd.f32 %v7746, %v7764
    %7766 = vdwg.mxu0
    %7767 = vmatpush.bf16.msra.mxu0 0
    %7768 = vmatpush.bf16.msra.mxu0 0
    %7769 = vmatpush.bf16.msra.mxu0 0
    %7770 = vmatpush.bf16.msra.mxu0 0
    %7771 = vmatpush.bf16.msra.mxu0 0
    %7772 = vmatpush.bf16.msra.mxu0 0
    %7773 = vmatpush.bf16.msra.mxu0 %v7666
    %7774 = vmatpush.bf16.msra.mxu0 %v7663
    %7775 = vmatmul.bf16.gmra.mxu0 %v7724
    %v7776 = vpop.f32.mrf.mxu0
    %v7777 = vadd.f32 %v7758, %v7776
    %v7778 = vpop.f32.mrf.mxu0
    %v7779 = vadd.f32 %v7760, %v7778
    %7780 = vmatmul.bf16.gmra.mxu0 %v7727
    %v7781 = vpop.f32.mrf.mxu0
    %v7782 = vadd.f32 %v7763, %v7781
    %v7783 = vpop.f32.mrf.mxu0
    %v7784 = vadd.f32 %v7765, %v7783
    %7785 = vdwg.mxu0
    %7786 = vmatpush.bf16.msra.mxu0 %v7637
    %7787 = vmatpush.bf16.msra.mxu0 %v7634
    %7788 = vmatpush.bf16.msra.mxu0 %v7631
    %7789 = vmatpush.bf16.msra.mxu0 %v7628
    %7790 = vmatpush.bf16.msra.mxu0 %v7625
    %7791 = vmatpush.bf16.msra.mxu0 %v7622
    %7792 = vmatpush.bf16.msra.mxu0 %v7619
    %7793 = vmatpush.bf16.msra.mxu0 %v7616
    %7794 = vmatmul.bf16.gmra.mxu0 %v7425
    %v7795 = vpop.f32.mrf.mxu0
    %v7796 = vadd.f32 0.0, %v7795
    %v7797 = vpop.f32.mrf.mxu0
    %v7798 = vadd.f32 0.0, %v7797
    %7799 = vmatmul.bf16.gmra.mxu0 %v7428
    %v7800 = vpop.f32.mrf.mxu0
    %v7801 = vadd.f32 0.0, %v7800
    %v7802 = vpop.f32.mrf.mxu0
    %v7803 = vadd.f32 0.0, %v7802
    %7804 = vdwg.mxu0
    %7805 = vmatpush.bf16.msra.mxu0 %v7661
    %7806 = vmatpush.bf16.msra.mxu0 %v7658
    %7807 = vmatpush.bf16.msra.mxu0 %v7655
    %7808 = vmatpush.bf16.msra.mxu0 %v7652
    %7809 = vmatpush.bf16.msra.mxu0 %v7649
    %7810 = vmatpush.bf16.msra.mxu0 %v7646
    %7811 = vmatpush.bf16.msra.mxu0 %v7643
    %7812 = vmatpush.bf16.msra.mxu0 %v7640
    %7813 = vmatmul.bf16.gmra.mxu0 %v7426
    %v7814 = vpop.f32.mrf.mxu0
    %v7815 = vadd.f32 %v7796, %v7814
    %v7816 = vpop.f32.mrf.mxu0
    %v7817 = vadd.f32 %v7798, %v7816
    %7818 = vmatmul.bf16.gmra.mxu0 %v7429
    %v7819 = vpop.f32.mrf.mxu0
    %v7820 = vadd.f32 %v7801, %v7819
    %v7821 = vpop.f32.mrf.mxu0
    %v7822 = vadd.f32 %v7803, %v7821
    %7823 = vdwg.mxu0
    %7824 = vmatpush.bf16.msra.mxu0 0
    %7825 = vmatpush.bf16.msra.mxu0 0
    %7826 = vmatpush.bf16.msra.mxu0 0
    %7827 = vmatpush.bf16.msra.mxu0 0
    %7828 = vmatpush.bf16.msra.mxu0 0
    %7829 = vmatpush.bf16.msra.mxu0 0
    %7830 = vmatpush.bf16.msra.mxu0 %v7667
    %7831 = vmatpush.bf16.msra.mxu0 %v7664
    %7832 = vmatmul.bf16.gmra.mxu0 %v7724
    %v7833 = vpop.f32.mrf.mxu0
    %v7834 = vadd.f32 %v7815, %v7833
    %v7835 = vpop.f32.mrf.mxu0
    %v7836 = vadd.f32 %v7817, %v7835
    %7837 = vmatmul.bf16.gmra.mxu0 %v7727
    %v7838 = vpop.f32.mrf.mxu0
    %v7839 = vadd.f32 %v7820, %v7838
    %v7840 = vpop.f32.mrf.mxu0
    %v7841 = vadd.f32 %v7822, %v7840
    %7842 = vdwg.mxu0
    %7843 = vmatpush.bf16.msra.mxu0 %v7638
    %7844 = vmatpush.bf16.msra.mxu0 %v7635
    %7845 = vmatpush.bf16.msra.mxu0 %v7632
    %7846 = vmatpush.bf16.msra.mxu0 %v7629
    %7847 = vmatpush.bf16.msra.mxu0 %v7626
    %7848 = vmatpush.bf16.msra.mxu0 %v7623
    %7849 = vmatpush.bf16.msra.mxu0 %v7620
    %7850 = vmatpush.bf16.msra.mxu0 %v7617
    %7851 = vmatmul.bf16.gmra.mxu0 %v7425
    %v7852 = vpop.f32.mrf.mxu0
    %v7853 = vadd.f32 0.0, %v7852
    %v7854 = vpop.f32.mrf.mxu0
    %v7855 = vadd.f32 0.0, %v7854
    %7856 = vmatmul.bf16.gmra.mxu0 %v7428
    %v7857 = vpop.f32.mrf.mxu0
    %v7858 = vadd.f32 0.0, %v7857
    %v7859 = vpop.f32.mrf.mxu0
    %v7860 = vadd.f32 0.0, %v7859
    %7861 = vdwg.mxu0
    %7862 = vmatpush.bf16.msra.mxu0 %v7662
    %7863 = vmatpush.bf16.msra.mxu0 %v7659
    %7864 = vmatpush.bf16.msra.mxu0 %v7656
    %7865 = vmatpush.bf16.msra.mxu0 %v7653
    %7866 = vmatpush.bf16.msra.mxu0 %v7650
    %7867 = vmatpush.bf16.msra.mxu0 %v7647
    %7868 = vmatpush.bf16.msra.mxu0 %v7644
    %7869 = vmatpush.bf16.msra.mxu0 %v7641
    %7870 = vmatmul.bf16.gmra.mxu0 %v7426
    %v7871 = vpop.f32.mrf.mxu0
    %v7872 = vadd.f32 %v7853, %v7871
    %v7873 = vpop.f32.mrf.mxu0
    %v7874 = vadd.f32 %v7855, %v7873
    %7875 = vmatmul.bf16.gmra.mxu0 %v7429
    %v7876 = vpop.f32.mrf.mxu0
    %v7877 = vadd.f32 %v7858, %v7876
    %v7878 = vpop.f32.mrf.mxu0
    %v7879 = vadd.f32 %v7860, %v7878
    %7880 = vdwg.mxu0
    %7881 = vmatpush.bf16.msra.mxu0 0
    %7882 = vmatpush.bf16.msra.mxu0 0
    %7883 = vmatpush.bf16.msra.mxu0 0
    %7884 = vmatpush.bf16.msra.mxu0 0
    %7885 = vmatpush.bf16.msra.mxu0 0
    %7886 = vmatpush.bf16.msra.mxu0 0
    %7887 = vmatpush.bf16.msra.mxu0 %v7668
    %7888 = vmatpush.bf16.msra.mxu0 %v7665
    %7889 = vmatmul.bf16.gmra.mxu0 %v7724
    %v7890 = vpop.f32.mrf.mxu0
    %v7891 = vadd.f32 %v7872, %v7890
    %v7892 = vpop.f32.mrf.mxu0
    %v7893 = vadd.f32 %v7874, %v7892
    %7894 = vmatmul.bf16.gmra.mxu0 %v7727
    %v7895 = vpop.f32.mrf.mxu0
    %v7896 = vadd.f32 %v7877, %v7895
    %v7897 = vpop.f32.mrf.mxu0
    %v7898 = vadd.f32 %v7879, %v7897
    %7899 = vdwg.mxu0
    %v7900 = vadd.f32 %v7284, %v7777
    %v7901 = vadd.f32 %v7285, %v7834
    %v7902 = vadd.f32 %v7286, %v7891
    %v7903 = vadd.f32 %v7287, %v7779
    %v7904 = vadd.f32 %v7288, %v7836
    %v7905 = vadd.f32 %v7289, %v7893
    %v7906 = vadd.f32 %v7290, %v7782
    %v7907 = vadd.f32 %v7291, %v7839
    %v7908 = vadd.f32 %v7292, %v7896
    %v7909 = vadd.f32 %v7293, %v7784
    %v7910 = vadd.f32 %v7294, %v7841
    %v7911 = vadd.f32 %v7295, %v7898
    %v7912 = vld [vmem:[#allocation3] sm:$0x88]
    %v7913 = vld [vmem:[#allocation3 + $0x8] sm:$0x8]
    %v7914 = vld [vmem:[#allocation3 + $0x18] sm:$0x77]
    %v7915 = vld [vmem:[#allocation3 + $0x20] sm:$0x7]
    %v7916 = vld [vmem:[#allocation3 + $0x30] sm:$0x88]
    %v7917 = vld [vmem:[#allocation3 + $0x38] sm:$0x8]
    %v7918 = vld [vmem:[#allocation3 + $0x48] sm:$0x77]
    %v7919 = vld [vmem:[#allocation3 + $0x50] sm:$0x7]
    %v7928 = vrot.slane %v7912, 7
    %v7929 = vrot.slane %v7928, 4
    %v7930 = vrot.slane %v6674, 7
    %v7931 = vsel %vm1198, %v7929, %v7930
    %v7932 = vrot.slane %v7913, 7
    %v7933 = vrot.slane %v7932, 4
    %v7934 = vrot.slane %v6675, 7
    %v7935 = vsel %vm1198, %v7933, %v7934
    %v7936 = vrot.slane %v7930, 4
    %v7937 = vrot.slane %v7914, 7
    %v7938 = vsel %vm1198, %v7936, %v7937
    %v7939 = vrot.slane %v7934, 4
    %v7940 = vrot.slane %v7915, 7
    %v7941 = vsel %vm1198, %v7939, %v7940
    %v7942 = vrot.slane %v7916, 7
    %v7943 = vrot.slane %v7942, 4
    %v7944 = vrot.slane %v6680, 7
    %v7945 = vsel %vm1198, %v7943, %v7944
    %v7946 = vrot.slane %v7917, 7
    %v7947 = vrot.slane %v7946, 4
    %v7948 = vrot.slane %v6681, 7
    %v7949 = vsel %vm1198, %v7947, %v7948
    %v7950 = vrot.slane %v7944, 4
    %v7951 = vrot.slane %v7918, 7
    %v7952 = vsel %vm1198, %v7950, %v7951
    %v7953 = vrot.slane %v7948, 4
    %v7954 = vrot.slane %v7919, 7
    %v7955 = vsel %vm1198, %v7953, %v7954
    %s7956 = scalar_lea.vmem [#allocation8], 1296
    %v7957 = vld [vmem:[%s7956] sm:$0xff]
    %v7958 = vld [vmem:[%s7956 + $0x8] sm:$0xf]
    %v7959 = vld [vmem:[%s7956 + $0xc] sm:$0xff]
    %v7960 = vld [vmem:[%s7956 + $0x14] sm:$0xf]
    %v7961 = vld [vmem:[%s7956 + $0x18] sm:$0xff]
    %v7962 = vld [vmem:[%s7956 + $0x20] sm:$0xf]
    %v7963 = vld [vmem:[%s7956 + $0x24] sm:$0xff]
    %v7964 = vld [vmem:[%s7956 + $0x2c] sm:$0xf]
    %v7965 = vld [vmem:[%s7956 + $0x30] sm:$0xff]
    %v7966 = vld [vmem:[%s7956 + $0x38] sm:$0xf]
    %v7967 = vld [vmem:[%s7956 + $0x3c] sm:$0xff]
    %v7968 = vld [vmem:[%s7956 + $0x44] sm:$0xf]
    %v7969 = vld [vmem:[%s7956 + $0x48] sm:$0xff]
    %v7970 = vld [vmem:[%s7956 + $0x50] sm:$0xf]
    %v7971 = vld [vmem:[%s7956 + $0x54] sm:$0xff]
    %v7972 = vld [vmem:[%s7956 + $0x5c] sm:$0xf]
    %v7973 = vld [vmem:[%s7956 + $0x60] sm:$0xff]
    %v7974 = vld [vmem:[%s7956 + $0x68] sm:$0xf]
    %v7975 = vld [vmem:[%s7956 + $0x6c] sm:$0xff]
    %v7976 = vld [vmem:[%s7956 + $0x74] sm:$0xf]
    %v7977 = vld [vmem:[%s7956 + $0x78] sm:$0xff]
    %v7978 = vld [vmem:[%s7956 + $0x80] sm:$0xf]
    %v7979 = vld [vmem:[%s7956 + $0x84] sm:$0xff]
    %v7980 = vld [vmem:[%s7956 + $0x8c] sm:$0xf]
    %v7981 = vld [vmem:[%s7956 + $0x90] sm:$0xff]
    %v7982 = vld [vmem:[%s7956 + $0x98] sm:$0xf]
    %v7983 = vld [vmem:[%s7956 + $0x9c] sm:$0xff]
    %v7984 = vld [vmem:[%s7956 + $0xa4] sm:$0xf]
    %v7985 = vld [vmem:[%s7956 + $0xa8] sm:$0xff]
    %v7986 = vld [vmem:[%s7956 + $0xb0] sm:$0xf]
    %v7987 = vld [vmem:[%s7956 + $0xb4] sm:$0xff]
    %v7988 = vld [vmem:[%s7956 + $0xbc] sm:$0xf]
    %v7989 = vld [vmem:[%s7956 + $0xc0] sm:$0xff]
    %v7990 = vld [vmem:[%s7956 + $0xc8] sm:$0xf]
    %v7991 = vld [vmem:[%s7956 + $0xcc] sm:$0xff]
    %v7992 = vld [vmem:[%s7956 + $0xd4] sm:$0xf]
    %v7993 = vld [vmem:[%s7956 + $0xd8] sm:$0xff]
    %v7994 = vld [vmem:[%s7956 + $0xe0] sm:$0xf]
    %v7995 = vld [vmem:[%s7956 + $0xe4] sm:$0xff]
    %v7996 = vld [vmem:[%s7956 + $0xec] sm:$0xf]
    %v7997 = vld [vmem:[%s7956 + $0xf0] sm:$0xff]
    %v7998 = vld [vmem:[%s7956 + $0xf8] sm:$0xf]
    %v7999 = vld [vmem:[%s7956 + $0xfc] sm:$0xff]
    %v8000 = vld [vmem:[%s7956 + $0x104] sm:$0xf]
    %v8001 = vld [vmem:[%s7956 + $0x108] sm:$0xff]
    %v8002 = vld [vmem:[%s7956 + $0x110] sm:$0xf]
    %v8003 = vld [vmem:[%s7956 + $0x114] sm:$0xff]
    %v8004 = vld [vmem:[%s7956 + $0x11c] sm:$0xf]
    %v8005 = vld [vmem:[%s7956 + $0x120] sm:$0xff]
    %v8006 = vld [vmem:[%s7956 + $0x128] sm:$0xf]
    %v8007 = vld [vmem:[%s7956 + $0x12c] sm:$0xff]
    %v8008 = vld [vmem:[%s7956 + $0x134] sm:$0xf]
    %v8009 = vld [vmem:[%s7956 + $0x138] sm:$0xff]
    %v8010 = vld [vmem:[%s7956 + $0x140] sm:$0xf]
    %v8011 = vld [vmem:[%s7956 + $0x144] sm:$0xff]
    %v8012 = vld [vmem:[%s7956 + $0x14c] sm:$0xf]
    %v8013 = vld [vmem:[%s7956 + $0x150] sm:$0xff]
    %v8014 = vld [vmem:[%s7956 + $0x158] sm:$0xf]
    %v8015 = vld [vmem:[%s7956 + $0x15c] sm:$0xff]
    %v8016 = vld [vmem:[%s7956 + $0x164] sm:$0xf]
    %v8017 = vld [vmem:[%s7956 + $0x168] sm:$0xff]
    %v8018 = vld [vmem:[%s7956 + $0x170] sm:$0xf]
    %v8019 = vld [vmem:[%s7956 + $0x174] sm:$0xff]
    %v8020 = vld [vmem:[%s7956 + $0x17c] sm:$0xf]
    %v8021 = vld [vmem:[%s7956 + $0x180] sm:$0xff]
    %v8022 = vld [vmem:[%s7956 + $0x188] sm:$0xf]
    %v8023 = vld [vmem:[%s7956 + $0x18c] sm:$0xff]
    %v8024 = vld [vmem:[%s7956 + $0x194] sm:$0xf]
    %v8025 = vld [vmem:[%s7956 + $0x198] sm:$0xff]
    %v8026 = vld [vmem:[%s7956 + $0x1a0] sm:$0xf]
    %v8027 = vld [vmem:[%s7956 + $0x1a4] sm:$0xff]
    %v8028 = vld [vmem:[%s7956 + $0x1ac] sm:$0xf]
    %v8029 = vunpack.c.l.b16 %v7931
    %v8030 = vunpack.c.h.b16 %v7931
    %v8031 = vunpack.c.l.b16 %v7935
    %v8032 = vunpack.c.l.b16 %v7938
    %v8033 = vunpack.c.h.b16 %v7938
    %v8034 = vunpack.c.l.b16 %v7941
    %v8035 = vunpack.c.l.b16 %v7945
    %v8036 = vunpack.c.h.b16 %v7945
    %v8037 = vunpack.c.l.b16 %v7949
    %v8038 = vunpack.c.l.b16 %v7952
    %v8039 = vunpack.c.h.b16 %v7952
    %v8040 = vunpack.c.l.b16 %v7955
    %v8041 = vpack.c.b16 %v8032, %v8029
    %v8042 = vpack.c.b16 %v8033, %v8030
    %v8043 = vpack.c.b16 %v8034, %v8031
    %v8044 = vpack.c.b16 %v8038, %v8035
    %v8045 = vpack.c.b16 %v8039, %v8036
    %v8046 = vpack.c.b16 %v8040, %v8037
    %v8123 = vunpack.c.l.b16 %v7957
    %v8124 = vunpack.c.h.b16 %v7957
    %v8125 = vunpack.c.l.b16 %v7958
    %v8126 = vunpack.c.l.b16 %v7959
    %v8127 = vunpack.c.h.b16 %v7959
    %v8128 = vunpack.c.l.b16 %v7960
    %v8129 = vunpack.c.l.b16 %v7961
    %v8130 = vunpack.c.h.b16 %v7961
    %v8131 = vunpack.c.l.b16 %v7962
    %v8132 = vunpack.c.l.b16 %v7963
    %v8133 = vunpack.c.h.b16 %v7963
    %v8134 = vunpack.c.l.b16 %v7964
    %v8135 = vunpack.c.l.b16 %v7965
    %v8136 = vunpack.c.h.b16 %v7965
    %v8137 = vunpack.c.l.b16 %v7966
    %v8138 = vunpack.c.l.b16 %v7967
    %v8139 = vunpack.c.h.b16 %v7967
    %v8140 = vunpack.c.l.b16 %v7968
    %v8141 = vunpack.c.l.b16 %v7969
    %v8142 = vunpack.c.h.b16 %v7969
    %v8143 = vunpack.c.l.b16 %v7970
    %v8144 = vunpack.c.l.b16 %v7971
    %v8145 = vunpack.c.h.b16 %v7971
    %v8146 = vunpack.c.l.b16 %v7972
    %v8147 = vunpack.c.l.b16 %v7973
    %v8148 = vunpack.c.h.b16 %v7973
    %v8149 = vunpack.c.l.b16 %v7974
    %v8150 = vunpack.c.l.b16 %v7975
    %v8151 = vunpack.c.h.b16 %v7975
    %v8152 = vunpack.c.l.b16 %v7976
    %v8153 = vunpack.c.l.b16 %v7977
    %v8154 = vunpack.c.h.b16 %v7977
    %v8155 = vunpack.c.l.b16 %v7978
    %v8156 = vunpack.c.l.b16 %v7979
    %v8157 = vunpack.c.h.b16 %v7979
    %v8158 = vunpack.c.l.b16 %v7980
    %v8159 = vunpack.c.l.b16 %v7981
    %v8160 = vunpack.c.h.b16 %v7981
    %v8161 = vunpack.c.l.b16 %v7982
    %v8162 = vunpack.c.l.b16 %v7983
    %v8163 = vunpack.c.h.b16 %v7983
    %v8164 = vunpack.c.l.b16 %v7984
    %v8165 = vunpack.c.l.b16 %v7985
    %v8166 = vunpack.c.h.b16 %v7985
    %v8167 = vunpack.c.l.b16 %v7986
    %v8168 = vunpack.c.l.b16 %v7987
    %v8169 = vunpack.c.h.b16 %v7987
    %v8170 = vunpack.c.l.b16 %v7988
    %v8171 = vunpack.c.l.b16 %v7989
    %v8172 = vunpack.c.h.b16 %v7989
    %v8173 = vunpack.c.l.b16 %v7990
    %v8174 = vunpack.c.l.b16 %v7991
    %v8175 = vunpack.c.h.b16 %v7991
    %v8176 = vunpack.c.l.b16 %v7992
    %v8177 = vunpack.c.l.b16 %v7993
    %v8178 = vunpack.c.h.b16 %v7993
    %v8179 = vunpack.c.l.b16 %v7994
    %v8180 = vunpack.c.l.b16 %v7995
    %v8181 = vunpack.c.h.b16 %v7995
    %v8182 = vunpack.c.l.b16 %v7996
    %v8183 = vunpack.c.l.b16 %v7997
    %v8184 = vunpack.c.h.b16 %v7997
    %v8185 = vunpack.c.l.b16 %v7998
    %v8186 = vunpack.c.l.b16 %v7999
    %v8187 = vunpack.c.h.b16 %v7999
    %v8188 = vunpack.c.l.b16 %v8000
    %v8189 = vunpack.c.l.b16 %v8001
    %v8190 = vunpack.c.h.b16 %v8001
    %v8191 = vunpack.c.l.b16 %v8002
    %v8192 = vunpack.c.l.b16 %v8003
    %v8193 = vunpack.c.h.b16 %v8003
    %v8194 = vunpack.c.l.b16 %v8004
    %v8195 = vunpack.c.l.b16 %v8005
    %v8196 = vunpack.c.h.b16 %v8005
    %v8197 = vunpack.c.l.b16 %v8006
    %v8198 = vunpack.c.l.b16 %v8007
    %v8199 = vunpack.c.h.b16 %v8007
    %v8200 = vunpack.c.l.b16 %v8008
    %v8201 = vunpack.c.l.b16 %v8009
    %v8202 = vunpack.c.h.b16 %v8009
    %v8203 = vunpack.c.l.b16 %v8010
    %v8204 = vunpack.c.l.b16 %v8011
    %v8205 = vunpack.c.h.b16 %v8011
    %v8206 = vunpack.c.l.b16 %v8012
    %v8207 = vunpack.c.l.b16 %v8013
    %v8208 = vunpack.c.h.b16 %v8013
    %v8209 = vunpack.c.l.b16 %v8014
    %v8210 = vunpack.c.l.b16 %v8015
    %v8211 = vunpack.c.h.b16 %v8015
    %v8212 = vunpack.c.l.b16 %v8016
    %v8213 = vunpack.c.l.b16 %v8017
    %v8214 = vunpack.c.h.b16 %v8017
    %v8215 = vunpack.c.l.b16 %v8018
    %v8216 = vunpack.c.l.b16 %v8019
    %v8217 = vunpack.c.h.b16 %v8019
    %v8218 = vunpack.c.l.b16 %v8020
    %v8219 = vunpack.c.l.b16 %v8021
    %v8220 = vunpack.c.h.b16 %v8021
    %v8221 = vunpack.c.l.b16 %v8022
    %v8222 = vunpack.c.l.b16 %v8023
    %v8223 = vunpack.c.h.b16 %v8023
    %v8224 = vunpack.c.l.b16 %v8024
    %v8225 = vunpack.c.l.b16 %v8025
    %v8226 = vunpack.c.h.b16 %v8025
    %v8227 = vunpack.c.l.b16 %v8026
    %v8228 = vunpack.c.l.b16 %v8027
    %v8229 = vunpack.c.h.b16 %v8027
    %v8230 = vunpack.c.l.b16 %v8028
    %v8231 = vpack.c.b16 %v8126, %v8123
    %v8232 = vpack.c.b16 %v8127, %v8124
    %v8233 = vpack.c.b16 %v8128, %v8125
    %v8234 = vpack.c.b16 %v8132, %v8129
    %v8235 = vpack.c.b16 %v8133, %v8130
    %v8236 = vpack.c.b16 %v8134, %v8131
    %v8237 = vpack.c.b16 %v8138, %v8135
    %v8238 = vpack.c.b16 %v8139, %v8136
    %v8239 = vpack.c.b16 %v8140, %v8137
    %v8240 = vpack.c.b16 %v8144, %v8141
    %v8241 = vpack.c.b16 %v8145, %v8142
    %v8242 = vpack.c.b16 %v8146, %v8143
    %v8243 = vpack.c.b16 %v8150, %v8147
    %v8244 = vpack.c.b16 %v8151, %v8148
    %v8245 = vpack.c.b16 %v8152, %v8149
    %v8246 = vpack.c.b16 %v8156, %v8153
    %v8247 = vpack.c.b16 %v8157, %v8154
    %v8248 = vpack.c.b16 %v8158, %v8155
    %v8249 = vpack.c.b16 %v8162, %v8159
    %v8250 = vpack.c.b16 %v8163, %v8160
    %v8251 = vpack.c.b16 %v8164, %v8161
    %v8252 = vpack.c.b16 %v8168, %v8165
    %v8253 = vpack.c.b16 %v8169, %v8166
    %v8254 = vpack.c.b16 %v8170, %v8167
    %v8255 = vpack.c.b16 %v8174, %v8171
    %v8256 = vpack.c.b16 %v8175, %v8172
    %v8257 = vpack.c.b16 %v8176, %v8173
    %v8258 = vpack.c.b16 %v8180, %v8177
    %v8259 = vpack.c.b16 %v8181, %v8178
    %v8260 = vpack.c.b16 %v8182, %v8179
    %v8261 = vpack.c.b16 %v8186, %v8183
    %v8262 = vpack.c.b16 %v8187, %v8184
    %v8263 = vpack.c.b16 %v8188, %v8185
    %v8264 = vpack.c.b16 %v8192, %v8189
    %v8265 = vpack.c.b16 %v8193, %v8190
    %v8266 = vpack.c.b16 %v8194, %v8191
    %v8267 = vpack.c.b16 %v8198, %v8195
    %v8268 = vpack.c.b16 %v8199, %v8196
    %v8269 = vpack.c.b16 %v8200, %v8197
    %v8270 = vpack.c.b16 %v8204, %v8201
    %v8271 = vpack.c.b16 %v8205, %v8202
    %v8272 = vpack.c.b16 %v8206, %v8203
    %v8273 = vpack.c.b16 %v8210, %v8207
    %v8274 = vpack.c.b16 %v8211, %v8208
    %v8275 = vpack.c.b16 %v8212, %v8209
    %v8276 = vpack.c.b16 %v8216, %v8213
    %v8277 = vpack.c.b16 %v8217, %v8214
    %v8278 = vpack.c.b16 %v8218, %v8215
    %v8279 = vpack.c.b16 %v8222, %v8219
    %v8280 = vpack.c.b16 %v8223, %v8220
    %v8281 = vpack.c.b16 %v8224, %v8221
    %v8282 = vpack.c.b16 %v8228, %v8225
    %v8283 = vpack.c.b16 %v8229, %v8226
    %v8284 = vpack.c.b16 %v8230, %v8227
    %v8340 = vsel %vm1944, %v8043, 0
    %v8343 = vsel %vm1944, %v8046, 0
    %8345 = vmatpush.bf16.msra.mxu0 %v8252
    %8346 = vmatpush.bf16.msra.mxu0 %v8249
    %8347 = vmatpush.bf16.msra.mxu0 %v8246
    %8348 = vmatpush.bf16.msra.mxu0 %v8243
    %8349 = vmatpush.bf16.msra.mxu0 %v8240
    %8350 = vmatpush.bf16.msra.mxu0 %v8237
    %8351 = vmatpush.bf16.msra.mxu0 %v8234
    %8352 = vmatpush.bf16.msra.mxu0 %v8231
    %8353 = vmatmul.bf16.gmra.mxu0 %v8041
    %v8354 = vpop.f32.mrf.mxu0
    %v8355 = vadd.f32 0.0, %v8354
    %v8356 = vpop.f32.mrf.mxu0
    %v8357 = vadd.f32 0.0, %v8356
    %8358 = vmatmul.bf16.gmra.mxu0 %v8044
    %v8359 = vpop.f32.mrf.mxu0
    %v8360 = vadd.f32 0.0, %v8359
    %v8361 = vpop.f32.mrf.mxu0
    %v8362 = vadd.f32 0.0, %v8361
    %8363 = vdwg.mxu0
    %8364 = vmatpush.bf16.msra.mxu0 %v8276
    %8365 = vmatpush.bf16.msra.mxu0 %v8273
    %8366 = vmatpush.bf16.msra.mxu0 %v8270
    %8367 = vmatpush.bf16.msra.mxu0 %v8267
    %8368 = vmatpush.bf16.msra.mxu0 %v8264
    %8369 = vmatpush.bf16.msra.mxu0 %v8261
    %8370 = vmatpush.bf16.msra.mxu0 %v8258
    %8371 = vmatpush.bf16.msra.mxu0 %v8255
    %8372 = vmatmul.bf16.gmra.mxu0 %v8042
    %v8373 = vpop.f32.mrf.mxu0
    %v8374 = vadd.f32 %v8355, %v8373
    %v8375 = vpop.f32.mrf.mxu0
    %v8376 = vadd.f32 %v8357, %v8375
    %8377 = vmatmul.bf16.gmra.mxu0 %v8045
    %v8378 = vpop.f32.mrf.mxu0
    %v8379 = vadd.f32 %v8360, %v8378
    %v8380 = vpop.f32.mrf.mxu0
    %v8381 = vadd.f32 %v8362, %v8380
    %8382 = vdwg.mxu0
    %8383 = vmatpush.bf16.msra.mxu0 0
    %8384 = vmatpush.bf16.msra.mxu0 0
    %8385 = vmatpush.bf16.msra.mxu0 0
    %8386 = vmatpush.bf16.msra.mxu0 0
    %8387 = vmatpush.bf16.msra.mxu0 0
    %8388 = vmatpush.bf16.msra.mxu0 0
    %8389 = vmatpush.bf16.msra.mxu0 %v8282
    %8390 = vmatpush.bf16.msra.mxu0 %v8279
    %8391 = vmatmul.bf16.gmra.mxu0 %v8340
    %v8392 = vpop.f32.mrf.mxu0
    %v8393 = vadd.f32 %v8374, %v8392
    %v8394 = vpop.f32.mrf.mxu0
    %v8395 = vadd.f32 %v8376, %v8394
    %8396 = vmatmul.bf16.gmra.mxu0 %v8343
    %v8397 = vpop.f32.mrf.mxu0
    %v8398 = vadd.f32 %v8379, %v8397
    %v8399 = vpop.f32.mrf.mxu0
    %v8400 = vadd.f32 %v8381, %v8399
    %8401 = vdwg.mxu0
    %8402 = vmatpush.bf16.msra.mxu0 %v8253
    %8403 = vmatpush.bf16.msra.mxu0 %v8250
    %8404 = vmatpush.bf16.msra.mxu0 %v8247
    %8405 = vmatpush.bf16.msra.mxu0 %v8244
    %8406 = vmatpush.bf16.msra.mxu0 %v8241
    %8407 = vmatpush.bf16.msra.mxu0 %v8238
    %8408 = vmatpush.bf16.msra.mxu0 %v8235
    %8409 = vmatpush.bf16.msra.mxu0 %v8232
    %8410 = vmatmul.bf16.gmra.mxu0 %v8041
    %v8411 = vpop.f32.mrf.mxu0
    %v8412 = vadd.f32 0.0, %v8411
    %v8413 = vpop.f32.mrf.mxu0
    %v8414 = vadd.f32 0.0, %v8413
    %8415 = vmatmul.bf16.gmra.mxu0 %v8044
    %v8416 = vpop.f32.mrf.mxu0
    %v8417 = vadd.f32 0.0, %v8416
    %v8418 = vpop.f32.mrf.mxu0
    %v8419 = vadd.f32 0.0, %v8418
    %8420 = vdwg.mxu0
    %8421 = vmatpush.bf16.msra.mxu0 %v8277
    %8422 = vmatpush.bf16.msra.mxu0 %v8274
    %8423 = vmatpush.bf16.msra.mxu0 %v8271
    %8424 = vmatpush.bf16.msra.mxu0 %v8268
    %8425 = vmatpush.bf16.msra.mxu0 %v8265
    %8426 = vmatpush.bf16.msra.mxu0 %v8262
    %8427 = vmatpush.bf16.msra.mxu0 %v8259
    %8428 = vmatpush.bf16.msra.mxu0 %v8256
    %8429 = vmatmul.bf16.gmra.mxu0 %v8042
    %v8430 = vpop.f32.mrf.mxu0
    %v8431 = vadd.f32 %v8412, %v8430
    %v8432 = vpop.f32.mrf.mxu0
    %v8433 = vadd.f32 %v8414, %v8432
    %8434 = vmatmul.bf16.gmra.mxu0 %v8045
    %v8435 = vpop.f32.mrf.mxu0
    %v8436 = vadd.f32 %v8417, %v8435
    %v8437 = vpop.f32.mrf.mxu0
    %v8438 = vadd.f32 %v8419, %v8437
    %8439 = vdwg.mxu0
    %8440 = vmatpush.bf16.msra.mxu0 0
    %8441 = vmatpush.bf16.msra.mxu0 0
    %8442 = vmatpush.bf16.msra.mxu0 0
    %8443 = vmatpush.bf16.msra.mxu0 0
    %8444 = vmatpush.bf16.msra.mxu0 0
    %8445 = vmatpush.bf16.msra.mxu0 0
    %8446 = vmatpush.bf16.msra.mxu0 %v8283
    %8447 = vmatpush.bf16.msra.mxu0 %v8280
    %8448 = vmatmul.bf16.gmra.mxu0 %v8340
    %v8449 = vpop.f32.mrf.mxu0
    %v8450 = vadd.f32 %v8431, %v8449
    %v8451 = vpop.f32.mrf.mxu0
    %v8452 = vadd.f32 %v8433, %v8451
    %8453 = vmatmul.bf16.gmra.mxu0 %v8343
    %v8454 = vpop.f32.mrf.mxu0
    %v8455 = vadd.f32 %v8436, %v8454
    %v8456 = vpop.f32.mrf.mxu0
    %v8457 = vadd.f32 %v8438, %v8456
    %8458 = vdwg.mxu0
    %8459 = vmatpush.bf16.msra.mxu0 %v8254
    %8460 = vmatpush.bf16.msra.mxu0 %v8251
    %8461 = vmatpush.bf16.msra.mxu0 %v8248
    %8462 = vmatpush.bf16.msra.mxu0 %v8245
    %8463 = vmatpush.bf16.msra.mxu0 %v8242
    %8464 = vmatpush.bf16.msra.mxu0 %v8239
    %8465 = vmatpush.bf16.msra.mxu0 %v8236
    %8466 = vmatpush.bf16.msra.mxu0 %v8233
    %8467 = vmatmul.bf16.gmra.mxu0 %v8041
    %v8468 = vpop.f32.mrf.mxu0
    %v8469 = vadd.f32 0.0, %v8468
    %v8470 = vpop.f32.mrf.mxu0
    %v8471 = vadd.f32 0.0, %v8470
    %8472 = vmatmul.bf16.gmra.mxu0 %v8044
    %v8473 = vpop.f32.mrf.mxu0
    %v8474 = vadd.f32 0.0, %v8473
    %v8475 = vpop.f32.mrf.mxu0
    %v8476 = vadd.f32 0.0, %v8475
    %8477 = vdwg.mxu0
    %8478 = vmatpush.bf16.msra.mxu0 %v8278
    %8479 = vmatpush.bf16.msra.mxu0 %v8275
    %8480 = vmatpush.bf16.msra.mxu0 %v8272
    %8481 = vmatpush.bf16.msra.mxu0 %v8269
    %8482 = vmatpush.bf16.msra.mxu0 %v8266
    %8483 = vmatpush.bf16.msra.mxu0 %v8263
    %8484 = vmatpush.bf16.msra.mxu0 %v8260
    %8485 = vmatpush.bf16.msra.mxu0 %v8257
    %8486 = vmatmul.bf16.gmra.mxu0 %v8042
    %v8487 = vpop.f32.mrf.mxu0
    %v8488 = vadd.f32 %v8469, %v8487
    %v8489 = vpop.f32.mrf.mxu0
    %v8490 = vadd.f32 %v8471, %v8489
    %8491 = vmatmul.bf16.gmra.mxu0 %v8045
    %v8492 = vpop.f32.mrf.mxu0
    %v8493 = vadd.f32 %v8474, %v8492
    %v8494 = vpop.f32.mrf.mxu0
    %v8495 = vadd.f32 %v8476, %v8494
    %8496 = vdwg.mxu0
    %8497 = vmatpush.bf16.msra.mxu0 0
    %8498 = vmatpush.bf16.msra.mxu0 0
    %8499 = vmatpush.bf16.msra.mxu0 0
    %8500 = vmatpush.bf16.msra.mxu0 0
    %8501 = vmatpush.bf16.msra.mxu0 0
    %8502 = vmatpush.bf16.msra.mxu0 0
    %8503 = vmatpush.bf16.msra.mxu0 %v8284
    %8504 = vmatpush.bf16.msra.mxu0 %v8281
    %8505 = vmatmul.bf16.gmra.mxu0 %v8340
    %v8506 = vpop.f32.mrf.mxu0
    %v8507 = vadd.f32 %v8488, %v8506
    %v8508 = vpop.f32.mrf.mxu0
    %v8509 = vadd.f32 %v8490, %v8508
    %8510 = vmatmul.bf16.gmra.mxu0 %v8343
    %v8511 = vpop.f32.mrf.mxu0
    %v8512 = vadd.f32 %v8493, %v8511
    %v8513 = vpop.f32.mrf.mxu0
    %v8514 = vadd.f32 %v8495, %v8513
    %8515 = vdwg.mxu0
    %v8516 = vadd.f32 %v7900, %v8393
    %v8517 = vadd.f32 %v7901, %v8450
    %v8518 = vadd.f32 %v7902, %v8507
    %v8519 = vadd.f32 %v7903, %v8395
    %v8520 = vadd.f32 %v7904, %v8452
    %v8521 = vadd.f32 %v7905, %v8509
    %v8522 = vadd.f32 %v7906, %v8398
    %v8523 = vadd.f32 %v7907, %v8455
    %v8524 = vadd.f32 %v7908, %v8512
    %v8525 = vadd.f32 %v7909, %v8400
    %v8526 = vadd.f32 %v7910, %v8457
    %v8527 = vadd.f32 %v7911, %v8514
    %v8528 = vld [vmem:[#allocation3 + $0x18] sm:$0xff]
    %v8529 = vld [vmem:[#allocation3 + $0x20] sm:$0xf]
    %v8530 = vld [vmem:[#allocation3 + $0x48] sm:$0xff]
    %v8531 = vld [vmem:[#allocation3 + $0x50] sm:$0xf]
    %s8532 = scalar_lea.vmem [#allocation8], 1728
    %v8533 = vld [vmem:[%s8532] sm:$0xff]
    %v8534 = vld [vmem:[%s8532 + $0x8] sm:$0xf]
    %v8535 = vld [vmem:[%s8532 + $0xc] sm:$0xff]
    %v8536 = vld [vmem:[%s8532 + $0x14] sm:$0xf]
    %v8537 = vld [vmem:[%s8532 + $0x18] sm:$0xff]
    %v8538 = vld [vmem:[%s8532 + $0x20] sm:$0xf]
    %v8539 = vld [vmem:[%s8532 + $0x24] sm:$0xff]
    %v8540 = vld [vmem:[%s8532 + $0x2c] sm:$0xf]
    %v8541 = vld [vmem:[%s8532 + $0x30] sm:$0xff]
    %v8542 = vld [vmem:[%s8532 + $0x38] sm:$0xf]
    %v8543 = vld [vmem:[%s8532 + $0x3c] sm:$0xff]
    %v8544 = vld [vmem:[%s8532 + $0x44] sm:$0xf]
    %v8545 = vld [vmem:[%s8532 + $0x48] sm:$0xff]
    %v8546 = vld [vmem:[%s8532 + $0x50] sm:$0xf]
    %v8547 = vld [vmem:[%s8532 + $0x54] sm:$0xff]
    %v8548 = vld [vmem:[%s8532 + $0x5c] sm:$0xf]
    %v8549 = vld [vmem:[%s8532 + $0x60] sm:$0xff]
    %v8550 = vld [vmem:[%s8532 + $0x68] sm:$0xf]
    %v8551 = vld [vmem:[%s8532 + $0x6c] sm:$0xff]
    %v8552 = vld [vmem:[%s8532 + $0x74] sm:$0xf]
    %v8553 = vld [vmem:[%s8532 + $0x78] sm:$0xff]
    %v8554 = vld [vmem:[%s8532 + $0x80] sm:$0xf]
    %v8555 = vld [vmem:[%s8532 + $0x84] sm:$0xff]
    %v8556 = vld [vmem:[%s8532 + $0x8c] sm:$0xf]
    %v8557 = vld [vmem:[%s8532 + $0x90] sm:$0xff]
    %v8558 = vld [vmem:[%s8532 + $0x98] sm:$0xf]
    %v8559 = vld [vmem:[%s8532 + $0x9c] sm:$0xff]
    %v8560 = vld [vmem:[%s8532 + $0xa4] sm:$0xf]
    %v8561 = vld [vmem:[%s8532 + $0xa8] sm:$0xff]
    %v8562 = vld [vmem:[%s8532 + $0xb0] sm:$0xf]
    %v8563 = vld [vmem:[%s8532 + $0xb4] sm:$0xff]
    %v8564 = vld [vmem:[%s8532 + $0xbc] sm:$0xf]
    %v8565 = vld [vmem:[%s8532 + $0xc0] sm:$0xff]
    %v8566 = vld [vmem:[%s8532 + $0xc8] sm:$0xf]
    %v8567 = vld [vmem:[%s8532 + $0xcc] sm:$0xff]
    %v8568 = vld [vmem:[%s8532 + $0xd4] sm:$0xf]
    %v8569 = vld [vmem:[%s8532 + $0xd8] sm:$0xff]
    %v8570 = vld [vmem:[%s8532 + $0xe0] sm:$0xf]
    %v8571 = vld [vmem:[%s8532 + $0xe4] sm:$0xff]
    %v8572 = vld [vmem:[%s8532 + $0xec] sm:$0xf]
    %v8573 = vld [vmem:[%s8532 + $0xf0] sm:$0xff]
    %v8574 = vld [vmem:[%s8532 + $0xf8] sm:$0xf]
    %v8575 = vld [vmem:[%s8532 + $0xfc] sm:$0xff]
    %v8576 = vld [vmem:[%s8532 + $0x104] sm:$0xf]
    %v8577 = vld [vmem:[%s8532 + $0x108] sm:$0xff]
    %v8578 = vld [vmem:[%s8532 + $0x110] sm:$0xf]
    %v8579 = vld [vmem:[%s8532 + $0x114] sm:$0xff]
    %v8580 = vld [vmem:[%s8532 + $0x11c] sm:$0xf]
    %v8581 = vld [vmem:[%s8532 + $0x120] sm:$0xff]
    %v8582 = vld [vmem:[%s8532 + $0x128] sm:$0xf]
    %v8583 = vld [vmem:[%s8532 + $0x12c] sm:$0xff]
    %v8584 = vld [vmem:[%s8532 + $0x134] sm:$0xf]
    %v8585 = vld [vmem:[%s8532 + $0x138] sm:$0xff]
    %v8586 = vld [vmem:[%s8532 + $0x140] sm:$0xf]
    %v8587 = vld [vmem:[%s8532 + $0x144] sm:$0xff]
    %v8588 = vld [vmem:[%s8532 + $0x14c] sm:$0xf]
    %v8589 = vld [vmem:[%s8532 + $0x150] sm:$0xff]
    %v8590 = vld [vmem:[%s8532 + $0x158] sm:$0xf]
    %v8591 = vld [vmem:[%s8532 + $0x15c] sm:$0xff]
    %v8592 = vld [vmem:[%s8532 + $0x164] sm:$0xf]
    %v8593 = vld [vmem:[%s8532 + $0x168] sm:$0xff]
    %v8594 = vld [vmem:[%s8532 + $0x170] sm:$0xf]
    %v8595 = vld [vmem:[%s8532 + $0x174] sm:$0xff]
    %v8596 = vld [vmem:[%s8532 + $0x17c] sm:$0xf]
    %v8597 = vld [vmem:[%s8532 + $0x180] sm:$0xff]
    %v8598 = vld [vmem:[%s8532 + $0x188] sm:$0xf]
    %v8599 = vld [vmem:[%s8532 + $0x18c] sm:$0xff]
    %v8600 = vld [vmem:[%s8532 + $0x194] sm:$0xf]
    %v8601 = vld [vmem:[%s8532 + $0x198] sm:$0xff]
    %v8602 = vld [vmem:[%s8532 + $0x1a0] sm:$0xf]
    %v8603 = vld [vmem:[%s8532 + $0x1a4] sm:$0xff]
    %v8604 = vld [vmem:[%s8532 + $0x1ac] sm:$0xf]
    %v8609 = vunpack.c.l.b16 %v6674
    %v8610 = vunpack.c.h.b16 %v6674
    %v8611 = vunpack.c.l.b16 %v6675
    %v8612 = vunpack.c.l.b16 %v8528
    %v8613 = vunpack.c.h.b16 %v8528
    %v8614 = vunpack.c.l.b16 %v8529
    %v8615 = vunpack.c.l.b16 %v6680
    %v8616 = vunpack.c.h.b16 %v6680
    %v8617 = vunpack.c.l.b16 %v6681
    %v8618 = vunpack.c.l.b16 %v8530
    %v8619 = vunpack.c.h.b16 %v8530
    %v8620 = vunpack.c.l.b16 %v8531
    %v8621 = vpack.c.b16 %v8612, %v8609
    %v8622 = vpack.c.b16 %v8613, %v8610
    %v8623 = vpack.c.b16 %v8614, %v8611
    %v8624 = vpack.c.b16 %v8618, %v8615
    %v8625 = vpack.c.b16 %v8619, %v8616
    %v8626 = vpack.c.b16 %v8620, %v8617
    %v8703 = vunpack.c.l.b16 %v8533
    %v8704 = vunpack.c.h.b16 %v8533
    %v8705 = vunpack.c.l.b16 %v8534
    %v8706 = vunpack.c.l.b16 %v8535
    %v8707 = vunpack.c.h.b16 %v8535
    %v8708 = vunpack.c.l.b16 %v8536
    %v8709 = vunpack.c.l.b16 %v8537
    %v8710 = vunpack.c.h.b16 %v8537
    %v8711 = vunpack.c.l.b16 %v8538
    %v8712 = vunpack.c.l.b16 %v8539
    %v8713 = vunpack.c.h.b16 %v8539
    %v8714 = vunpack.c.l.b16 %v8540
    %v8715 = vunpack.c.l.b16 %v8541
    %v8716 = vunpack.c.h.b16 %v8541
    %v8717 = vunpack.c.l.b16 %v8542
    %v8718 = vunpack.c.l.b16 %v8543
    %v8719 = vunpack.c.h.b16 %v8543
    %v8720 = vunpack.c.l.b16 %v8544
    %v8721 = vunpack.c.l.b16 %v8545
    %v8722 = vunpack.c.h.b16 %v8545
    %v8723 = vunpack.c.l.b16 %v8546
    %v8724 = vunpack.c.l.b16 %v8547
    %v8725 = vunpack.c.h.b16 %v8547
    %v8726 = vunpack.c.l.b16 %v8548
    %v8727 = vunpack.c.l.b16 %v8549
    %v8728 = vunpack.c.h.b16 %v8549
    %v8729 = vunpack.c.l.b16 %v8550
    %v8730 = vunpack.c.l.b16 %v8551
    %v8731 = vunpack.c.h.b16 %v8551
    %v8732 = vunpack.c.l.b16 %v8552
    %v8733 = vunpack.c.l.b16 %v8553
    %v8734 = vunpack.c.h.b16 %v8553
    %v8735 = vunpack.c.l.b16 %v8554
    %v8736 = vunpack.c.l.b16 %v8555
    %v8737 = vunpack.c.h.b16 %v8555
    %v8738 = vunpack.c.l.b16 %v8556
    %v8739 = vunpack.c.l.b16 %v8557
    %v8740 = vunpack.c.h.b16 %v8557
    %v8741 = vunpack.c.l.b16 %v8558
    %v8742 = vunpack.c.l.b16 %v8559
    %v8743 = vunpack.c.h.b16 %v8559
    %v8744 = vunpack.c.l.b16 %v8560
    %v8745 = vunpack.c.l.b16 %v8561
    %v8746 = vunpack.c.h.b16 %v8561
    %v8747 = vunpack.c.l.b16 %v8562
    %v8748 = vunpack.c.l.b16 %v8563
    %v8749 = vunpack.c.h.b16 %v8563
    %v8750 = vunpack.c.l.b16 %v8564
    %v8751 = vunpack.c.l.b16 %v8565
    %v8752 = vunpack.c.h.b16 %v8565
    %v8753 = vunpack.c.l.b16 %v8566
    %v8754 = vunpack.c.l.b16 %v8567
    %v8755 = vunpack.c.h.b16 %v8567
    %v8756 = vunpack.c.l.b16 %v8568
    %v8757 = vunpack.c.l.b16 %v8569
    %v8758 = vunpack.c.h.b16 %v8569
    %v8759 = vunpack.c.l.b16 %v8570
    %v8760 = vunpack.c.l.b16 %v8571
    %v8761 = vunpack.c.h.b16 %v8571
    %v8762 = vunpack.c.l.b16 %v8572
    %v8763 = vunpack.c.l.b16 %v8573
    %v8764 = vunpack.c.h.b16 %v8573
    %v8765 = vunpack.c.l.b16 %v8574
    %v8766 = vunpack.c.l.b16 %v8575
    %v8767 = vunpack.c.h.b16 %v8575
    %v8768 = vunpack.c.l.b16 %v8576
    %v8769 = vunpack.c.l.b16 %v8577
    %v8770 = vunpack.c.h.b16 %v8577
    %v8771 = vunpack.c.l.b16 %v8578
    %v8772 = vunpack.c.l.b16 %v8579
    %v8773 = vunpack.c.h.b16 %v8579
    %v8774 = vunpack.c.l.b16 %v8580
    %v8775 = vunpack.c.l.b16 %v8581
    %v8776 = vunpack.c.h.b16 %v8581
    %v8777 = vunpack.c.l.b16 %v8582
    %v8778 = vunpack.c.l.b16 %v8583
    %v8779 = vunpack.c.h.b16 %v8583
    %v8780 = vunpack.c.l.b16 %v8584
    %v8781 = vunpack.c.l.b16 %v8585
    %v8782 = vunpack.c.h.b16 %v8585
    %v8783 = vunpack.c.l.b16 %v8586
    %v8784 = vunpack.c.l.b16 %v8587
    %v8785 = vunpack.c.h.b16 %v8587
    %v8786 = vunpack.c.l.b16 %v8588
    %v8787 = vunpack.c.l.b16 %v8589
    %v8788 = vunpack.c.h.b16 %v8589
    %v8789 = vunpack.c.l.b16 %v8590
    %v8790 = vunpack.c.l.b16 %v8591
    %v8791 = vunpack.c.h.b16 %v8591
    %v8792 = vunpack.c.l.b16 %v8592
    %v8793 = vunpack.c.l.b16 %v8593
    %v8794 = vunpack.c.h.b16 %v8593
    %v8795 = vunpack.c.l.b16 %v8594
    %v8796 = vunpack.c.l.b16 %v8595
    %v8797 = vunpack.c.h.b16 %v8595
    %v8798 = vunpack.c.l.b16 %v8596
    %v8799 = vunpack.c.l.b16 %v8597
    %v8800 = vunpack.c.h.b16 %v8597
    %v8801 = vunpack.c.l.b16 %v8598
    %v8802 = vunpack.c.l.b16 %v8599
    %v8803 = vunpack.c.h.b16 %v8599
    %v8804 = vunpack.c.l.b16 %v8600
    %v8805 = vunpack.c.l.b16 %v8601
    %v8806 = vunpack.c.h.b16 %v8601
    %v8807 = vunpack.c.l.b16 %v8602
    %v8808 = vunpack.c.l.b16 %v8603
    %v8809 = vunpack.c.h.b16 %v8603
    %v8810 = vunpack.c.l.b16 %v8604
    %v8811 = vpack.c.b16 %v8706, %v8703
    %v8812 = vpack.c.b16 %v8707, %v8704
    %v8813 = vpack.c.b16 %v8708, %v8705
    %v8814 = vpack.c.b16 %v8712, %v8709
    %v8815 = vpack.c.b16 %v8713, %v8710
    %v8816 = vpack.c.b16 %v8714, %v8711
    %v8817 = vpack.c.b16 %v8718, %v8715
    %v8818 = vpack.c.b16 %v8719, %v8716
    %v8819 = vpack.c.b16 %v8720, %v8717
    %v8820 = vpack.c.b16 %v8724, %v8721
    %v8821 = vpack.c.b16 %v8725, %v8722
    %v8822 = vpack.c.b16 %v8726, %v8723
    %v8823 = vpack.c.b16 %v8730, %v8727
    %v8824 = vpack.c.b16 %v8731, %v8728
    %v8825 = vpack.c.b16 %v8732, %v8729
    %v8826 = vpack.c.b16 %v8736, %v8733
    %v8827 = vpack.c.b16 %v8737, %v8734
    %v8828 = vpack.c.b16 %v8738, %v8735
    %v8829 = vpack.c.b16 %v8742, %v8739
    %v8830 = vpack.c.b16 %v8743, %v8740
    %v8831 = vpack.c.b16 %v8744, %v8741
    %v8832 = vpack.c.b16 %v8748, %v8745
    %v8833 = vpack.c.b16 %v8749, %v8746
    %v8834 = vpack.c.b16 %v8750, %v8747
    %v8835 = vpack.c.b16 %v8754, %v8751
    %v8836 = vpack.c.b16 %v8755, %v8752
    %v8837 = vpack.c.b16 %v8756, %v8753
    %v8838 = vpack.c.b16 %v8760, %v8757
    %v8839 = vpack.c.b16 %v8761, %v8758
    %v8840 = vpack.c.b16 %v8762, %v8759
    %v8841 = vpack.c.b16 %v8766, %v8763
    %v8842 = vpack.c.b16 %v8767, %v8764
    %v8843 = vpack.c.b16 %v8768, %v8765
    %v8844 = vpack.c.b16 %v8772, %v8769
    %v8845 = vpack.c.b16 %v8773, %v8770
    %v8846 = vpack.c.b16 %v8774, %v8771
    %v8847 = vpack.c.b16 %v8778, %v8775
    %v8848 = vpack.c.b16 %v8779, %v8776
    %v8849 = vpack.c.b16 %v8780, %v8777
    %v8850 = vpack.c.b16 %v8784, %v8781
    %v8851 = vpack.c.b16 %v8785, %v8782
    %v8852 = vpack.c.b16 %v8786, %v8783
    %v8853 = vpack.c.b16 %v8790, %v8787
    %v8854 = vpack.c.b16 %v8791, %v8788
    %v8855 = vpack.c.b16 %v8792, %v8789
    %v8856 = vpack.c.b16 %v8796, %v8793
    %v8857 = vpack.c.b16 %v8797, %v8794
    %v8858 = vpack.c.b16 %v8798, %v8795
    %v8859 = vpack.c.b16 %v8802, %v8799
    %v8860 = vpack.c.b16 %v8803, %v8800
    %v8861 = vpack.c.b16 %v8804, %v8801
    %v8862 = vpack.c.b16 %v8808, %v8805
    %v8863 = vpack.c.b16 %v8809, %v8806
    %v8864 = vpack.c.b16 %v8810, %v8807
    %v8920 = vsel %vm1944, %v8623, 0
    %v8923 = vsel %vm1944, %v8626, 0
    %8925 = vmatpush.bf16.msra.mxu0 %v8832
    %8926 = vmatpush.bf16.msra.mxu0 %v8829
    %8927 = vmatpush.bf16.msra.mxu0 %v8826
    %8928 = vmatpush.bf16.msra.mxu0 %v8823
    %8929 = vmatpush.bf16.msra.mxu0 %v8820
    %8930 = vmatpush.bf16.msra.mxu0 %v8817
    %8931 = vmatpush.bf16.msra.mxu0 %v8814
    %8932 = vmatpush.bf16.msra.mxu0 %v8811
    %8933 = vmatmul.bf16.gmra.mxu0 %v8621
    %v8934 = vpop.f32.mrf.mxu0
    %v8935 = vadd.f32 0.0, %v8934
    %v8936 = vpop.f32.mrf.mxu0
    %v8937 = vadd.f32 0.0, %v8936
    %8938 = vmatmul.bf16.gmra.mxu0 %v8624
    %v8939 = vpop.f32.mrf.mxu0
    %v8940 = vadd.f32 0.0, %v8939
    %v8941 = vpop.f32.mrf.mxu0
    %v8942 = vadd.f32 0.0, %v8941
    %8943 = vdwg.mxu0
    %8944 = vmatpush.bf16.msra.mxu0 %v8856
    %8945 = vmatpush.bf16.msra.mxu0 %v8853
    %8946 = vmatpush.bf16.msra.mxu0 %v8850
    %8947 = vmatpush.bf16.msra.mxu0 %v8847
    %8948 = vmatpush.bf16.msra.mxu0 %v8844
    %8949 = vmatpush.bf16.msra.mxu0 %v8841
    %8950 = vmatpush.bf16.msra.mxu0 %v8838
    %8951 = vmatpush.bf16.msra.mxu0 %v8835
    %8952 = vmatmul.bf16.gmra.mxu0 %v8622
    %v8953 = vpop.f32.mrf.mxu0
    %v8954 = vadd.f32 %v8935, %v8953
    %v8955 = vpop.f32.mrf.mxu0
    %v8956 = vadd.f32 %v8937, %v8955
    %8957 = vmatmul.bf16.gmra.mxu0 %v8625
    %v8958 = vpop.f32.mrf.mxu0
    %v8959 = vadd.f32 %v8940, %v8958
    %v8960 = vpop.f32.mrf.mxu0
    %v8961 = vadd.f32 %v8942, %v8960
    %8962 = vdwg.mxu0
    %8963 = vmatpush.bf16.msra.mxu0 0
    %8964 = vmatpush.bf16.msra.mxu0 0
    %8965 = vmatpush.bf16.msra.mxu0 0
    %8966 = vmatpush.bf16.msra.mxu0 0
    %8967 = vmatpush.bf16.msra.mxu0 0
    %8968 = vmatpush.bf16.msra.mxu0 0
    %8969 = vmatpush.bf16.msra.mxu0 %v8862
    %8970 = vmatpush.bf16.msra.mxu0 %v8859
    %8971 = vmatmul.bf16.gmra.mxu0 %v8920
    %v8972 = vpop.f32.mrf.mxu0
    %v8973 = vadd.f32 %v8954, %v8972
    %v8974 = vpop.f32.mrf.mxu0
    %v8975 = vadd.f32 %v8956, %v8974
    %8976 = vmatmul.bf16.gmra.mxu0 %v8923
    %v8977 = vpop.f32.mrf.mxu0
    %v8978 = vadd.f32 %v8959, %v8977
    %v8979 = vpop.f32.mrf.mxu0
    %v8980 = vadd.f32 %v8961, %v8979
    %8981 = vdwg.mxu0
    %8982 = vmatpush.bf16.msra.mxu0 %v8833
    %8983 = vmatpush.bf16.msra.mxu0 %v8830
    %8984 = vmatpush.bf16.msra.mxu0 %v8827
    %8985 = vmatpush.bf16.msra.mxu0 %v8824
    %8986 = vmatpush.bf16.msra.mxu0 %v8821
    %8987 = vmatpush.bf16.msra.mxu0 %v8818
    %8988 = vmatpush.bf16.msra.mxu0 %v8815
    %8989 = vmatpush.bf16.msra.mxu0 %v8812
    %8990 = vmatmul.bf16.gmra.mxu0 %v8621
    %v8991 = vpop.f32.mrf.mxu0
    %v8992 = vadd.f32 0.0, %v8991
    %v8993 = vpop.f32.mrf.mxu0
    %v8994 = vadd.f32 0.0, %v8993
    %8995 = vmatmul.bf16.gmra.mxu0 %v8624
    %v8996 = vpop.f32.mrf.mxu0
    %v8997 = vadd.f32 0.0, %v8996
    %v8998 = vpop.f32.mrf.mxu0
    %v8999 = vadd.f32 0.0, %v8998
    %9000 = vdwg.mxu0
    %9001 = vmatpush.bf16.msra.mxu0 %v8857
    %9002 = vmatpush.bf16.msra.mxu0 %v8854
    %9003 = vmatpush.bf16.msra.mxu0 %v8851
    %9004 = vmatpush.bf16.msra.mxu0 %v8848
    %9005 = vmatpush.bf16.msra.mxu0 %v8845
    %9006 = vmatpush.bf16.msra.mxu0 %v8842
    %9007 = vmatpush.bf16.msra.mxu0 %v8839
    %9008 = vmatpush.bf16.msra.mxu0 %v8836
    %9009 = vmatmul.bf16.gmra.mxu0 %v8622
    %v9010 = vpop.f32.mrf.mxu0
    %v9011 = vadd.f32 %v8992, %v9010
    %v9012 = vpop.f32.mrf.mxu0
    %v9013 = vadd.f32 %v8994, %v9012
    %9014 = vmatmul.bf16.gmra.mxu0 %v8625
    %v9015 = vpop.f32.mrf.mxu0
    %v9016 = vadd.f32 %v8997, %v9015
    %v9017 = vpop.f32.mrf.mxu0
    %v9018 = vadd.f32 %v8999, %v9017
    %9019 = vdwg.mxu0
    %9020 = vmatpush.bf16.msra.mxu0 0
    %9021 = vmatpush.bf16.msra.mxu0 0
    %9022 = vmatpush.bf16.msra.mxu0 0
    %9023 = vmatpush.bf16.msra.mxu0 0
    %9024 = vmatpush.bf16.msra.mxu0 0
    %9025 = vmatpush.bf16.msra.mxu0 0
    %9026 = vmatpush.bf16.msra.mxu0 %v8863
    %9027 = vmatpush.bf16.msra.mxu0 %v8860
    %9028 = vmatmul.bf16.gmra.mxu0 %v8920
    %v9029 = vpop.f32.mrf.mxu0
    %v9030 = vadd.f32 %v9011, %v9029
    %v9031 = vpop.f32.mrf.mxu0
    %v9032 = vadd.f32 %v9013, %v9031
    %9033 = vmatmul.bf16.gmra.mxu0 %v8923
    %v9034 = vpop.f32.mrf.mxu0
    %v9035 = vadd.f32 %v9016, %v9034
    %v9036 = vpop.f32.mrf.mxu0
    %v9037 = vadd.f32 %v9018, %v9036
    %9038 = vdwg.mxu0
    %9039 = vmatpush.bf16.msra.mxu0 %v8834
    %9040 = vmatpush.bf16.msra.mxu0 %v8831
    %9041 = vmatpush.bf16.msra.mxu0 %v8828
    %9042 = vmatpush.bf16.msra.mxu0 %v8825
    %9043 = vmatpush.bf16.msra.mxu0 %v8822
    %9044 = vmatpush.bf16.msra.mxu0 %v8819
    %9045 = vmatpush.bf16.msra.mxu0 %v8816
    %9046 = vmatpush.bf16.msra.mxu0 %v8813
    %9047 = vmatmul.bf16.gmra.mxu0 %v8621
    %v9048 = vpop.f32.mrf.mxu0
    %v9049 = vadd.f32 0.0, %v9048
    %v9050 = vpop.f32.mrf.mxu0
    %v9051 = vadd.f32 0.0, %v9050
    %9052 = vmatmul.bf16.gmra.mxu0 %v8624
    %v9053 = vpop.f32.mrf.mxu0
    %v9054 = vadd.f32 0.0, %v9053
    %v9055 = vpop.f32.mrf.mxu0
    %v9056 = vadd.f32 0.0, %v9055
    %9057 = vdwg.mxu0
    %9058 = vmatpush.bf16.msra.mxu0 %v8858
    %9059 = vmatpush.bf16.msra.mxu0 %v8855
    %9060 = vmatpush.bf16.msra.mxu0 %v8852
    %9061 = vmatpush.bf16.msra.mxu0 %v8849
    %9062 = vmatpush.bf16.msra.mxu0 %v8846
    %9063 = vmatpush.bf16.msra.mxu0 %v8843
    %9064 = vmatpush.bf16.msra.mxu0 %v8840
    %9065 = vmatpush.bf16.msra.mxu0 %v8837
    %9066 = vmatmul.bf16.gmra.mxu0 %v8622
    %v9067 = vpop.f32.mrf.mxu0
    %v9068 = vadd.f32 %v9049, %v9067
    %v9069 = vpop.f32.mrf.mxu0
    %v9070 = vadd.f32 %v9051, %v9069
    %9071 = vmatmul.bf16.gmra.mxu0 %v8625
    %v9072 = vpop.f32.mrf.mxu0
    %v9073 = vadd.f32 %v9054, %v9072
    %v9074 = vpop.f32.mrf.mxu0
    %v9075 = vadd.f32 %v9056, %v9074
    %9076 = vdwg.mxu0
    %9077 = vmatpush.bf16.msra.mxu0 0
    %9078 = vmatpush.bf16.msra.mxu0 0
    %9079 = vmatpush.bf16.msra.mxu0 0
    %9080 = vmatpush.bf16.msra.mxu0 0
    %9081 = vmatpush.bf16.msra.mxu0 0
    %9082 = vmatpush.bf16.msra.mxu0 0
    %9083 = vmatpush.bf16.msra.mxu0 %v8864
    %9084 = vmatpush.bf16.msra.mxu0 %v8861
    %9085 = vmatmul.bf16.gmra.mxu0 %v8920
    %v9086 = vpop.f32.mrf.mxu0
    %v9087 = vadd.f32 %v9068, %v9086
    %v9088 = vpop.f32.mrf.mxu0
    %v9089 = vadd.f32 %v9070, %v9088
    %9090 = vmatmul.bf16.gmra.mxu0 %v8923
    %v9091 = vpop.f32.mrf.mxu0
    %v9092 = vadd.f32 %v9073, %v9091
    %v9093 = vpop.f32.mrf.mxu0
    %v9094 = vadd.f32 %v9075, %v9093
    %9095 = vdwg.mxu0
    %v9096 = vadd.f32 %v8516, %v8973
    %v9097 = vadd.f32 %v8517, %v9030
    %v9098 = vadd.f32 %v8518, %v9087
    %v9099 = vadd.f32 %v8519, %v8975
    %v9100 = vadd.f32 %v8520, %v9032
    %v9101 = vadd.f32 %v8521, %v9089
    %v9102 = vadd.f32 %v8522, %v8978
    %v9103 = vadd.f32 %v8523, %v9035
    %v9104 = vadd.f32 %v8524, %v9092
    %v9105 = vadd.f32 %v8525, %v8980
    %v9106 = vadd.f32 %v8526, %v9037
    %v9107 = vadd.f32 %v8527, %v9094
    %v9108 = vld [vmem:[#allocation3 + $0xc] sm:$0xee]
    %v9109 = vld [vmem:[#allocation3 + $0x14] sm:$0xe]
    %v9110 = vld [vmem:[#allocation3 + $0x18] sm:$0xff]
    %v9111 = vld [vmem:[#allocation3 + $0x20] sm:$0xf]
    %v9112 = vld [vmem:[#allocation3 + $0x24] sm:$0x11]
    %v9113 = vld [vmem:[#allocation3 + $0x2c] sm:$0x1]
    %v9114 = vld [vmem:[#allocation3 + $0x3c] sm:$0xee]
    %v9115 = vld [vmem:[#allocation3 + $0x44] sm:$0xe]
    %v9116 = vld [vmem:[#allocation3 + $0x48] sm:$0xff]
    %v9117 = vld [vmem:[#allocation3 + $0x50] sm:$0xf]
    %v9118 = vld [vmem:[#allocation3 + $0x54] sm:$0x11]
    %v9119 = vld [vmem:[#allocation3 + $0x5c] sm:$0x1]
    %v9132 = vrot.slane %v9108, 5
    %v9133 = vrot.slane %v9132, 4
    %v9134 = vrot.slane %v9110, 5
    %v9135 = vsel %vm482, %v9133, %v9134
    %v9136 = vrot.slane %v9109, 5
    %v9137 = vrot.slane %v9136, 4
    %v9138 = vrot.slane %v9111, 5
    %v9139 = vsel %vm482, %v9137, %v9138
    %v9140 = vrot.slane %v9134, 4
    %v9141 = vrot.slane %v9112, 5
    %v9142 = vsel %vm482, %v9140, %v9141
    %v9143 = vrot.slane %v9138, 4
    %v9144 = vrot.slane %v9113, 5
    %v9145 = vsel %vm482, %v9143, %v9144
    %v9146 = vrot.slane %v9114, 5
    %v9147 = vrot.slane %v9146, 4
    %v9148 = vrot.slane %v9116, 5
    %v9149 = vsel %vm482, %v9147, %v9148
    %v9150 = vrot.slane %v9115, 5
    %v9151 = vrot.slane %v9150, 4
    %v9152 = vrot.slane %v9117, 5
    %v9153 = vsel %vm482, %v9151, %v9152
    %v9154 = vrot.slane %v9148, 4
    %v9155 = vrot.slane %v9118, 5
    %v9156 = vsel %vm482, %v9154, %v9155
    %v9157 = vrot.slane %v9152, 4
    %v9158 = vrot.slane %v9119, 5
    %v9159 = vsel %vm482, %v9157, %v9158
    %s9160 = scalar_lea.vmem [#allocation8], 2160
    %v9161 = vld [vmem:[%s9160] sm:$0xff]
    %v9162 = vld [vmem:[%s9160 + $0x8] sm:$0xf]
    %v9163 = vld [vmem:[%s9160 + $0xc] sm:$0xff]
    %v9164 = vld [vmem:[%s9160 + $0x14] sm:$0xf]
    %v9165 = vld [vmem:[%s9160 + $0x18] sm:$0xff]
    %v9166 = vld [vmem:[%s9160 + $0x20] sm:$0xf]
    %v9167 = vld [vmem:[%s9160 + $0x24] sm:$0xff]
    %v9168 = vld [vmem:[%s9160 + $0x2c] sm:$0xf]
    %v9169 = vld [vmem:[%s9160 + $0x30] sm:$0xff]
    %v9170 = vld [vmem:[%s9160 + $0x38] sm:$0xf]
    %v9171 = vld [vmem:[%s9160 + $0x3c] sm:$0xff]
    %v9172 = vld [vmem:[%s9160 + $0x44] sm:$0xf]
    %v9173 = vld [vmem:[%s9160 + $0x48] sm:$0xff]
    %v9174 = vld [vmem:[%s9160 + $0x50] sm:$0xf]
    %v9175 = vld [vmem:[%s9160 + $0x54] sm:$0xff]
    %v9176 = vld [vmem:[%s9160 + $0x5c] sm:$0xf]
    %v9177 = vld [vmem:[%s9160 + $0x60] sm:$0xff]
    %v9178 = vld [vmem:[%s9160 + $0x68] sm:$0xf]
    %v9179 = vld [vmem:[%s9160 + $0x6c] sm:$0xff]
    %v9180 = vld [vmem:[%s9160 + $0x74] sm:$0xf]
    %v9181 = vld [vmem:[%s9160 + $0x78] sm:$0xff]
    %v9182 = vld [vmem:[%s9160 + $0x80] sm:$0xf]
    %v9183 = vld [vmem:[%s9160 + $0x84] sm:$0xff]
    %v9184 = vld [vmem:[%s9160 + $0x8c] sm:$0xf]
    %v9185 = vld [vmem:[%s9160 + $0x90] sm:$0xff]
    %v9186 = vld [vmem:[%s9160 + $0x98] sm:$0xf]
    %v9187 = vld [vmem:[%s9160 + $0x9c] sm:$0xff]
    %v9188 = vld [vmem:[%s9160 + $0xa4] sm:$0xf]
    %v9189 = vld [vmem:[%s9160 + $0xa8] sm:$0xff]
    %v9190 = vld [vmem:[%s9160 + $0xb0] sm:$0xf]
    %v9191 = vld [vmem:[%s9160 + $0xb4] sm:$0xff]
    %v9192 = vld [vmem:[%s9160 + $0xbc] sm:$0xf]
    %v9193 = vld [vmem:[%s9160 + $0xc0] sm:$0xff]
    %v9194 = vld [vmem:[%s9160 + $0xc8] sm:$0xf]
    %v9195 = vld [vmem:[%s9160 + $0xcc] sm:$0xff]
    %v9196 = vld [vmem:[%s9160 + $0xd4] sm:$0xf]
    %v9197 = vld [vmem:[%s9160 + $0xd8] sm:$0xff]
    %v9198 = vld [vmem:[%s9160 + $0xe0] sm:$0xf]
    %v9199 = vld [vmem:[%s9160 + $0xe4] sm:$0xff]
    %v9200 = vld [vmem:[%s9160 + $0xec] sm:$0xf]
    %v9201 = vld [vmem:[%s9160 + $0xf0] sm:$0xff]
    %v9202 = vld [vmem:[%s9160 + $0xf8] sm:$0xf]
    %v9203 = vld [vmem:[%s9160 + $0xfc] sm:$0xff]
    %v9204 = vld [vmem:[%s9160 + $0x104] sm:$0xf]
    %v9205 = vld [vmem:[%s9160 + $0x108] sm:$0xff]
    %v9206 = vld [vmem:[%s9160 + $0x110] sm:$0xf]
    %v9207 = vld [vmem:[%s9160 + $0x114] sm:$0xff]
    %v9208 = vld [vmem:[%s9160 + $0x11c] sm:$0xf]
    %v9209 = vld [vmem:[%s9160 + $0x120] sm:$0xff]
    %v9210 = vld [vmem:[%s9160 + $0x128] sm:$0xf]
    %v9211 = vld [vmem:[%s9160 + $0x12c] sm:$0xff]
    %v9212 = vld [vmem:[%s9160 + $0x134] sm:$0xf]
    %v9213 = vld [vmem:[%s9160 + $0x138] sm:$0xff]
    %v9214 = vld [vmem:[%s9160 + $0x140] sm:$0xf]
    %v9215 = vld [vmem:[%s9160 + $0x144] sm:$0xff]
    %v9216 = vld [vmem:[%s9160 + $0x14c] sm:$0xf]
    %v9217 = vld [vmem:[%s9160 + $0x150] sm:$0xff]
    %v9218 = vld [vmem:[%s9160 + $0x158] sm:$0xf]
    %v9219 = vld [vmem:[%s9160 + $0x15c] sm:$0xff]
    %v9220 = vld [vmem:[%s9160 + $0x164] sm:$0xf]
    %v9221 = vld [vmem:[%s9160 + $0x168] sm:$0xff]
    %v9222 = vld [vmem:[%s9160 + $0x170] sm:$0xf]
    %v9223 = vld [vmem:[%s9160 + $0x174] sm:$0xff]
    %v9224 = vld [vmem:[%s9160 + $0x17c] sm:$0xf]
    %v9225 = vld [vmem:[%s9160 + $0x180] sm:$0xff]
    %v9226 = vld [vmem:[%s9160 + $0x188] sm:$0xf]
    %v9227 = vld [vmem:[%s9160 + $0x18c] sm:$0xff]
    %v9228 = vld [vmem:[%s9160 + $0x194] sm:$0xf]
    %v9229 = vld [vmem:[%s9160 + $0x198] sm:$0xff]
    %v9230 = vld [vmem:[%s9160 + $0x1a0] sm:$0xf]
    %v9231 = vld [vmem:[%s9160 + $0x1a4] sm:$0xff]
    %v9232 = vld [vmem:[%s9160 + $0x1ac] sm:$0xf]
    %v9233 = vunpack.c.l.b16 %v9135
    %v9234 = vunpack.c.h.b16 %v9135
    %v9235 = vunpack.c.l.b16 %v9139
    %v9236 = vunpack.c.l.b16 %v9142
    %v9237 = vunpack.c.h.b16 %v9142
    %v9238 = vunpack.c.l.b16 %v9145
    %v9239 = vunpack.c.l.b16 %v9149
    %v9240 = vunpack.c.h.b16 %v9149
    %v9241 = vunpack.c.l.b16 %v9153
    %v9242 = vunpack.c.l.b16 %v9156
    %v9243 = vunpack.c.h.b16 %v9156
    %v9244 = vunpack.c.l.b16 %v9159
    %v9245 = vpack.c.b16 %v9236, %v9233
    %v9246 = vpack.c.b16 %v9237, %v9234
    %v9247 = vpack.c.b16 %v9238, %v9235
    %v9248 = vpack.c.b16 %v9242, %v9239
    %v9249 = vpack.c.b16 %v9243, %v9240
    %v9250 = vpack.c.b16 %v9244, %v9241
    %v9327 = vunpack.c.l.b16 %v9161
    %v9328 = vunpack.c.h.b16 %v9161
    %v9329 = vunpack.c.l.b16 %v9162
    %v9330 = vunpack.c.l.b16 %v9163
    %v9331 = vunpack.c.h.b16 %v9163
    %v9332 = vunpack.c.l.b16 %v9164
    %v9333 = vunpack.c.l.b16 %v9165
    %v9334 = vunpack.c.h.b16 %v9165
    %v9335 = vunpack.c.l.b16 %v9166
    %v9336 = vunpack.c.l.b16 %v9167
    %v9337 = vunpack.c.h.b16 %v9167
    %v9338 = vunpack.c.l.b16 %v9168
    %v9339 = vunpack.c.l.b16 %v9169
    %v9340 = vunpack.c.h.b16 %v9169
    %v9341 = vunpack.c.l.b16 %v9170
    %v9342 = vunpack.c.l.b16 %v9171
    %v9343 = vunpack.c.h.b16 %v9171
    %v9344 = vunpack.c.l.b16 %v9172
    %v9345 = vunpack.c.l.b16 %v9173
    %v9346 = vunpack.c.h.b16 %v9173
    %v9347 = vunpack.c.l.b16 %v9174
    %v9348 = vunpack.c.l.b16 %v9175
    %v9349 = vunpack.c.h.b16 %v9175
    %v9350 = vunpack.c.l.b16 %v9176
    %v9351 = vunpack.c.l.b16 %v9177
    %v9352 = vunpack.c.h.b16 %v9177
    %v9353 = vunpack.c.l.b16 %v9178
    %v9354 = vunpack.c.l.b16 %v9179
    %v9355 = vunpack.c.h.b16 %v9179
    %v9356 = vunpack.c.l.b16 %v9180
    %v9357 = vunpack.c.l.b16 %v9181
    %v9358 = vunpack.c.h.b16 %v9181
    %v9359 = vunpack.c.l.b16 %v9182
    %v9360 = vunpack.c.l.b16 %v9183
    %v9361 = vunpack.c.h.b16 %v9183
    %v9362 = vunpack.c.l.b16 %v9184
    %v9363 = vunpack.c.l.b16 %v9185
    %v9364 = vunpack.c.h.b16 %v9185
    %v9365 = vunpack.c.l.b16 %v9186
    %v9366 = vunpack.c.l.b16 %v9187
    %v9367 = vunpack.c.h.b16 %v9187
    %v9368 = vunpack.c.l.b16 %v9188
    %v9369 = vunpack.c.l.b16 %v9189
    %v9370 = vunpack.c.h.b16 %v9189
    %v9371 = vunpack.c.l.b16 %v9190
    %v9372 = vunpack.c.l.b16 %v9191
    %v9373 = vunpack.c.h.b16 %v9191
    %v9374 = vunpack.c.l.b16 %v9192
    %v9375 = vunpack.c.l.b16 %v9193
    %v9376 = vunpack.c.h.b16 %v9193
    %v9377 = vunpack.c.l.b16 %v9194
    %v9378 = vunpack.c.l.b16 %v9195
    %v9379 = vunpack.c.h.b16 %v9195
    %v9380 = vunpack.c.l.b16 %v9196
    %v9381 = vunpack.c.l.b16 %v9197
    %v9382 = vunpack.c.h.b16 %v9197
    %v9383 = vunpack.c.l.b16 %v9198
    %v9384 = vunpack.c.l.b16 %v9199
    %v9385 = vunpack.c.h.b16 %v9199
    %v9386 = vunpack.c.l.b16 %v9200
    %v9387 = vunpack.c.l.b16 %v9201
    %v9388 = vunpack.c.h.b16 %v9201
    %v9389 = vunpack.c.l.b16 %v9202
    %v9390 = vunpack.c.l.b16 %v9203
    %v9391 = vunpack.c.h.b16 %v9203
    %v9392 = vunpack.c.l.b16 %v9204
    %v9393 = vunpack.c.l.b16 %v9205
    %v9394 = vunpack.c.h.b16 %v9205
    %v9395 = vunpack.c.l.b16 %v9206
    %v9396 = vunpack.c.l.b16 %v9207
    %v9397 = vunpack.c.h.b16 %v9207
    %v9398 = vunpack.c.l.b16 %v9208
    %v9399 = vunpack.c.l.b16 %v9209
    %v9400 = vunpack.c.h.b16 %v9209
    %v9401 = vunpack.c.l.b16 %v9210
    %v9402 = vunpack.c.l.b16 %v9211
    %v9403 = vunpack.c.h.b16 %v9211
    %v9404 = vunpack.c.l.b16 %v9212
    %v9405 = vunpack.c.l.b16 %v9213
    %v9406 = vunpack.c.h.b16 %v9213
    %v9407 = vunpack.c.l.b16 %v9214
    %v9408 = vunpack.c.l.b16 %v9215
    %v9409 = vunpack.c.h.b16 %v9215
    %v9410 = vunpack.c.l.b16 %v9216
    %v9411 = vunpack.c.l.b16 %v9217
    %v9412 = vunpack.c.h.b16 %v9217
    %v9413 = vunpack.c.l.b16 %v9218
    %v9414 = vunpack.c.l.b16 %v9219
    %v9415 = vunpack.c.h.b16 %v9219
    %v9416 = vunpack.c.l.b16 %v9220
    %v9417 = vunpack.c.l.b16 %v9221
    %v9418 = vunpack.c.h.b16 %v9221
    %v9419 = vunpack.c.l.b16 %v9222
    %v9420 = vunpack.c.l.b16 %v9223
    %v9421 = vunpack.c.h.b16 %v9223
    %v9422 = vunpack.c.l.b16 %v9224
    %v9423 = vunpack.c.l.b16 %v9225
    %v9424 = vunpack.c.h.b16 %v9225
    %v9425 = vunpack.c.l.b16 %v9226
    %v9426 = vunpack.c.l.b16 %v9227
    %v9427 = vunpack.c.h.b16 %v9227
    %v9428 = vunpack.c.l.b16 %v9228
    %v9429 = vunpack.c.l.b16 %v9229
    %v9430 = vunpack.c.h.b16 %v9229
    %v9431 = vunpack.c.l.b16 %v9230
    %v9432 = vunpack.c.l.b16 %v9231
    %v9433 = vunpack.c.h.b16 %v9231
    %v9434 = vunpack.c.l.b16 %v9232
    %v9435 = vpack.c.b16 %v9330, %v9327
    %v9436 = vpack.c.b16 %v9331, %v9328
    %v9437 = vpack.c.b16 %v9332, %v9329
    %v9438 = vpack.c.b16 %v9336, %v9333
    %v9439 = vpack.c.b16 %v9337, %v9334
    %v9440 = vpack.c.b16 %v9338, %v9335
    %v9441 = vpack.c.b16 %v9342, %v9339
    %v9442 = vpack.c.b16 %v9343, %v9340
    %v9443 = vpack.c.b16 %v9344, %v9341
    %v9444 = vpack.c.b16 %v9348, %v9345
    %v9445 = vpack.c.b16 %v9349, %v9346
    %v9446 = vpack.c.b16 %v9350, %v9347
    %v9447 = vpack.c.b16 %v9354, %v9351
    %v9448 = vpack.c.b16 %v9355, %v9352
    %v9449 = vpack.c.b16 %v9356, %v9353
    %v9450 = vpack.c.b16 %v9360, %v9357
    %v9451 = vpack.c.b16 %v9361, %v9358
    %v9452 = vpack.c.b16 %v9362, %v9359
    %v9453 = vpack.c.b16 %v9366, %v9363
    %v9454 = vpack.c.b16 %v9367, %v9364
    %v9455 = vpack.c.b16 %v9368, %v9365
    %v9456 = vpack.c.b16 %v9372, %v9369
    %v9457 = vpack.c.b16 %v9373, %v9370
    %v9458 = vpack.c.b16 %v9374, %v9371
    %v9459 = vpack.c.b16 %v9378, %v9375
    %v9460 = vpack.c.b16 %v9379, %v9376
    %v9461 = vpack.c.b16 %v9380, %v9377
    %v9462 = vpack.c.b16 %v9384, %v9381
    %v9463 = vpack.c.b16 %v9385, %v9382
    %v9464 = vpack.c.b16 %v9386, %v9383
    %v9465 = vpack.c.b16 %v9390, %v9387
    %v9466 = vpack.c.b16 %v9391, %v9388
    %v9467 = vpack.c.b16 %v9392, %v9389
    %v9468 = vpack.c.b16 %v9396, %v9393
    %v9469 = vpack.c.b16 %v9397, %v9394
    %v9470 = vpack.c.b16 %v9398, %v9395
    %v9471 = vpack.c.b16 %v9402, %v9399
    %v9472 = vpack.c.b16 %v9403, %v9400
    %v9473 = vpack.c.b16 %v9404, %v9401
    %v9474 = vpack.c.b16 %v9408, %v9405
    %v9475 = vpack.c.b16 %v9409, %v9406
    %v9476 = vpack.c.b16 %v9410, %v9407
    %v9477 = vpack.c.b16 %v9414, %v9411
    %v9478 = vpack.c.b16 %v9415, %v9412
    %v9479 = vpack.c.b16 %v9416, %v9413
    %v9480 = vpack.c.b16 %v9420, %v9417
    %v9481 = vpack.c.b16 %v9421, %v9418
    %v9482 = vpack.c.b16 %v9422, %v9419
    %v9483 = vpack.c.b16 %v9426, %v9423
    %v9484 = vpack.c.b16 %v9427, %v9424
    %v9485 = vpack.c.b16 %v9428, %v9425
    %v9486 = vpack.c.b16 %v9432, %v9429
    %v9487 = vpack.c.b16 %v9433, %v9430
    %v9488 = vpack.c.b16 %v9434, %v9431
    %v9544 = vsel %vm1944, %v9247, 0
    %v9547 = vsel %vm1944, %v9250, 0
    %9549 = vmatpush.bf16.msra.mxu0 %v9456
    %9550 = vmatpush.bf16.msra.mxu0 %v9453
    %9551 = vmatpush.bf16.msra.mxu0 %v9450
    %9552 = vmatpush.bf16.msra.mxu0 %v9447
    %9553 = vmatpush.bf16.msra.mxu0 %v9444
    %9554 = vmatpush.bf16.msra.mxu0 %v9441
    %9555 = vmatpush.bf16.msra.mxu0 %v9438
    %9556 = vmatpush.bf16.msra.mxu0 %v9435
    %9557 = vmatmul.bf16.gmra.mxu0 %v9245
    %v9558 = vpop.f32.mrf.mxu0
    %v9559 = vadd.f32 0.0, %v9558
    %v9560 = vpop.f32.mrf.mxu0
    %v9561 = vadd.f32 0.0, %v9560
    %9562 = vmatmul.bf16.gmra.mxu0 %v9248
    %v9563 = vpop.f32.mrf.mxu0
    %v9564 = vadd.f32 0.0, %v9563
    %v9565 = vpop.f32.mrf.mxu0
    %v9566 = vadd.f32 0.0, %v9565
    %9567 = vdwg.mxu0
    %9568 = vmatpush.bf16.msra.mxu0 %v9480
    %9569 = vmatpush.bf16.msra.mxu0 %v9477
    %9570 = vmatpush.bf16.msra.mxu0 %v9474
    %9571 = vmatpush.bf16.msra.mxu0 %v9471
    %9572 = vmatpush.bf16.msra.mxu0 %v9468
    %9573 = vmatpush.bf16.msra.mxu0 %v9465
    %9574 = vmatpush.bf16.msra.mxu0 %v9462
    %9575 = vmatpush.bf16.msra.mxu0 %v9459
    %9576 = vmatmul.bf16.gmra.mxu0 %v9246
    %v9577 = vpop.f32.mrf.mxu0
    %v9578 = vadd.f32 %v9559, %v9577
    %v9579 = vpop.f32.mrf.mxu0
    %v9580 = vadd.f32 %v9561, %v9579
    %9581 = vmatmul.bf16.gmra.mxu0 %v9249
    %v9582 = vpop.f32.mrf.mxu0
    %v9583 = vadd.f32 %v9564, %v9582
    %v9584 = vpop.f32.mrf.mxu0
    %v9585 = vadd.f32 %v9566, %v9584
    %9586 = vdwg.mxu0
    %9587 = vmatpush.bf16.msra.mxu0 0
    %9588 = vmatpush.bf16.msra.mxu0 0
    %9589 = vmatpush.bf16.msra.mxu0 0
    %9590 = vmatpush.bf16.msra.mxu0 0
    %9591 = vmatpush.bf16.msra.mxu0 0
    %9592 = vmatpush.bf16.msra.mxu0 0
    %9593 = vmatpush.bf16.msra.mxu0 %v9486
    %9594 = vmatpush.bf16.msra.mxu0 %v9483
    %9595 = vmatmul.bf16.gmra.mxu0 %v9544
    %v9596 = vpop.f32.mrf.mxu0
    %v9597 = vadd.f32 %v9578, %v9596
    %v9598 = vpop.f32.mrf.mxu0
    %v9599 = vadd.f32 %v9580, %v9598
    %9600 = vmatmul.bf16.gmra.mxu0 %v9547
    %v9601 = vpop.f32.mrf.mxu0
    %v9602 = vadd.f32 %v9583, %v9601
    %v9603 = vpop.f32.mrf.mxu0
    %v9604 = vadd.f32 %v9585, %v9603
    %9605 = vdwg.mxu0
    %9606 = vmatpush.bf16.msra.mxu0 %v9457
    %9607 = vmatpush.bf16.msra.mxu0 %v9454
    %9608 = vmatpush.bf16.msra.mxu0 %v9451
    %9609 = vmatpush.bf16.msra.mxu0 %v9448
    %9610 = vmatpush.bf16.msra.mxu0 %v9445
    %9611 = vmatpush.bf16.msra.mxu0 %v9442
    %9612 = vmatpush.bf16.msra.mxu0 %v9439
    %9613 = vmatpush.bf16.msra.mxu0 %v9436
    %9614 = vmatmul.bf16.gmra.mxu0 %v9245
    %v9615 = vpop.f32.mrf.mxu0
    %v9616 = vadd.f32 0.0, %v9615
    %v9617 = vpop.f32.mrf.mxu0
    %v9618 = vadd.f32 0.0, %v9617
    %9619 = vmatmul.bf16.gmra.mxu0 %v9248
    %v9620 = vpop.f32.mrf.mxu0
    %v9621 = vadd.f32 0.0, %v9620
    %v9622 = vpop.f32.mrf.mxu0
    %v9623 = vadd.f32 0.0, %v9622
    %9624 = vdwg.mxu0
    %9625 = vmatpush.bf16.msra.mxu0 %v9481
    %9626 = vmatpush.bf16.msra.mxu0 %v9478
    %9627 = vmatpush.bf16.msra.mxu0 %v9475
    %9628 = vmatpush.bf16.msra.mxu0 %v9472
    %9629 = vmatpush.bf16.msra.mxu0 %v9469
    %9630 = vmatpush.bf16.msra.mxu0 %v9466
    %9631 = vmatpush.bf16.msra.mxu0 %v9463
    %9632 = vmatpush.bf16.msra.mxu0 %v9460
    %9633 = vmatmul.bf16.gmra.mxu0 %v9246
    %v9634 = vpop.f32.mrf.mxu0
    %v9635 = vadd.f32 %v9616, %v9634
    %v9636 = vpop.f32.mrf.mxu0
    %v9637 = vadd.f32 %v9618, %v9636
    %9638 = vmatmul.bf16.gmra.mxu0 %v9249
    %v9639 = vpop.f32.mrf.mxu0
    %v9640 = vadd.f32 %v9621, %v9639
    %v9641 = vpop.f32.mrf.mxu0
    %v9642 = vadd.f32 %v9623, %v9641
    %9643 = vdwg.mxu0
    %9644 = vmatpush.bf16.msra.mxu0 0
    %9645 = vmatpush.bf16.msra.mxu0 0
    %9646 = vmatpush.bf16.msra.mxu0 0
    %9647 = vmatpush.bf16.msra.mxu0 0
    %9648 = vmatpush.bf16.msra.mxu0 0
    %9649 = vmatpush.bf16.msra.mxu0 0
    %9650 = vmatpush.bf16.msra.mxu0 %v9487
    %9651 = vmatpush.bf16.msra.mxu0 %v9484
    %9652 = vmatmul.bf16.gmra.mxu0 %v9544
    %v9653 = vpop.f32.mrf.mxu0
    %v9654 = vadd.f32 %v9635, %v9653
    %v9655 = vpop.f32.mrf.mxu0
    %v9656 = vadd.f32 %v9637, %v9655
    %9657 = vmatmul.bf16.gmra.mxu0 %v9547
    %v9658 = vpop.f32.mrf.mxu0
    %v9659 = vadd.f32 %v9640, %v9658
    %v9660 = vpop.f32.mrf.mxu0
    %v9661 = vadd.f32 %v9642, %v9660
    %9662 = vdwg.mxu0
    %9663 = vmatpush.bf16.msra.mxu0 %v9458
    %9664 = vmatpush.bf16.msra.mxu0 %v9455
    %9665 = vmatpush.bf16.msra.mxu0 %v9452
    %9666 = vmatpush.bf16.msra.mxu0 %v9449
    %9667 = vmatpush.bf16.msra.mxu0 %v9446
    %9668 = vmatpush.bf16.msra.mxu0 %v9443
    %9669 = vmatpush.bf16.msra.mxu0 %v9440
    %9670 = vmatpush.bf16.msra.mxu0 %v9437
    %9671 = vmatmul.bf16.gmra.mxu0 %v9245
    %v9672 = vpop.f32.mrf.mxu0
    %v9673 = vadd.f32 0.0, %v9672
    %v9674 = vpop.f32.mrf.mxu0
    %v9675 = vadd.f32 0.0, %v9674
    %9676 = vmatmul.bf16.gmra.mxu0 %v9248
    %v9677 = vpop.f32.mrf.mxu0
    %v9678 = vadd.f32 0.0, %v9677
    %v9679 = vpop.f32.mrf.mxu0
    %v9680 = vadd.f32 0.0, %v9679
    %9681 = vdwg.mxu0
    %9682 = vmatpush.bf16.msra.mxu0 %v9482
    %9683 = vmatpush.bf16.msra.mxu0 %v9479
    %9684 = vmatpush.bf16.msra.mxu0 %v9476
    %9685 = vmatpush.bf16.msra.mxu0 %v9473
    %9686 = vmatpush.bf16.msra.mxu0 %v9470
    %9687 = vmatpush.bf16.msra.mxu0 %v9467
    %9688 = vmatpush.bf16.msra.mxu0 %v9464
    %9689 = vmatpush.bf16.msra.mxu0 %v9461
    %9690 = vmatmul.bf16.gmra.mxu0 %v9246
    %v9691 = vpop.f32.mrf.mxu0
    %v9692 = vadd.f32 %v9673, %v9691
    %v9693 = vpop.f32.mrf.mxu0
    %v9694 = vadd.f32 %v9675, %v9693
    %9695 = vmatmul.bf16.gmra.mxu0 %v9249
    %v9696 = vpop.f32.mrf.mxu0
    %v9697 = vadd.f32 %v9678, %v9696
    %v9698 = vpop.f32.mrf.mxu0
    %v9699 = vadd.f32 %v9680, %v9698
    %9700 = vdwg.mxu0
    %9701 = vmatpush.bf16.msra.mxu0 0
    %9702 = vmatpush.bf16.msra.mxu0 0
    %9703 = vmatpush.bf16.msra.mxu0 0
    %9704 = vmatpush.bf16.msra.mxu0 0
    %9705 = vmatpush.bf16.msra.mxu0 0
    %9706 = vmatpush.bf16.msra.mxu0 0
    %9707 = vmatpush.bf16.msra.mxu0 %v9488
    %9708 = vmatpush.bf16.msra.mxu0 %v9485
    %9709 = vmatmul.bf16.gmra.mxu0 %v9544
    %v9710 = vpop.f32.mrf.mxu0
    %v9711 = vadd.f32 %v9692, %v9710
    %v9712 = vpop.f32.mrf.mxu0
    %v9713 = vadd.f32 %v9694, %v9712
    %9714 = vmatmul.bf16.gmra.mxu0 %v9547
    %v9715 = vpop.f32.mrf.mxu0
    %v9716 = vadd.f32 %v9697, %v9715
    %v9717 = vpop.f32.mrf.mxu0
    %v9718 = vadd.f32 %v9699, %v9717
    %9719 = vdwg.mxu0
    %v9720 = vadd.f32 %v9096, %v9597
    %v9721 = vadd.f32 %v9097, %v9654
    %v9722 = vadd.f32 %v9098, %v9711
    %v9723 = vadd.f32 %v9099, %v9599
    %v9724 = vadd.f32 %v9100, %v9656
    %v9725 = vadd.f32 %v9101, %v9713
    %v9726 = vadd.f32 %v9102, %v9602
    %v9727 = vadd.f32 %v9103, %v9659
    %v9728 = vadd.f32 %v9104, %v9716
    %v9729 = vadd.f32 %v9105, %v9604
    %v9730 = vadd.f32 %v9106, %v9661
    %v9731 = vadd.f32 %v9107, %v9718
    %v9732 = vld [vmem:[#allocation3 + $0xc] sm:$0xcc]
    %v9733 = vld [vmem:[#allocation3 + $0x14] sm:$0xc]
    %v9734 = vld [vmem:[#allocation3 + $0x24] sm:$0x33]
    %v9735 = vld [vmem:[#allocation3 + $0x2c] sm:$0x3]
    %v9736 = vld [vmem:[#allocation3 + $0x3c] sm:$0xcc]
    %v9737 = vld [vmem:[#allocation3 + $0x44] sm:$0xc]
    %v9738 = vld [vmem:[#allocation3 + $0x54] sm:$0x33]
    %v9739 = vld [vmem:[#allocation3 + $0x5c] sm:$0x3]
    %v9748 = vrot.slane %v9732, 6
    %v9749 = vrot.slane %v9748, 4
    %v9750 = vrot.slane %v9110, 6
    %v9751 = vsel %vm840, %v9749, %v9750
    %v9752 = vrot.slane %v9733, 6
    %v9753 = vrot.slane %v9752, 4
    %v9754 = vrot.slane %v9111, 6
    %v9755 = vsel %vm840, %v9753, %v9754
    %v9756 = vrot.slane %v9750, 4
    %v9757 = vrot.slane %v9734, 6
    %v9758 = vsel %vm840, %v9756, %v9757
    %v9759 = vrot.slane %v9754, 4
    %v9760 = vrot.slane %v9735, 6
    %v9761 = vsel %vm840, %v9759, %v9760
    %v9762 = vrot.slane %v9736, 6
    %v9763 = vrot.slane %v9762, 4
    %v9764 = vrot.slane %v9116, 6
    %v9765 = vsel %vm840, %v9763, %v9764
    %v9766 = vrot.slane %v9737, 6
    %v9767 = vrot.slane %v9766, 4
    %v9768 = vrot.slane %v9117, 6
    %v9769 = vsel %vm840, %v9767, %v9768
    %v9770 = vrot.slane %v9764, 4
    %v9771 = vrot.slane %v9738, 6
    %v9772 = vsel %vm840, %v9770, %v9771
    %v9773 = vrot.slane %v9768, 4
    %v9774 = vrot.slane %v9739, 6
    %v9775 = vsel %vm840, %v9773, %v9774
    %s9776 = scalar_lea.vmem [#allocation8], 2592
    %v9777 = vld [vmem:[%s9776] sm:$0xff]
    %v9778 = vld [vmem:[%s9776 + $0x8] sm:$0xf]
    %v9779 = vld [vmem:[%s9776 + $0xc] sm:$0xff]
    %v9780 = vld [vmem:[%s9776 + $0x14] sm:$0xf]
    %v9781 = vld [vmem:[%s9776 + $0x18] sm:$0xff]
    %v9782 = vld [vmem:[%s9776 + $0x20] sm:$0xf]
    %v9783 = vld [vmem:[%s9776 + $0x24] sm:$0xff]
    %v9784 = vld [vmem:[%s9776 + $0x2c] sm:$0xf]
    %v9785 = vld [vmem:[%s9776 + $0x30] sm:$0xff]
    %v9786 = vld [vmem:[%s9776 + $0x38] sm:$0xf]
    %v9787 = vld [vmem:[%s9776 + $0x3c] sm:$0xff]
    %v9788 = vld [vmem:[%s9776 + $0x44] sm:$0xf]
    %v9789 = vld [vmem:[%s9776 + $0x48] sm:$0xff]
    %v9790 = vld [vmem:[%s9776 + $0x50] sm:$0xf]
    %v9791 = vld [vmem:[%s9776 + $0x54] sm:$0xff]
    %v9792 = vld [vmem:[%s9776 + $0x5c] sm:$0xf]
    %v9793 = vld [vmem:[%s9776 + $0x60] sm:$0xff]
    %v9794 = vld [vmem:[%s9776 + $0x68] sm:$0xf]
    %v9795 = vld [vmem:[%s9776 + $0x6c] sm:$0xff]
    %v9796 = vld [vmem:[%s9776 + $0x74] sm:$0xf]
    %v9797 = vld [vmem:[%s9776 + $0x78] sm:$0xff]
    %v9798 = vld [vmem:[%s9776 + $0x80] sm:$0xf]
    %v9799 = vld [vmem:[%s9776 + $0x84] sm:$0xff]
    %v9800 = vld [vmem:[%s9776 + $0x8c] sm:$0xf]
    %v9801 = vld [vmem:[%s9776 + $0x90] sm:$0xff]
    %v9802 = vld [vmem:[%s9776 + $0x98] sm:$0xf]
    %v9803 = vld [vmem:[%s9776 + $0x9c] sm:$0xff]
    %v9804 = vld [vmem:[%s9776 + $0xa4] sm:$0xf]
    %v9805 = vld [vmem:[%s9776 + $0xa8] sm:$0xff]
    %v9806 = vld [vmem:[%s9776 + $0xb0] sm:$0xf]
    %v9807 = vld [vmem:[%s9776 + $0xb4] sm:$0xff]
    %v9808 = vld [vmem:[%s9776 + $0xbc] sm:$0xf]
    %v9809 = vld [vmem:[%s9776 + $0xc0] sm:$0xff]
    %v9810 = vld [vmem:[%s9776 + $0xc8] sm:$0xf]
    %v9811 = vld [vmem:[%s9776 + $0xcc] sm:$0xff]
    %v9812 = vld [vmem:[%s9776 + $0xd4] sm:$0xf]
    %v9813 = vld [vmem:[%s9776 + $0xd8] sm:$0xff]
    %v9814 = vld [vmem:[%s9776 + $0xe0] sm:$0xf]
    %v9815 = vld [vmem:[%s9776 + $0xe4] sm:$0xff]
    %v9816 = vld [vmem:[%s9776 + $0xec] sm:$0xf]
    %v9817 = vld [vmem:[%s9776 + $0xf0] sm:$0xff]
    %v9818 = vld [vmem:[%s9776 + $0xf8] sm:$0xf]
    %v9819 = vld [vmem:[%s9776 + $0xfc] sm:$0xff]
    %v9820 = vld [vmem:[%s9776 + $0x104] sm:$0xf]
    %v9821 = vld [vmem:[%s9776 + $0x108] sm:$0xff]
    %v9822 = vld [vmem:[%s9776 + $0x110] sm:$0xf]
    %v9823 = vld [vmem:[%s9776 + $0x114] sm:$0xff]
    %v9824 = vld [vmem:[%s9776 + $0x11c] sm:$0xf]
    %v9825 = vld [vmem:[%s9776 + $0x120] sm:$0xff]
    %v9826 = vld [vmem:[%s9776 + $0x128] sm:$0xf]
    %v9827 = vld [vmem:[%s9776 + $0x12c] sm:$0xff]
    %v9828 = vld [vmem:[%s9776 + $0x134] sm:$0xf]
    %v9829 = vld [vmem:[%s9776 + $0x138] sm:$0xff]
    %v9830 = vld [vmem:[%s9776 + $0x140] sm:$0xf]
    %v9831 = vld [vmem:[%s9776 + $0x144] sm:$0xff]
    %v9832 = vld [vmem:[%s9776 + $0x14c] sm:$0xf]
    %v9833 = vld [vmem:[%s9776 + $0x150] sm:$0xff]
    %v9834 = vld [vmem:[%s9776 + $0x158] sm:$0xf]
    %v9835 = vld [vmem:[%s9776 + $0x15c] sm:$0xff]
    %v9836 = vld [vmem:[%s9776 + $0x164] sm:$0xf]
    %v9837 = vld [vmem:[%s9776 + $0x168] sm:$0xff]
    %v9838 = vld [vmem:[%s9776 + $0x170] sm:$0xf]
    %v9839 = vld [vmem:[%s9776 + $0x174] sm:$0xff]
    %v9840 = vld [vmem:[%s9776 + $0x17c] sm:$0xf]
    %v9841 = vld [vmem:[%s9776 + $0x180] sm:$0xff]
    %v9842 = vld [vmem:[%s9776 + $0x188] sm:$0xf]
    %v9843 = vld [vmem:[%s9776 + $0x18c] sm:$0xff]
    %v9844 = vld [vmem:[%s9776 + $0x194] sm:$0xf]
    %v9845 = vld [vmem:[%s9776 + $0x198] sm:$0xff]
    %v9846 = vld [vmem:[%s9776 + $0x1a0] sm:$0xf]
    %v9847 = vld [vmem:[%s9776 + $0x1a4] sm:$0xff]
    %v9848 = vld [vmem:[%s9776 + $0x1ac] sm:$0xf]
    %v9849 = vunpack.c.l.b16 %v9751
    %v9850 = vunpack.c.h.b16 %v9751
    %v9851 = vunpack.c.l.b16 %v9755
    %v9852 = vunpack.c.l.b16 %v9758
    %v9853 = vunpack.c.h.b16 %v9758
    %v9854 = vunpack.c.l.b16 %v9761
    %v9855 = vunpack.c.l.b16 %v9765
    %v9856 = vunpack.c.h.b16 %v9765
    %v9857 = vunpack.c.l.b16 %v9769
    %v9858 = vunpack.c.l.b16 %v9772
    %v9859 = vunpack.c.h.b16 %v9772
    %v9860 = vunpack.c.l.b16 %v9775
    %v9861 = vpack.c.b16 %v9852, %v9849
    %v9862 = vpack.c.b16 %v9853, %v9850
    %v9863 = vpack.c.b16 %v9854, %v9851
    %v9864 = vpack.c.b16 %v9858, %v9855
    %v9865 = vpack.c.b16 %v9859, %v9856
    %v9866 = vpack.c.b16 %v9860, %v9857
    %v9943 = vunpack.c.l.b16 %v9777
    %v9944 = vunpack.c.h.b16 %v9777
    %v9945 = vunpack.c.l.b16 %v9778
    %v9946 = vunpack.c.l.b16 %v9779
    %v9947 = vunpack.c.h.b16 %v9779
    %v9948 = vunpack.c.l.b16 %v9780
    %v9949 = vunpack.c.l.b16 %v9781
    %v9950 = vunpack.c.h.b16 %v9781
    %v9951 = vunpack.c.l.b16 %v9782
    %v9952 = vunpack.c.l.b16 %v9783
    %v9953 = vunpack.c.h.b16 %v9783
    %v9954 = vunpack.c.l.b16 %v9784
    %v9955 = vunpack.c.l.b16 %v9785
    %v9956 = vunpack.c.h.b16 %v9785
    %v9957 = vunpack.c.l.b16 %v9786
    %v9958 = vunpack.c.l.b16 %v9787
    %v9959 = vunpack.c.h.b16 %v9787
    %v9960 = vunpack.c.l.b16 %v9788
    %v9961 = vunpack.c.l.b16 %v9789
    %v9962 = vunpack.c.h.b16 %v9789
    %v9963 = vunpack.c.l.b16 %v9790
    %v9964 = vunpack.c.l.b16 %v9791
    %v9965 = vunpack.c.h.b16 %v9791
    %v9966 = vunpack.c.l.b16 %v9792
    %v9967 = vunpack.c.l.b16 %v9793
    %v9968 = vunpack.c.h.b16 %v9793
    %v9969 = vunpack.c.l.b16 %v9794
    %v9970 = vunpack.c.l.b16 %v9795
    %v9971 = vunpack.c.h.b16 %v9795
    %v9972 = vunpack.c.l.b16 %v9796
    %v9973 = vunpack.c.l.b16 %v9797
    %v9974 = vunpack.c.h.b16 %v9797
    %v9975 = vunpack.c.l.b16 %v9798
    %v9976 = vunpack.c.l.b16 %v9799
    %v9977 = vunpack.c.h.b16 %v9799
    %v9978 = vunpack.c.l.b16 %v9800
    %v9979 = vunpack.c.l.b16 %v9801
    %v9980 = vunpack.c.h.b16 %v9801
    %v9981 = vunpack.c.l.b16 %v9802
    %v9982 = vunpack.c.l.b16 %v9803
    %v9983 = vunpack.c.h.b16 %v9803
    %v9984 = vunpack.c.l.b16 %v9804
    %v9985 = vunpack.c.l.b16 %v9805
    %v9986 = vunpack.c.h.b16 %v9805
    %v9987 = vunpack.c.l.b16 %v9806
    %v9988 = vunpack.c.l.b16 %v9807
    %v9989 = vunpack.c.h.b16 %v9807
    %v9990 = vunpack.c.l.b16 %v9808
    %v9991 = vunpack.c.l.b16 %v9809
    %v9992 = vunpack.c.h.b16 %v9809
    %v9993 = vunpack.c.l.b16 %v9810
    %v9994 = vunpack.c.l.b16 %v9811
    %v9995 = vunpack.c.h.b16 %v9811
    %v9996 = vunpack.c.l.b16 %v9812
    %v9997 = vunpack.c.l.b16 %v9813
    %v9998 = vunpack.c.h.b16 %v9813
    %v9999 = vunpack.c.l.b16 %v9814
    %v10000 = vunpack.c.l.b16 %v9815
    %v10001 = vunpack.c.h.b16 %v9815
    %v10002 = vunpack.c.l.b16 %v9816
    %v10003 = vunpack.c.l.b16 %v9817
    %v10004 = vunpack.c.h.b16 %v9817
    %v10005 = vunpack.c.l.b16 %v9818
    %v10006 = vunpack.c.l.b16 %v9819
    %v10007 = vunpack.c.h.b16 %v9819
    %v10008 = vunpack.c.l.b16 %v9820
    %v10009 = vunpack.c.l.b16 %v9821
    %v10010 = vunpack.c.h.b16 %v9821
    %v10011 = vunpack.c.l.b16 %v9822
    %v10012 = vunpack.c.l.b16 %v9823
    %v10013 = vunpack.c.h.b16 %v9823
    %v10014 = vunpack.c.l.b16 %v9824
    %v10015 = vunpack.c.l.b16 %v9825
    %v10016 = vunpack.c.h.b16 %v9825
    %v10017 = vunpack.c.l.b16 %v9826
    %v10018 = vunpack.c.l.b16 %v9827
    %v10019 = vunpack.c.h.b16 %v9827
    %v10020 = vunpack.c.l.b16 %v9828
    %v10021 = vunpack.c.l.b16 %v9829
    %v10022 = vunpack.c.h.b16 %v9829
    %v10023 = vunpack.c.l.b16 %v9830
    %v10024 = vunpack.c.l.b16 %v9831
    %v10025 = vunpack.c.h.b16 %v9831
    %v10026 = vunpack.c.l.b16 %v9832
    %v10027 = vunpack.c.l.b16 %v9833
    %v10028 = vunpack.c.h.b16 %v9833
    %v10029 = vunpack.c.l.b16 %v9834
    %v10030 = vunpack.c.l.b16 %v9835
    %v10031 = vunpack.c.h.b16 %v9835
    %v10032 = vunpack.c.l.b16 %v9836
    %v10033 = vunpack.c.l.b16 %v9837
    %v10034 = vunpack.c.h.b16 %v9837
    %v10035 = vunpack.c.l.b16 %v9838
    %v10036 = vunpack.c.l.b16 %v9839
    %v10037 = vunpack.c.h.b16 %v9839
    %v10038 = vunpack.c.l.b16 %v9840
    %v10039 = vunpack.c.l.b16 %v9841
    %v10040 = vunpack.c.h.b16 %v9841
    %v10041 = vunpack.c.l.b16 %v9842
    %v10042 = vunpack.c.l.b16 %v9843
    %v10043 = vunpack.c.h.b16 %v9843
    %v10044 = vunpack.c.l.b16 %v9844
    %v10045 = vunpack.c.l.b16 %v9845
    %v10046 = vunpack.c.h.b16 %v9845
    %v10047 = vunpack.c.l.b16 %v9846
    %v10048 = vunpack.c.l.b16 %v9847
    %v10049 = vunpack.c.h.b16 %v9847
    %v10050 = vunpack.c.l.b16 %v9848
    %v10051 = vpack.c.b16 %v9946, %v9943
    %v10052 = vpack.c.b16 %v9947, %v9944
    %v10053 = vpack.c.b16 %v9948, %v9945
    %v10054 = vpack.c.b16 %v9952, %v9949
    %v10055 = vpack.c.b16 %v9953, %v9950
    %v10056 = vpack.c.b16 %v9954, %v9951
    %v10057 = vpack.c.b16 %v9958, %v9955
    %v10058 = vpack.c.b16 %v9959, %v9956
    %v10059 = vpack.c.b16 %v9960, %v9957
    %v10060 = vpack.c.b16 %v9964, %v9961
    %v10061 = vpack.c.b16 %v9965, %v9962
    %v10062 = vpack.c.b16 %v9966, %v9963
    %v10063 = vpack.c.b16 %v9970, %v9967
    %v10064 = vpack.c.b16 %v9971, %v9968
    %v10065 = vpack.c.b16 %v9972, %v9969
    %v10066 = vpack.c.b16 %v9976, %v9973
    %v10067 = vpack.c.b16 %v9977, %v9974
    %v10068 = vpack.c.b16 %v9978, %v9975
    %v10069 = vpack.c.b16 %v9982, %v9979
    %v10070 = vpack.c.b16 %v9983, %v9980
    %v10071 = vpack.c.b16 %v9984, %v9981
    %v10072 = vpack.c.b16 %v9988, %v9985
    %v10073 = vpack.c.b16 %v9989, %v9986
    %v10074 = vpack.c.b16 %v9990, %v9987
    %v10075 = vpack.c.b16 %v9994, %v9991
    %v10076 = vpack.c.b16 %v9995, %v9992
    %v10077 = vpack.c.b16 %v9996, %v9993
    %v10078 = vpack.c.b16 %v10000, %v9997
    %v10079 = vpack.c.b16 %v10001, %v9998
    %v10080 = vpack.c.b16 %v10002, %v9999
    %v10081 = vpack.c.b16 %v10006, %v10003
    %v10082 = vpack.c.b16 %v10007, %v10004
    %v10083 = vpack.c.b16 %v10008, %v10005
    %v10084 = vpack.c.b16 %v10012, %v10009
    %v10085 = vpack.c.b16 %v10013, %v10010
    %v10086 = vpack.c.b16 %v10014, %v10011
    %v10087 = vpack.c.b16 %v10018, %v10015
    %v10088 = vpack.c.b16 %v10019, %v10016
    %v10089 = vpack.c.b16 %v10020, %v10017
    %v10090 = vpack.c.b16 %v10024, %v10021
    %v10091 = vpack.c.b16 %v10025, %v10022
    %v10092 = vpack.c.b16 %v10026, %v10023
    %v10093 = vpack.c.b16 %v10030, %v10027
    %v10094 = vpack.c.b16 %v10031, %v10028
    %v10095 = vpack.c.b16 %v10032, %v10029
    %v10096 = vpack.c.b16 %v10036, %v10033
    %v10097 = vpack.c.b16 %v10037, %v10034
    %v10098 = vpack.c.b16 %v10038, %v10035
    %v10099 = vpack.c.b16 %v10042, %v10039
    %v10100 = vpack.c.b16 %v10043, %v10040
    %v10101 = vpack.c.b16 %v10044, %v10041
    %v10102 = vpack.c.b16 %v10048, %v10045
    %v10103 = vpack.c.b16 %v10049, %v10046
    %v10104 = vpack.c.b16 %v10050, %v10047
    %v10160 = vsel %vm1944, %v9863, 0
    %v10163 = vsel %vm1944, %v9866, 0
    %10165 = vmatpush.bf16.msra.mxu0 %v10072
    %10166 = vmatpush.bf16.msra.mxu0 %v10069
    %10167 = vmatpush.bf16.msra.mxu0 %v10066
    %10168 = vmatpush.bf16.msra.mxu0 %v10063
    %10169 = vmatpush.bf16.msra.mxu0 %v10060
    %10170 = vmatpush.bf16.msra.mxu0 %v10057
    %10171 = vmatpush.bf16.msra.mxu0 %v10054
    %10172 = vmatpush.bf16.msra.mxu0 %v10051
    %10173 = vmatmul.bf16.gmra.mxu0 %v9861
    %v10174 = vpop.f32.mrf.mxu0
    %v10175 = vadd.f32 0.0, %v10174
    %v10176 = vpop.f32.mrf.mxu0
    %v10177 = vadd.f32 0.0, %v10176
    %10178 = vmatmul.bf16.gmra.mxu0 %v9864
    %v10179 = vpop.f32.mrf.mxu0
    %v10180 = vadd.f32 0.0, %v10179
    %v10181 = vpop.f32.mrf.mxu0
    %v10182 = vadd.f32 0.0, %v10181
    %10183 = vdwg.mxu0
    %10184 = vmatpush.bf16.msra.mxu0 %v10096
    %10185 = vmatpush.bf16.msra.mxu0 %v10093
    %10186 = vmatpush.bf16.msra.mxu0 %v10090
    %10187 = vmatpush.bf16.msra.mxu0 %v10087
    %10188 = vmatpush.bf16.msra.mxu0 %v10084
    %10189 = vmatpush.bf16.msra.mxu0 %v10081
    %10190 = vmatpush.bf16.msra.mxu0 %v10078
    %10191 = vmatpush.bf16.msra.mxu0 %v10075
    %10192 = vmatmul.bf16.gmra.mxu0 %v9862
    %v10193 = vpop.f32.mrf.mxu0
    %v10194 = vadd.f32 %v10175, %v10193
    %v10195 = vpop.f32.mrf.mxu0
    %v10196 = vadd.f32 %v10177, %v10195
    %10197 = vmatmul.bf16.gmra.mxu0 %v9865
    %v10198 = vpop.f32.mrf.mxu0
    %v10199 = vadd.f32 %v10180, %v10198
    %v10200 = vpop.f32.mrf.mxu0
    %v10201 = vadd.f32 %v10182, %v10200
    %10202 = vdwg.mxu0
    %10203 = vmatpush.bf16.msra.mxu0 0
    %10204 = vmatpush.bf16.msra.mxu0 0
    %10205 = vmatpush.bf16.msra.mxu0 0
    %10206 = vmatpush.bf16.msra.mxu0 0
    %10207 = vmatpush.bf16.msra.mxu0 0
    %10208 = vmatpush.bf16.msra.mxu0 0
    %10209 = vmatpush.bf16.msra.mxu0 %v10102
    %10210 = vmatpush.bf16.msra.mxu0 %v10099
    %10211 = vmatmul.bf16.gmra.mxu0 %v10160
    %v10212 = vpop.f32.mrf.mxu0
    %v10213 = vadd.f32 %v10194, %v10212
    %v10214 = vpop.f32.mrf.mxu0
    %v10215 = vadd.f32 %v10196, %v10214
    %10216 = vmatmul.bf16.gmra.mxu0 %v10163
    %v10217 = vpop.f32.mrf.mxu0
    %v10218 = vadd.f32 %v10199, %v10217
    %v10219 = vpop.f32.mrf.mxu0
    %v10220 = vadd.f32 %v10201, %v10219
    %10221 = vdwg.mxu0
    %10222 = vmatpush.bf16.msra.mxu0 %v10073
    %10223 = vmatpush.bf16.msra.mxu0 %v10070
    %10224 = vmatpush.bf16.msra.mxu0 %v10067
    %10225 = vmatpush.bf16.msra.mxu0 %v10064
    %10226 = vmatpush.bf16.msra.mxu0 %v10061
    %10227 = vmatpush.bf16.msra.mxu0 %v10058
    %10228 = vmatpush.bf16.msra.mxu0 %v10055
    %10229 = vmatpush.bf16.msra.mxu0 %v10052
    %10230 = vmatmul.bf16.gmra.mxu0 %v9861
    %v10231 = vpop.f32.mrf.mxu0
    %v10232 = vadd.f32 0.0, %v10231
    %v10233 = vpop.f32.mrf.mxu0
    %v10234 = vadd.f32 0.0, %v10233
    %10235 = vmatmul.bf16.gmra.mxu0 %v9864
    %v10236 = vpop.f32.mrf.mxu0
    %v10237 = vadd.f32 0.0, %v10236
    %v10238 = vpop.f32.mrf.mxu0
    %v10239 = vadd.f32 0.0, %v10238
    %10240 = vdwg.mxu0
    %10241 = vmatpush.bf16.msra.mxu0 %v10097
    %10242 = vmatpush.bf16.msra.mxu0 %v10094
    %10243 = vmatpush.bf16.msra.mxu0 %v10091
    %10244 = vmatpush.bf16.msra.mxu0 %v10088
    %10245 = vmatpush.bf16.msra.mxu0 %v10085
    %10246 = vmatpush.bf16.msra.mxu0 %v10082
    %10247 = vmatpush.bf16.msra.mxu0 %v10079
    %10248 = vmatpush.bf16.msra.mxu0 %v10076
    %10249 = vmatmul.bf16.gmra.mxu0 %v9862
    %v10250 = vpop.f32.mrf.mxu0
    %v10251 = vadd.f32 %v10232, %v10250
    %v10252 = vpop.f32.mrf.mxu0
    %v10253 = vadd.f32 %v10234, %v10252
    %10254 = vmatmul.bf16.gmra.mxu0 %v9865
    %v10255 = vpop.f32.mrf.mxu0
    %v10256 = vadd.f32 %v10237, %v10255
    %v10257 = vpop.f32.mrf.mxu0
    %v10258 = vadd.f32 %v10239, %v10257
    %10259 = vdwg.mxu0
    %10260 = vmatpush.bf16.msra.mxu0 0
    %10261 = vmatpush.bf16.msra.mxu0 0
    %10262 = vmatpush.bf16.msra.mxu0 0
    %10263 = vmatpush.bf16.msra.mxu0 0
    %10264 = vmatpush.bf16.msra.mxu0 0
    %10265 = vmatpush.bf16.msra.mxu0 0
    %10266 = vmatpush.bf16.msra.mxu0 %v10103
    %10267 = vmatpush.bf16.msra.mxu0 %v10100
    %10268 = vmatmul.bf16.gmra.mxu0 %v10160
    %v10269 = vpop.f32.mrf.mxu0
    %v10270 = vadd.f32 %v10251, %v10269
    %v10271 = vpop.f32.mrf.mxu0
    %v10272 = vadd.f32 %v10253, %v10271
    %10273 = vmatmul.bf16.gmra.mxu0 %v10163
    %v10274 = vpop.f32.mrf.mxu0
    %v10275 = vadd.f32 %v10256, %v10274
    %v10276 = vpop.f32.mrf.mxu0
    %v10277 = vadd.f32 %v10258, %v10276
    %10278 = vdwg.mxu0
    %10279 = vmatpush.bf16.msra.mxu0 %v10074
    %10280 = vmatpush.bf16.msra.mxu0 %v10071
    %10281 = vmatpush.bf16.msra.mxu0 %v10068
    %10282 = vmatpush.bf16.msra.mxu0 %v10065
    %10283 = vmatpush.bf16.msra.mxu0 %v10062
    %10284 = vmatpush.bf16.msra.mxu0 %v10059
    %10285 = vmatpush.bf16.msra.mxu0 %v10056
    %10286 = vmatpush.bf16.msra.mxu0 %v10053
    %10287 = vmatmul.bf16.gmra.mxu0 %v9861
    %v10288 = vpop.f32.mrf.mxu0
    %v10289 = vadd.f32 0.0, %v10288
    %v10290 = vpop.f32.mrf.mxu0
    %v10291 = vadd.f32 0.0, %v10290
    %10292 = vmatmul.bf16.gmra.mxu0 %v9864
    %v10293 = vpop.f32.mrf.mxu0
    %v10294 = vadd.f32 0.0, %v10293
    %v10295 = vpop.f32.mrf.mxu0
    %v10296 = vadd.f32 0.0, %v10295
    %10297 = vdwg.mxu0
    %10298 = vmatpush.bf16.msra.mxu0 %v10098
    %10299 = vmatpush.bf16.msra.mxu0 %v10095
    %10300 = vmatpush.bf16.msra.mxu0 %v10092
    %10301 = vmatpush.bf16.msra.mxu0 %v10089
    %10302 = vmatpush.bf16.msra.mxu0 %v10086
    %10303 = vmatpush.bf16.msra.mxu0 %v10083
    %10304 = vmatpush.bf16.msra.mxu0 %v10080
    %10305 = vmatpush.bf16.msra.mxu0 %v10077
    %10306 = vmatmul.bf16.gmra.mxu0 %v9862
    %v10307 = vpop.f32.mrf.mxu0
    %v10308 = vadd.f32 %v10289, %v10307
    %v10309 = vpop.f32.mrf.mxu0
    %v10310 = vadd.f32 %v10291, %v10309
    %10311 = vmatmul.bf16.gmra.mxu0 %v9865
    %v10312 = vpop.f32.mrf.mxu0
    %v10313 = vadd.f32 %v10294, %v10312
    %v10314 = vpop.f32.mrf.mxu0
    %v10315 = vadd.f32 %v10296, %v10314
    %10316 = vdwg.mxu0
    %10317 = vmatpush.bf16.msra.mxu0 0
    %10318 = vmatpush.bf16.msra.mxu0 0
    %10319 = vmatpush.bf16.msra.mxu0 0
    %10320 = vmatpush.bf16.msra.mxu0 0
    %10321 = vmatpush.bf16.msra.mxu0 0
    %10322 = vmatpush.bf16.msra.mxu0 0
    %10323 = vmatpush.bf16.msra.mxu0 %v10104
    %10324 = vmatpush.bf16.msra.mxu0 %v10101
    %10325 = vmatmul.bf16.gmra.mxu0 %v10160
    %v10326 = vpop.f32.mrf.mxu0
    %v10327 = vadd.f32 %v10308, %v10326
    %v10328 = vpop.f32.mrf.mxu0
    %v10329 = vadd.f32 %v10310, %v10328
    %10330 = vmatmul.bf16.gmra.mxu0 %v10163
    %v10331 = vpop.f32.mrf.mxu0
    %v10332 = vadd.f32 %v10313, %v10331
    %v10333 = vpop.f32.mrf.mxu0
    %v10334 = vadd.f32 %v10315, %v10333
    %10335 = vdwg.mxu0
    %v10336 = vadd.f32 %v9720, %v10213
    %v10337 = vadd.f32 %v9721, %v10270
    %v10338 = vadd.f32 %v9722, %v10327
    %v10339 = vadd.f32 %v9723, %v10215
    %v10340 = vadd.f32 %v9724, %v10272
    %v10341 = vadd.f32 %v9725, %v10329
    %v10342 = vadd.f32 %v9726, %v10218
    %v10343 = vadd.f32 %v9727, %v10275
    %v10344 = vadd.f32 %v9728, %v10332
    %v10345 = vadd.f32 %v9729, %v10220
    %v10346 = vadd.f32 %v9730, %v10277
    %v10347 = vadd.f32 %v9731, %v10334
    %v10348 = vmax.f32 %v10336, 0.0
    %v10349 = vmax.f32 %v10337, 0.0
    %v10350 = vmax.f32 %v10338, 0.0
    %v10351 = vmax.f32 %v10339, 0.0
    %v10352 = vmax.f32 %v10340, 0.0
    %v10353 = vmax.f32 %v10341, 0.0
    %v10354 = vmax.f32 %v10342, 0.0
    %v10355 = vmax.f32 %v10343, 0.0
    %v10356 = vmax.f32 %v10344, 0.0
    %v10357 = vmax.f32 %v10345, 0.0
    %v10358 = vmax.f32 %v10346, 0.0
    %v10359 = vmax.f32 %v10347, 0.0
    %10360 = vst [vmem:[%s7] sm:$0xff] %v10348
    %10361 = vst [vmem:[%s7 + $0x8] sm:$0xff] %v10349
    %10362 = vst.msk [vmem:[%s7 + $0x10] sm:$0xff] %vm1944, %v10350
    %10363 = vst [vmem:[%s7 + $0x18] sm:$0xff] %v10351
    %10364 = vst [vmem:[%s7 + $0x20] sm:$0xff] %v10352
    %10365 = vst.msk [vmem:[%s7 + $0x28] sm:$0xff] %vm1944, %v10353
    %10366 = vst [vmem:[%s7 + $0x30] sm:$0xff] %v10354
    %10367 = vst [vmem:[%s7 + $0x38] sm:$0xff] %v10355
    %10368 = vst.msk [vmem:[%s7 + $0x40] sm:$0xff] %vm1944, %v10356
    %10369 = vst [vmem:[%s7 + $0x48] sm:$0xff] %v10357
    %10370 = vst [vmem:[%s7 + $0x50] sm:$0xff] %v10358
    %10371 = vst.msk [vmem:[%s7 + $0x58] sm:$0xff] %vm1944, %v10359
    // Predicated region
    $region54: #{sfcn_forward.1} parent=1 // pred_check
      _
    $region55: #{sfcn_forward.1} parent=1 // pred_check_branch
      %10373 = sbr.rel (0) target = $region57
    $region56: #{sfcn_forward.1} parent=1 // pred_region
      _
    $region57: #{sfcn_forward.1} parent=1 // pred_fallthru
      _
    // Predicated region
    $region58: #{sfcn_forward.1} parent=1 // pred_check
      _
    $region59: #{sfcn_forward.1} parent=1 // pred_check_branch
      %10375 = sbr.rel (0) target = $region61
    $region60: #{sfcn_forward.1} parent=1 // pred_region
      _
    $region61: #{sfcn_forward.1} parent=1 // pred_fallthru
      _
    %10376 = vsyncpa [#allocation5], 1
    %10377 = vsyncpa [#allocation7], 1
    %10378 = vsyncpa [#allocation10], 1
    %10379 = vsyncpa [#allocation13], 1

</llo_original>
